<compile_context>
chip_gen: v5e
topology: v5e:2x2
jax: 0.10.0
libtpu: 0.0.40
codegen_flags: <defaults>
</compile_context>

<pallas_src>
import jax
import jax.numpy as jnp
from jax.experimental import pallas as pl
from jax.experimental.pallas import tpu as pltpu

_LANE = 128   # lane width of one tap slot in the im2col matrix / padded weights
_LPAD = 8     # left zero-pad columns (a full sublane tile) in the padded buffers


# ----------------------------------------------------------------------------
# In-kernel helper: one Conv2d(3x3, pad=1) + folded BatchNorm + ReLU
# ----------------------------------------------------------------------------
def _conv3x3_bn_relu(pad_ref, col_ref, w_ref, s_ref, b_ref, H, W, Cin):
    """pad_ref: (H+2, W+_LPAD+1, Cin) f32 scratch, zeroed, interior stored at
                [1:H+1, _LPAD:_LPAD+W, :]  (tile-aligned interior => zero ring).
       col_ref: (H*W, 9*128) f32 im2col scratch; tap t=3*dy+dx occupies lanes
                [t*128, t*128+Cin); remaining lanes stay zero.
       w_ref:   (9*128, Cout) bf16 weights; rows outside the tap slots are zero.
       s_ref/b_ref: (1, Cout) f32 folded BatchNorm scale / bias.
       Returns (H*W, Cout) f32."""
    pad = pad_ref[...]                                    # full VMEM load
    for dy in range(3):                                   # 9 taps, static unroll
        for dx in range(3):
            t = dy * 3 + dx
            patch = pad[dy:dy + H, _LPAD - 1 + dx:_LPAD - 1 + dx + W, :]
            col_ref[:, t * _LANE:t * _LANE + Cin] = patch.reshape(H * W, Cin)
    acc = jnp.dot(col_ref[...].astype(jnp.bfloat16), w_ref[...],
                  preferred_element_type=jnp.float32)     # single wide-K matmul
    return jnp.maximum(acc * s_ref[...] + b_ref[...], 0.0)


# ----------------------------------------------------------------------------
# Fused kernel: (Conv3x3 + BN + ReLU) x 2  ==  one "contract block"
# ----------------------------------------------------------------------------
def _double_conv_kernel(x_ref, w0_ref, s0_ref, b0_ref, w1_ref, s1_ref, b1_ref,
                        o_ref, pad0, pad1, col):
    _, H, W, C0 = x_ref.shape
    C1 = w0_ref.shape[-1]
    C2 = w1_ref.shape[-1]

    # Zero scratch every grid step: padded borders must be 0 and unused im2col
    # lanes must be finite (they meet zero weight rows in the matmul).
    pad0[...] = jnp.zeros_like(pad0)
    pad1[...] = jnp.zeros_like(pad1)
    col[...] = jnp.zeros_like(col)

    # --- layer 0: in-kernel zero padding (aligned interior store) + conv ---
    pad0[1:H + 1, _LPAD:_LPAD + W, :] = x_ref[0]
    a = _conv3x3_bn_relu(pad0, col, w0_ref, s0_ref, b0_ref, H, W, C0)

    # --- layer 1: activation fed straight back through VMEM ---
    pad1[1:H + 1, _LPAD:_LPAD + W, :] = a.reshape(H, W, C1)
    y = _conv3x3_bn_relu(pad1, col, w1_ref, s1_ref, b1_ref, H, W, C1)

    o_ref[0] = y.reshape(H, W, C2).astype(o_ref.dtype)


def double_conv_block(x, wp0, s0, b0, wp1, s1, b1):
    """x: (N,H,W,C0) f32 NHWC; wp*: (9*128, C) bf16; s*/b*: (1, C) f32."""
    N, H, W, C0 = x.shape
    C1 = wp0.shape[-1]
    C2 = wp1.shape[-1]
    return pl.pallas_call(
        _double_conv_kernel,
        out_shape=jax.ShapeDtypeStruct((N, H, W, C2), jnp.float32),
        grid=(N,),
        in_specs=[
            pl.BlockSpec((1, H, W, C0), lambda n: (n, 0, 0, 0)),
            pl.BlockSpec((9 * _LANE, C1), lambda n: (0, 0)),
            pl.BlockSpec((1, C1), lambda n: (0, 0)),
            pl.BlockSpec((1, C1), lambda n: (0, 0)),
            pl.BlockSpec((9 * _LANE, C2), lambda n: (0, 0)),
            pl.BlockSpec((1, C2), lambda n: (0, 0)),
            pl.BlockSpec((1, C2), lambda n: (0, 0)),
        ],
        out_specs=pl.BlockSpec((1, H, W, C2), lambda n: (n, 0, 0, 0)),
        scratch_shapes=[
            pltpu.VMEM((H + 2, W + _LPAD + 1, C0), jnp.float32),   # padded input
            pltpu.VMEM((H + 2, W + _LPAD + 1, C1), jnp.float32),   # padded mid act
            pltpu.VMEM((H * W, 9 * _LANE), jnp.float32),           # im2col matrix
        ],
        compiler_params=pltpu.CompilerParams(
            dimension_semantics=("parallel",)),                    # batch -> 2 TCs on v7x
    )(x, wp0, s0, b0, wp1, s1, b1)


# ----------------------------------------------------------------------------
# Parameters (deterministic synthetic init, mirroring the PyTorch module shapes)
# ----------------------------------------------------------------------------
def init_conv_bn(key, cin, cout, eps=1e-5):
    kw, kb, kg, kbe, km, kv = jax.random.split(key, 6)
    fan_in = 9 * cin
    w = jax.random.normal(kw, (3, 3, cin, cout), jnp.float32) * (2.0 / fan_in) ** 0.5
    conv_b = 0.01 * jax.random.normal(kb, (cout,), jnp.float32)
    gamma = 1.0 + 0.1 * jax.random.normal(kg, (cout,), jnp.float32)
    beta = 0.1 * jax.random.normal(kbe, (cout,), jnp.float32)
    r_mean = 0.1 * jax.random.normal(km, (cout,), jnp.float32)
    r_var = 1.0 + 0.1 * jax.random.uniform(kv, (cout,), jnp.float32)
    scale = gamma / jnp.sqrt(r_var + eps)
    bias = beta + (conv_b - r_mean) * scale
    return w, scale, bias


def prep_layer(w, scale, bias):
    """Pack (3,3,Cin,Cout) HWIO weights into 128-lane tap slots; cast to bf16."""
    cin, cout = w.shape[2], w.shape[3]
    wp = jnp.zeros((9, _LANE, cout), jnp.float32)
    wp = wp.at[:, :cin, :].set(w.reshape(9, cin, cout))
    return (wp.reshape(9 * _LANE, cout).astype(jnp.bfloat16),
            scale.reshape(1, cout), bias.reshape(1, cout))


# ----------------------------------------------------------------------------
# Full forward (matches UNet_Encoder.forward): returns (x2, x1) in NCHW
# ----------------------------------------------------------------------------
def unet_encoder_forward(x_nchw, params):
    x = jnp.transpose(x_nchw, (0, 2, 3, 1))                  # NCHW -> NHWC (tiny)
    x1 = double_conv_block(x, *params["enc1"])               # (N,16,16,64)
    N, H, W, C = x1.shape
    pooled = x1.reshape(N, H // 2, 2, W // 2, 2, C).max(axis=(2, 4))  # MaxPool2d(2)
    x2 = double_conv_block(pooled, *params["enc2"])          # (N,8,8,128)
    return (jnp.transpose(x2, (0, 3, 1, 2)),                 # NHWC -> NCHW
            jnp.transpose(x1, (0, 3, 1, 2)))


# Pure-JAX reference for correctness checking
def ref_forward(x_nchw, raw_params):
    x = jnp.transpose(x_nchw, (0, 2, 3, 1))

    def cbr(x, w, scale, bias):
        w = w.astype(jnp.bfloat16).astype(jnp.float32)       # match kernel weights
        y = jax.lax.conv_general_dilated(
            x, w, (1, 1), "SAME",
            dimension_numbers=("NHWC", "HWIO", "NHWC"),
            precision=jax.lax.Precision.HIGHEST)
        return jnp.maximum(y * scale + bias, 0.0)

    def pool(x):
        N, H, W, C = x.shape
        return x.reshape(N, H // 2, 2, W // 2, 2, C).max(axis=(2, 4))

    h = cbr(x, *raw_params["enc1_0"])
    x1 = cbr(h, *raw_params["enc1_1"])
    h = cbr(pool(x1), *raw_params["enc2_0"])
    x2 = cbr(h, *raw_params["enc2_1"])
    return jnp.transpose(x2, (0, 3, 1, 2)), jnp.transpose(x1, (0, 3, 1, 2))


if __name__ == "__main__":
    key = jax.random.PRNGKey(0)
    kx, k1, k2, k3, k4 = jax.random.split(key, 5)

    in_channels = 4
    x = jax.random.normal(kx, (2, in_channels, 16, 16), jnp.float32)  # NCHW

    raw = {
        "enc1_0": init_conv_bn(k1, in_channels, 64),
        "enc1_1": init_conv_bn(k2, 64, 64),
        "enc2_0": init_conv_bn(k3, 64, 128),
        "enc2_1": init_conv_bn(k4, 128, 128),
    }
    params = {
        "enc1": prep_layer(*raw["enc1_0"]) + prep_layer(*raw["enc1_1"]),
        "enc2": prep_layer(*raw["enc2_0"]) + prep_layer(*raw["enc2_1"]),
    }

    fwd = jax.jit(unet_encoder_forward)
    x2, x1 = fwd(x, params)
    jax.block_until_ready((x2, x1))

    assert x1.shape == (2, 64, 16, 16), x1.shape
    assert x2.shape == (2, 128, 8, 8), x2.shape

    r2, r1 = ref_forward(x, raw)
    assert jnp.allclose(x1, r1, rtol=5e-2, atol=5e-2), float(jnp.max(jnp.abs(x1 - r1)))
    assert jnp.allclose(x2, r2, rtol=5e-2, atol=5e-2), float(jnp.max(jnp.abs(x2 - r2)))

    print("KERNEL_OK")
</pallas_src>

<mosaic_0001>
module attributes {stable_mosaic.version = 11 : i64} {
  func.func @_double_conv_kernel(%arg0: i32, %arg1: memref<1x16x16x4xf32, #tpu.memory_space<vmem>>, %arg2: memref<1152x64xbf16, #tpu.memory_space<vmem>>, %arg3: memref<1x64xf32, #tpu.memory_space<vmem>>, %arg4: memref<1x64xf32, #tpu.memory_space<vmem>>, %arg5: memref<1152x64xbf16, #tpu.memory_space<vmem>>, %arg6: memref<1x64xf32, #tpu.memory_space<vmem>>, %arg7: memref<1x64xf32, #tpu.memory_space<vmem>>, %arg8: memref<1x16x16x64xf32, #tpu.memory_space<vmem>>, %arg9: memref<18x25x4xf32, #tpu.memory_space<vmem>>, %arg10: memref<18x25x64xf32, #tpu.memory_space<vmem>>, %arg11: memref<256x1152xf32, #tpu.memory_space<vmem>>) attributes {dimension_semantics = [#tpu.dimension_semantics<parallel>], iteration_bounds = array<i64: 2>, scalar_prefetch = 0 : i64, scratch_operands = 3 : i64, tpu.core_type = #tpu.core_type<tc>, window_params = [{transform_indices = @transform_0, window_bounds = array<i64: 1, 16, 16, 4>}, {pipeline_mode = #tpu.pipeline_mode<synchronous>, transform_indices = @transform_1, window_bounds = array<i64: 1152, 64>}, {pipeline_mode = #tpu.pipeline_mode<synchronous>, transform_indices = @transform_2, window_bounds = array<i64: 1, 64>}, {pipeline_mode = #tpu.pipeline_mode<synchronous>, transform_indices = @transform_3, window_bounds = array<i64: 1, 64>}, {pipeline_mode = #tpu.pipeline_mode<synchronous>, transform_indices = @transform_4, window_bounds = array<i64: 1152, 64>}, {pipeline_mode = #tpu.pipeline_mode<synchronous>, transform_indices = @transform_5, window_bounds = array<i64: 1, 64>}, {pipeline_mode = #tpu.pipeline_mode<synchronous>, transform_indices = @transform_6, window_bounds = array<i64: 1, 64>}, {transform_indices = @transform_7, window_bounds = array<i64: 1, 16, 16, 64>}]} {
    %cst = arith.constant 0.000000e+00 : f32
    %0 = vector.broadcast %cst : f32 to vector<18x25x4xf32>
    %c0 = arith.constant 0 : index
    %c0_0 = arith.constant 0 : index
    %c0_1 = arith.constant 0 : index
    %1 = vector.load %arg9[%c0, %c0_0, %c0_1] : memref<18x25x4xf32, #tpu.memory_space<vmem>>, vector<18x25x4xf32>
    tpu.vector_store %arg9[%c0, %c0_0, %c0_1], %0 {strides = array<i32>} : memref<18x25x4xf32, #tpu.memory_space<vmem>>, vector<18x25x4xf32>,
    %cst_2 = arith.constant 0.000000e+00 : f32
    %2 = vector.broadcast %cst_2 : f32 to vector<18x25x64xf32>
    %c0_3 = arith.constant 0 : index
    %c0_4 = arith.constant 0 : index
    %c0_5 = arith.constant 0 : index
    %3 = vector.load %arg10[%c0_3, %c0_4, %c0_5] : memref<18x25x64xf32, #tpu.memory_space<vmem>>, vector<18x25x64xf32>
    tpu.vector_store %arg10[%c0_3, %c0_4, %c0_5], %2 {strides = array<i32>} : memref<18x25x64xf32, #tpu.memory_space<vmem>>, vector<18x25x64xf32>,
    %cst_6 = arith.constant 0.000000e+00 : f32
    %4 = vector.broadcast %cst_6 : f32 to vector<256x1152xf32>
    %c0_7 = arith.constant 0 : index
    %c0_8 = arith.constant 0 : index
    %5 = vector.load %arg11[%c0_7, %c0_8] : memref<256x1152xf32, #tpu.memory_space<vmem>>, vector<256x1152xf32>
    tpu.vector_store %arg11[%c0_7, %c0_8], %4 {strides = array<i32>} : memref<256x1152xf32, #tpu.memory_space<vmem>>, vector<256x1152xf32>,
    %c0_9 = arith.constant 0 : index
    %c0_10 = arith.constant 0 : index
    %c0_11 = arith.constant 0 : index
    %c0_12 = arith.constant 0 : index
    %6 = vector.load %arg1[%c0_9, %c0_10, %c0_11, %c0_12] : memref<1x16x16x4xf32, #tpu.memory_space<vmem>>, vector<1x16x16x4xf32>
    %7 = vector.shape_cast %6 : vector<1x16x16x4xf32> to vector<16x16x4xf32>
    %c1 = arith.constant 1 : index
    %c8 = arith.constant 8 : index
    %c0_13 = arith.constant 0 : index
    %8 = vector.load %arg9[%c1, %c8, %c0_13] : memref<18x25x4xf32, #tpu.memory_space<vmem>>, vector<16x16x4xf32>
    tpu.vector_store %arg9[%c1, %c8, %c0_13], %7 {strides = array<i32>} : memref<18x25x4xf32, #tpu.memory_space<vmem>>, vector<16x16x4xf32>,
    %c0_14 = arith.constant 0 : index
    %c0_15 = arith.constant 0 : index
    %c0_16 = arith.constant 0 : index
    %9 = vector.load %arg9[%c0_14, %c0_15, %c0_16] : memref<18x25x4xf32, #tpu.memory_space<vmem>>, vector<18x25x4xf32>
    %10 = vector.extract_strided_slice %9 {offsets = [0, 7, 0], sizes = [16, 16, 4], strides = [1, 1, 1]} : vector<18x25x4xf32> to vector<16x16x4xf32>
    %11 = vector.shape_cast %10 : vector<16x16x4xf32> to vector<256x4xf32>
    %c0_17 = arith.constant 0 : index
    %c0_18 = arith.constant 0 : index
    %12 = vector.load %arg11[%c0_17, %c0_18] : memref<256x1152xf32, #tpu.memory_space<vmem>>, vector<256x4xf32>
    tpu.vector_store %arg11[%c0_17, %c0_18], %11 {strides = array<i32>} : memref<256x1152xf32, #tpu.memory_space<vmem>>, vector<256x4xf32>,
    %13 = vector.extract_strided_slice %9 {offsets = [0, 8, 0], sizes = [16, 16, 4], strides = [1, 1, 1]} : vector<18x25x4xf32> to vector<16x16x4xf32>
    %14 = vector.shape_cast %13 : vector<16x16x4xf32> to vector<256x4xf32>
    %c0_19 = arith.constant 0 : index
    %c128 = arith.constant 128 : index
    %15 = vector.load %arg11[%c0_19, %c128] : memref<256x1152xf32, #tpu.memory_space<vmem>>, vector<256x4xf32>
    tpu.vector_store %arg11[%c0_19, %c128], %14 {strides = array<i32>} : memref<256x1152xf32, #tpu.memory_space<vmem>>, vector<256x4xf32>,
    %16 = vector.extract_strided_slice %9 {offsets = [0, 9, 0], sizes = [16, 16, 4], strides = [1, 1, 1]} : vector<18x25x4xf32> to vector<16x16x4xf32>
    %17 = vector.shape_cast %16 : vector<16x16x4xf32> to vector<256x4xf32>
    %c0_20 = arith.constant 0 : index
    %c256 = arith.constant 256 : index
    %18 = vector.load %arg11[%c0_20, %c256] : memref<256x1152xf32, #tpu.memory_space<vmem>>, vector<256x4xf32>
    tpu.vector_store %arg11[%c0_20, %c256], %17 {strides = array<i32>} : memref<256x1152xf32, #tpu.memory_space<vmem>>, vector<256x4xf32>,
    %19 = vector.extract_strided_slice %9 {offsets = [1, 7, 0], sizes = [16, 16, 4], strides = [1, 1, 1]} : vector<18x25x4xf32> to vector<16x16x4xf32>
    %20 = vector.shape_cast %19 : vector<16x16x4xf32> to vector<256x4xf32>
    %c0_21 = arith.constant 0 : index
    %c384 = arith.constant 384 : index
    %21 = vector.load %arg11[%c0_21, %c384] : memref<256x1152xf32, #tpu.memory_space<vmem>>, vector<256x4xf32>
    tpu.vector_store %arg11[%c0_21, %c384], %20 {strides = array<i32>} : memref<256x1152xf32, #tpu.memory_space<vmem>>, vector<256x4xf32>,
    %22 = vector.extract_strided_slice %9 {offsets = [1, 8, 0], sizes = [16, 16, 4], strides = [1, 1, 1]} : vector<18x25x4xf32> to vector<16x16x4xf32>
    %23 = vector.shape_cast %22 : vector<16x16x4xf32> to vector<256x4xf32>
    %c0_22 = arith.constant 0 : index
    %c512 = arith.constant 512 : index
    %24 = vector.load %arg11[%c0_22, %c512] : memref<256x1152xf32, #tpu.memory_space<vmem>>, vector<256x4xf32>
    tpu.vector_store %arg11[%c0_22, %c512], %23 {strides = array<i32>} : memref<256x1152xf32, #tpu.memory_space<vmem>>, vector<256x4xf32>,
    %25 = vector.extract_strided_slice %9 {offsets = [1, 9, 0], sizes = [16, 16, 4], strides = [1, 1, 1]} : vector<18x25x4xf32> to vector<16x16x4xf32>
    %26 = vector.shape_cast %25 : vector<16x16x4xf32> to vector<256x4xf32>
    %c0_23 = arith.constant 0 : index
    %c640 = arith.constant 640 : index
    %27 = vector.load %arg11[%c0_23, %c640] : memref<256x1152xf32, #tpu.memory_space<vmem>>, vector<256x4xf32>
    tpu.vector_store %arg11[%c0_23, %c640], %26 {strides = array<i32>} : memref<256x1152xf32, #tpu.memory_space<vmem>>, vector<256x4xf32>,
    %28 = vector.extract_strided_slice %9 {offsets = [2, 7, 0], sizes = [16, 16, 4], strides = [1, 1, 1]} : vector<18x25x4xf32> to vector<16x16x4xf32>
    %29 = vector.shape_cast %28 : vector<16x16x4xf32> to vector<256x4xf32>
    %c0_24 = arith.constant 0 : index
    %c768 = arith.constant 768 : index
    %30 = vector.load %arg11[%c0_24, %c768] : memref<256x1152xf32, #tpu.memory_space<vmem>>, vector<256x4xf32>
    tpu.vector_store %arg11[%c0_24, %c768], %29 {strides = array<i32>} : memref<256x1152xf32, #tpu.memory_space<vmem>>, vector<256x4xf32>,
    %31 = vector.extract_strided_slice %9 {offsets = [2, 8, 0], sizes = [16, 16, 4], strides = [1, 1, 1]} : vector<18x25x4xf32> to vector<16x16x4xf32>
    %32 = vector.shape_cast %31 : vector<16x16x4xf32> to vector<256x4xf32>
    %c0_25 = arith.constant 0 : index
    %c896 = arith.constant 896 : index
    %33 = vector.load %arg11[%c0_25, %c896] : memref<256x1152xf32, #tpu.memory_space<vmem>>, vector<256x4xf32>
    tpu.vector_store %arg11[%c0_25, %c896], %32 {strides = array<i32>} : memref<256x1152xf32, #tpu.memory_space<vmem>>, vector<256x4xf32>,
    %34 = vector.extract_strided_slice %9 {offsets = [2, 9, 0], sizes = [16, 16, 4], strides = [1, 1, 1]} : vector<18x25x4xf32> to vector<16x16x4xf32>
    %35 = vector.shape_cast %34 : vector<16x16x4xf32> to vector<256x4xf32>
    %c0_26 = arith.constant 0 : index
    %c1024 = arith.constant 1024 : index
    %36 = vector.load %arg11[%c0_26, %c1024] : memref<256x1152xf32, #tpu.memory_space<vmem>>, vector<256x4xf32>
    tpu.vector_store %arg11[%c0_26, %c1024], %35 {strides = array<i32>} : memref<256x1152xf32, #tpu.memory_space<vmem>>, vector<256x4xf32>,
    %c0_27 = arith.constant 0 : index
    %c0_28 = arith.constant 0 : index
    %37 = vector.load %arg11[%c0_27, %c0_28] : memref<256x1152xf32, #tpu.memory_space<vmem>>, vector<256x1152xf32>
    %38 = arith.truncf %37 : vector<256x1152xf32> to vector<256x1152xbf16>
    %c0_29 = arith.constant 0 : index
    %c0_30 = arith.constant 0 : index
    %39 = vector.load %arg2[%c0_29, %c0_30] : memref<1152x64xbf16, #tpu.memory_space<vmem>>, vector<1152x64xbf16>
    %cst_31 = arith.constant dense<0.000000e+00> : vector<256x64xf32>
    %40 = tpu.matmul %38, %39, %cst_31 {dimension_numbers = #tpu.dot_dimension_numbers<[1], [0], [0], [1], [0, 0, 1, 1], [], []>} : vector<256x1152xbf16>, vector<1152x64xbf16>, vector<256x64xf32> -> vector<256x64xf32>
    %c0_32 = arith.constant 0 : index
    %c0_33 = arith.constant 0 : index
    %41 = vector.load %arg3[%c0_32, %c0_33] : memref<1x64xf32, #tpu.memory_space<vmem>>, vector<1x64xf32>
    %42 = vector.broadcast %41 : vector<1x64xf32> to vector<256x64xf32>
    %43 = arith.mulf %40, %42 : vector<256x64xf32>
    %c0_34 = arith.constant 0 : index
    %c0_35 = arith.constant 0 : index
    %44 = vector.load %arg4[%c0_34, %c0_35] : memref<1x64xf32, #tpu.memory_space<vmem>>, vector<1x64xf32>
    %45 = vector.broadcast %44 : vector<1x64xf32> to vector<256x64xf32>
    %46 = arith.addf %43, %45 : vector<256x64xf32>
    %cst_36 = arith.constant 0.000000e+00 : f32
    %47 = vector.broadcast %cst_36 : f32 to vector<256x64xf32>
    %48 = arith.maximumf %46, %47 : vector<256x64xf32>
    %49 = vector.shape_cast %48 : vector<256x64xf32> to vector<16x16x64xf32>
    %c1_37 = arith.constant 1 : index
    %c8_38 = arith.constant 8 : index
    %c0_39 = arith.constant 0 : index
    %50 = vector.load %arg10[%c1_37, %c8_38, %c0_39] : memref<18x25x64xf32, #tpu.memory_space<vmem>>, vector<16x16x64xf32>
    tpu.vector_store %arg10[%c1_37, %c8_38, %c0_39], %49 {strides = array<i32>} : memref<18x25x64xf32, #tpu.memory_space<vmem>>, vector<16x16x64xf32>,
    %c0_40 = arith.constant 0 : index
    %c0_41 = arith.constant 0 : index
    %c0_42 = arith.constant 0 : index
    %51 = vector.load %arg10[%c0_40, %c0_41, %c0_42] : memref<18x25x64xf32, #tpu.memory_space<vmem>>, vector<18x25x64xf32>
    %52 = vector.extract_strided_slice %51 {offsets = [0, 7, 0], sizes = [16, 16, 64], strides = [1, 1, 1]} : vector<18x25x64xf32> to vector<16x16x64xf32>
    %53 = vector.shape_cast %52 : vector<16x16x64xf32> to vector<256x64xf32>
    %c0_43 = arith.constant 0 : index
    %c0_44 = arith.constant 0 : index
    %54 = vector.load %arg11[%c0_43, %c0_44] : memref<256x1152xf32, #tpu.memory_space<vmem>>, vector<256x64xf32>
    tpu.vector_store %arg11[%c0_43, %c0_44], %53 {strides = array<i32>} : memref<256x1152xf32, #tpu.memory_space<vmem>>, vector<256x64xf32>,
    %55 = vector.extract_strided_slice %51 {offsets = [0, 8, 0], sizes = [16, 16, 64], strides = [1, 1, 1]} : vector<18x25x64xf32> to vector<16x16x64xf32>
    %56 = vector.shape_cast %55 : vector<16x16x64xf32> to vector<256x64xf32>
    %c0_45 = arith.constant 0 : index
    %c128_46 = arith.constant 128 : index
    %57 = vector.load %arg11[%c0_45, %c128_46] : memref<256x1152xf32, #tpu.memory_space<vmem>>, vector<256x64xf32>
    tpu.vector_store %arg11[%c0_45, %c128_46], %56 {strides = array<i32>} : memref<256x1152xf32, #tpu.memory_space<vmem>>, vector<256x64xf32>,
    %58 = vector.extract_strided_slice %51 {offsets = [0, 9, 0], sizes = [16, 16, 64], strides = [1, 1, 1]} : vector<18x25x64xf32> to vector<16x16x64xf32>
    %59 = vector.shape_cast %58 : vector<16x16x64xf32> to vector<256x64xf32>
    %c0_47 = arith.constant 0 : index
    %c256_48 = arith.constant 256 : index
    %60 = vector.load %arg11[%c0_47, %c256_48] : memref<256x1152xf32, #tpu.memory_space<vmem>>, vector<256x64xf32>
    tpu.vector_store %arg11[%c0_47, %c256_48], %59 {strides = array<i32>} : memref<256x1152xf32, #tpu.memory_space<vmem>>, vector<256x64xf32>,
    %61 = vector.extract_strided_slice %51 {offsets = [1, 7, 0], sizes = [16, 16, 64], strides = [1, 1, 1]} : vector<18x25x64xf32> to vector<16x16x64xf32>
    %62 = vector.shape_cast %61 : vector<16x16x64xf32> to vector<256x64xf32>
    %c0_49 = arith.constant 0 : index
    %c384_50 = arith.constant 384 : index
    %63 = vector.load %arg11[%c0_49, %c384_50] : memref<256x1152xf32, #tpu.memory_space<vmem>>, vector<256x64xf32>
    tpu.vector_store %arg11[%c0_49, %c384_50], %62 {strides = array<i32>} : memref<256x1152xf32, #tpu.memory_space<vmem>>, vector<256x64xf32>,
    %64 = vector.extract_strided_slice %51 {offsets = [1, 8, 0], sizes = [16, 16, 64], strides = [1, 1, 1]} : vector<18x25x64xf32> to vector<16x16x64xf32>
    %65 = vector.shape_cast %64 : vector<16x16x64xf32> to vector<256x64xf32>
    %c0_51 = arith.constant 0 : index
    %c512_52 = arith.constant 512 : index
    %66 = vector.load %arg11[%c0_51, %c512_52] : memref<256x1152xf32, #tpu.memory_space<vmem>>, vector<256x64xf32>
    tpu.vector_store %arg11[%c0_51, %c512_52], %65 {strides = array<i32>} : memref<256x1152xf32, #tpu.memory_space<vmem>>, vector<256x64xf32>,
    %67 = vector.extract_strided_slice %51 {offsets = [1, 9, 0], sizes = [16, 16, 64], strides = [1, 1, 1]} : vector<18x25x64xf32> to vector<16x16x64xf32>
    %68 = vector.shape_cast %67 : vector<16x16x64xf32> to vector<256x64xf32>
    %c0_53 = arith.constant 0 : index
    %c640_54 = arith.constant 640 : index
    %69 = vector.load %arg11[%c0_53, %c640_54] : memref<256x1152xf32, #tpu.memory_space<vmem>>, vector<256x64xf32>
    tpu.vector_store %arg11[%c0_53, %c640_54], %68 {strides = array<i32>} : memref<256x1152xf32, #tpu.memory_space<vmem>>, vector<256x64xf32>,
    %70 = vector.extract_strided_slice %51 {offsets = [2, 7, 0], sizes = [16, 16, 64], strides = [1, 1, 1]} : vector<18x25x64xf32> to vector<16x16x64xf32>
    %71 = vector.shape_cast %70 : vector<16x16x64xf32> to vector<256x64xf32>
    %c0_55 = arith.constant 0 : index
    %c768_56 = arith.constant 768 : index
    %72 = vector.load %arg11[%c0_55, %c768_56] : memref<256x1152xf32, #tpu.memory_space<vmem>>, vector<256x64xf32>
    tpu.vector_store %arg11[%c0_55, %c768_56], %71 {strides = array<i32>} : memref<256x1152xf32, #tpu.memory_space<vmem>>, vector<256x64xf32>,
    %73 = vector.extract_strided_slice %51 {offsets = [2, 8, 0], sizes = [16, 16, 64], strides = [1, 1, 1]} : vector<18x25x64xf32> to vector<16x16x64xf32>
    %74 = vector.shape_cast %73 : vector<16x16x64xf32> to vector<256x64xf32>
    %c0_57 = arith.constant 0 : index
    %c896_58 = arith.constant 896 : index
    %75 = vector.load %arg11[%c0_57, %c896_58] : memref<256x1152xf32, #tpu.memory_space<vmem>>, vector<256x64xf32>
    tpu.vector_store %arg11[%c0_57, %c896_58], %74 {strides = array<i32>} : memref<256x1152xf32, #tpu.memory_space<vmem>>, vector<256x64xf32>,
    %76 = vector.extract_strided_slice %51 {offsets = [2, 9, 0], sizes = [16, 16, 64], strides = [1, 1, 1]} : vector<18x25x64xf32> to vector<16x16x64xf32>
    %77 = vector.shape_cast %76 : vector<16x16x64xf32> to vector<256x64xf32>
    %c0_59 = arith.constant 0 : index
    %c1024_60 = arith.constant 1024 : index
    %78 = vector.load %arg11[%c0_59, %c1024_60] : memref<256x1152xf32, #tpu.memory_space<vmem>>, vector<256x64xf32>
    tpu.vector_store %arg11[%c0_59, %c1024_60], %77 {strides = array<i32>} : memref<256x1152xf32, #tpu.memory_space<vmem>>, vector<256x64xf32>,
    %c0_61 = arith.constant 0 : index
    %c0_62 = arith.constant 0 : index
    %79 = vector.load %arg11[%c0_61, %c0_62] : memref<256x1152xf32, #tpu.memory_space<vmem>>, vector<256x1152xf32>
    %80 = arith.truncf %79 : vector<256x1152xf32> to vector<256x1152xbf16>
    %c0_63 = arith.constant 0 : index
    %c0_64 = arith.constant 0 : index
    %81 = vector.load %arg5[%c0_63, %c0_64] : memref<1152x64xbf16, #tpu.memory_space<vmem>>, vector<1152x64xbf16>
    %cst_65 = arith.constant dense<0.000000e+00> : vector<256x64xf32>
    %82 = tpu.matmul %80, %81, %cst_65 {dimension_numbers = #tpu.dot_dimension_numbers<[1], [0], [0], [1], [0, 0, 1, 1], [], []>} : vector<256x1152xbf16>, vector<1152x64xbf16>, vector<256x64xf32> -> vector<256x64xf32>
    %c0_66 = arith.constant 0 : index
    %c0_67 = arith.constant 0 : index
    %83 = vector.load %arg6[%c0_66, %c0_67] : memref<1x64xf32, #tpu.memory_space<vmem>>, vector<1x64xf32>
    %84 = vector.broadcast %83 : vector<1x64xf32> to vector<256x64xf32>
    %85 = arith.mulf %82, %84 : vector<256x64xf32>
    %c0_68 = arith.constant 0 : index
    %c0_69 = arith.constant 0 : index
    %86 = vector.load %arg7[%c0_68, %c0_69] : memref<1x64xf32, #tpu.memory_space<vmem>>, vector<1x64xf32>
    %87 = vector.broadcast %86 : vector<1x64xf32> to vector<256x64xf32>
    %88 = arith.addf %85, %87 : vector<256x64xf32>
    %cst_70 = arith.constant 0.000000e+00 : f32
    %89 = vector.broadcast %cst_70 : f32 to vector<256x64xf32>
    %90 = arith.maximumf %88, %89 : vector<256x64xf32>
    %91 = vector.shape_cast %90 : vector<256x64xf32> to vector<16x16x64xf32>
    %c0_71 = arith.constant 0 : index
    %c0_72 = arith.constant 0 : index
    %c0_73 = arith.constant 0 : index
    %c0_74 = arith.constant 0 : index
    %92 = vector.load %arg8[%c0_71, %c0_72, %c0_73, %c0_74] : memref<1x16x16x64xf32, #tpu.memory_space<vmem>>, vector<1x16x16x64xf32>
    %93 = vector.shape_cast %92 : vector<1x16x16x64xf32> to vector<16x16x64xf32>
    %94 = vector.shape_cast %91 : vector<16x16x64xf32> to vector<1x16x16x64xf32>
    tpu.vector_store %arg8[%c0_71, %c0_72, %c0_73, %c0_74], %94 {strides = array<i32>} : memref<1x16x16x64xf32, #tpu.memory_space<vmem>>, vector<1x16x16x64xf32>,
    return
  }
  func.func @transform_0(%arg0: i32) -> (i32, i32, i32, i32) {
    %c0_i32 = arith.constant 0 : i32
    %c0_i32_0 = arith.constant 0 : i32
    %c0_i32_1 = arith.constant 0 : i32
    %c0_i32_2 = arith.constant 0 : i32
    return %arg0, %c0_i32, %c0_i32_0, %c0_i32_1 : i32, i32, i32, i32
  }
  func.func @transform_1(%arg0: i32) -> (i32, i32) {
    %c0_i32 = arith.constant 0 : i32
    %c0_i32_0 = arith.constant 0 : i32
    %c0_i32_1 = arith.constant 0 : i32
    return %c0_i32, %c0_i32_0 : i32, i32
  }
  func.func @transform_2(%arg0: i32) -> (i32, i32) {
    %c0_i32 = arith.constant 0 : i32
    %c0_i32_0 = arith.constant 0 : i32
    %c0_i32_1 = arith.constant 0 : i32
    return %c0_i32, %c0_i32_0 : i32, i32
  }
  func.func @transform_3(%arg0: i32) -> (i32, i32) {
    %c0_i32 = arith.constant 0 : i32
    %c0_i32_0 = arith.constant 0 : i32
    %c0_i32_1 = arith.constant 0 : i32
    return %c0_i32, %c0_i32_0 : i32, i32
  }
  func.func @transform_4(%arg0: i32) -> (i32, i32) {
    %c0_i32 = arith.constant 0 : i32
    %c0_i32_0 = arith.constant 0 : i32
    %c0_i32_1 = arith.constant 0 : i32
    return %c0_i32, %c0_i32_0 : i32, i32
  }
  func.func @transform_5(%arg0: i32) -> (i32, i32) {
    %c0_i32 = arith.constant 0 : i32
    %c0_i32_0 = arith.constant 0 : i32
    %c0_i32_1 = arith.constant 0 : i32
    return %c0_i32, %c0_i32_0 : i32, i32
  }
  func.func @transform_6(%arg0: i32) -> (i32, i32) {
    %c0_i32 = arith.constant 0 : i32
    %c0_i32_0 = arith.constant 0 : i32
    %c0_i32_1 = arith.constant 0 : i32
    return %c0_i32, %c0_i32_0 : i32, i32
  }
  func.func @transform_7(%arg0: i32) -> (i32, i32, i32, i32) {
    %c0_i32 = arith.constant 0 : i32
    %c0_i32_0 = arith.constant 0 : i32
    %c0_i32_1 = arith.constant 0 : i32
    %c0_i32_2 = arith.constant 0 : i32
    return %arg0, %c0_i32, %c0_i32_0, %c0_i32_1 : i32, i32, i32, i32
  }
}

module attributes {stable_mosaic.version = 11 : i64} {
  func.func @_double_conv_kernel(%arg0: i32, %arg1: memref<1x8x8x64xf32, #tpu.memory_space<vmem>>, %arg2: memref<1152x128xbf16, #tpu.memory_space<vmem>>, %arg3: memref<1x128xf32, #tpu.memory_space<vmem>>, %arg4: memref<1x128xf32, #tpu.memory_space<vmem>>, %arg5: memref<1152x128xbf16, #tpu.memory_space<vmem>>, %arg6: memref<1x128xf32, #tpu.memory_space<vmem>>, %arg7: memref<1x128xf32, #tpu.memory_space<vmem>>, %arg8: memref<1x8x8x128xf32, #tpu.memory_space<vmem>>, %arg9: memref<10x17x64xf32, #tpu.memory_space<vmem>>, %arg10: memref<10x17x128xf32, #tpu.memory_space<vmem>>, %arg11: memref<64x1152xf32, #tpu.memory_space<vmem>>) attributes {dimension_semantics = [#tpu.dimension_semantics<parallel>], iteration_bounds = array<i64: 2>, scalar_prefetch = 0 : i64, scratch_operands = 3 : i64, tpu.core_type = #tpu.core_type<tc>, window_params = [{transform_indices = @transform_0, window_bounds = array<i64: 1, 8, 8, 64>}, {pipeline_mode = #tpu.pipeline_mode<synchronous>, transform_indices = @transform_1, window_bounds = array<i64: 1152, 128>}, {pipeline_mode = #tpu.pipeline_mode<synchronous>, transform_indices = @transform_2, window_bounds = array<i64: 1, 128>}, {pipeline_mode = #tpu.pipeline_mode<synchronous>, transform_indices = @transform_3, window_bounds = array<i64: 1, 128>}, {pipeline_mode = #tpu.pipeline_mode<synchronous>, transform_indices = @transform_4, window_bounds = array<i64: 1152, 128>}, {pipeline_mode = #tpu.pipeline_mode<synchronous>, transform_indices = @transform_5, window_bounds = array<i64: 1, 128>}, {pipeline_mode = #tpu.pipeline_mode<synchronous>, transform_indices = @transform_6, window_bounds = array<i64: 1, 128>}, {transform_indices = @transform_7, window_bounds = array<i64: 1, 8, 8, 128>}]} {
    %cst = arith.constant 0.000000e+00 : f32
    %0 = vector.broadcast %cst : f32 to vector<10x17x64xf32>
    %c0 = arith.constant 0 : index
    %c0_0 = arith.constant 0 : index
    %c0_1 = arith.constant 0 : index
    %1 = vector.load %arg9[%c0, %c0_0, %c0_1] : memref<10x17x64xf32, #tpu.memory_space<vmem>>, vector<10x17x64xf32>
    tpu.vector_store %arg9[%c0, %c0_0, %c0_1], %0 {strides = array<i32>} : memref<10x17x64xf32, #tpu.memory_space<vmem>>, vector<10x17x64xf32>,
    %cst_2 = arith.constant 0.000000e+00 : f32
    %2 = vector.broadcast %cst_2 : f32 to vector<10x17x128xf32>
    %c0_3 = arith.constant 0 : index
    %c0_4 = arith.constant 0 : index
    %c0_5 = arith.constant 0 : index
    %3 = vector.load %arg10[%c0_3, %c0_4, %c0_5] : memref<10x17x128xf32, #tpu.memory_space<vmem>>, vector<10x17x128xf32>
    tpu.vector_store %arg10[%c0_3, %c0_4, %c0_5], %2 {strides = array<i32>} : memref<10x17x128xf32, #tpu.memory_space<vmem>>, vector<10x17x128xf32>,
    %cst_6 = arith.constant 0.000000e+00 : f32
    %4 = vector.broadcast %cst_6 : f32 to vector<64x1152xf32>
    %c0_7 = arith.constant 0 : index
    %c0_8 = arith.constant 0 : index
    %5 = vector.load %arg11[%c0_7, %c0_8] : memref<64x1152xf32, #tpu.memory_space<vmem>>, vector<64x1152xf32>
    tpu.vector_store %arg11[%c0_7, %c0_8], %4 {strides = array<i32>} : memref<64x1152xf32, #tpu.memory_space<vmem>>, vector<64x1152xf32>,
    %c0_9 = arith.constant 0 : index
    %c0_10 = arith.constant 0 : index
    %c0_11 = arith.constant 0 : index
    %c0_12 = arith.constant 0 : index
    %6 = vector.load %arg1[%c0_9, %c0_10, %c0_11, %c0_12] : memref<1x8x8x64xf32, #tpu.memory_space<vmem>>, vector<1x8x8x64xf32>
    %7 = vector.shape_cast %6 : vector<1x8x8x64xf32> to vector<8x8x64xf32>
    %c1 = arith.constant 1 : index
    %c8 = arith.constant 8 : index
    %c0_13 = arith.constant 0 : index
    %8 = vector.load %arg9[%c1, %c8, %c0_13] : memref<10x17x64xf32, #tpu.memory_space<vmem>>, vector<8x8x64xf32>
    tpu.vector_store %arg9[%c1, %c8, %c0_13], %7 {strides = array<i32>} : memref<10x17x64xf32, #tpu.memory_space<vmem>>, vector<8x8x64xf32>,
    %c0_14 = arith.constant 0 : index
    %c0_15 = arith.constant 0 : index
    %c0_16 = arith.constant 0 : index
    %9 = vector.load %arg9[%c0_14, %c0_15, %c0_16] : memref<10x17x64xf32, #tpu.memory_space<vmem>>, vector<10x17x64xf32>
    %10 = vector.extract_strided_slice %9 {offsets = [0, 7, 0], sizes = [8, 8, 64], strides = [1, 1, 1]} : vector<10x17x64xf32> to vector<8x8x64xf32>
    %11 = vector.shape_cast %10 : vector<8x8x64xf32> to vector<64x64xf32>
    %c0_17 = arith.constant 0 : index
    %c0_18 = arith.constant 0 : index
    %12 = vector.load %arg11[%c0_17, %c0_18] : memref<64x1152xf32, #tpu.memory_space<vmem>>, vector<64x64xf32>
    tpu.vector_store %arg11[%c0_17, %c0_18], %11 {strides = array<i32>} : memref<64x1152xf32, #tpu.memory_space<vmem>>, vector<64x64xf32>,
    %13 = vector.extract_strided_slice %9 {offsets = [0, 8, 0], sizes = [8, 8, 64], strides = [1, 1, 1]} : vector<10x17x64xf32> to vector<8x8x64xf32>
    %14 = vector.shape_cast %13 : vector<8x8x64xf32> to vector<64x64xf32>
    %c0_19 = arith.constant 0 : index
    %c128 = arith.constant 128 : index
    %15 = vector.load %arg11[%c0_19, %c128] : memref<64x1152xf32, #tpu.memory_space<vmem>>, vector<64x64xf32>
    tpu.vector_store %arg11[%c0_19, %c128], %14 {strides = array<i32>} : memref<64x1152xf32, #tpu.memory_space<vmem>>, vector<64x64xf32>,
    %16 = vector.extract_strided_slice %9 {offsets = [0, 9, 0], sizes = [8, 8, 64], strides = [1, 1, 1]} : vector<10x17x64xf32> to vector<8x8x64xf32>
    %17 = vector.shape_cast %16 : vector<8x8x64xf32> to vector<64x64xf32>
    %c0_20 = arith.constant 0 : index
    %c256 = arith.constant 256 : index
    %18 = vector.load %arg11[%c0_20, %c256] : memref<64x1152xf32, #tpu.memory_space<vmem>>, vector<64x64xf32>
    tpu.vector_store %arg11[%c0_20, %c256], %17 {strides = array<i32>} : memref<64x1152xf32, #tpu.memory_space<vmem>>, vector<64x64xf32>,
    %19 = vector.extract_strided_slice %9 {offsets = [1, 7, 0], sizes = [8, 8, 64], strides = [1, 1, 1]} : vector<10x17x64xf32> to vector<8x8x64xf32>
    %20 = vector.shape_cast %19 : vector<8x8x64xf32> to vector<64x64xf32>
    %c0_21 = arith.constant 0 : index
    %c384 = arith.constant 384 : index
    %21 = vector.load %arg11[%c0_21, %c384] : memref<64x1152xf32, #tpu.memory_space<vmem>>, vector<64x64xf32>
    tpu.vector_store %arg11[%c0_21, %c384], %20 {strides = array<i32>} : memref<64x1152xf32, #tpu.memory_space<vmem>>, vector<64x64xf32>,
    %22 = vector.extract_strided_slice %9 {offsets = [1, 8, 0], sizes = [8, 8, 64], strides = [1, 1, 1]} : vector<10x17x64xf32> to vector<8x8x64xf32>
    %23 = vector.shape_cast %22 : vector<8x8x64xf32> to vector<64x64xf32>
    %c0_22 = arith.constant 0 : index
    %c512 = arith.constant 512 : index
    %24 = vector.load %arg11[%c0_22, %c512] : memref<64x1152xf32, #tpu.memory_space<vmem>>, vector<64x64xf32>
    tpu.vector_store %arg11[%c0_22, %c512], %23 {strides = array<i32>} : memref<64x1152xf32, #tpu.memory_space<vmem>>, vector<64x64xf32>,
    %25 = vector.extract_strided_slice %9 {offsets = [1, 9, 0], sizes = [8, 8, 64], strides = [1, 1, 1]} : vector<10x17x64xf32> to vector<8x8x64xf32>
    %26 = vector.shape_cast %25 : vector<8x8x64xf32> to vector<64x64xf32>
    %c0_23 = arith.constant 0 : index
    %c640 = arith.constant 640 : index
    %27 = vector.load %arg11[%c0_23, %c640] : memref<64x1152xf32, #tpu.memory_space<vmem>>, vector<64x64xf32>
    tpu.vector_store %arg11[%c0_23, %c640], %26 {strides = array<i32>} : memref<64x1152xf32, #tpu.memory_space<vmem>>, vector<64x64xf32>,
    %28 = vector.extract_strided_slice %9 {offsets = [2, 7, 0], sizes = [8, 8, 64], strides = [1, 1, 1]} : vector<10x17x64xf32> to vector<8x8x64xf32>
    %29 = vector.shape_cast %28 : vector<8x8x64xf32> to vector<64x64xf32>
    %c0_24 = arith.constant 0 : index
    %c768 = arith.constant 768 : index
    %30 = vector.load %arg11[%c0_24, %c768] : memref<64x1152xf32, #tpu.memory_space<vmem>>, vector<64x64xf32>
    tpu.vector_store %arg11[%c0_24, %c768], %29 {strides = array<i32>} : memref<64x1152xf32, #tpu.memory_space<vmem>>, vector<64x64xf32>,
    %31 = vector.extract_strided_slice %9 {offsets = [2, 8, 0], sizes = [8, 8, 64], strides = [1, 1, 1]} : vector<10x17x64xf32> to vector<8x8x64xf32>
    %32 = vector.shape_cast %31 : vector<8x8x64xf32> to vector<64x64xf32>
    %c0_25 = arith.constant 0 : index
    %c896 = arith.constant 896 : index
    %33 = vector.load %arg11[%c0_25, %c896] : memref<64x1152xf32, #tpu.memory_space<vmem>>, vector<64x64xf32>
    tpu.vector_store %arg11[%c0_25, %c896], %32 {strides = array<i32>} : memref<64x1152xf32, #tpu.memory_space<vmem>>, vector<64x64xf32>,
    %34 = vector.extract_strided_slice %9 {offsets = [2, 9, 0], sizes = [8, 8, 64], strides = [1, 1, 1]} : vector<10x17x64xf32> to vector<8x8x64xf32>
    %35 = vector.shape_cast %34 : vector<8x8x64xf32> to vector<64x64xf32>
    %c0_26 = arith.constant 0 : index
    %c1024 = arith.constant 1024 : index
    %36 = vector.load %arg11[%c0_26, %c1024] : memref<64x1152xf32, #tpu.memory_space<vmem>>, vector<64x64xf32>
    tpu.vector_store %arg11[%c0_26, %c1024], %35 {strides = array<i32>} : memref<64x1152xf32, #tpu.memory_space<vmem>>, vector<64x64xf32>,
    %c0_27 = arith.constant 0 : index
    %c0_28 = arith.constant 0 : index
    %37 = vector.load %arg11[%c0_27, %c0_28] : memref<64x1152xf32, #tpu.memory_space<vmem>>, vector<64x1152xf32>
    %38 = arith.truncf %37 : vector<64x1152xf32> to vector<64x1152xbf16>
    %c0_29 = arith.constant 0 : index
    %c0_30 = arith.constant 0 : index
    %39 = vector.load %arg2[%c0_29, %c0_30] : memref<1152x128xbf16, #tpu.memory_space<vmem>>, vector<1152x128xbf16>
    %cst_31 = arith.constant dense<0.000000e+00> : vector<64x128xf32>
    %40 = tpu.matmul %38, %39, %cst_31 {dimension_numbers = #tpu.dot_dimension_numbers<[1], [0], [0], [1], [0, 0, 1, 1], [], []>} : vector<64x1152xbf16>, vector<1152x128xbf16>, vector<64x128xf32> -> vector<64x128xf32>
    %c0_32 = arith.constant 0 : index
    %c0_33 = arith.constant 0 : index
    %41 = vector.load %arg3[%c0_32, %c0_33] : memref<1x128xf32, #tpu.memory_space<vmem>>, vector<1x128xf32>
    %42 = vector.broadcast %41 : vector<1x128xf32> to vector<64x128xf32>
    %43 = arith.mulf %40, %42 : vector<64x128xf32>
    %c0_34 = arith.constant 0 : index
    %c0_35 = arith.constant 0 : index
    %44 = vector.load %arg4[%c0_34, %c0_35] : memref<1x128xf32, #tpu.memory_space<vmem>>, vector<1x128xf32>
    %45 = vector.broadcast %44 : vector<1x128xf32> to vector<64x128xf32>
    %46 = arith.addf %43, %45 : vector<64x128xf32>
    %cst_36 = arith.constant 0.000000e+00 : f32
    %47 = vector.broadcast %cst_36 : f32 to vector<64x128xf32>
    %48 = arith.maximumf %46, %47 : vector<64x128xf32>
    %49 = vector.shape_cast %48 : vector<64x128xf32> to vector<8x8x128xf32>
    %c1_37 = arith.constant 1 : index
    %c8_38 = arith.constant 8 : index
    %c0_39 = arith.constant 0 : index
    %50 = vector.load %arg10[%c1_37, %c8_38, %c0_39] : memref<10x17x128xf32, #tpu.memory_space<vmem>>, vector<8x8x128xf32>
    tpu.vector_store %arg10[%c1_37, %c8_38, %c0_39], %49 {strides = array<i32>} : memref<10x17x128xf32, #tpu.memory_space<vmem>>, vector<8x8x128xf32>,
    %c0_40 = arith.constant 0 : index
    %c0_41 = arith.constant 0 : index
    %c0_42 = arith.constant 0 : index
    %51 = vector.load %arg10[%c0_40, %c0_41, %c0_42] : memref<10x17x128xf32, #tpu.memory_space<vmem>>, vector<10x17x128xf32>
    %52 = vector.extract_strided_slice %51 {offsets = [0, 7, 0], sizes = [8, 8, 128], strides = [1, 1, 1]} : vector<10x17x128xf32> to vector<8x8x128xf32>
    %53 = vector.shape_cast %52 : vector<8x8x128xf32> to vector<64x128xf32>
    %c0_43 = arith.constant 0 : index
    %c0_44 = arith.constant 0 : index
    %54 = vector.load %arg11[%c0_43, %c0_44] : memref<64x1152xf32, #tpu.memory_space<vmem>>, vector<64x128xf32>
    tpu.vector_store %arg11[%c0_43, %c0_44], %53 {strides = array<i32>} : memref<64x1152xf32, #tpu.memory_space<vmem>>, vector<64x128xf32>,
    %55 = vector.extract_strided_slice %51 {offsets = [0, 8, 0], sizes = [8, 8, 128], strides = [1, 1, 1]} : vector<10x17x128xf32> to vector<8x8x128xf32>
    %56 = vector.shape_cast %55 : vector<8x8x128xf32> to vector<64x128xf32>
    %c0_45 = arith.constant 0 : index
    %c128_46 = arith.constant 128 : index
    %57 = vector.load %arg11[%c0_45, %c128_46] : memref<64x1152xf32, #tpu.memory_space<vmem>>, vector<64x128xf32>
    tpu.vector_store %arg11[%c0_45, %c128_46], %56 {strides = array<i32>} : memref<64x1152xf32, #tpu.memory_space<vmem>>, vector<64x128xf32>,
    %58 = vector.extract_strided_slice %51 {offsets = [0, 9, 0], sizes = [8, 8, 128], strides = [1, 1, 1]} : vector<10x17x128xf32> to vector<8x8x128xf32>
    %59 = vector.shape_cast %58 : vector<8x8x128xf32> to vector<64x128xf32>
    %c0_47 = arith.constant 0 : index
    %c256_48 = arith.constant 256 : index
    %60 = vector.load %arg11[%c0_47, %c256_48] : memref<64x1152xf32, #tpu.memory_space<vmem>>, vector<64x128xf32>
    tpu.vector_store %arg11[%c0_47, %c256_48], %59 {strides = array<i32>} : memref<64x1152xf32, #tpu.memory_space<vmem>>, vector<64x128xf32>,
    %61 = vector.extract_strided_slice %51 {offsets = [1, 7, 0], sizes = [8, 8, 128], strides = [1, 1, 1]} : vector<10x17x128xf32> to vector<8x8x128xf32>
    %62 = vector.shape_cast %61 : vector<8x8x128xf32> to vector<64x128xf32>
    %c0_49 = arith.constant 0 : index
    %c384_50 = arith.constant 384 : index
    %63 = vector.load %arg11[%c0_49, %c384_50] : memref<64x1152xf32, #tpu.memory_space<vmem>>, vector<64x128xf32>
    tpu.vector_store %arg11[%c0_49, %c384_50], %62 {strides = array<i32>} : memref<64x1152xf32, #tpu.memory_space<vmem>>, vector<64x128xf32>,
    %64 = vector.extract_strided_slice %51 {offsets = [1, 8, 0], sizes = [8, 8, 128], strides = [1, 1, 1]} : vector<10x17x128xf32> to vector<8x8x128xf32>
    %65 = vector.shape_cast %64 : vector<8x8x128xf32> to vector<64x128xf32>
    %c0_51 = arith.constant 0 : index
    %c512_52 = arith.constant 512 : index
    %66 = vector.load %arg11[%c0_51, %c512_52] : memref<64x1152xf32, #tpu.memory_space<vmem>>, vector<64x128xf32>
    tpu.vector_store %arg11[%c0_51, %c512_52], %65 {strides = array<i32>} : memref<64x1152xf32, #tpu.memory_space<vmem>>, vector<64x128xf32>,
    %67 = vector.extract_strided_slice %51 {offsets = [1, 9, 0], sizes = [8, 8, 128], strides = [1, 1, 1]} : vector<10x17x128xf32> to vector<8x8x128xf32>
    %68 = vector.shape_cast %67 : vector<8x8x128xf32> to vector<64x128xf32>
    %c0_53 = arith.constant 0 : index
    %c640_54 = arith.constant 640 : index
    %69 = vector.load %arg11[%c0_53, %c640_54] : memref<64x1152xf32, #tpu.memory_space<vmem>>, vector<64x128xf32>
    tpu.vector_store %arg11[%c0_53, %c640_54], %68 {strides = array<i32>} : memref<64x1152xf32, #tpu.memory_space<vmem>>, vector<64x128xf32>,
    %70 = vector.extract_strided_slice %51 {offsets = [2, 7, 0], sizes = [8, 8, 128], strides = [1, 1, 1]} : vector<10x17x128xf32> to vector<8x8x128xf32>
    %71 = vector.shape_cast %70 : vector<8x8x128xf32> to vector<64x128xf32>
    %c0_55 = arith.constant 0 : index
    %c768_56 = arith.constant 768 : index
    %72 = vector.load %arg11[%c0_55, %c768_56] : memref<64x1152xf32, #tpu.memory_space<vmem>>, vector<64x128xf32>
    tpu.vector_store %arg11[%c0_55, %c768_56], %71 {strides = array<i32>} : memref<64x1152xf32, #tpu.memory_space<vmem>>, vector<64x128xf32>,
    %73 = vector.extract_strided_slice %51 {offsets = [2, 8, 0], sizes = [8, 8, 128], strides = [1, 1, 1]} : vector<10x17x128xf32> to vector<8x8x128xf32>
    %74 = vector.shape_cast %73 : vector<8x8x128xf32> to vector<64x128xf32>
    %c0_57 = arith.constant 0 : index
    %c896_58 = arith.constant 896 : index
    %75 = vector.load %arg11[%c0_57, %c896_58] : memref<64x1152xf32, #tpu.memory_space<vmem>>, vector<64x128xf32>
    tpu.vector_store %arg11[%c0_57, %c896_58], %74 {strides = array<i32>} : memref<64x1152xf32, #tpu.memory_space<vmem>>, vector<64x128xf32>,
    %76 = vector.extract_strided_slice %51 {offsets = [2, 9, 0], sizes = [8, 8, 128], strides = [1, 1, 1]} : vector<10x17x128xf32> to vector<8x8x128xf32>
    %77 = vector.shape_cast %76 : vector<8x8x128xf32> to vector<64x128xf32>
    %c0_59 = arith.constant 0 : index
    %c1024_60 = arith.constant 1024 : index
    %78 = vector.load %arg11[%c0_59, %c1024_60] : memref<64x1152xf32, #tpu.memory_space<vmem>>, vector<64x128xf32>
    tpu.vector_store %arg11[%c0_59, %c1024_60], %77 {strides = array<i32>} : memref<64x1152xf32, #tpu.memory_space<vmem>>, vector<64x128xf32>,
    %c0_61 = arith.constant 0 : index
    %c0_62 = arith.constant 0 : index
    %79 = vector.load %arg11[%c0_61, %c0_62] : memref<64x1152xf32, #tpu.memory_space<vmem>>, vector<64x1152xf32>
    %80 = arith.truncf %79 : vector<64x1152xf32> to vector<64x1152xbf16>
    %c0_63 = arith.constant 0 : index
    %c0_64 = arith.constant 0 : index
    %81 = vector.load %arg5[%c0_63, %c0_64] : memref<1152x128xbf16, #tpu.memory_space<vmem>>, vector<1152x128xbf16>
    %cst_65 = arith.constant dense<0.000000e+00> : vector<64x128xf32>
    %82 = tpu.matmul %80, %81, %cst_65 {dimension_numbers = #tpu.dot_dimension_numbers<[1], [0], [0], [1], [0, 0, 1, 1], [], []>} : vector<64x1152xbf16>, vector<1152x128xbf16>, vector<64x128xf32> -> vector<64x128xf32>
    %c0_66 = arith.constant 0 : index
    %c0_67 = arith.constant 0 : index
    %83 = vector.load %arg6[%c0_66, %c0_67] : memref<1x128xf32, #tpu.memory_space<vmem>>, vector<1x128xf32>
    %84 = vector.broadcast %83 : vector<1x128xf32> to vector<64x128xf32>
    %85 = arith.mulf %82, %84 : vector<64x128xf32>
    %c0_68 = arith.constant 0 : index
    %c0_69 = arith.constant 0 : index
    %86 = vector.load %arg7[%c0_68, %c0_69] : memref<1x128xf32, #tpu.memory_space<vmem>>, vector<1x128xf32>
    %87 = vector.broadcast %86 : vector<1x128xf32> to vector<64x128xf32>
    %88 = arith.addf %85, %87 : vector<64x128xf32>
    %cst_70 = arith.constant 0.000000e+00 : f32
    %89 = vector.broadcast %cst_70 : f32 to vector<64x128xf32>
    %90 = arith.maximumf %88, %89 : vector<64x128xf32>
    %91 = vector.shape_cast %90 : vector<64x128xf32> to vector<8x8x128xf32>
    %c0_71 = arith.constant 0 : index
    %c0_72 = arith.constant 0 : index
    %c0_73 = arith.constant 0 : index
    %c0_74 = arith.constant 0 : index
    %92 = vector.load %arg8[%c0_71, %c0_72, %c0_73, %c0_74] : memref<1x8x8x128xf32, #tpu.memory_space<vmem>>, vector<1x8x8x128xf32>
    %93 = vector.shape_cast %92 : vector<1x8x8x128xf32> to vector<8x8x128xf32>
    %94 = vector.shape_cast %91 : vector<8x8x128xf32> to vector<1x8x8x128xf32>
    tpu.vector_store %arg8[%c0_71, %c0_72, %c0_73, %c0_74], %94 {strides = array<i32>} : memref<1x8x8x128xf32, #tpu.memory_space<vmem>>, vector<1x8x8x128xf32>,
    return
  }
  func.func @transform_0(%arg0: i32) -> (i32, i32, i32, i32) {
    %c0_i32 = arith.constant 0 : i32
    %c0_i32_0 = arith.constant 0 : i32
    %c0_i32_1 = arith.constant 0 : i32
    %c0_i32_2 = arith.constant 0 : i32
    return %arg0, %c0_i32, %c0_i32_0, %c0_i32_1 : i32, i32, i32, i32
  }
  func.func @transform_1(%arg0: i32) -> (i32, i32) {
    %c0_i32 = arith.constant 0 : i32
    %c0_i32_0 = arith.constant 0 : i32
    %c0_i32_1 = arith.constant 0 : i32
    return %c0_i32, %c0_i32_0 : i32, i32
  }
  func.func @transform_2(%arg0: i32) -> (i32, i32) {
    %c0_i32 = arith.constant 0 : i32
    %c0_i32_0 = arith.constant 0 : i32
    %c0_i32_1 = arith.constant 0 : i32
    return %c0_i32, %c0_i32_0 : i32, i32
  }
  func.func @transform_3(%arg0: i32) -> (i32, i32) {
    %c0_i32 = arith.constant 0 : i32
    %c0_i32_0 = arith.constant 0 : i32
    %c0_i32_1 = arith.constant 0 : i32
    return %c0_i32, %c0_i32_0 : i32, i32
  }
  func.func @transform_4(%arg0: i32) -> (i32, i32) {
    %c0_i32 = arith.constant 0 : i32
    %c0_i32_0 = arith.constant 0 : i32
    %c0_i32_1 = arith.constant 0 : i32
    return %c0_i32, %c0_i32_0 : i32, i32
  }
  func.func @transform_5(%arg0: i32) -> (i32, i32) {
    %c0_i32 = arith.constant 0 : i32
    %c0_i32_0 = arith.constant 0 : i32
    %c0_i32_1 = arith.constant 0 : i32
    return %c0_i32, %c0_i32_0 : i32, i32
  }
  func.func @transform_6(%arg0: i32) -> (i32, i32) {
    %c0_i32 = arith.constant 0 : i32
    %c0_i32_0 = arith.constant 0 : i32
    %c0_i32_1 = arith.constant 0 : i32
    return %c0_i32, %c0_i32_0 : i32, i32
  }
  func.func @transform_7(%arg0: i32) -> (i32, i32, i32, i32) {
    %c0_i32 = arith.constant 0 : i32
    %c0_i32_0 = arith.constant 0 : i32
    %c0_i32_1 = arith.constant 0 : i32
    %c0_i32_2 = arith.constant 0 : i32
    return %arg0, %c0_i32, %c0_i32_0, %c0_i32_1 : i32, i32, i32, i32
  }
}

</mosaic_0001>

<llo_original>
// kernel: unet_encoder_forward.3
$region0: #{unet_encoder_forward.3}
  #allocation0 [shape = 'u32[]', space=smem, size = 0x4, offset = 0x4, fixed_abs, tag = 'smem constant byte address 0x4 - core index']
  #allocation1 [shape = 'u32[72,128]{1,0:T(1,128)}', space=vmem, size = 0x9000, scoped, tag = 'internal scratch']
  #allocation2 [shape = 'f32[10,17,64]{2,1,0:T(8,128)}', space=vmem, size = 0x1e000, scoped, tag = 'scratch operand']
  #allocation3 [shape = 'f32[10,17,128]{2,1,0:T(8,128)}', space=vmem, size = 0x1e000, scoped, tag = 'scratch operand']
  #allocation4 [shape = 'f32[64,1152]{1,0:T(8,128)}', space=vmem, size = 0x48000, scoped, tag = 'scratch operand']
  %s0 = inlined_call_operand.vmem [shape: f32[2,8,8,64], index: 0, kind: input, shape index: {}]
  %s1 = inlined_call_operand.vmem [shape: bf16[1152,128], index: 1, kind: input, shape index: {}]
  %s2 = inlined_call_operand.vmem [shape: f32[1,128], index: 2, kind: input, shape index: {}]
  %s3 = inlined_call_operand.vmem [shape: f32[1,128], index: 3, kind: input, shape index: {}]
  %s4 = inlined_call_operand.vmem [shape: bf16[1152,128], index: 4, kind: input, shape index: {}]
  %s5 = inlined_call_operand.vmem [shape: f32[1,128], index: 5, kind: input, shape index: {}]
  %s6 = inlined_call_operand.vmem [shape: f32[1,128], index: 6, kind: input, shape index: {}]
  %s7 = inlined_call_operand.hbm [shape: f32[2,8,8,128], index: 7, kind: output, shape index: {}]
  %s8 = sld [smem:[#allocation0]]
  $region61: #{unet_encoder_forward.3} parent=0
    _
  %s10 = ssub.s32 1, %s8
  %s11 = scalar_select 0, %s10, %s8
  $region1: #{unet_encoder_forward.3} parent=0
    #allocation5 [shape = 'u8[65536]{0}', space=vmem, size = 0x10000, scoped, tag = 'output window, operand 0']
    #allocation6 [shape = 's32[2]{0}', space=sflag, size = 0x8, scoped, tag = 'scoped memory for unet_encoder_forward.3']
    %12 = vsyncpa [#allocation6], 0
    %s13 = scalar_lea.sflag [#allocation6], 1
    %14 = vsyncpa %s13, 0
    loop: start=0, step=1, limit=4
    $region2: #{unet_encoder_forward.3} parent=1 // loop_pre_header
      _
    $region3: #{unet_encoder_forward.3} parent=1 // loop_header
      %s16 = sphi 0, %s20
      %p17 = scmp.ge.s32.totalorder %s16, 4
      %s26 = sphi 0, %s28
      %s29 = sphi 0, %s26
      %s30 = sphi 0, %s29
      %s46 = sphi 0, %s30
      %s50 = sphi 0, %s50
      %s52 = sphi 0, %s50
      %s53 = sphi 0, %s52
      %s67 = sphi 0, %s53
      %s71 = sphi 0, %s71
      %s73 = sphi 0, %s71
      %s74 = sphi 0, %s73
      %s88 = sphi 0, %s74
      %s92 = sphi 0, %s92
      %s94 = sphi 0, %s92
      %s95 = sphi 0, %s94
      %s109 = sphi 0, %s95
      %s113 = sphi 0, %s113
      %s115 = sphi 0, %s113
      %s116 = sphi 0, %s115
      %s130 = sphi 0, %s116
      %s134 = sphi 0, %s134
      %s136 = sphi 0, %s134
      %s137 = sphi 0, %s136
      %s151 = sphi 0, %s137
      %s155 = sphi 0, %s155
      %s157 = sphi 0, %s155
      %s158 = sphi 0, %s157
      %s172 = sphi 0, %s158
      %s178 = sphi 0, %s180
      %s181 = sphi 0, %s178
      %s182 = sphi 0, %s181
      %s198 = sphi 0, %s182
    $region4: #{unet_encoder_forward.3} parent=1 // loop_header_branch
      %19 = sbr.rel (%p17) target = $region8
    $region5: #{unet_encoder_forward.3} parent=1 // loop_body
      %s21 = ssub.s32 %s16, 1
      %s22 = ssub.s32 %s16, 2
      %s23 = sadd.s32 %s16, 1
      %s24 = ssub.s32 %s16, %s23
      %p25 = scmp.eq.s32.totalorder %s24, 0
      %s27 = sadd.s32 %s26, 1
      %s28 = scalar_select %p25, %s26, %s27
      %p31 = pneg %p25
      %p32 = scmp.eq.s32.totalorder %s16, 1
      %p33 = por %p31, %p32
      %p34 = scmp.ne.s32.totalorder %s26, %s29
      %p35 = scmp.eq.s32.totalorder %s16, 0
      %p36 = por %p34, %p35
      %p37 = scmp.ne.s32.totalorder %s26, %s29
      %p38 = scmp.eq.s32.totalorder %s21, 1
      %p39 = por %p37, %p38
      %p40 = scmp.ne.s32.totalorder %s29, %s30
      %p41 = scmp.eq.s32.totalorder %s21, 0
      %p42 = por %p40, %p41
      %p43 = scmp.ne.s32.totalorder %s29, %s30
      %p44 = scmp.eq.s32.totalorder %s22, 1
      %p45 = por %p43, %p44
      %p47 = scmp.ne.s32.totalorder %s30, %s46
      %p48 = scmp.eq.s32.totalorder %s22, 0
      %p49 = por %p47, %p48
      %s51 = sadd.s32 %s50, 1
      %p54 = scmp.eq.s32.totalorder %s16, 1
      %p55 = scmp.ne.s32.totalorder %s50, %s52
      %p56 = scmp.eq.s32.totalorder %s16, 0
      %p57 = por %p55, %p56
      %p58 = scmp.ne.s32.totalorder %s50, %s52
      %p59 = scmp.eq.s32.totalorder %s21, 1
      %p60 = por %p58, %p59
      %p61 = scmp.ne.s32.totalorder %s52, %s53
      %p62 = scmp.eq.s32.totalorder %s21, 0
      %p63 = por %p61, %p62
      %p64 = scmp.ne.s32.totalorder %s52, %s53
      %p65 = scmp.eq.s32.totalorder %s22, 1
      %p66 = por %p64, %p65
      %p68 = scmp.ne.s32.totalorder %s53, %s67
      %p69 = scmp.eq.s32.totalorder %s22, 0
      %p70 = por %p68, %p69
      %s72 = sadd.s32 %s71, 1
      %p75 = scmp.eq.s32.totalorder %s16, 1
      %p76 = scmp.ne.s32.totalorder %s71, %s73
      %p77 = scmp.eq.s32.totalorder %s16, 0
      %p78 = por %p76, %p77
      %p79 = scmp.ne.s32.totalorder %s71, %s73
      %p80 = scmp.eq.s32.totalorder %s21, 1
      %p81 = por %p79, %p80
      %p82 = scmp.ne.s32.totalorder %s73, %s74
      %p83 = scmp.eq.s32.totalorder %s21, 0
      %p84 = por %p82, %p83
      %p85 = scmp.ne.s32.totalorder %s73, %s74
      %p86 = scmp.eq.s32.totalorder %s22, 1
      %p87 = por %p85, %p86
      %p89 = scmp.ne.s32.totalorder %s74, %s88
      %p90 = scmp.eq.s32.totalorder %s22, 0
      %p91 = por %p89, %p90
      %s93 = sadd.s32 %s92, 1
      %p96 = scmp.eq.s32.totalorder %s16, 1
      %p97 = scmp.ne.s32.totalorder %s92, %s94
      %p98 = scmp.eq.s32.totalorder %s16, 0
      %p99 = por %p97, %p98
      %p100 = scmp.ne.s32.totalorder %s92, %s94
      %p101 = scmp.eq.s32.totalorder %s21, 1
      %p102 = por %p100, %p101
      %p103 = scmp.ne.s32.totalorder %s94, %s95
      %p104 = scmp.eq.s32.totalorder %s21, 0
      %p105 = por %p103, %p104
      %p106 = scmp.ne.s32.totalorder %s94, %s95
      %p107 = scmp.eq.s32.totalorder %s22, 1
      %p108 = por %p106, %p107
      %p110 = scmp.ne.s32.totalorder %s95, %s109
      %p111 = scmp.eq.s32.totalorder %s22, 0
      %p112 = por %p110, %p111
      %s114 = sadd.s32 %s113, 1
      %p117 = scmp.eq.s32.totalorder %s16, 1
      %p118 = scmp.ne.s32.totalorder %s113, %s115
      %p119 = scmp.eq.s32.totalorder %s16, 0
      %p120 = por %p118, %p119
      %p121 = scmp.ne.s32.totalorder %s113, %s115
      %p122 = scmp.eq.s32.totalorder %s21, 1
      %p123 = por %p121, %p122
      %p124 = scmp.ne.s32.totalorder %s115, %s116
      %p125 = scmp.eq.s32.totalorder %s21, 0
      %p126 = por %p124, %p125
      %p127 = scmp.ne.s32.totalorder %s115, %s116
      %p128 = scmp.eq.s32.totalorder %s22, 1
      %p129 = por %p127, %p128
      %p131 = scmp.ne.s32.totalorder %s116, %s130
      %p132 = scmp.eq.s32.totalorder %s22, 0
      %p133 = por %p131, %p132
      %s135 = sadd.s32 %s134, 1
      %p138 = scmp.eq.s32.totalorder %s16, 1
      %p139 = scmp.ne.s32.totalorder %s134, %s136
      %p140 = scmp.eq.s32.totalorder %s16, 0
      %p141 = por %p139, %p140
      %p142 = scmp.ne.s32.totalorder %s134, %s136
      %p143 = scmp.eq.s32.totalorder %s21, 1
      %p144 = por %p142, %p143
      %p145 = scmp.ne.s32.totalorder %s136, %s137
      %p146 = scmp.eq.s32.totalorder %s21, 0
      %p147 = por %p145, %p146
      %p148 = scmp.ne.s32.totalorder %s136, %s137
      %p149 = scmp.eq.s32.totalorder %s22, 1
      %p150 = por %p148, %p149
      %p152 = scmp.ne.s32.totalorder %s137, %s151
      %p153 = scmp.eq.s32.totalorder %s22, 0
      %p154 = por %p152, %p153
      %s156 = sadd.s32 %s155, 1
      %p159 = scmp.eq.s32.totalorder %s16, 1
      %p160 = scmp.ne.s32.totalorder %s155, %s157
      %p161 = scmp.eq.s32.totalorder %s16, 0
      %p162 = por %p160, %p161
      %p163 = scmp.ne.s32.totalorder %s155, %s157
      %p164 = scmp.eq.s32.totalorder %s21, 1
      %p165 = por %p163, %p164
      %p166 = scmp.ne.s32.totalorder %s157, %s158
      %p167 = scmp.eq.s32.totalorder %s21, 0
      %p168 = por %p166, %p167
      %p169 = scmp.ne.s32.totalorder %s157, %s158
      %p170 = scmp.eq.s32.totalorder %s22, 1
      %p171 = por %p169, %p170
      %p173 = scmp.ne.s32.totalorder %s158, %s172
      %p174 = scmp.eq.s32.totalorder %s22, 0
      %p175 = por %p173, %p174
      %s176 = ssub.s32 %s16, %s23
      %p177 = scmp.eq.s32.totalorder %s176, 0
      %s179 = sadd.s32 %s178, 1
      %s180 = scalar_select %p177, %s178, %s179
      %p183 = pneg %p177
      %p184 = scmp.eq.s32.totalorder %s16, 1
      %p185 = por %p183, %p184
      %p186 = scmp.ne.s32.totalorder %s178, %s181
      %p187 = scmp.eq.s32.totalorder %s16, 0
      %p188 = por %p186, %p187
      %p189 = scmp.ne.s32.totalorder %s178, %s181
      %p190 = scmp.eq.s32.totalorder %s21, 1
      %p191 = por %p189, %p190
      %p192 = scmp.ne.s32.totalorder %s181, %s182
      %p193 = scmp.eq.s32.totalorder %s21, 0
      %p194 = por %p192, %p193
      %p195 = scmp.ne.s32.totalorder %s181, %s182
      %p196 = scmp.eq.s32.totalorder %s22, 1
      %p197 = por %p195, %p196
      %p199 = scmp.ne.s32.totalorder %s182, %s198
      %p200 = scmp.eq.s32.totalorder %s22, 0
      %p201 = por %p199, %p200
      %p202 = scmp.le.s32.totalorder 1, %s16
      %p203 = scmp.lt.s32.totalorder %s16, 3
      %p204 = pnand %p202, %p203
      %p205 = pneg %p204
      // Predicated region
      $region9: #{unet_encoder_forward.3} parent=5 // pred_check
        _
      $region10: #{unet_encoder_forward.3} parent=5 // pred_check_branch
        %207 = sbr.rel (%p204) target = $region12
      $region11: #{unet_encoder_forward.3} parent=5 // pred_region
        %s208 = ssub.s32 %s16, 1
        // Predicated region
        $region13: #{unet_encoder_forward.3} parent=11 // pred_check
          %p209 = pneg %p63
        $region14: #{unet_encoder_forward.3} parent=11 // pred_check_branch
          %211 = sbr.rel (%p209) target = $region16
        $region15: #{unet_encoder_forward.3} parent=11 // pred_region
          _
        $region16: #{unet_encoder_forward.3} parent=11 // pred_fallthru
          _
        // Predicated region
        $region17: #{unet_encoder_forward.3} parent=11 // pred_check
          %p212 = pneg %p84
        $region18: #{unet_encoder_forward.3} parent=11 // pred_check_branch
          %214 = sbr.rel (%p212) target = $region20
        $region19: #{unet_encoder_forward.3} parent=11 // pred_region
          _
        $region20: #{unet_encoder_forward.3} parent=11 // pred_fallthru
          _
        // Predicated region
        $region21: #{unet_encoder_forward.3} parent=11 // pred_check
          %p215 = pneg %p105
        $region22: #{unet_encoder_forward.3} parent=11 // pred_check_branch
          %217 = sbr.rel (%p215) target = $region24
        $region23: #{unet_encoder_forward.3} parent=11 // pred_region
          _
        $region24: #{unet_encoder_forward.3} parent=11 // pred_fallthru
          _
        // Predicated region
        $region25: #{unet_encoder_forward.3} parent=11 // pred_check
          %p218 = pneg %p126
        $region26: #{unet_encoder_forward.3} parent=11 // pred_check_branch
          %220 = sbr.rel (%p218) target = $region28
        $region27: #{unet_encoder_forward.3} parent=11 // pred_region
          _
        $region28: #{unet_encoder_forward.3} parent=11 // pred_fallthru
          _
        // Predicated region
        $region29: #{unet_encoder_forward.3} parent=11 // pred_check
          %p221 = pneg %p147
        $region30: #{unet_encoder_forward.3} parent=11 // pred_check_branch
          %223 = sbr.rel (%p221) target = $region32
        $region31: #{unet_encoder_forward.3} parent=11 // pred_region
          _
        $region32: #{unet_encoder_forward.3} parent=11 // pred_fallthru
          _
        // Predicated region
        $region33: #{unet_encoder_forward.3} parent=11 // pred_check
          %p224 = pneg %p168
        $region34: #{unet_encoder_forward.3} parent=11 // pred_check_branch
          %226 = sbr.rel (%p224) target = $region36
        $region35: #{unet_encoder_forward.3} parent=11 // pred_region
          _
        $region36: #{unet_encoder_forward.3} parent=11 // pred_fallthru
          _
      $region12: #{unet_encoder_forward.3} parent=5 // pred_fallthru
        _
      %p227 = scmp.lt.s32.totalorder %s16, 2
      // Predicated region
      $region37: #{unet_encoder_forward.3} parent=5 // pred_check
        %p228 = pneg %p227
      $region38: #{unet_encoder_forward.3} parent=5 // pred_check_branch
        %230 = sbr.rel (%p228) target = $region40
      $region39: #{unet_encoder_forward.3} parent=5 // pred_region
        // Predicated region
        $region41: #{unet_encoder_forward.3} parent=39 // pred_check
          %p231 = pneg %p36
        $region42: #{unet_encoder_forward.3} parent=39 // pred_check_branch
          %233 = sbr.rel (%p231) target = $region44
        $region43: #{unet_encoder_forward.3} parent=39 // pred_region
          %p234 = scmp.lt.s32.totalorder %s16, 1
          %s235 = scalar_select %p234, %s16, 1
          %s236 = smul.addr %s235, 8
          %s237 = smul.addr %s236, 8
          %s238 = scalar_lea.vmem %s0, %s237
        $region44: #{unet_encoder_forward.3} parent=39 // pred_fallthru
          _
      $region40: #{unet_encoder_forward.3} parent=5 // pred_fallthru
        _
      %p239 = scmp.le.s32.totalorder 1, %s16
      %p240 = scmp.lt.s32.totalorder %s16, 3
      %p241 = pnand %p239, %p240
      %p242 = pneg %p241
      // Predicated region
      $region45: #{unet_encoder_forward.3} parent=5 // pred_check
        _
      $region46: #{unet_encoder_forward.3} parent=5 // pred_check_branch
        %244 = sbr.rel (%p241) target = $region48
      $region47: #{unet_encoder_forward.3} parent=5 // pred_region
        %s245 = ssub.s32 %s16, 1
        %p246 = scmp.lt.s32.totalorder %s21, 1
        %s247 = scalar_select %p246, %s21, 1
        %s248 = smul.addr %s247, 8
        %s249 = smul.addr %s248, 8
        %s250 = scalar_lea.vmem %s0, %s249
        %p251 = pneg %p42
        %p252 = pneg %p39
        %p253 = pneg %p63
        %p254 = pneg %p60
        %p255 = pneg %p84
        %p256 = pneg %p81
        %p257 = pneg %p105
        %p258 = pneg %p102
        %p259 = pneg %p126
        %p260 = pneg %p123
        %p261 = pneg %p147
        %p262 = pneg %p144
        %p263 = pneg %p168
        %p264 = pneg %p165
        %p265 = pneg %p194
        %p266 = pneg %p191
        %s267 = sand.u32 %s181, 1
        %s268 = scalar_lea.sflag [#allocation6], %s267
        %s269 = sand.u32 %s181, 1
        %s270 = smul.addr %s269, 64
        %s271 = scalar_lea.vmem [#allocation5], %s270
        %p272 = scmp.lt.s32.totalorder %s21, 1
        %s273 = scalar_select %p272, %s21, 1
        %s274 = smul.addr %s273, 8
        %s275 = smul.addr %s274, 8
        %s276 = scalar_lea.vmem %s0, %s275
        %vm277 = vcmask 523264
        %278 = vst.msk [vmem:[#allocation2] sm:$0xff] %vm277, 0.0
        %279 = vst.msk [vmem:[#allocation2 + $0x8] sm:$0xff] %vm277, 0.0
        %vm280 = vcmask 516096
        %281 = vst.msk [vmem:[#allocation2 + $0x10] sm:$0x1] %vm280, 0.0
        %282 = vst.msk [vmem:[#allocation2 + $0x18] sm:$0xff] %vm277, 0.0
        %283 = vst.msk [vmem:[#allocation2 + $0x20] sm:$0xff] %vm277, 0.0
        %284 = vst.msk [vmem:[#allocation2 + $0x28] sm:$0x1] %vm280, 0.0
        %285 = vst.msk [vmem:[#allocation2 + $0x30] sm:$0xff] %vm277, 0.0
        %286 = vst.msk [vmem:[#allocation2 + $0x38] sm:$0xff] %vm277, 0.0
        %287 = vst.msk [vmem:[#allocation2 + $0x40] sm:$0x1] %vm280, 0.0
        %288 = vst.msk [vmem:[#allocation2 + $0x48] sm:$0xff] %vm277, 0.0
        %289 = vst.msk [vmem:[#allocation2 + $0x50] sm:$0xff] %vm277, 0.0
        %290 = vst.msk [vmem:[#allocation2 + $0x58] sm:$0x1] %vm280, 0.0
        %291 = vst.msk [vmem:[#allocation2 + $0x60] sm:$0xff] %vm277, 0.0
        %292 = vst.msk [vmem:[#allocation2 + $0x68] sm:$0xff] %vm277, 0.0
        %293 = vst.msk [vmem:[#allocation2 + $0x70] sm:$0x1] %vm280, 0.0
        %294 = vst.msk [vmem:[#allocation2 + $0x78] sm:$0xff] %vm277, 0.0
        %295 = vst.msk [vmem:[#allocation2 + $0x80] sm:$0xff] %vm277, 0.0
        %296 = vst.msk [vmem:[#allocation2 + $0x88] sm:$0x1] %vm280, 0.0
        %297 = vst.msk [vmem:[#allocation2 + $0x90] sm:$0xff] %vm277, 0.0
        %298 = vst.msk [vmem:[#allocation2 + $0x98] sm:$0xff] %vm277, 0.0
        %299 = vst.msk [vmem:[#allocation2 + $0xa0] sm:$0x1] %vm280, 0.0
        %300 = vst.msk [vmem:[#allocation2 + $0xa8] sm:$0xff] %vm277, 0.0
        %301 = vst.msk [vmem:[#allocation2 + $0xb0] sm:$0xff] %vm277, 0.0
        %302 = vst.msk [vmem:[#allocation2 + $0xb8] sm:$0x1] %vm280, 0.0
        %303 = vst.msk [vmem:[#allocation2 + $0xc0] sm:$0xff] %vm277, 0.0
        %304 = vst.msk [vmem:[#allocation2 + $0xc8] sm:$0xff] %vm277, 0.0
        %305 = vst.msk [vmem:[#allocation2 + $0xd0] sm:$0x1] %vm280, 0.0
        %306 = vst.msk [vmem:[#allocation2 + $0xd8] sm:$0xff] %vm277, 0.0
        %307 = vst.msk [vmem:[#allocation2 + $0xe0] sm:$0xff] %vm277, 0.0
        %308 = vst.msk [vmem:[#allocation2 + $0xe8] sm:$0x1] %vm280, 0.0
        %309 = vst [vmem:[#allocation3] sm:$0xff] 0.0
        %310 = vst [vmem:[#allocation3 + $0x8] sm:$0xff] 0.0
        %311 = vst [vmem:[#allocation3 + $0x10] sm:$0x1] 0.0
        %312 = vst [vmem:[#allocation3 + $0x18] sm:$0xff] 0.0
        %313 = vst [vmem:[#allocation3 + $0x20] sm:$0xff] 0.0
        %314 = vst [vmem:[#allocation3 + $0x28] sm:$0x1] 0.0
        %315 = vst [vmem:[#allocation3 + $0x30] sm:$0xff] 0.0
        %316 = vst [vmem:[#allocation3 + $0x38] sm:$0xff] 0.0
        %317 = vst [vmem:[#allocation3 + $0x40] sm:$0x1] 0.0
        %318 = vst [vmem:[#allocation3 + $0x48] sm:$0xff] 0.0
        %319 = vst [vmem:[#allocation3 + $0x50] sm:$0xff] 0.0
        %320 = vst [vmem:[#allocation3 + $0x58] sm:$0x1] 0.0
        %321 = vst [vmem:[#allocation3 + $0x60] sm:$0xff] 0.0
        %322 = vst [vmem:[#allocation3 + $0x68] sm:$0xff] 0.0
        %323 = vst [vmem:[#allocation3 + $0x70] sm:$0x1] 0.0
        %324 = vst [vmem:[#allocation3 + $0x78] sm:$0xff] 0.0
        %325 = vst [vmem:[#allocation3 + $0x80] sm:$0xff] 0.0
        %326 = vst [vmem:[#allocation3 + $0x88] sm:$0x1] 0.0
        %327 = vst [vmem:[#allocation3 + $0x90] sm:$0xff] 0.0
        %328 = vst [vmem:[#allocation3 + $0x98] sm:$0xff] 0.0
        %329 = vst [vmem:[#allocation3 + $0xa0] sm:$0x1] 0.0
        %330 = vst [vmem:[#allocation3 + $0xa8] sm:$0xff] 0.0
        %331 = vst [vmem:[#allocation3 + $0xb0] sm:$0xff] 0.0
        %332 = vst [vmem:[#allocation3 + $0xb8] sm:$0x1] 0.0
        %333 = vst [vmem:[#allocation3 + $0xc0] sm:$0xff] 0.0
        %334 = vst [vmem:[#allocation3 + $0xc8] sm:$0xff] 0.0
        %335 = vst [vmem:[#allocation3 + $0xd0] sm:$0x1] 0.0
        %336 = vst [vmem:[#allocation3 + $0xd8] sm:$0xff] 0.0
        %337 = vst [vmem:[#allocation3 + $0xe0] sm:$0xff] 0.0
        %338 = vst [vmem:[#allocation3 + $0xe8] sm:$0x1] 0.0
        %339 = vst [vmem:[#allocation4] sm:$0xff] 0.0
        %340 = vst [vmem:[#allocation4 + $0x8] sm:$0xff] 0.0
        %341 = vst [vmem:[#allocation4 + $0x10] sm:$0xff] 0.0
        %342 = vst [vmem:[#allocation4 + $0x18] sm:$0xff] 0.0
        %343 = vst [vmem:[#allocation4 + $0x20] sm:$0xff] 0.0
        %344 = vst [vmem:[#allocation4 + $0x28] sm:$0xff] 0.0
        %345 = vst [vmem:[#allocation4 + $0x30] sm:$0xff] 0.0
        %346 = vst [vmem:[#allocation4 + $0x38] sm:$0xff] 0.0
        %347 = vst [vmem:[#allocation4 + $0x40] sm:$0xff] 0.0
        %348 = vst [vmem:[#allocation4 + $0x48] sm:$0xff] 0.0
        %349 = vst [vmem:[#allocation4 + $0x50] sm:$0xff] 0.0
        %350 = vst [vmem:[#allocation4 + $0x58] sm:$0xff] 0.0
        %351 = vst [vmem:[#allocation4 + $0x60] sm:$0xff] 0.0
        %352 = vst [vmem:[#allocation4 + $0x68] sm:$0xff] 0.0
        %353 = vst [vmem:[#allocation4 + $0x70] sm:$0xff] 0.0
        %354 = vst [vmem:[#allocation4 + $0x78] sm:$0xff] 0.0
        %355 = vst [vmem:[#allocation4 + $0x80] sm:$0xff] 0.0
        %356 = vst [vmem:[#allocation4 + $0x88] sm:$0xff] 0.0
        %357 = vst [vmem:[#allocation4 + $0x90] sm:$0xff] 0.0
        %358 = vst [vmem:[#allocation4 + $0x98] sm:$0xff] 0.0
        %359 = vst [vmem:[#allocation4 + $0xa0] sm:$0xff] 0.0
        %360 = vst [vmem:[#allocation4 + $0xa8] sm:$0xff] 0.0
        %361 = vst [vmem:[#allocation4 + $0xb0] sm:$0xff] 0.0
        %362 = vst [vmem:[#allocation4 + $0xb8] sm:$0xff] 0.0
        %363 = vst [vmem:[#allocation4 + $0xc0] sm:$0xff] 0.0
        %364 = vst [vmem:[#allocation4 + $0xc8] sm:$0xff] 0.0
        %365 = vst [vmem:[#allocation4 + $0xd0] sm:$0xff] 0.0
        %366 = vst [vmem:[#allocation4 + $0xd8] sm:$0xff] 0.0
        %367 = vst [vmem:[#allocation4 + $0xe0] sm:$0xff] 0.0
        %368 = vst [vmem:[#allocation4 + $0xe8] sm:$0xff] 0.0
        %369 = vst [vmem:[#allocation4 + $0xf0] sm:$0xff] 0.0
        %370 = vst [vmem:[#allocation4 + $0xf8] sm:$0xff] 0.0
        %371 = vst [vmem:[#allocation4 + $0x100] sm:$0xff] 0.0
        %372 = vst [vmem:[#allocation4 + $0x108] sm:$0xff] 0.0
        %373 = vst [vmem:[#allocation4 + $0x110] sm:$0xff] 0.0
        %374 = vst [vmem:[#allocation4 + $0x118] sm:$0xff] 0.0
        %375 = vst [vmem:[#allocation4 + $0x120] sm:$0xff] 0.0
        %376 = vst [vmem:[#allocation4 + $0x128] sm:$0xff] 0.0
        %377 = vst [vmem:[#allocation4 + $0x130] sm:$0xff] 0.0
        %378 = vst [vmem:[#allocation4 + $0x138] sm:$0xff] 0.0
        %379 = vst [vmem:[#allocation4 + $0x140] sm:$0xff] 0.0
        %380 = vst [vmem:[#allocation4 + $0x148] sm:$0xff] 0.0
        %381 = vst [vmem:[#allocation4 + $0x150] sm:$0xff] 0.0
        %382 = vst [vmem:[#allocation4 + $0x158] sm:$0xff] 0.0
        %383 = vst [vmem:[#allocation4 + $0x160] sm:$0xff] 0.0
        %384 = vst [vmem:[#allocation4 + $0x168] sm:$0xff] 0.0
        %385 = vst [vmem:[#allocation4 + $0x170] sm:$0xff] 0.0
        %386 = vst [vmem:[#allocation4 + $0x178] sm:$0xff] 0.0
        %387 = vst [vmem:[#allocation4 + $0x180] sm:$0xff] 0.0
        %388 = vst [vmem:[#allocation4 + $0x188] sm:$0xff] 0.0
        %389 = vst [vmem:[#allocation4 + $0x190] sm:$0xff] 0.0
        %390 = vst [vmem:[#allocation4 + $0x198] sm:$0xff] 0.0
        %391 = vst [vmem:[#allocation4 + $0x1a0] sm:$0xff] 0.0
        %392 = vst [vmem:[#allocation4 + $0x1a8] sm:$0xff] 0.0
        %393 = vst [vmem:[#allocation4 + $0x1b0] sm:$0xff] 0.0
        %394 = vst [vmem:[#allocation4 + $0x1b8] sm:$0xff] 0.0
        %395 = vst [vmem:[#allocation4 + $0x1c0] sm:$0xff] 0.0
        %396 = vst [vmem:[#allocation4 + $0x1c8] sm:$0xff] 0.0
        %397 = vst [vmem:[#allocation4 + $0x1d0] sm:$0xff] 0.0
        %398 = vst [vmem:[#allocation4 + $0x1d8] sm:$0xff] 0.0
        %399 = vst [vmem:[#allocation4 + $0x1e0] sm:$0xff] 0.0
        %400 = vst [vmem:[#allocation4 + $0x1e8] sm:$0xff] 0.0
        %401 = vst [vmem:[#allocation4 + $0x1f0] sm:$0xff] 0.0
        %402 = vst [vmem:[#allocation4 + $0x1f8] sm:$0xff] 0.0
        %403 = vst [vmem:[#allocation4 + $0x200] sm:$0xff] 0.0
        %404 = vst [vmem:[#allocation4 + $0x208] sm:$0xff] 0.0
        %405 = vst [vmem:[#allocation4 + $0x210] sm:$0xff] 0.0
        %406 = vst [vmem:[#allocation4 + $0x218] sm:$0xff] 0.0
        %407 = vst [vmem:[#allocation4 + $0x220] sm:$0xff] 0.0
        %408 = vst [vmem:[#allocation4 + $0x228] sm:$0xff] 0.0
        %409 = vst [vmem:[#allocation4 + $0x230] sm:$0xff] 0.0
        %410 = vst [vmem:[#allocation4 + $0x238] sm:$0xff] 0.0
        %v411 = vld [vmem:[%s276] sm:$0xff]
        %v412 = vld [vmem:[%s276 + $0x8] sm:$0xff]
        %v413 = vld [vmem:[%s276 + $0x10] sm:$0xff]
        %v414 = vld [vmem:[%s276 + $0x18] sm:$0xff]
        %v415 = vld [vmem:[%s276 + $0x20] sm:$0xff]
        %v416 = vld [vmem:[%s276 + $0x28] sm:$0xff]
        %v417 = vld [vmem:[%s276 + $0x30] sm:$0xff]
        %v418 = vld [vmem:[%s276 + $0x38] sm:$0xff]
        %s419 = scalar_lea.vmem [#allocation2], 24
        %420 = vst.msk [vmem:[%s419 + $0x8] sm:$0xff] %vm277, %v411
        %421 = vst.msk [vmem:[%s419 + $0x20] sm:$0xff] %vm277, %v412
        %422 = vst.msk [vmem:[%s419 + $0x38] sm:$0xff] %vm277, %v413
        %423 = vst.msk [vmem:[%s419 + $0x50] sm:$0xff] %vm277, %v414
        %424 = vst.msk [vmem:[%s419 + $0x68] sm:$0xff] %vm277, %v415
        %425 = vst.msk [vmem:[%s419 + $0x80] sm:$0xff] %vm277, %v416
        %426 = vst.msk [vmem:[%s419 + $0x98] sm:$0xff] %vm277, %v417
        %427 = vst.msk [vmem:[%s419 + $0xb0] sm:$0xff] %vm277, %v418
        %v428 = vld [vmem:[#allocation2] sm:$0xff]
        %v429 = vld [vmem:[#allocation2 + $0x8] sm:$0xff]
        %v430 = vld [vmem:[#allocation2 + $0x10] sm:$0x1]
        %v431 = vld [vmem:[#allocation2 + $0x18] sm:$0xff]
        %v432 = vld [vmem:[#allocation2 + $0x20] sm:$0xff]
        %v433 = vld [vmem:[#allocation2 + $0x28] sm:$0x1]
        %v434 = vld [vmem:[#allocation2 + $0x30] sm:$0xff]
        %v435 = vld [vmem:[#allocation2 + $0x38] sm:$0xff]
        %v436 = vld [vmem:[#allocation2 + $0x40] sm:$0x1]
        %v437 = vld [vmem:[#allocation2 + $0x48] sm:$0xff]
        %v438 = vld [vmem:[#allocation2 + $0x50] sm:$0xff]
        %v439 = vld [vmem:[#allocation2 + $0x58] sm:$0x1]
        %v440 = vld [vmem:[#allocation2 + $0x60] sm:$0xff]
        %v441 = vld [vmem:[#allocation2 + $0x68] sm:$0xff]
        %v442 = vld [vmem:[#allocation2 + $0x70] sm:$0x1]
        %v443 = vld [vmem:[#allocation2 + $0x78] sm:$0xff]
        %v444 = vld [vmem:[#allocation2 + $0x80] sm:$0xff]
        %v445 = vld [vmem:[#allocation2 + $0x88] sm:$0x1]
        %v446 = vld [vmem:[#allocation2 + $0x90] sm:$0xff]
        %v447 = vld [vmem:[#allocation2 + $0x98] sm:$0xff]
        %v448 = vld [vmem:[#allocation2 + $0xa0] sm:$0x1]
        %v449 = vld [vmem:[#allocation2 + $0xa8] sm:$0xff]
        %v450 = vld [vmem:[#allocation2 + $0xb0] sm:$0xff]
        %v451 = vld [vmem:[#allocation2 + $0xb8] sm:$0x1]
        %v452 = vld [vmem:[#allocation2 + $0xc0] sm:$0xff]
        %v453 = vld [vmem:[#allocation2 + $0xc8] sm:$0xff]
        %v454 = vld [vmem:[#allocation2 + $0xd0] sm:$0x1]
        %v455 = vld [vmem:[#allocation2 + $0xd8] sm:$0xff]
        %v456 = vld [vmem:[#allocation2 + $0xe0] sm:$0xff]
        %v457 = vld [vmem:[#allocation2 + $0xe8] sm:$0x1]
        %vm474 = vcmask 1040384
        %v475 = vrot.slane %v428, 7
        %v476 = vrot.slane %v429, 7
        %v477 = vsel %vm474, %v475, %v476
        %v478 = vrot.slane %v431, 7
        %v479 = vrot.slane %v432, 7
        %v480 = vsel %vm474, %v478, %v479
        %v481 = vrot.slane %v434, 7
        %v482 = vrot.slane %v435, 7
        %v483 = vsel %vm474, %v481, %v482
        %v484 = vrot.slane %v437, 7
        %v485 = vrot.slane %v438, 7
        %v486 = vsel %vm474, %v484, %v485
        %v487 = vrot.slane %v440, 7
        %v488 = vrot.slane %v441, 7
        %v489 = vsel %vm474, %v487, %v488
        %v490 = vrot.slane %v443, 7
        %v491 = vrot.slane %v444, 7
        %v492 = vsel %vm474, %v490, %v491
        %v493 = vrot.slane %v446, 7
        %v494 = vrot.slane %v447, 7
        %v495 = vsel %vm474, %v493, %v494
        %v496 = vrot.slane %v449, 7
        %v497 = vrot.slane %v450, 7
        %v498 = vsel %vm474, %v496, %v497
        %507 = vst.msk [vmem:[#allocation4] sm:$0xff] %vm277, %v477
        %508 = vst.msk [vmem:[#allocation4 + $0x48] sm:$0xff] %vm277, %v480
        %509 = vst.msk [vmem:[#allocation4 + $0x90] sm:$0xff] %vm277, %v483
        %510 = vst.msk [vmem:[#allocation4 + $0xd8] sm:$0xff] %vm277, %v486
        %511 = vst.msk [vmem:[#allocation4 + $0x120] sm:$0xff] %vm277, %v489
        %512 = vst.msk [vmem:[#allocation4 + $0x168] sm:$0xff] %vm277, %v492
        %513 = vst.msk [vmem:[#allocation4 + $0x1b0] sm:$0xff] %vm277, %v495
        %514 = vst.msk [vmem:[#allocation4 + $0x1f8] sm:$0xff] %vm277, %v498
        %515 = vst.msk [vmem:[#allocation4 + $0x8] sm:$0xff] %vm277, %v429
        %516 = vst.msk [vmem:[#allocation4 + $0x50] sm:$0xff] %vm277, %v432
        %517 = vst.msk [vmem:[#allocation4 + $0x98] sm:$0xff] %vm277, %v435
        %518 = vst.msk [vmem:[#allocation4 + $0xe0] sm:$0xff] %vm277, %v438
        %519 = vst.msk [vmem:[#allocation4 + $0x128] sm:$0xff] %vm277, %v441
        %520 = vst.msk [vmem:[#allocation4 + $0x170] sm:$0xff] %vm277, %v444
        %521 = vst.msk [vmem:[#allocation4 + $0x1b8] sm:$0xff] %vm277, %v447
        %522 = vst.msk [vmem:[#allocation4 + $0x200] sm:$0xff] %vm277, %v450
        %vm531 = vcmask 1046528
        %v532 = vrot.slane %v429, 1
        %v533 = vrot.slane %v430, 1
        %v534 = vsel %vm531, %v532, %v533
        %v535 = vrot.slane %v432, 1
        %v536 = vrot.slane %v433, 1
        %v537 = vsel %vm531, %v535, %v536
        %v538 = vrot.slane %v435, 1
        %v539 = vrot.slane %v436, 1
        %v540 = vsel %vm531, %v538, %v539
        %v541 = vrot.slane %v438, 1
        %v542 = vrot.slane %v439, 1
        %v543 = vsel %vm531, %v541, %v542
        %v544 = vrot.slane %v441, 1
        %v545 = vrot.slane %v442, 1
        %v546 = vsel %vm531, %v544, %v545
        %v547 = vrot.slane %v444, 1
        %v548 = vrot.slane %v445, 1
        %v549 = vsel %vm531, %v547, %v548
        %v550 = vrot.slane %v447, 1
        %v551 = vrot.slane %v448, 1
        %v552 = vsel %vm531, %v550, %v551
        %v553 = vrot.slane %v450, 1
        %v554 = vrot.slane %v451, 1
        %v555 = vsel %vm531, %v553, %v554
        %564 = vst.msk [vmem:[#allocation4 + $0x10] sm:$0xff] %vm277, %v534
        %565 = vst.msk [vmem:[#allocation4 + $0x58] sm:$0xff] %vm277, %v537
        %566 = vst.msk [vmem:[#allocation4 + $0xa0] sm:$0xff] %vm277, %v540
        %567 = vst.msk [vmem:[#allocation4 + $0xe8] sm:$0xff] %vm277, %v543
        %568 = vst.msk [vmem:[#allocation4 + $0x130] sm:$0xff] %vm277, %v546
        %569 = vst.msk [vmem:[#allocation4 + $0x178] sm:$0xff] %vm277, %v549
        %570 = vst.msk [vmem:[#allocation4 + $0x1c0] sm:$0xff] %vm277, %v552
        %571 = vst.msk [vmem:[#allocation4 + $0x208] sm:$0xff] %vm277, %v555
        %v574 = vrot.slane %v452, 7
        %v575 = vrot.slane %v453, 7
        %v576 = vsel %vm474, %v574, %v575
        %578 = vst.msk [vmem:[#allocation4 + $0x18] sm:$0xff] %vm277, %v480
        %579 = vst.msk [vmem:[#allocation4 + $0x60] sm:$0xff] %vm277, %v483
        %580 = vst.msk [vmem:[#allocation4 + $0xa8] sm:$0xff] %vm277, %v486
        %581 = vst.msk [vmem:[#allocation4 + $0xf0] sm:$0xff] %vm277, %v489
        %582 = vst.msk [vmem:[#allocation4 + $0x138] sm:$0xff] %vm277, %v492
        %583 = vst.msk [vmem:[#allocation4 + $0x180] sm:$0xff] %vm277, %v495
        %584 = vst.msk [vmem:[#allocation4 + $0x1c8] sm:$0xff] %vm277, %v498
        %585 = vst.msk [vmem:[#allocation4 + $0x210] sm:$0xff] %vm277, %v576
        %586 = vst.msk [vmem:[#allocation4 + $0x20] sm:$0xff] %vm277, %v432
        %587 = vst.msk [vmem:[#allocation4 + $0x68] sm:$0xff] %vm277, %v435
        %588 = vst.msk [vmem:[#allocation4 + $0xb0] sm:$0xff] %vm277, %v438
        %589 = vst.msk [vmem:[#allocation4 + $0xf8] sm:$0xff] %vm277, %v441
        %590 = vst.msk [vmem:[#allocation4 + $0x140] sm:$0xff] %vm277, %v444
        %591 = vst.msk [vmem:[#allocation4 + $0x188] sm:$0xff] %vm277, %v447
        %592 = vst.msk [vmem:[#allocation4 + $0x1d0] sm:$0xff] %vm277, %v450
        %593 = vst.msk [vmem:[#allocation4 + $0x218] sm:$0xff] %vm277, %v453
        %v595 = vrot.slane %v453, 1
        %v596 = vrot.slane %v454, 1
        %v597 = vsel %vm531, %v595, %v596
        %599 = vst.msk [vmem:[#allocation4 + $0x28] sm:$0xff] %vm277, %v537
        %600 = vst.msk [vmem:[#allocation4 + $0x70] sm:$0xff] %vm277, %v540
        %601 = vst.msk [vmem:[#allocation4 + $0xb8] sm:$0xff] %vm277, %v543
        %602 = vst.msk [vmem:[#allocation4 + $0x100] sm:$0xff] %vm277, %v546
        %603 = vst.msk [vmem:[#allocation4 + $0x148] sm:$0xff] %vm277, %v549
        %604 = vst.msk [vmem:[#allocation4 + $0x190] sm:$0xff] %vm277, %v552
        %605 = vst.msk [vmem:[#allocation4 + $0x1d8] sm:$0xff] %vm277, %v555
        %606 = vst.msk [vmem:[#allocation4 + $0x220] sm:$0xff] %vm277, %v597
        %v609 = vrot.slane %v455, 7
        %v610 = vrot.slane %v456, 7
        %v611 = vsel %vm474, %v609, %v610
        %613 = vst.msk [vmem:[#allocation4 + $0x30] sm:$0xff] %vm277, %v483
        %614 = vst.msk [vmem:[#allocation4 + $0x78] sm:$0xff] %vm277, %v486
        %615 = vst.msk [vmem:[#allocation4 + $0xc0] sm:$0xff] %vm277, %v489
        %616 = vst.msk [vmem:[#allocation4 + $0x108] sm:$0xff] %vm277, %v492
        %617 = vst.msk [vmem:[#allocation4 + $0x150] sm:$0xff] %vm277, %v495
        %618 = vst.msk [vmem:[#allocation4 + $0x198] sm:$0xff] %vm277, %v498
        %619 = vst.msk [vmem:[#allocation4 + $0x1e0] sm:$0xff] %vm277, %v576
        %620 = vst.msk [vmem:[#allocation4 + $0x228] sm:$0xff] %vm277, %v611
        %621 = vst.msk [vmem:[#allocation4 + $0x38] sm:$0xff] %vm277, %v435
        %622 = vst.msk [vmem:[#allocation4 + $0x80] sm:$0xff] %vm277, %v438
        %623 = vst.msk [vmem:[#allocation4 + $0xc8] sm:$0xff] %vm277, %v441
        %624 = vst.msk [vmem:[#allocation4 + $0x110] sm:$0xff] %vm277, %v444
        %625 = vst.msk [vmem:[#allocation4 + $0x158] sm:$0xff] %vm277, %v447
        %626 = vst.msk [vmem:[#allocation4 + $0x1a0] sm:$0xff] %vm277, %v450
        %627 = vst.msk [vmem:[#allocation4 + $0x1e8] sm:$0xff] %vm277, %v453
        %628 = vst.msk [vmem:[#allocation4 + $0x230] sm:$0xff] %vm277, %v456
        %v630 = vrot.slane %v456, 1
        %v631 = vrot.slane %v457, 1
        %v632 = vsel %vm531, %v630, %v631
        %634 = vst.msk [vmem:[#allocation4 + $0x40] sm:$0xff] %vm277, %v540
        %635 = vst.msk [vmem:[#allocation4 + $0x88] sm:$0xff] %vm277, %v543
        %636 = vst.msk [vmem:[#allocation4 + $0xd0] sm:$0xff] %vm277, %v546
        %637 = vst.msk [vmem:[#allocation4 + $0x118] sm:$0xff] %vm277, %v549
        %638 = vst.msk [vmem:[#allocation4 + $0x160] sm:$0xff] %vm277, %v552
        %639 = vst.msk [vmem:[#allocation4 + $0x1a8] sm:$0xff] %vm277, %v555
        %640 = vst.msk [vmem:[#allocation4 + $0x1f0] sm:$0xff] %vm277, %v597
        %641 = vst.msk [vmem:[#allocation4 + $0x238] sm:$0xff] %vm277, %v632
        %v642 = vld [vmem:[#allocation4] sm:$0xff]
        %v643 = vld [vmem:[#allocation4 + $0x8] sm:$0xff]
        %v644 = vld [vmem:[#allocation4 + $0x10] sm:$0xff]
        %v645 = vld [vmem:[#allocation4 + $0x18] sm:$0xff]
        %v646 = vld [vmem:[#allocation4 + $0x20] sm:$0xff]
        %v647 = vld [vmem:[#allocation4 + $0x28] sm:$0xff]
        %v648 = vld [vmem:[#allocation4 + $0x30] sm:$0xff]
        %v649 = vld [vmem:[#allocation4 + $0x38] sm:$0xff]
        %v650 = vld [vmem:[#allocation4 + $0x40] sm:$0xff]
        %v651 = vld [vmem:[#allocation4 + $0x48] sm:$0xff]
        %v652 = vld [vmem:[#allocation4 + $0x50] sm:$0xff]
        %v653 = vld [vmem:[#allocation4 + $0x58] sm:$0xff]
        %v654 = vld [vmem:[#allocation4 + $0x60] sm:$0xff]
        %v655 = vld [vmem:[#allocation4 + $0x68] sm:$0xff]
        %v656 = vld [vmem:[#allocation4 + $0x70] sm:$0xff]
        %v657 = vld [vmem:[#allocation4 + $0x78] sm:$0xff]
        %v658 = vld [vmem:[#allocation4 + $0x80] sm:$0xff]
        %v659 = vld [vmem:[#allocation4 + $0x88] sm:$0xff]
        %v660 = vld [vmem:[#allocation4 + $0x90] sm:$0xff]
        %v661 = vld [vmem:[#allocation4 + $0x98] sm:$0xff]
        %v662 = vld [vmem:[#allocation4 + $0xa0] sm:$0xff]
        %v663 = vld [vmem:[#allocation4 + $0xa8] sm:$0xff]
        %v664 = vld [vmem:[#allocation4 + $0xb0] sm:$0xff]
        %v665 = vld [vmem:[#allocation4 + $0xb8] sm:$0xff]
        %v666 = vld [vmem:[#allocation4 + $0xc0] sm:$0xff]
        %v667 = vld [vmem:[#allocation4 + $0xc8] sm:$0xff]
        %v668 = vld [vmem:[#allocation4 + $0xd0] sm:$0xff]
        %v669 = vld [vmem:[#allocation4 + $0xd8] sm:$0xff]
        %v670 = vld [vmem:[#allocation4 + $0xe0] sm:$0xff]
        %v671 = vld [vmem:[#allocation4 + $0xe8] sm:$0xff]
        %v672 = vld [vmem:[#allocation4 + $0xf0] sm:$0xff]
        %v673 = vld [vmem:[#allocation4 + $0xf8] sm:$0xff]
        %v674 = vld [vmem:[#allocation4 + $0x100] sm:$0xff]
        %v675 = vld [vmem:[#allocation4 + $0x108] sm:$0xff]
        %v676 = vld [vmem:[#allocation4 + $0x110] sm:$0xff]
        %v677 = vld [vmem:[#allocation4 + $0x118] sm:$0xff]
        %v678 = vld [vmem:[#allocation4 + $0x120] sm:$0xff]
        %v679 = vld [vmem:[#allocation4 + $0x128] sm:$0xff]
        %v680 = vld [vmem:[#allocation4 + $0x130] sm:$0xff]
        %v681 = vld [vmem:[#allocation4 + $0x138] sm:$0xff]
        %v682 = vld [vmem:[#allocation4 + $0x140] sm:$0xff]
        %v683 = vld [vmem:[#allocation4 + $0x148] sm:$0xff]
        %v684 = vld [vmem:[#allocation4 + $0x150] sm:$0xff]
        %v685 = vld [vmem:[#allocation4 + $0x158] sm:$0xff]
        %v686 = vld [vmem:[#allocation4 + $0x160] sm:$0xff]
        %v687 = vld [vmem:[#allocation4 + $0x168] sm:$0xff]
        %v688 = vld [vmem:[#allocation4 + $0x170] sm:$0xff]
        %v689 = vld [vmem:[#allocation4 + $0x178] sm:$0xff]
        %v690 = vld [vmem:[#allocation4 + $0x180] sm:$0xff]
        %v691 = vld [vmem:[#allocation4 + $0x188] sm:$0xff]
        %v692 = vld [vmem:[#allocation4 + $0x190] sm:$0xff]
        %v693 = vld [vmem:[#allocation4 + $0x198] sm:$0xff]
        %v694 = vld [vmem:[#allocation4 + $0x1a0] sm:$0xff]
        %v695 = vld [vmem:[#allocation4 + $0x1a8] sm:$0xff]
        %v696 = vld [vmem:[#allocation4 + $0x1b0] sm:$0xff]
        %v697 = vld [vmem:[#allocation4 + $0x1b8] sm:$0xff]
        %v698 = vld [vmem:[#allocation4 + $0x1c0] sm:$0xff]
        %v699 = vld [vmem:[#allocation4 + $0x1c8] sm:$0xff]
        %v700 = vld [vmem:[#allocation4 + $0x1d0] sm:$0xff]
        %v701 = vld [vmem:[#allocation4 + $0x1d8] sm:$0xff]
        %v702 = vld [vmem:[#allocation4 + $0x1e0] sm:$0xff]
        %v703 = vld [vmem:[#allocation4 + $0x1e8] sm:$0xff]
        %v704 = vld [vmem:[#allocation4 + $0x1f0] sm:$0xff]
        %v705 = vld [vmem:[#allocation4 + $0x1f8] sm:$0xff]
        %v706 = vld [vmem:[#allocation4 + $0x200] sm:$0xff]
        %v707 = vld [vmem:[#allocation4 + $0x208] sm:$0xff]
        %v708 = vld [vmem:[#allocation4 + $0x210] sm:$0xff]
        %v709 = vld [vmem:[#allocation4 + $0x218] sm:$0xff]
        %v710 = vld [vmem:[#allocation4 + $0x220] sm:$0xff]
        %v711 = vld [vmem:[#allocation4 + $0x228] sm:$0xff]
        %v712 = vld [vmem:[#allocation4 + $0x230] sm:$0xff]
        %v713 = vld [vmem:[#allocation4 + $0x238] sm:$0xff]
        %v714 = vpack.c.bf16 %v651, %v642
        %v715 = vpack.c.bf16 %v652, %v643
        %v716 = vpack.c.bf16 %v653, %v644
        %v717 = vpack.c.bf16 %v654, %v645
        %v718 = vpack.c.bf16 %v655, %v646
        %v719 = vpack.c.bf16 %v656, %v647
        %v720 = vpack.c.bf16 %v657, %v648
        %v721 = vpack.c.bf16 %v658, %v649
        %v722 = vpack.c.bf16 %v659, %v650
        %v723 = vpack.c.bf16 %v669, %v660
        %v724 = vpack.c.bf16 %v670, %v661
        %v725 = vpack.c.bf16 %v671, %v662
        %v726 = vpack.c.bf16 %v672, %v663
        %v727 = vpack.c.bf16 %v673, %v664
        %v728 = vpack.c.bf16 %v674, %v665
        %v729 = vpack.c.bf16 %v675, %v666
        %v730 = vpack.c.bf16 %v676, %v667
        %v731 = vpack.c.bf16 %v677, %v668
        %v732 = vpack.c.bf16 %v687, %v678
        %v733 = vpack.c.bf16 %v688, %v679
        %v734 = vpack.c.bf16 %v689, %v680
        %v735 = vpack.c.bf16 %v690, %v681
        %v736 = vpack.c.bf16 %v691, %v682
        %v737 = vpack.c.bf16 %v692, %v683
        %v738 = vpack.c.bf16 %v693, %v684
        %v739 = vpack.c.bf16 %v694, %v685
        %v740 = vpack.c.bf16 %v695, %v686
        %v741 = vpack.c.bf16 %v705, %v696
        %v742 = vpack.c.bf16 %v706, %v697
        %v743 = vpack.c.bf16 %v707, %v698
        %v744 = vpack.c.bf16 %v708, %v699
        %v745 = vpack.c.bf16 %v709, %v700
        %v746 = vpack.c.bf16 %v710, %v701
        %v747 = vpack.c.bf16 %v711, %v702
        %v748 = vpack.c.bf16 %v712, %v703
        %v749 = vpack.c.bf16 %v713, %v704
        %v750 = vld [vmem:[%s1] sm:$0xf]
        %v751 = vld [vmem:[%s1 + $0x4] sm:$0xf]
        %v752 = vld [vmem:[%s1 + $0x8] sm:$0xf]
        %v753 = vld [vmem:[%s1 + $0xc] sm:$0xf]
        %v754 = vld [vmem:[%s1 + $0x10] sm:$0xf]
        %v755 = vld [vmem:[%s1 + $0x14] sm:$0xf]
        %v756 = vld [vmem:[%s1 + $0x18] sm:$0xf]
        %v757 = vld [vmem:[%s1 + $0x1c] sm:$0xf]
        %v758 = vld [vmem:[%s1 + $0x20] sm:$0xf]
        %v759 = vld [vmem:[%s1 + $0x24] sm:$0xf]
        %v760 = vld [vmem:[%s1 + $0x28] sm:$0xf]
        %v761 = vld [vmem:[%s1 + $0x2c] sm:$0xf]
        %v762 = vld [vmem:[%s1 + $0x30] sm:$0xf]
        %v763 = vld [vmem:[%s1 + $0x34] sm:$0xf]
        %v764 = vld [vmem:[%s1 + $0x38] sm:$0xf]
        %v765 = vld [vmem:[%s1 + $0x3c] sm:$0xf]
        %v766 = vld [vmem:[%s1 + $0x40] sm:$0xf]
        %v767 = vld [vmem:[%s1 + $0x44] sm:$0xf]
        %v768 = vld [vmem:[%s1 + $0x48] sm:$0xf]
        %v769 = vld [vmem:[%s1 + $0x4c] sm:$0xf]
        %v770 = vld [vmem:[%s1 + $0x50] sm:$0xf]
        %v771 = vld [vmem:[%s1 + $0x54] sm:$0xf]
        %v772 = vld [vmem:[%s1 + $0x58] sm:$0xf]
        %v773 = vld [vmem:[%s1 + $0x5c] sm:$0xf]
        %v774 = vld [vmem:[%s1 + $0x60] sm:$0xf]
        %v775 = vld [vmem:[%s1 + $0x64] sm:$0xf]
        %v776 = vld [vmem:[%s1 + $0x68] sm:$0xf]
        %v777 = vld [vmem:[%s1 + $0x6c] sm:$0xf]
        %v778 = vld [vmem:[%s1 + $0x70] sm:$0xf]
        %v779 = vld [vmem:[%s1 + $0x74] sm:$0xf]
        %v780 = vld [vmem:[%s1 + $0x78] sm:$0xf]
        %v781 = vld [vmem:[%s1 + $0x7c] sm:$0xf]
        %v782 = vld [vmem:[%s1 + $0x80] sm:$0xf]
        %v783 = vld [vmem:[%s1 + $0x84] sm:$0xf]
        %v784 = vld [vmem:[%s1 + $0x88] sm:$0xf]
        %v785 = vld [vmem:[%s1 + $0x8c] sm:$0xf]
        %v786 = vld [vmem:[%s1 + $0x90] sm:$0xf]
        %v787 = vld [vmem:[%s1 + $0x94] sm:$0xf]
        %v788 = vld [vmem:[%s1 + $0x98] sm:$0xf]
        %v789 = vld [vmem:[%s1 + $0x9c] sm:$0xf]
        %v790 = vld [vmem:[%s1 + $0xa0] sm:$0xf]
        %v791 = vld [vmem:[%s1 + $0xa4] sm:$0xf]
        %v792 = vld [vmem:[%s1 + $0xa8] sm:$0xf]
        %v793 = vld [vmem:[%s1 + $0xac] sm:$0xf]
        %v794 = vld [vmem:[%s1 + $0xb0] sm:$0xf]
        %v795 = vld [vmem:[%s1 + $0xb4] sm:$0xf]
        %v796 = vld [vmem:[%s1 + $0xb8] sm:$0xf]
        %v797 = vld [vmem:[%s1 + $0xbc] sm:$0xf]
        %v798 = vld [vmem:[%s1 + $0xc0] sm:$0xf]
        %v799 = vld [vmem:[%s1 + $0xc4] sm:$0xf]
        %v800 = vld [vmem:[%s1 + $0xc8] sm:$0xf]
        %v801 = vld [vmem:[%s1 + $0xcc] sm:$0xf]
        %v802 = vld [vmem:[%s1 + $0xd0] sm:$0xf]
        %v803 = vld [vmem:[%s1 + $0xd4] sm:$0xf]
        %v804 = vld [vmem:[%s1 + $0xd8] sm:$0xf]
        %v805 = vld [vmem:[%s1 + $0xdc] sm:$0xf]
        %v806 = vld [vmem:[%s1 + $0xe0] sm:$0xf]
        %v807 = vld [vmem:[%s1 + $0xe4] sm:$0xf]
        %v808 = vld [vmem:[%s1 + $0xe8] sm:$0xf]
        %v809 = vld [vmem:[%s1 + $0xec] sm:$0xf]
        %v810 = vld [vmem:[%s1 + $0xf0] sm:$0xf]
        %v811 = vld [vmem:[%s1 + $0xf4] sm:$0xf]
        %v812 = vld [vmem:[%s1 + $0xf8] sm:$0xf]
        %v813 = vld [vmem:[%s1 + $0xfc] sm:$0xf]
        %v814 = vld [vmem:[%s1 + $0x100] sm:$0xf]
        %v815 = vld [vmem:[%s1 + $0x104] sm:$0xf]
        %v816 = vld [vmem:[%s1 + $0x108] sm:$0xf]
        %v817 = vld [vmem:[%s1 + $0x10c] sm:$0xf]
        %v818 = vld [vmem:[%s1 + $0x110] sm:$0xf]
        %v819 = vld [vmem:[%s1 + $0x114] sm:$0xf]
        %v820 = vld [vmem:[%s1 + $0x118] sm:$0xf]
        %v821 = vld [vmem:[%s1 + $0x11c] sm:$0xf]
        %v822 = vld [vmem:[%s1 + $0x120] sm:$0xf]
        %v823 = vld [vmem:[%s1 + $0x124] sm:$0xf]
        %v824 = vld [vmem:[%s1 + $0x128] sm:$0xf]
        %v825 = vld [vmem:[%s1 + $0x12c] sm:$0xf]
        %v826 = vld [vmem:[%s1 + $0x130] sm:$0xf]
        %v827 = vld [vmem:[%s1 + $0x134] sm:$0xf]
        %v828 = vld [vmem:[%s1 + $0x138] sm:$0xf]
        %v829 = vld [vmem:[%s1 + $0x13c] sm:$0xf]
        %v830 = vld [vmem:[%s1 + $0x140] sm:$0xf]
        %v831 = vld [vmem:[%s1 + $0x144] sm:$0xf]
        %v832 = vld [vmem:[%s1 + $0x148] sm:$0xf]
        %v833 = vld [vmem:[%s1 + $0x14c] sm:$0xf]
        %v834 = vld [vmem:[%s1 + $0x150] sm:$0xf]
        %v835 = vld [vmem:[%s1 + $0x154] sm:$0xf]
        %v836 = vld [vmem:[%s1 + $0x158] sm:$0xf]
        %v837 = vld [vmem:[%s1 + $0x15c] sm:$0xf]
        %v838 = vld [vmem:[%s1 + $0x160] sm:$0xf]
        %v839 = vld [vmem:[%s1 + $0x164] sm:$0xf]
        %v840 = vld [vmem:[%s1 + $0x168] sm:$0xf]
        %v841 = vld [vmem:[%s1 + $0x16c] sm:$0xf]
        %v842 = vld [vmem:[%s1 + $0x170] sm:$0xf]
        %v843 = vld [vmem:[%s1 + $0x174] sm:$0xf]
        %v844 = vld [vmem:[%s1 + $0x178] sm:$0xf]
        %v845 = vld [vmem:[%s1 + $0x17c] sm:$0xf]
        %v846 = vld [vmem:[%s1 + $0x180] sm:$0xf]
        %v847 = vld [vmem:[%s1 + $0x184] sm:$0xf]
        %v848 = vld [vmem:[%s1 + $0x188] sm:$0xf]
        %v849 = vld [vmem:[%s1 + $0x18c] sm:$0xf]
        %v850 = vld [vmem:[%s1 + $0x190] sm:$0xf]
        %v851 = vld [vmem:[%s1 + $0x194] sm:$0xf]
        %v852 = vld [vmem:[%s1 + $0x198] sm:$0xf]
        %v853 = vld [vmem:[%s1 + $0x19c] sm:$0xf]
        %v854 = vld [vmem:[%s1 + $0x1a0] sm:$0xf]
        %v855 = vld [vmem:[%s1 + $0x1a4] sm:$0xf]
        %v856 = vld [vmem:[%s1 + $0x1a8] sm:$0xf]
        %v857 = vld [vmem:[%s1 + $0x1ac] sm:$0xf]
        %v858 = vld [vmem:[%s1 + $0x1b0] sm:$0xf]
        %v859 = vld [vmem:[%s1 + $0x1b4] sm:$0xf]
        %v860 = vld [vmem:[%s1 + $0x1b8] sm:$0xf]
        %v861 = vld [vmem:[%s1 + $0x1bc] sm:$0xf]
        %v862 = vld [vmem:[%s1 + $0x1c0] sm:$0xf]
        %v863 = vld [vmem:[%s1 + $0x1c4] sm:$0xf]
        %v864 = vld [vmem:[%s1 + $0x1c8] sm:$0xf]
        %v865 = vld [vmem:[%s1 + $0x1cc] sm:$0xf]
        %v866 = vld [vmem:[%s1 + $0x1d0] sm:$0xf]
        %v867 = vld [vmem:[%s1 + $0x1d4] sm:$0xf]
        %v868 = vld [vmem:[%s1 + $0x1d8] sm:$0xf]
        %v869 = vld [vmem:[%s1 + $0x1dc] sm:$0xf]
        %v870 = vld [vmem:[%s1 + $0x1e0] sm:$0xf]
        %v871 = vld [vmem:[%s1 + $0x1e4] sm:$0xf]
        %v872 = vld [vmem:[%s1 + $0x1e8] sm:$0xf]
        %v873 = vld [vmem:[%s1 + $0x1ec] sm:$0xf]
        %v874 = vld [vmem:[%s1 + $0x1f0] sm:$0xf]
        %v875 = vld [vmem:[%s1 + $0x1f4] sm:$0xf]
        %v876 = vld [vmem:[%s1 + $0x1f8] sm:$0xf]
        %v877 = vld [vmem:[%s1 + $0x1fc] sm:$0xf]
        %v878 = vld [vmem:[%s1 + $0x200] sm:$0xf]
        %v879 = vld [vmem:[%s1 + $0x204] sm:$0xf]
        %v880 = vld [vmem:[%s1 + $0x208] sm:$0xf]
        %v881 = vld [vmem:[%s1 + $0x20c] sm:$0xf]
        %v882 = vld [vmem:[%s1 + $0x210] sm:$0xf]
        %v883 = vld [vmem:[%s1 + $0x214] sm:$0xf]
        %v884 = vld [vmem:[%s1 + $0x218] sm:$0xf]
        %v885 = vld [vmem:[%s1 + $0x21c] sm:$0xf]
        %v886 = vld [vmem:[%s1 + $0x220] sm:$0xf]
        %v887 = vld [vmem:[%s1 + $0x224] sm:$0xf]
        %v888 = vld [vmem:[%s1 + $0x228] sm:$0xf]
        %v889 = vld [vmem:[%s1 + $0x22c] sm:$0xf]
        %v890 = vld [vmem:[%s1 + $0x230] sm:$0xf]
        %v891 = vld [vmem:[%s1 + $0x234] sm:$0xf]
        %v892 = vld [vmem:[%s1 + $0x238] sm:$0xf]
        %v893 = vld [vmem:[%s1 + $0x23c] sm:$0xf]
        %v1038 = vunpack.c.l.b16 %v750
        %v1039 = vunpack.c.l.b16 %v751
        %v1040 = vunpack.c.l.b16 %v752
        %v1041 = vunpack.c.l.b16 %v753
        %v1042 = vunpack.c.l.b16 %v754
        %v1043 = vunpack.c.l.b16 %v755
        %v1044 = vunpack.c.l.b16 %v756
        %v1045 = vunpack.c.l.b16 %v757
        %v1046 = vunpack.c.l.b16 %v758
        %v1047 = vunpack.c.l.b16 %v759
        %v1048 = vunpack.c.l.b16 %v760
        %v1049 = vunpack.c.l.b16 %v761
        %v1050 = vunpack.c.l.b16 %v762
        %v1051 = vunpack.c.l.b16 %v763
        %v1052 = vunpack.c.l.b16 %v764
        %v1053 = vunpack.c.l.b16 %v765
        %v1054 = vunpack.c.l.b16 %v766
        %v1055 = vunpack.c.l.b16 %v767
        %v1056 = vunpack.c.l.b16 %v768
        %v1057 = vunpack.c.l.b16 %v769
        %v1058 = vunpack.c.l.b16 %v770
        %v1059 = vunpack.c.l.b16 %v771
        %v1060 = vunpack.c.l.b16 %v772
        %v1061 = vunpack.c.l.b16 %v773
        %v1062 = vunpack.c.l.b16 %v774
        %v1063 = vunpack.c.l.b16 %v775
        %v1064 = vunpack.c.l.b16 %v776
        %v1065 = vunpack.c.l.b16 %v777
        %v1066 = vunpack.c.l.b16 %v778
        %v1067 = vunpack.c.l.b16 %v779
        %v1068 = vunpack.c.l.b16 %v780
        %v1069 = vunpack.c.l.b16 %v781
        %v1070 = vunpack.c.l.b16 %v782
        %v1071 = vunpack.c.l.b16 %v783
        %v1072 = vunpack.c.l.b16 %v784
        %v1073 = vunpack.c.l.b16 %v785
        %v1074 = vunpack.c.l.b16 %v786
        %v1075 = vunpack.c.l.b16 %v787
        %v1076 = vunpack.c.l.b16 %v788
        %v1077 = vunpack.c.l.b16 %v789
        %v1078 = vunpack.c.l.b16 %v790
        %v1079 = vunpack.c.l.b16 %v791
        %v1080 = vunpack.c.l.b16 %v792
        %v1081 = vunpack.c.l.b16 %v793
        %v1082 = vunpack.c.l.b16 %v794
        %v1083 = vunpack.c.l.b16 %v795
        %v1084 = vunpack.c.l.b16 %v796
        %v1085 = vunpack.c.l.b16 %v797
        %v1086 = vunpack.c.l.b16 %v798
        %v1087 = vunpack.c.l.b16 %v799
        %v1088 = vunpack.c.l.b16 %v800
        %v1089 = vunpack.c.l.b16 %v801
        %v1090 = vunpack.c.l.b16 %v802
        %v1091 = vunpack.c.l.b16 %v803
        %v1092 = vunpack.c.l.b16 %v804
        %v1093 = vunpack.c.l.b16 %v805
        %v1094 = vunpack.c.l.b16 %v806
        %v1095 = vunpack.c.l.b16 %v807
        %v1096 = vunpack.c.l.b16 %v808
        %v1097 = vunpack.c.l.b16 %v809
        %v1098 = vunpack.c.l.b16 %v810
        %v1099 = vunpack.c.l.b16 %v811
        %v1100 = vunpack.c.l.b16 %v812
        %v1101 = vunpack.c.l.b16 %v813
        %v1102 = vunpack.c.l.b16 %v814
        %v1103 = vunpack.c.l.b16 %v815
        %v1104 = vunpack.c.l.b16 %v816
        %v1105 = vunpack.c.l.b16 %v817
        %v1106 = vunpack.c.l.b16 %v818
        %v1107 = vunpack.c.l.b16 %v819
        %v1108 = vunpack.c.l.b16 %v820
        %v1109 = vunpack.c.l.b16 %v821
        %v1110 = vunpack.c.l.b16 %v822
        %v1111 = vunpack.c.l.b16 %v823
        %v1112 = vunpack.c.l.b16 %v824
        %v1113 = vunpack.c.l.b16 %v825
        %v1114 = vunpack.c.l.b16 %v826
        %v1115 = vunpack.c.l.b16 %v827
        %v1116 = vunpack.c.l.b16 %v828
        %v1117 = vunpack.c.l.b16 %v829
        %v1118 = vunpack.c.l.b16 %v830
        %v1119 = vunpack.c.l.b16 %v831
        %v1120 = vunpack.c.l.b16 %v832
        %v1121 = vunpack.c.l.b16 %v833
        %v1122 = vunpack.c.l.b16 %v834
        %v1123 = vunpack.c.l.b16 %v835
        %v1124 = vunpack.c.l.b16 %v836
        %v1125 = vunpack.c.l.b16 %v837
        %v1126 = vunpack.c.l.b16 %v838
        %v1127 = vunpack.c.l.b16 %v839
        %v1128 = vunpack.c.l.b16 %v840
        %v1129 = vunpack.c.l.b16 %v841
        %v1130 = vunpack.c.l.b16 %v842
        %v1131 = vunpack.c.l.b16 %v843
        %v1132 = vunpack.c.l.b16 %v844
        %v1133 = vunpack.c.l.b16 %v845
        %v1134 = vunpack.c.l.b16 %v846
        %v1135 = vunpack.c.l.b16 %v847
        %v1136 = vunpack.c.l.b16 %v848
        %v1137 = vunpack.c.l.b16 %v849
        %v1138 = vunpack.c.l.b16 %v850
        %v1139 = vunpack.c.l.b16 %v851
        %v1140 = vunpack.c.l.b16 %v852
        %v1141 = vunpack.c.l.b16 %v853
        %v1142 = vunpack.c.l.b16 %v854
        %v1143 = vunpack.c.l.b16 %v855
        %v1144 = vunpack.c.l.b16 %v856
        %v1145 = vunpack.c.l.b16 %v857
        %v1146 = vunpack.c.l.b16 %v858
        %v1147 = vunpack.c.l.b16 %v859
        %v1148 = vunpack.c.l.b16 %v860
        %v1149 = vunpack.c.l.b16 %v861
        %v1150 = vunpack.c.l.b16 %v862
        %v1151 = vunpack.c.l.b16 %v863
        %v1152 = vunpack.c.l.b16 %v864
        %v1153 = vunpack.c.l.b16 %v865
        %v1154 = vunpack.c.l.b16 %v866
        %v1155 = vunpack.c.l.b16 %v867
        %v1156 = vunpack.c.l.b16 %v868
        %v1157 = vunpack.c.l.b16 %v869
        %v1158 = vunpack.c.l.b16 %v870
        %v1159 = vunpack.c.l.b16 %v871
        %v1160 = vunpack.c.l.b16 %v872
        %v1161 = vunpack.c.l.b16 %v873
        %v1162 = vunpack.c.l.b16 %v874
        %v1163 = vunpack.c.l.b16 %v875
        %v1164 = vunpack.c.l.b16 %v876
        %v1165 = vunpack.c.l.b16 %v877
        %v1166 = vunpack.c.l.b16 %v878
        %v1167 = vunpack.c.l.b16 %v879
        %v1168 = vunpack.c.l.b16 %v880
        %v1169 = vunpack.c.l.b16 %v881
        %v1170 = vunpack.c.l.b16 %v882
        %v1171 = vunpack.c.l.b16 %v883
        %v1172 = vunpack.c.l.b16 %v884
        %v1173 = vunpack.c.l.b16 %v885
        %v1174 = vunpack.c.l.b16 %v886
        %v1175 = vunpack.c.l.b16 %v887
        %v1176 = vunpack.c.l.b16 %v888
        %v1177 = vunpack.c.l.b16 %v889
        %v1178 = vunpack.c.l.b16 %v890
        %v1179 = vunpack.c.l.b16 %v891
        %v1180 = vunpack.c.l.b16 %v892
        %v1181 = vunpack.c.l.b16 %v893
        %v1182 = vpack.c.b16 %v1039, %v1038
        %v1183 = vpack.c.b16 %v1041, %v1040
        %v1184 = vpack.c.b16 %v1043, %v1042
        %v1185 = vpack.c.b16 %v1045, %v1044
        %v1186 = vpack.c.b16 %v1047, %v1046
        %v1187 = vpack.c.b16 %v1049, %v1048
        %v1188 = vpack.c.b16 %v1051, %v1050
        %v1189 = vpack.c.b16 %v1053, %v1052
        %v1190 = vpack.c.b16 %v1055, %v1054
        %v1191 = vpack.c.b16 %v1057, %v1056
        %v1192 = vpack.c.b16 %v1059, %v1058
        %v1193 = vpack.c.b16 %v1061, %v1060
        %v1194 = vpack.c.b16 %v1063, %v1062
        %v1195 = vpack.c.b16 %v1065, %v1064
        %v1196 = vpack.c.b16 %v1067, %v1066
        %v1197 = vpack.c.b16 %v1069, %v1068
        %v1198 = vpack.c.b16 %v1071, %v1070
        %v1199 = vpack.c.b16 %v1073, %v1072
        %v1200 = vpack.c.b16 %v1075, %v1074
        %v1201 = vpack.c.b16 %v1077, %v1076
        %v1202 = vpack.c.b16 %v1079, %v1078
        %v1203 = vpack.c.b16 %v1081, %v1080
        %v1204 = vpack.c.b16 %v1083, %v1082
        %v1205 = vpack.c.b16 %v1085, %v1084
        %v1206 = vpack.c.b16 %v1087, %v1086
        %v1207 = vpack.c.b16 %v1089, %v1088
        %v1208 = vpack.c.b16 %v1091, %v1090
        %v1209 = vpack.c.b16 %v1093, %v1092
        %v1210 = vpack.c.b16 %v1095, %v1094
        %v1211 = vpack.c.b16 %v1097, %v1096
        %v1212 = vpack.c.b16 %v1099, %v1098
        %v1213 = vpack.c.b16 %v1101, %v1100
        %v1214 = vpack.c.b16 %v1103, %v1102
        %v1215 = vpack.c.b16 %v1105, %v1104
        %v1216 = vpack.c.b16 %v1107, %v1106
        %v1217 = vpack.c.b16 %v1109, %v1108
        %v1218 = vpack.c.b16 %v1111, %v1110
        %v1219 = vpack.c.b16 %v1113, %v1112
        %v1220 = vpack.c.b16 %v1115, %v1114
        %v1221 = vpack.c.b16 %v1117, %v1116
        %v1222 = vpack.c.b16 %v1119, %v1118
        %v1223 = vpack.c.b16 %v1121, %v1120
        %v1224 = vpack.c.b16 %v1123, %v1122
        %v1225 = vpack.c.b16 %v1125, %v1124
        %v1226 = vpack.c.b16 %v1127, %v1126
        %v1227 = vpack.c.b16 %v1129, %v1128
        %v1228 = vpack.c.b16 %v1131, %v1130
        %v1229 = vpack.c.b16 %v1133, %v1132
        %v1230 = vpack.c.b16 %v1135, %v1134
        %v1231 = vpack.c.b16 %v1137, %v1136
        %v1232 = vpack.c.b16 %v1139, %v1138
        %v1233 = vpack.c.b16 %v1141, %v1140
        %v1234 = vpack.c.b16 %v1143, %v1142
        %v1235 = vpack.c.b16 %v1145, %v1144
        %v1236 = vpack.c.b16 %v1147, %v1146
        %v1237 = vpack.c.b16 %v1149, %v1148
        %v1238 = vpack.c.b16 %v1151, %v1150
        %v1239 = vpack.c.b16 %v1153, %v1152
        %v1240 = vpack.c.b16 %v1155, %v1154
        %v1241 = vpack.c.b16 %v1157, %v1156
        %v1242 = vpack.c.b16 %v1159, %v1158
        %v1243 = vpack.c.b16 %v1161, %v1160
        %v1244 = vpack.c.b16 %v1163, %v1162
        %v1245 = vpack.c.b16 %v1165, %v1164
        %v1246 = vpack.c.b16 %v1167, %v1166
        %v1247 = vpack.c.b16 %v1169, %v1168
        %v1248 = vpack.c.b16 %v1171, %v1170
        %v1249 = vpack.c.b16 %v1173, %v1172
        %v1250 = vpack.c.b16 %v1175, %v1174
        %v1251 = vpack.c.b16 %v1177, %v1176
        %v1252 = vpack.c.b16 %v1179, %v1178
        %v1253 = vpack.c.b16 %v1181, %v1180
        %1326 = vmatpush.bf16.msra.mxu0 %v1189
        %1327 = vmatpush.bf16.msra.mxu0 %v1188
        %1328 = vmatpush.bf16.msra.mxu0 %v1187
        %1329 = vmatpush.bf16.msra.mxu0 %v1186
        %1330 = vmatpush.bf16.msra.mxu0 %v1185
        %1331 = vmatpush.bf16.msra.mxu0 %v1184
        %1332 = vmatpush.bf16.msra.mxu0 %v1183
        %1333 = vmatpush.bf16.msra.mxu0 %v1182
        %1334 = vmatmul.bf16.gmra.mxu0 %v714
        %v1335 = vpop.f32.mrf.mxu0
        %v1336 = vadd.f32 0.0, %v1335
        %v1337 = vpop.f32.mrf.mxu0
        %v1338 = vadd.f32 0.0, %v1337
        %1339 = vmatmul.bf16.gmra.mxu0 %v723
        %v1340 = vpop.f32.mrf.mxu0
        %v1341 = vadd.f32 0.0, %v1340
        %v1342 = vpop.f32.mrf.mxu0
        %v1343 = vadd.f32 0.0, %v1342
        %1344 = vmatmul.bf16.gmra.mxu0 %v732
        %v1345 = vpop.f32.mrf.mxu0
        %v1346 = vadd.f32 0.0, %v1345
        %v1347 = vpop.f32.mrf.mxu0
        %v1348 = vadd.f32 0.0, %v1347
        %1349 = vmatmul.bf16.gmra.mxu0 %v741
        %v1350 = vpop.f32.mrf.mxu0
        %v1351 = vadd.f32 0.0, %v1350
        %v1352 = vpop.f32.mrf.mxu0
        %v1353 = vadd.f32 0.0, %v1352
        %1354 = vdwg.mxu0
        %1355 = vmatpush.bf16.msra.mxu0 %v1197
        %1356 = vmatpush.bf16.msra.mxu0 %v1196
        %1357 = vmatpush.bf16.msra.mxu0 %v1195
        %1358 = vmatpush.bf16.msra.mxu0 %v1194
        %1359 = vmatpush.bf16.msra.mxu0 %v1193
        %1360 = vmatpush.bf16.msra.mxu0 %v1192
        %1361 = vmatpush.bf16.msra.mxu0 %v1191
        %1362 = vmatpush.bf16.msra.mxu0 %v1190
        %1363 = vmatmul.bf16.gmra.mxu0 %v715
        %v1364 = vpop.f32.mrf.mxu0
        %v1365 = vadd.f32 %v1336, %v1364
        %v1366 = vpop.f32.mrf.mxu0
        %v1367 = vadd.f32 %v1338, %v1366
        %1368 = vmatmul.bf16.gmra.mxu0 %v724
        %v1369 = vpop.f32.mrf.mxu0
        %v1370 = vadd.f32 %v1341, %v1369
        %v1371 = vpop.f32.mrf.mxu0
        %v1372 = vadd.f32 %v1343, %v1371
        %1373 = vmatmul.bf16.gmra.mxu0 %v733
        %v1374 = vpop.f32.mrf.mxu0
        %v1375 = vadd.f32 %v1346, %v1374
        %v1376 = vpop.f32.mrf.mxu0
        %v1377 = vadd.f32 %v1348, %v1376
        %1378 = vmatmul.bf16.gmra.mxu0 %v742
        %v1379 = vpop.f32.mrf.mxu0
        %v1380 = vadd.f32 %v1351, %v1379
        %v1381 = vpop.f32.mrf.mxu0
        %v1382 = vadd.f32 %v1353, %v1381
        %1383 = vdwg.mxu0
        %1384 = vmatpush.bf16.msra.mxu0 %v1205
        %1385 = vmatpush.bf16.msra.mxu0 %v1204
        %1386 = vmatpush.bf16.msra.mxu0 %v1203
        %1387 = vmatpush.bf16.msra.mxu0 %v1202
        %1388 = vmatpush.bf16.msra.mxu0 %v1201
        %1389 = vmatpush.bf16.msra.mxu0 %v1200
        %1390 = vmatpush.bf16.msra.mxu0 %v1199
        %1391 = vmatpush.bf16.msra.mxu0 %v1198
        %1392 = vmatmul.bf16.gmra.mxu0 %v716
        %v1393 = vpop.f32.mrf.mxu0
        %v1394 = vadd.f32 %v1365, %v1393
        %v1395 = vpop.f32.mrf.mxu0
        %v1396 = vadd.f32 %v1367, %v1395
        %1397 = vmatmul.bf16.gmra.mxu0 %v725
        %v1398 = vpop.f32.mrf.mxu0
        %v1399 = vadd.f32 %v1370, %v1398
        %v1400 = vpop.f32.mrf.mxu0
        %v1401 = vadd.f32 %v1372, %v1400
        %1402 = vmatmul.bf16.gmra.mxu0 %v734
        %v1403 = vpop.f32.mrf.mxu0
        %v1404 = vadd.f32 %v1375, %v1403
        %v1405 = vpop.f32.mrf.mxu0
        %v1406 = vadd.f32 %v1377, %v1405
        %1407 = vmatmul.bf16.gmra.mxu0 %v743
        %v1408 = vpop.f32.mrf.mxu0
        %v1409 = vadd.f32 %v1380, %v1408
        %v1410 = vpop.f32.mrf.mxu0
        %v1411 = vadd.f32 %v1382, %v1410
        %1412 = vdwg.mxu0
        %1413 = vmatpush.bf16.msra.mxu0 %v1213
        %1414 = vmatpush.bf16.msra.mxu0 %v1212
        %1415 = vmatpush.bf16.msra.mxu0 %v1211
        %1416 = vmatpush.bf16.msra.mxu0 %v1210
        %1417 = vmatpush.bf16.msra.mxu0 %v1209
        %1418 = vmatpush.bf16.msra.mxu0 %v1208
        %1419 = vmatpush.bf16.msra.mxu0 %v1207
        %1420 = vmatpush.bf16.msra.mxu0 %v1206
        %1421 = vmatmul.bf16.gmra.mxu0 %v717
        %v1422 = vpop.f32.mrf.mxu0
        %v1423 = vadd.f32 %v1394, %v1422
        %v1424 = vpop.f32.mrf.mxu0
        %v1425 = vadd.f32 %v1396, %v1424
        %1426 = vmatmul.bf16.gmra.mxu0 %v726
        %v1427 = vpop.f32.mrf.mxu0
        %v1428 = vadd.f32 %v1399, %v1427
        %v1429 = vpop.f32.mrf.mxu0
        %v1430 = vadd.f32 %v1401, %v1429
        %1431 = vmatmul.bf16.gmra.mxu0 %v735
        %v1432 = vpop.f32.mrf.mxu0
        %v1433 = vadd.f32 %v1404, %v1432
        %v1434 = vpop.f32.mrf.mxu0
        %v1435 = vadd.f32 %v1406, %v1434
        %1436 = vmatmul.bf16.gmra.mxu0 %v744
        %v1437 = vpop.f32.mrf.mxu0
        %v1438 = vadd.f32 %v1409, %v1437
        %v1439 = vpop.f32.mrf.mxu0
        %v1440 = vadd.f32 %v1411, %v1439
        %1441 = vdwg.mxu0
        %1442 = vmatpush.bf16.msra.mxu0 %v1221
        %1443 = vmatpush.bf16.msra.mxu0 %v1220
        %1444 = vmatpush.bf16.msra.mxu0 %v1219
        %1445 = vmatpush.bf16.msra.mxu0 %v1218
        %1446 = vmatpush.bf16.msra.mxu0 %v1217
        %1447 = vmatpush.bf16.msra.mxu0 %v1216
        %1448 = vmatpush.bf16.msra.mxu0 %v1215
        %1449 = vmatpush.bf16.msra.mxu0 %v1214
        %1450 = vmatmul.bf16.gmra.mxu0 %v718
        %v1451 = vpop.f32.mrf.mxu0
        %v1452 = vadd.f32 %v1423, %v1451
        %v1453 = vpop.f32.mrf.mxu0
        %v1454 = vadd.f32 %v1425, %v1453
        %1455 = vmatmul.bf16.gmra.mxu0 %v727
        %v1456 = vpop.f32.mrf.mxu0
        %v1457 = vadd.f32 %v1428, %v1456
        %v1458 = vpop.f32.mrf.mxu0
        %v1459 = vadd.f32 %v1430, %v1458
        %1460 = vmatmul.bf16.gmra.mxu0 %v736
        %v1461 = vpop.f32.mrf.mxu0
        %v1462 = vadd.f32 %v1433, %v1461
        %v1463 = vpop.f32.mrf.mxu0
        %v1464 = vadd.f32 %v1435, %v1463
        %1465 = vmatmul.bf16.gmra.mxu0 %v745
        %v1466 = vpop.f32.mrf.mxu0
        %v1467 = vadd.f32 %v1438, %v1466
        %v1468 = vpop.f32.mrf.mxu0
        %v1469 = vadd.f32 %v1440, %v1468
        %1470 = vdwg.mxu0
        %1471 = vmatpush.bf16.msra.mxu0 %v1229
        %1472 = vmatpush.bf16.msra.mxu0 %v1228
        %1473 = vmatpush.bf16.msra.mxu0 %v1227
        %1474 = vmatpush.bf16.msra.mxu0 %v1226
        %1475 = vmatpush.bf16.msra.mxu0 %v1225
        %1476 = vmatpush.bf16.msra.mxu0 %v1224
        %1477 = vmatpush.bf16.msra.mxu0 %v1223
        %1478 = vmatpush.bf16.msra.mxu0 %v1222
        %1479 = vmatmul.bf16.gmra.mxu0 %v719
        %v1480 = vpop.f32.mrf.mxu0
        %v1481 = vadd.f32 %v1452, %v1480
        %v1482 = vpop.f32.mrf.mxu0
        %v1483 = vadd.f32 %v1454, %v1482
        %1484 = vmatmul.bf16.gmra.mxu0 %v728
        %v1485 = vpop.f32.mrf.mxu0
        %v1486 = vadd.f32 %v1457, %v1485
        %v1487 = vpop.f32.mrf.mxu0
        %v1488 = vadd.f32 %v1459, %v1487
        %1489 = vmatmul.bf16.gmra.mxu0 %v737
        %v1490 = vpop.f32.mrf.mxu0
        %v1491 = vadd.f32 %v1462, %v1490
        %v1492 = vpop.f32.mrf.mxu0
        %v1493 = vadd.f32 %v1464, %v1492
        %1494 = vmatmul.bf16.gmra.mxu0 %v746
        %v1495 = vpop.f32.mrf.mxu0
        %v1496 = vadd.f32 %v1467, %v1495
        %v1497 = vpop.f32.mrf.mxu0
        %v1498 = vadd.f32 %v1469, %v1497
        %1499 = vdwg.mxu0
        %1500 = vmatpush.bf16.msra.mxu0 %v1237
        %1501 = vmatpush.bf16.msra.mxu0 %v1236
        %1502 = vmatpush.bf16.msra.mxu0 %v1235
        %1503 = vmatpush.bf16.msra.mxu0 %v1234
        %1504 = vmatpush.bf16.msra.mxu0 %v1233
        %1505 = vmatpush.bf16.msra.mxu0 %v1232
        %1506 = vmatpush.bf16.msra.mxu0 %v1231
        %1507 = vmatpush.bf16.msra.mxu0 %v1230
        %1508 = vmatmul.bf16.gmra.mxu0 %v720
        %v1509 = vpop.f32.mrf.mxu0
        %v1510 = vadd.f32 %v1481, %v1509
        %v1511 = vpop.f32.mrf.mxu0
        %v1512 = vadd.f32 %v1483, %v1511
        %1513 = vmatmul.bf16.gmra.mxu0 %v729
        %v1514 = vpop.f32.mrf.mxu0
        %v1515 = vadd.f32 %v1486, %v1514
        %v1516 = vpop.f32.mrf.mxu0
        %v1517 = vadd.f32 %v1488, %v1516
        %1518 = vmatmul.bf16.gmra.mxu0 %v738
        %v1519 = vpop.f32.mrf.mxu0
        %v1520 = vadd.f32 %v1491, %v1519
        %v1521 = vpop.f32.mrf.mxu0
        %v1522 = vadd.f32 %v1493, %v1521
        %1523 = vmatmul.bf16.gmra.mxu0 %v747
        %v1524 = vpop.f32.mrf.mxu0
        %v1525 = vadd.f32 %v1496, %v1524
        %v1526 = vpop.f32.mrf.mxu0
        %v1527 = vadd.f32 %v1498, %v1526
        %1528 = vdwg.mxu0
        %1529 = vmatpush.bf16.msra.mxu0 %v1245
        %1530 = vmatpush.bf16.msra.mxu0 %v1244
        %1531 = vmatpush.bf16.msra.mxu0 %v1243
        %1532 = vmatpush.bf16.msra.mxu0 %v1242
        %1533 = vmatpush.bf16.msra.mxu0 %v1241
        %1534 = vmatpush.bf16.msra.mxu0 %v1240
        %1535 = vmatpush.bf16.msra.mxu0 %v1239
        %1536 = vmatpush.bf16.msra.mxu0 %v1238
        %1537 = vmatmul.bf16.gmra.mxu0 %v721
        %v1538 = vpop.f32.mrf.mxu0
        %v1539 = vadd.f32 %v1510, %v1538
        %v1540 = vpop.f32.mrf.mxu0
        %v1541 = vadd.f32 %v1512, %v1540
        %1542 = vmatmul.bf16.gmra.mxu0 %v730
        %v1543 = vpop.f32.mrf.mxu0
        %v1544 = vadd.f32 %v1515, %v1543
        %v1545 = vpop.f32.mrf.mxu0
        %v1546 = vadd.f32 %v1517, %v1545
        %1547 = vmatmul.bf16.gmra.mxu0 %v739
        %v1548 = vpop.f32.mrf.mxu0
        %v1549 = vadd.f32 %v1520, %v1548
        %v1550 = vpop.f32.mrf.mxu0
        %v1551 = vadd.f32 %v1522, %v1550
        %1552 = vmatmul.bf16.gmra.mxu0 %v748
        %v1553 = vpop.f32.mrf.mxu0
        %v1554 = vadd.f32 %v1525, %v1553
        %v1555 = vpop.f32.mrf.mxu0
        %v1556 = vadd.f32 %v1527, %v1555
        %1557 = vdwg.mxu0
        %1558 = vmatpush.bf16.msra.mxu0 %v1253
        %1559 = vmatpush.bf16.msra.mxu0 %v1252
        %1560 = vmatpush.bf16.msra.mxu0 %v1251
        %1561 = vmatpush.bf16.msra.mxu0 %v1250
        %1562 = vmatpush.bf16.msra.mxu0 %v1249
        %1563 = vmatpush.bf16.msra.mxu0 %v1248
        %1564 = vmatpush.bf16.msra.mxu0 %v1247
        %1565 = vmatpush.bf16.msra.mxu0 %v1246
        %1566 = vmatmul.bf16.gmra.mxu0 %v722
        %v1567 = vpop.f32.mrf.mxu0
        %v1568 = vadd.f32 %v1539, %v1567
        %v1569 = vpop.f32.mrf.mxu0
        %v1570 = vadd.f32 %v1541, %v1569
        %1571 = vmatmul.bf16.gmra.mxu0 %v731
        %v1572 = vpop.f32.mrf.mxu0
        %v1573 = vadd.f32 %v1544, %v1572
        %v1574 = vpop.f32.mrf.mxu0
        %v1575 = vadd.f32 %v1546, %v1574
        %1576 = vmatmul.bf16.gmra.mxu0 %v740
        %v1577 = vpop.f32.mrf.mxu0
        %v1578 = vadd.f32 %v1549, %v1577
        %v1579 = vpop.f32.mrf.mxu0
        %v1580 = vadd.f32 %v1551, %v1579
        %1581 = vmatmul.bf16.gmra.mxu0 %v749
        %v1582 = vpop.f32.mrf.mxu0
        %v1583 = vadd.f32 %v1554, %v1582
        %v1584 = vpop.f32.mrf.mxu0
        %v1585 = vadd.f32 %v1556, %v1584
        %1586 = vdwg.mxu0
        %v1587 = vld [vmem:[%s2] sm:$0x1]
        %v1589 = vperm.slane %v1587, 0
        %v1591 = vmul.f32 %v1568, %v1589
        %v1592 = vmul.f32 %v1570, %v1589
        %v1593 = vmul.f32 %v1573, %v1589
        %v1594 = vmul.f32 %v1575, %v1589
        %v1595 = vmul.f32 %v1578, %v1589
        %v1596 = vmul.f32 %v1580, %v1589
        %v1597 = vmul.f32 %v1583, %v1589
        %v1598 = vmul.f32 %v1585, %v1589
        %v1599 = vld [vmem:[%s3] sm:$0x1]
        %v1601 = vperm.slane %v1599, 0
        %v1603 = vadd.f32 %v1591, %v1601
        %v1604 = vadd.f32 %v1592, %v1601
        %v1605 = vadd.f32 %v1593, %v1601
        %v1606 = vadd.f32 %v1594, %v1601
        %v1607 = vadd.f32 %v1595, %v1601
        %v1608 = vadd.f32 %v1596, %v1601
        %v1609 = vadd.f32 %v1597, %v1601
        %v1610 = vadd.f32 %v1598, %v1601
        %v1611 = vmax.f32 %v1603, 0.0
        %v1612 = vmax.f32 %v1604, 0.0
        %v1613 = vmax.f32 %v1605, 0.0
        %v1614 = vmax.f32 %v1606, 0.0
        %v1615 = vmax.f32 %v1607, 0.0
        %v1616 = vmax.f32 %v1608, 0.0
        %v1617 = vmax.f32 %v1609, 0.0
        %v1618 = vmax.f32 %v1610, 0.0
        %s1619 = scalar_lea.vmem [#allocation3], 24
        %1620 = vst [vmem:[%s1619 + $0x8] sm:$0xff] %v1611
        %1621 = vst [vmem:[%s1619 + $0x20] sm:$0xff] %v1612
        %1622 = vst [vmem:[%s1619 + $0x38] sm:$0xff] %v1613
        %1623 = vst [vmem:[%s1619 + $0x50] sm:$0xff] %v1614
        %1624 = vst [vmem:[%s1619 + $0x68] sm:$0xff] %v1615
        %1625 = vst [vmem:[%s1619 + $0x80] sm:$0xff] %v1616
        %1626 = vst [vmem:[%s1619 + $0x98] sm:$0xff] %v1617
        %1627 = vst [vmem:[%s1619 + $0xb0] sm:$0xff] %v1618
        %v1628 = vld [vmem:[#allocation3] sm:$0xff]
        %v1629 = vld [vmem:[#allocation3 + $0x8] sm:$0xff]
        %v1630 = vld [vmem:[#allocation3 + $0x10] sm:$0x1]
        %v1631 = vld [vmem:[#allocation3 + $0x18] sm:$0xff]
        %v1632 = vld [vmem:[#allocation3 + $0x20] sm:$0xff]
        %v1633 = vld [vmem:[#allocation3 + $0x28] sm:$0x1]
        %v1634 = vld [vmem:[#allocation3 + $0x30] sm:$0xff]
        %v1635 = vld [vmem:[#allocation3 + $0x38] sm:$0xff]
        %v1636 = vld [vmem:[#allocation3 + $0x40] sm:$0x1]
        %v1637 = vld [vmem:[#allocation3 + $0x48] sm:$0xff]
        %v1638 = vld [vmem:[#allocation3 + $0x50] sm:$0xff]
        %v1639 = vld [vmem:[#allocation3 + $0x58] sm:$0x1]
        %v1640 = vld [vmem:[#allocation3 + $0x60] sm:$0xff]
        %v1641 = vld [vmem:[#allocation3 + $0x68] sm:$0xff]
        %v1642 = vld [vmem:[#allocation3 + $0x70] sm:$0x1]
        %v1643 = vld [vmem:[#allocation3 + $0x78] sm:$0xff]
        %v1644 = vld [vmem:[#allocation3 + $0x80] sm:$0xff]
        %v1645 = vld [vmem:[#allocation3 + $0x88] sm:$0x1]
        %v1646 = vld [vmem:[#allocation3 + $0x90] sm:$0xff]
        %v1647 = vld [vmem:[#allocation3 + $0x98] sm:$0xff]
        %v1648 = vld [vmem:[#allocation3 + $0xa0] sm:$0x1]
        %v1649 = vld [vmem:[#allocation3 + $0xa8] sm:$0xff]
        %v1650 = vld [vmem:[#allocation3 + $0xb0] sm:$0xff]
        %v1651 = vld [vmem:[#allocation3 + $0xb8] sm:$0x1]
        %v1652 = vld [vmem:[#allocation3 + $0xc0] sm:$0xff]
        %v1653 = vld [vmem:[#allocation3 + $0xc8] sm:$0xff]
        %v1654 = vld [vmem:[#allocation3 + $0xd0] sm:$0x1]
        %v1655 = vld [vmem:[#allocation3 + $0xd8] sm:$0xff]
        %v1656 = vld [vmem:[#allocation3 + $0xe0] sm:$0xff]
        %v1657 = vld [vmem:[#allocation3 + $0xe8] sm:$0x1]
        %v1674 = vrot.slane %v1628, 7
        %v1675 = vrot.slane %v1629, 7
        %v1676 = vsel %vm474, %v1674, %v1675
        %v1677 = vrot.slane %v1631, 7
        %v1678 = vrot.slane %v1632, 7
        %v1679 = vsel %vm474, %v1677, %v1678
        %v1680 = vrot.slane %v1634, 7
        %v1681 = vrot.slane %v1635, 7
        %v1682 = vsel %vm474, %v1680, %v1681
        %v1683 = vrot.slane %v1637, 7
        %v1684 = vrot.slane %v1638, 7
        %v1685 = vsel %vm474, %v1683, %v1684
        %v1686 = vrot.slane %v1640, 7
        %v1687 = vrot.slane %v1641, 7
        %v1688 = vsel %vm474, %v1686, %v1687
        %v1689 = vrot.slane %v1643, 7
        %v1690 = vrot.slane %v1644, 7
        %v1691 = vsel %vm474, %v1689, %v1690
        %v1692 = vrot.slane %v1646, 7
        %v1693 = vrot.slane %v1647, 7
        %v1694 = vsel %vm474, %v1692, %v1693
        %v1695 = vrot.slane %v1649, 7
        %v1696 = vrot.slane %v1650, 7
        %v1697 = vsel %vm474, %v1695, %v1696
        %1706 = vst [vmem:[#allocation4] sm:$0xff] %v1676
        %1707 = vst [vmem:[#allocation4 + $0x48] sm:$0xff] %v1679
        %1708 = vst [vmem:[#allocation4 + $0x90] sm:$0xff] %v1682
        %1709 = vst [vmem:[#allocation4 + $0xd8] sm:$0xff] %v1685
        %1710 = vst [vmem:[#allocation4 + $0x120] sm:$0xff] %v1688
        %1711 = vst [vmem:[#allocation4 + $0x168] sm:$0xff] %v1691
        %1712 = vst [vmem:[#allocation4 + $0x1b0] sm:$0xff] %v1694
        %1713 = vst [vmem:[#allocation4 + $0x1f8] sm:$0xff] %v1697
        %1714 = vst [vmem:[#allocation4 + $0x8] sm:$0xff] %v1629
        %1715 = vst [vmem:[#allocation4 + $0x50] sm:$0xff] %v1632
        %1716 = vst [vmem:[#allocation4 + $0x98] sm:$0xff] %v1635
        %1717 = vst [vmem:[#allocation4 + $0xe0] sm:$0xff] %v1638
        %1718 = vst [vmem:[#allocation4 + $0x128] sm:$0xff] %v1641
        %1719 = vst [vmem:[#allocation4 + $0x170] sm:$0xff] %v1644
        %1720 = vst [vmem:[#allocation4 + $0x1b8] sm:$0xff] %v1647
        %1721 = vst [vmem:[#allocation4 + $0x200] sm:$0xff] %v1650
        %v1730 = vrot.slane %v1629, 1
        %v1731 = vrot.slane %v1630, 1
        %v1732 = vsel %vm531, %v1730, %v1731
        %v1733 = vrot.slane %v1632, 1
        %v1734 = vrot.slane %v1633, 1
        %v1735 = vsel %vm531, %v1733, %v1734
        %v1736 = vrot.slane %v1635, 1
        %v1737 = vrot.slane %v1636, 1
        %v1738 = vsel %vm531, %v1736, %v1737
        %v1739 = vrot.slane %v1638, 1
        %v1740 = vrot.slane %v1639, 1
        %v1741 = vsel %vm531, %v1739, %v1740
        %v1742 = vrot.slane %v1641, 1
        %v1743 = vrot.slane %v1642, 1
        %v1744 = vsel %vm531, %v1742, %v1743
        %v1745 = vrot.slane %v1644, 1
        %v1746 = vrot.slane %v1645, 1
        %v1747 = vsel %vm531, %v1745, %v1746
        %v1748 = vrot.slane %v1647, 1
        %v1749 = vrot.slane %v1648, 1
        %v1750 = vsel %vm531, %v1748, %v1749
        %v1751 = vrot.slane %v1650, 1
        %v1752 = vrot.slane %v1651, 1
        %v1753 = vsel %vm531, %v1751, %v1752
        %1762 = vst [vmem:[#allocation4 + $0x10] sm:$0xff] %v1732
        %1763 = vst [vmem:[#allocation4 + $0x58] sm:$0xff] %v1735
        %1764 = vst [vmem:[#allocation4 + $0xa0] sm:$0xff] %v1738
        %1765 = vst [vmem:[#allocation4 + $0xe8] sm:$0xff] %v1741
        %1766 = vst [vmem:[#allocation4 + $0x130] sm:$0xff] %v1744
        %1767 = vst [vmem:[#allocation4 + $0x178] sm:$0xff] %v1747
        %1768 = vst [vmem:[#allocation4 + $0x1c0] sm:$0xff] %v1750
        %1769 = vst [vmem:[#allocation4 + $0x208] sm:$0xff] %v1753
        %v1772 = vrot.slane %v1652, 7
        %v1773 = vrot.slane %v1653, 7
        %v1774 = vsel %vm474, %v1772, %v1773
        %1776 = vst [vmem:[#allocation4 + $0x18] sm:$0xff] %v1679
        %1777 = vst [vmem:[#allocation4 + $0x60] sm:$0xff] %v1682
        %1778 = vst [vmem:[#allocation4 + $0xa8] sm:$0xff] %v1685
        %1779 = vst [vmem:[#allocation4 + $0xf0] sm:$0xff] %v1688
        %1780 = vst [vmem:[#allocation4 + $0x138] sm:$0xff] %v1691
        %1781 = vst [vmem:[#allocation4 + $0x180] sm:$0xff] %v1694
        %1782 = vst [vmem:[#allocation4 + $0x1c8] sm:$0xff] %v1697
        %1783 = vst [vmem:[#allocation4 + $0x210] sm:$0xff] %v1774
        %1784 = vst [vmem:[#allocation4 + $0x20] sm:$0xff] %v1632
        %1785 = vst [vmem:[#allocation4 + $0x68] sm:$0xff] %v1635
        %1786 = vst [vmem:[#allocation4 + $0xb0] sm:$0xff] %v1638
        %1787 = vst [vmem:[#allocation4 + $0xf8] sm:$0xff] %v1641
        %1788 = vst [vmem:[#allocation4 + $0x140] sm:$0xff] %v1644
        %1789 = vst [vmem:[#allocation4 + $0x188] sm:$0xff] %v1647
        %1790 = vst [vmem:[#allocation4 + $0x1d0] sm:$0xff] %v1650
        %1791 = vst [vmem:[#allocation4 + $0x218] sm:$0xff] %v1653
        %v1793 = vrot.slane %v1653, 1
        %v1794 = vrot.slane %v1654, 1
        %v1795 = vsel %vm531, %v1793, %v1794
        %1797 = vst [vmem:[#allocation4 + $0x28] sm:$0xff] %v1735
        %1798 = vst [vmem:[#allocation4 + $0x70] sm:$0xff] %v1738
        %1799 = vst [vmem:[#allocation4 + $0xb8] sm:$0xff] %v1741
        %1800 = vst [vmem:[#allocation4 + $0x100] sm:$0xff] %v1744
        %1801 = vst [vmem:[#allocation4 + $0x148] sm:$0xff] %v1747
        %1802 = vst [vmem:[#allocation4 + $0x190] sm:$0xff] %v1750
        %1803 = vst [vmem:[#allocation4 + $0x1d8] sm:$0xff] %v1753
        %1804 = vst [vmem:[#allocation4 + $0x220] sm:$0xff] %v1795
        %v1807 = vrot.slane %v1655, 7
        %v1808 = vrot.slane %v1656, 7
        %v1809 = vsel %vm474, %v1807, %v1808
        %1811 = vst [vmem:[#allocation4 + $0x30] sm:$0xff] %v1682
        %1812 = vst [vmem:[#allocation4 + $0x78] sm:$0xff] %v1685
        %1813 = vst [vmem:[#allocation4 + $0xc0] sm:$0xff] %v1688
        %1814 = vst [vmem:[#allocation4 + $0x108] sm:$0xff] %v1691
        %1815 = vst [vmem:[#allocation4 + $0x150] sm:$0xff] %v1694
        %1816 = vst [vmem:[#allocation4 + $0x198] sm:$0xff] %v1697
        %1817 = vst [vmem:[#allocation4 + $0x1e0] sm:$0xff] %v1774
        %1818 = vst [vmem:[#allocation4 + $0x228] sm:$0xff] %v1809
        %1819 = vst [vmem:[#allocation4 + $0x38] sm:$0xff] %v1635
        %1820 = vst [vmem:[#allocation4 + $0x80] sm:$0xff] %v1638
        %1821 = vst [vmem:[#allocation4 + $0xc8] sm:$0xff] %v1641
        %1822 = vst [vmem:[#allocation4 + $0x110] sm:$0xff] %v1644
        %1823 = vst [vmem:[#allocation4 + $0x158] sm:$0xff] %v1647
        %1824 = vst [vmem:[#allocation4 + $0x1a0] sm:$0xff] %v1650
        %1825 = vst [vmem:[#allocation4 + $0x1e8] sm:$0xff] %v1653
        %1826 = vst [vmem:[#allocation4 + $0x230] sm:$0xff] %v1656
        %v1828 = vrot.slane %v1656, 1
        %v1829 = vrot.slane %v1657, 1
        %v1830 = vsel %vm531, %v1828, %v1829
        %1832 = vst [vmem:[#allocation4 + $0x40] sm:$0xff] %v1738
        %1833 = vst [vmem:[#allocation4 + $0x88] sm:$0xff] %v1741
        %1834 = vst [vmem:[#allocation4 + $0xd0] sm:$0xff] %v1744
        %1835 = vst [vmem:[#allocation4 + $0x118] sm:$0xff] %v1747
        %1836 = vst [vmem:[#allocation4 + $0x160] sm:$0xff] %v1750
        %1837 = vst [vmem:[#allocation4 + $0x1a8] sm:$0xff] %v1753
        %1838 = vst [vmem:[#allocation4 + $0x1f0] sm:$0xff] %v1795
        %1839 = vst [vmem:[#allocation4 + $0x238] sm:$0xff] %v1830
        %v1840 = vld [vmem:[#allocation4] sm:$0xff]
        %v1841 = vld [vmem:[#allocation4 + $0x8] sm:$0xff]
        %v1842 = vld [vmem:[#allocation4 + $0x10] sm:$0xff]
        %v1843 = vld [vmem:[#allocation4 + $0x18] sm:$0xff]
        %v1844 = vld [vmem:[#allocation4 + $0x20] sm:$0xff]
        %v1845 = vld [vmem:[#allocation4 + $0x28] sm:$0xff]
        %v1846 = vld [vmem:[#allocation4 + $0x30] sm:$0xff]
        %v1847 = vld [vmem:[#allocation4 + $0x38] sm:$0xff]
        %v1848 = vld [vmem:[#allocation4 + $0x40] sm:$0xff]
        %v1849 = vld [vmem:[#allocation4 + $0x48] sm:$0xff]
        %v1850 = vld [vmem:[#allocation4 + $0x50] sm:$0xff]
        %v1851 = vld [vmem:[#allocation4 + $0x58] sm:$0xff]
        %v1852 = vld [vmem:[#allocation4 + $0x60] sm:$0xff]
        %v1853 = vld [vmem:[#allocation4 + $0x68] sm:$0xff]
        %v1854 = vld [vmem:[#allocation4 + $0x70] sm:$0xff]
        %v1855 = vld [vmem:[#allocation4 + $0x78] sm:$0xff]
        %v1856 = vld [vmem:[#allocation4 + $0x80] sm:$0xff]
        %v1857 = vld [vmem:[#allocation4 + $0x88] sm:$0xff]
        %v1858 = vld [vmem:[#allocation4 + $0x90] sm:$0xff]
        %v1859 = vld [vmem:[#allocation4 + $0x98] sm:$0xff]
        %v1860 = vld [vmem:[#allocation4 + $0xa0] sm:$0xff]
        %v1861 = vld [vmem:[#allocation4 + $0xa8] sm:$0xff]
        %v1862 = vld [vmem:[#allocation4 + $0xb0] sm:$0xff]
        %v1863 = vld [vmem:[#allocation4 + $0xb8] sm:$0xff]
        %v1864 = vld [vmem:[#allocation4 + $0xc0] sm:$0xff]
        %v1865 = vld [vmem:[#allocation4 + $0xc8] sm:$0xff]
        %v1866 = vld [vmem:[#allocation4 + $0xd0] sm:$0xff]
        %v1867 = vld [vmem:[#allocation4 + $0xd8] sm:$0xff]
        %v1868 = vld [vmem:[#allocation4 + $0xe0] sm:$0xff]
        %v1869 = vld [vmem:[#allocation4 + $0xe8] sm:$0xff]
        %v1870 = vld [vmem:[#allocation4 + $0xf0] sm:$0xff]
        %v1871 = vld [vmem:[#allocation4 + $0xf8] sm:$0xff]
        %v1872 = vld [vmem:[#allocation4 + $0x100] sm:$0xff]
        %v1873 = vld [vmem:[#allocation4 + $0x108] sm:$0xff]
        %v1874 = vld [vmem:[#allocation4 + $0x110] sm:$0xff]
        %v1875 = vld [vmem:[#allocation4 + $0x118] sm:$0xff]
        %v1876 = vld [vmem:[#allocation4 + $0x120] sm:$0xff]
        %v1877 = vld [vmem:[#allocation4 + $0x128] sm:$0xff]
        %v1878 = vld [vmem:[#allocation4 + $0x130] sm:$0xff]
        %v1879 = vld [vmem:[#allocation4 + $0x138] sm:$0xff]
        %v1880 = vld [vmem:[#allocation4 + $0x140] sm:$0xff]
        %v1881 = vld [vmem:[#allocation4 + $0x148] sm:$0xff]
        %v1882 = vld [vmem:[#allocation4 + $0x150] sm:$0xff]
        %v1883 = vld [vmem:[#allocation4 + $0x158] sm:$0xff]
        %v1884 = vld [vmem:[#allocation4 + $0x160] sm:$0xff]
        %v1885 = vld [vmem:[#allocation4 + $0x168] sm:$0xff]
        %v1886 = vld [vmem:[#allocation4 + $0x170] sm:$0xff]
        %v1887 = vld [vmem:[#allocation4 + $0x178] sm:$0xff]
        %v1888 = vld [vmem:[#allocation4 + $0x180] sm:$0xff]
        %v1889 = vld [vmem:[#allocation4 + $0x188] sm:$0xff]
        %v1890 = vld [vmem:[#allocation4 + $0x190] sm:$0xff]
        %v1891 = vld [vmem:[#allocation4 + $0x198] sm:$0xff]
        %v1892 = vld [vmem:[#allocation4 + $0x1a0] sm:$0xff]
        %v1893 = vld [vmem:[#allocation4 + $0x1a8] sm:$0xff]
        %v1894 = vld [vmem:[#allocation4 + $0x1b0] sm:$0xff]
        %v1895 = vld [vmem:[#allocation4 + $0x1b8] sm:$0xff]
        %v1896 = vld [vmem:[#allocation4 + $0x1c0] sm:$0xff]
        %v1897 = vld [vmem:[#allocation4 + $0x1c8] sm:$0xff]
        %v1898 = vld [vmem:[#allocation4 + $0x1d0] sm:$0xff]
        %v1899 = vld [vmem:[#allocation4 + $0x1d8] sm:$0xff]
        %v1900 = vld [vmem:[#allocation4 + $0x1e0] sm:$0xff]
        %v1901 = vld [vmem:[#allocation4 + $0x1e8] sm:$0xff]
        %v1902 = vld [vmem:[#allocation4 + $0x1f0] sm:$0xff]
        %v1903 = vld [vmem:[#allocation4 + $0x1f8] sm:$0xff]
        %v1904 = vld [vmem:[#allocation4 + $0x200] sm:$0xff]
        %v1905 = vld [vmem:[#allocation4 + $0x208] sm:$0xff]
        %v1906 = vld [vmem:[#allocation4 + $0x210] sm:$0xff]
        %v1907 = vld [vmem:[#allocation4 + $0x218] sm:$0xff]
        %v1908 = vld [vmem:[#allocation4 + $0x220] sm:$0xff]
        %v1909 = vld [vmem:[#allocation4 + $0x228] sm:$0xff]
        %v1910 = vld [vmem:[#allocation4 + $0x230] sm:$0xff]
        %v1911 = vld [vmem:[#allocation4 + $0x238] sm:$0xff]
        %v1912 = vpack.c.bf16 %v1849, %v1840
        %v1913 = vpack.c.bf16 %v1850, %v1841
        %v1914 = vpack.c.bf16 %v1851, %v1842
        %v1915 = vpack.c.bf16 %v1852, %v1843
        %v1916 = vpack.c.bf16 %v1853, %v1844
        %v1917 = vpack.c.bf16 %v1854, %v1845
        %v1918 = vpack.c.bf16 %v1855, %v1846
        %v1919 = vpack.c.bf16 %v1856, %v1847
        %v1920 = vpack.c.bf16 %v1857, %v1848
        %v1921 = vpack.c.bf16 %v1867, %v1858
        %v1922 = vpack.c.bf16 %v1868, %v1859
        %v1923 = vpack.c.bf16 %v1869, %v1860
        %v1924 = vpack.c.bf16 %v1870, %v1861
        %v1925 = vpack.c.bf16 %v1871, %v1862
        %v1926 = vpack.c.bf16 %v1872, %v1863
        %v1927 = vpack.c.bf16 %v1873, %v1864
        %v1928 = vpack.c.bf16 %v1874, %v1865
        %v1929 = vpack.c.bf16 %v1875, %v1866
        %v1930 = vpack.c.bf16 %v1885, %v1876
        %v1931 = vpack.c.bf16 %v1886, %v1877
        %v1932 = vpack.c.bf16 %v1887, %v1878
        %v1933 = vpack.c.bf16 %v1888, %v1879
        %v1934 = vpack.c.bf16 %v1889, %v1880
        %v1935 = vpack.c.bf16 %v1890, %v1881
        %v1936 = vpack.c.bf16 %v1891, %v1882
        %v1937 = vpack.c.bf16 %v1892, %v1883
        %v1938 = vpack.c.bf16 %v1893, %v1884
        %v1939 = vpack.c.bf16 %v1903, %v1894
        %v1940 = vpack.c.bf16 %v1904, %v1895
        %v1941 = vpack.c.bf16 %v1905, %v1896
        %v1942 = vpack.c.bf16 %v1906, %v1897
        %v1943 = vpack.c.bf16 %v1907, %v1898
        %v1944 = vpack.c.bf16 %v1908, %v1899
        %v1945 = vpack.c.bf16 %v1909, %v1900
        %v1946 = vpack.c.bf16 %v1910, %v1901
        %v1947 = vpack.c.bf16 %v1911, %v1902
        %v1948 = vld [vmem:[%s4] sm:$0xf]
        %v1949 = vld [vmem:[%s4 + $0x4] sm:$0xf]
        %v1950 = vld [vmem:[%s4 + $0x8] sm:$0xf]
        %v1951 = vld [vmem:[%s4 + $0xc] sm:$0xf]
        %v1952 = vld [vmem:[%s4 + $0x10] sm:$0xf]
        %v1953 = vld [vmem:[%s4 + $0x14] sm:$0xf]
        %v1954 = vld [vmem:[%s4 + $0x18] sm:$0xf]
        %v1955 = vld [vmem:[%s4 + $0x1c] sm:$0xf]
        %v1956 = vld [vmem:[%s4 + $0x20] sm:$0xf]
        %v1957 = vld [vmem:[%s4 + $0x24] sm:$0xf]
        %v1958 = vld [vmem:[%s4 + $0x28] sm:$0xf]
        %v1959 = vld [vmem:[%s4 + $0x2c] sm:$0xf]
        %v1960 = vld [vmem:[%s4 + $0x30] sm:$0xf]
        %v1961 = vld [vmem:[%s4 + $0x34] sm:$0xf]
        %v1962 = vld [vmem:[%s4 + $0x38] sm:$0xf]
        %v1963 = vld [vmem:[%s4 + $0x3c] sm:$0xf]
        %v1964 = vld [vmem:[%s4 + $0x40] sm:$0xf]
        %v1965 = vld [vmem:[%s4 + $0x44] sm:$0xf]
        %v1966 = vld [vmem:[%s4 + $0x48] sm:$0xf]
        %v1967 = vld [vmem:[%s4 + $0x4c] sm:$0xf]
        %v1968 = vld [vmem:[%s4 + $0x50] sm:$0xf]
        %v1969 = vld [vmem:[%s4 + $0x54] sm:$0xf]
        %v1970 = vld [vmem:[%s4 + $0x58] sm:$0xf]
        %v1971 = vld [vmem:[%s4 + $0x5c] sm:$0xf]
        %v1972 = vld [vmem:[%s4 + $0x60] sm:$0xf]
        %v1973 = vld [vmem:[%s4 + $0x64] sm:$0xf]
        %v1974 = vld [vmem:[%s4 + $0x68] sm:$0xf]
        %v1975 = vld [vmem:[%s4 + $0x6c] sm:$0xf]
        %v1976 = vld [vmem:[%s4 + $0x70] sm:$0xf]
        %v1977 = vld [vmem:[%s4 + $0x74] sm:$0xf]
        %v1978 = vld [vmem:[%s4 + $0x78] sm:$0xf]
        %v1979 = vld [vmem:[%s4 + $0x7c] sm:$0xf]
        %v1980 = vld [vmem:[%s4 + $0x80] sm:$0xf]
        %v1981 = vld [vmem:[%s4 + $0x84] sm:$0xf]
        %v1982 = vld [vmem:[%s4 + $0x88] sm:$0xf]
        %v1983 = vld [vmem:[%s4 + $0x8c] sm:$0xf]
        %v1984 = vld [vmem:[%s4 + $0x90] sm:$0xf]
        %v1985 = vld [vmem:[%s4 + $0x94] sm:$0xf]
        %v1986 = vld [vmem:[%s4 + $0x98] sm:$0xf]
        %v1987 = vld [vmem:[%s4 + $0x9c] sm:$0xf]
        %v1988 = vld [vmem:[%s4 + $0xa0] sm:$0xf]
        %v1989 = vld [vmem:[%s4 + $0xa4] sm:$0xf]
        %v1990 = vld [vmem:[%s4 + $0xa8] sm:$0xf]
        %v1991 = vld [vmem:[%s4 + $0xac] sm:$0xf]
        %v1992 = vld [vmem:[%s4 + $0xb0] sm:$0xf]
        %v1993 = vld [vmem:[%s4 + $0xb4] sm:$0xf]
        %v1994 = vld [vmem:[%s4 + $0xb8] sm:$0xf]
        %v1995 = vld [vmem:[%s4 + $0xbc] sm:$0xf]
        %v1996 = vld [vmem:[%s4 + $0xc0] sm:$0xf]
        %v1997 = vld [vmem:[%s4 + $0xc4] sm:$0xf]
        %v1998 = vld [vmem:[%s4 + $0xc8] sm:$0xf]
        %v1999 = vld [vmem:[%s4 + $0xcc] sm:$0xf]
        %v2000 = vld [vmem:[%s4 + $0xd0] sm:$0xf]
        %v2001 = vld [vmem:[%s4 + $0xd4] sm:$0xf]
        %v2002 = vld [vmem:[%s4 + $0xd8] sm:$0xf]
        %v2003 = vld [vmem:[%s4 + $0xdc] sm:$0xf]
        %v2004 = vld [vmem:[%s4 + $0xe0] sm:$0xf]
        %v2005 = vld [vmem:[%s4 + $0xe4] sm:$0xf]
        %v2006 = vld [vmem:[%s4 + $0xe8] sm:$0xf]
        %v2007 = vld [vmem:[%s4 + $0xec] sm:$0xf]
        %v2008 = vld [vmem:[%s4 + $0xf0] sm:$0xf]
        %v2009 = vld [vmem:[%s4 + $0xf4] sm:$0xf]
        %v2010 = vld [vmem:[%s4 + $0xf8] sm:$0xf]
        %v2011 = vld [vmem:[%s4 + $0xfc] sm:$0xf]
        %v2012 = vld [vmem:[%s4 + $0x100] sm:$0xf]
        %v2013 = vld [vmem:[%s4 + $0x104] sm:$0xf]
        %v2014 = vld [vmem:[%s4 + $0x108] sm:$0xf]
        %v2015 = vld [vmem:[%s4 + $0x10c] sm:$0xf]
        %v2016 = vld [vmem:[%s4 + $0x110] sm:$0xf]
        %v2017 = vld [vmem:[%s4 + $0x114] sm:$0xf]
        %v2018 = vld [vmem:[%s4 + $0x118] sm:$0xf]
        %v2019 = vld [vmem:[%s4 + $0x11c] sm:$0xf]
        %v2020 = vld [vmem:[%s4 + $0x120] sm:$0xf]
        %v2021 = vld [vmem:[%s4 + $0x124] sm:$0xf]
        %v2022 = vld [vmem:[%s4 + $0x128] sm:$0xf]
        %v2023 = vld [vmem:[%s4 + $0x12c] sm:$0xf]
        %v2024 = vld [vmem:[%s4 + $0x130] sm:$0xf]
        %v2025 = vld [vmem:[%s4 + $0x134] sm:$0xf]
        %v2026 = vld [vmem:[%s4 + $0x138] sm:$0xf]
        %v2027 = vld [vmem:[%s4 + $0x13c] sm:$0xf]
        %v2028 = vld [vmem:[%s4 + $0x140] sm:$0xf]
        %v2029 = vld [vmem:[%s4 + $0x144] sm:$0xf]
        %v2030 = vld [vmem:[%s4 + $0x148] sm:$0xf]
        %v2031 = vld [vmem:[%s4 + $0x14c] sm:$0xf]
        %v2032 = vld [vmem:[%s4 + $0x150] sm:$0xf]
        %v2033 = vld [vmem:[%s4 + $0x154] sm:$0xf]
        %v2034 = vld [vmem:[%s4 + $0x158] sm:$0xf]
        %v2035 = vld [vmem:[%s4 + $0x15c] sm:$0xf]
        %v2036 = vld [vmem:[%s4 + $0x160] sm:$0xf]
        %v2037 = vld [vmem:[%s4 + $0x164] sm:$0xf]
        %v2038 = vld [vmem:[%s4 + $0x168] sm:$0xf]
        %v2039 = vld [vmem:[%s4 + $0x16c] sm:$0xf]
        %v2040 = vld [vmem:[%s4 + $0x170] sm:$0xf]
        %v2041 = vld [vmem:[%s4 + $0x174] sm:$0xf]
        %v2042 = vld [vmem:[%s4 + $0x178] sm:$0xf]
        %v2043 = vld [vmem:[%s4 + $0x17c] sm:$0xf]
        %v2044 = vld [vmem:[%s4 + $0x180] sm:$0xf]
        %v2045 = vld [vmem:[%s4 + $0x184] sm:$0xf]
        %v2046 = vld [vmem:[%s4 + $0x188] sm:$0xf]
        %v2047 = vld [vmem:[%s4 + $0x18c] sm:$0xf]
        %v2048 = vld [vmem:[%s4 + $0x190] sm:$0xf]
        %v2049 = vld [vmem:[%s4 + $0x194] sm:$0xf]
        %v2050 = vld [vmem:[%s4 + $0x198] sm:$0xf]
        %v2051 = vld [vmem:[%s4 + $0x19c] sm:$0xf]
        %v2052 = vld [vmem:[%s4 + $0x1a0] sm:$0xf]
        %v2053 = vld [vmem:[%s4 + $0x1a4] sm:$0xf]
        %v2054 = vld [vmem:[%s4 + $0x1a8] sm:$0xf]
        %v2055 = vld [vmem:[%s4 + $0x1ac] sm:$0xf]
        %v2056 = vld [vmem:[%s4 + $0x1b0] sm:$0xf]
        %v2057 = vld [vmem:[%s4 + $0x1b4] sm:$0xf]
        %v2058 = vld [vmem:[%s4 + $0x1b8] sm:$0xf]
        %v2059 = vld [vmem:[%s4 + $0x1bc] sm:$0xf]
        %v2060 = vld [vmem:[%s4 + $0x1c0] sm:$0xf]
        %v2061 = vld [vmem:[%s4 + $0x1c4] sm:$0xf]
        %v2062 = vld [vmem:[%s4 + $0x1c8] sm:$0xf]
        %v2063 = vld [vmem:[%s4 + $0x1cc] sm:$0xf]
        %v2064 = vld [vmem:[%s4 + $0x1d0] sm:$0xf]
        %v2065 = vld [vmem:[%s4 + $0x1d4] sm:$0xf]
        %v2066 = vld [vmem:[%s4 + $0x1d8] sm:$0xf]
        %v2067 = vld [vmem:[%s4 + $0x1dc] sm:$0xf]
        %v2068 = vld [vmem:[%s4 + $0x1e0] sm:$0xf]
        %v2069 = vld [vmem:[%s4 + $0x1e4] sm:$0xf]
        %v2070 = vld [vmem:[%s4 + $0x1e8] sm:$0xf]
        %v2071 = vld [vmem:[%s4 + $0x1ec] sm:$0xf]
        %v2072 = vld [vmem:[%s4 + $0x1f0] sm:$0xf]
        %v2073 = vld [vmem:[%s4 + $0x1f4] sm:$0xf]
        %v2074 = vld [vmem:[%s4 + $0x1f8] sm:$0xf]
        %v2075 = vld [vmem:[%s4 + $0x1fc] sm:$0xf]
        %v2076 = vld [vmem:[%s4 + $0x200] sm:$0xf]
        %v2077 = vld [vmem:[%s4 + $0x204] sm:$0xf]
        %v2078 = vld [vmem:[%s4 + $0x208] sm:$0xf]
        %v2079 = vld [vmem:[%s4 + $0x20c] sm:$0xf]
        %v2080 = vld [vmem:[%s4 + $0x210] sm:$0xf]
        %v2081 = vld [vmem:[%s4 + $0x214] sm:$0xf]
        %v2082 = vld [vmem:[%s4 + $0x218] sm:$0xf]
        %v2083 = vld [vmem:[%s4 + $0x21c] sm:$0xf]
        %v2084 = vld [vmem:[%s4 + $0x220] sm:$0xf]
        %v2085 = vld [vmem:[%s4 + $0x224] sm:$0xf]
        %v2086 = vld [vmem:[%s4 + $0x228] sm:$0xf]
        %v2087 = vld [vmem:[%s4 + $0x22c] sm:$0xf]
        %v2088 = vld [vmem:[%s4 + $0x230] sm:$0xf]
        %v2089 = vld [vmem:[%s4 + $0x234] sm:$0xf]
        %v2090 = vld [vmem:[%s4 + $0x238] sm:$0xf]
        %v2091 = vld [vmem:[%s4 + $0x23c] sm:$0xf]
        %v2236 = vunpack.c.l.b16 %v1948
        %v2237 = vunpack.c.l.b16 %v1949
        %v2238 = vunpack.c.l.b16 %v1950
        %v2239 = vunpack.c.l.b16 %v1951
        %v2240 = vunpack.c.l.b16 %v1952
        %v2241 = vunpack.c.l.b16 %v1953
        %v2242 = vunpack.c.l.b16 %v1954
        %v2243 = vunpack.c.l.b16 %v1955
        %v2244 = vunpack.c.l.b16 %v1956
        %v2245 = vunpack.c.l.b16 %v1957
        %v2246 = vunpack.c.l.b16 %v1958
        %v2247 = vunpack.c.l.b16 %v1959
        %v2248 = vunpack.c.l.b16 %v1960
        %v2249 = vunpack.c.l.b16 %v1961
        %v2250 = vunpack.c.l.b16 %v1962
        %v2251 = vunpack.c.l.b16 %v1963
        %v2252 = vunpack.c.l.b16 %v1964
        %v2253 = vunpack.c.l.b16 %v1965
        %v2254 = vunpack.c.l.b16 %v1966
        %v2255 = vunpack.c.l.b16 %v1967
        %v2256 = vunpack.c.l.b16 %v1968
        %v2257 = vunpack.c.l.b16 %v1969
        %v2258 = vunpack.c.l.b16 %v1970
        %v2259 = vunpack.c.l.b16 %v1971
        %v2260 = vunpack.c.l.b16 %v1972
        %v2261 = vunpack.c.l.b16 %v1973
        %v2262 = vunpack.c.l.b16 %v1974
        %v2263 = vunpack.c.l.b16 %v1975
        %v2264 = vunpack.c.l.b16 %v1976
        %v2265 = vunpack.c.l.b16 %v1977
        %v2266 = vunpack.c.l.b16 %v1978
        %v2267 = vunpack.c.l.b16 %v1979
        %v2268 = vunpack.c.l.b16 %v1980
        %v2269 = vunpack.c.l.b16 %v1981
        %v2270 = vunpack.c.l.b16 %v1982
        %v2271 = vunpack.c.l.b16 %v1983
        %v2272 = vunpack.c.l.b16 %v1984
        %v2273 = vunpack.c.l.b16 %v1985
        %v2274 = vunpack.c.l.b16 %v1986
        %v2275 = vunpack.c.l.b16 %v1987
        %v2276 = vunpack.c.l.b16 %v1988
        %v2277 = vunpack.c.l.b16 %v1989
        %v2278 = vunpack.c.l.b16 %v1990
        %v2279 = vunpack.c.l.b16 %v1991
        %v2280 = vunpack.c.l.b16 %v1992
        %v2281 = vunpack.c.l.b16 %v1993
        %v2282 = vunpack.c.l.b16 %v1994
        %v2283 = vunpack.c.l.b16 %v1995
        %v2284 = vunpack.c.l.b16 %v1996
        %v2285 = vunpack.c.l.b16 %v1997
        %v2286 = vunpack.c.l.b16 %v1998
        %v2287 = vunpack.c.l.b16 %v1999
        %v2288 = vunpack.c.l.b16 %v2000
        %v2289 = vunpack.c.l.b16 %v2001
        %v2290 = vunpack.c.l.b16 %v2002
        %v2291 = vunpack.c.l.b16 %v2003
        %v2292 = vunpack.c.l.b16 %v2004
        %v2293 = vunpack.c.l.b16 %v2005
        %v2294 = vunpack.c.l.b16 %v2006
        %v2295 = vunpack.c.l.b16 %v2007
        %v2296 = vunpack.c.l.b16 %v2008
        %v2297 = vunpack.c.l.b16 %v2009
        %v2298 = vunpack.c.l.b16 %v2010
        %v2299 = vunpack.c.l.b16 %v2011
        %v2300 = vunpack.c.l.b16 %v2012
        %v2301 = vunpack.c.l.b16 %v2013
        %v2302 = vunpack.c.l.b16 %v2014
        %v2303 = vunpack.c.l.b16 %v2015
        %v2304 = vunpack.c.l.b16 %v2016
        %v2305 = vunpack.c.l.b16 %v2017
        %v2306 = vunpack.c.l.b16 %v2018
        %v2307 = vunpack.c.l.b16 %v2019
        %v2308 = vunpack.c.l.b16 %v2020
        %v2309 = vunpack.c.l.b16 %v2021
        %v2310 = vunpack.c.l.b16 %v2022
        %v2311 = vunpack.c.l.b16 %v2023
        %v2312 = vunpack.c.l.b16 %v2024
        %v2313 = vunpack.c.l.b16 %v2025
        %v2314 = vunpack.c.l.b16 %v2026
        %v2315 = vunpack.c.l.b16 %v2027
        %v2316 = vunpack.c.l.b16 %v2028
        %v2317 = vunpack.c.l.b16 %v2029
        %v2318 = vunpack.c.l.b16 %v2030
        %v2319 = vunpack.c.l.b16 %v2031
        %v2320 = vunpack.c.l.b16 %v2032
        %v2321 = vunpack.c.l.b16 %v2033
        %v2322 = vunpack.c.l.b16 %v2034
        %v2323 = vunpack.c.l.b16 %v2035
        %v2324 = vunpack.c.l.b16 %v2036
        %v2325 = vunpack.c.l.b16 %v2037
        %v2326 = vunpack.c.l.b16 %v2038
        %v2327 = vunpack.c.l.b16 %v2039
        %v2328 = vunpack.c.l.b16 %v2040
        %v2329 = vunpack.c.l.b16 %v2041
        %v2330 = vunpack.c.l.b16 %v2042
        %v2331 = vunpack.c.l.b16 %v2043
        %v2332 = vunpack.c.l.b16 %v2044
        %v2333 = vunpack.c.l.b16 %v2045
        %v2334 = vunpack.c.l.b16 %v2046
        %v2335 = vunpack.c.l.b16 %v2047
        %v2336 = vunpack.c.l.b16 %v2048
        %v2337 = vunpack.c.l.b16 %v2049
        %v2338 = vunpack.c.l.b16 %v2050
        %v2339 = vunpack.c.l.b16 %v2051
        %v2340 = vunpack.c.l.b16 %v2052
        %v2341 = vunpack.c.l.b16 %v2053
        %v2342 = vunpack.c.l.b16 %v2054
        %v2343 = vunpack.c.l.b16 %v2055
        %v2344 = vunpack.c.l.b16 %v2056
        %v2345 = vunpack.c.l.b16 %v2057
        %v2346 = vunpack.c.l.b16 %v2058
        %v2347 = vunpack.c.l.b16 %v2059
        %v2348 = vunpack.c.l.b16 %v2060
        %v2349 = vunpack.c.l.b16 %v2061
        %v2350 = vunpack.c.l.b16 %v2062
        %v2351 = vunpack.c.l.b16 %v2063
        %v2352 = vunpack.c.l.b16 %v2064
        %v2353 = vunpack.c.l.b16 %v2065
        %v2354 = vunpack.c.l.b16 %v2066
        %v2355 = vunpack.c.l.b16 %v2067
        %v2356 = vunpack.c.l.b16 %v2068
        %v2357 = vunpack.c.l.b16 %v2069
        %v2358 = vunpack.c.l.b16 %v2070
        %v2359 = vunpack.c.l.b16 %v2071
        %v2360 = vunpack.c.l.b16 %v2072
        %v2361 = vunpack.c.l.b16 %v2073
        %v2362 = vunpack.c.l.b16 %v2074
        %v2363 = vunpack.c.l.b16 %v2075
        %v2364 = vunpack.c.l.b16 %v2076
        %v2365 = vunpack.c.l.b16 %v2077
        %v2366 = vunpack.c.l.b16 %v2078
        %v2367 = vunpack.c.l.b16 %v2079
        %v2368 = vunpack.c.l.b16 %v2080
        %v2369 = vunpack.c.l.b16 %v2081
        %v2370 = vunpack.c.l.b16 %v2082
        %v2371 = vunpack.c.l.b16 %v2083
        %v2372 = vunpack.c.l.b16 %v2084
        %v2373 = vunpack.c.l.b16 %v2085
        %v2374 = vunpack.c.l.b16 %v2086
        %v2375 = vunpack.c.l.b16 %v2087
        %v2376 = vunpack.c.l.b16 %v2088
        %v2377 = vunpack.c.l.b16 %v2089
        %v2378 = vunpack.c.l.b16 %v2090
        %v2379 = vunpack.c.l.b16 %v2091
        %v2380 = vpack.c.b16 %v2237, %v2236
        %v2381 = vpack.c.b16 %v2239, %v2238
        %v2382 = vpack.c.b16 %v2241, %v2240
        %v2383 = vpack.c.b16 %v2243, %v2242
        %v2384 = vpack.c.b16 %v2245, %v2244
        %v2385 = vpack.c.b16 %v2247, %v2246
        %v2386 = vpack.c.b16 %v2249, %v2248
        %v2387 = vpack.c.b16 %v2251, %v2250
        %v2388 = vpack.c.b16 %v2253, %v2252
        %v2389 = vpack.c.b16 %v2255, %v2254
        %v2390 = vpack.c.b16 %v2257, %v2256
        %v2391 = vpack.c.b16 %v2259, %v2258
        %v2392 = vpack.c.b16 %v2261, %v2260
        %v2393 = vpack.c.b16 %v2263, %v2262
        %v2394 = vpack.c.b16 %v2265, %v2264
        %v2395 = vpack.c.b16 %v2267, %v2266
        %v2396 = vpack.c.b16 %v2269, %v2268
        %v2397 = vpack.c.b16 %v2271, %v2270
        %v2398 = vpack.c.b16 %v2273, %v2272
        %v2399 = vpack.c.b16 %v2275, %v2274
        %v2400 = vpack.c.b16 %v2277, %v2276
        %v2401 = vpack.c.b16 %v2279, %v2278
        %v2402 = vpack.c.b16 %v2281, %v2280
        %v2403 = vpack.c.b16 %v2283, %v2282
        %v2404 = vpack.c.b16 %v2285, %v2284
        %v2405 = vpack.c.b16 %v2287, %v2286
        %v2406 = vpack.c.b16 %v2289, %v2288
        %v2407 = vpack.c.b16 %v2291, %v2290
        %v2408 = vpack.c.b16 %v2293, %v2292
        %v2409 = vpack.c.b16 %v2295, %v2294
        %v2410 = vpack.c.b16 %v2297, %v2296
        %v2411 = vpack.c.b16 %v2299, %v2298
        %v2412 = vpack.c.b16 %v2301, %v2300
        %v2413 = vpack.c.b16 %v2303, %v2302
        %v2414 = vpack.c.b16 %v2305, %v2304
        %v2415 = vpack.c.b16 %v2307, %v2306
        %v2416 = vpack.c.b16 %v2309, %v2308
        %v2417 = vpack.c.b16 %v2311, %v2310
        %v2418 = vpack.c.b16 %v2313, %v2312
        %v2419 = vpack.c.b16 %v2315, %v2314
        %v2420 = vpack.c.b16 %v2317, %v2316
        %v2421 = vpack.c.b16 %v2319, %v2318
        %v2422 = vpack.c.b16 %v2321, %v2320
        %v2423 = vpack.c.b16 %v2323, %v2322
        %v2424 = vpack.c.b16 %v2325, %v2324
        %v2425 = vpack.c.b16 %v2327, %v2326
        %v2426 = vpack.c.b16 %v2329, %v2328
        %v2427 = vpack.c.b16 %v2331, %v2330
        %v2428 = vpack.c.b16 %v2333, %v2332
        %v2429 = vpack.c.b16 %v2335, %v2334
        %v2430 = vpack.c.b16 %v2337, %v2336
        %v2431 = vpack.c.b16 %v2339, %v2338
        %v2432 = vpack.c.b16 %v2341, %v2340
        %v2433 = vpack.c.b16 %v2343, %v2342
        %v2434 = vpack.c.b16 %v2345, %v2344
        %v2435 = vpack.c.b16 %v2347, %v2346
        %v2436 = vpack.c.b16 %v2349, %v2348
        %v2437 = vpack.c.b16 %v2351, %v2350
        %v2438 = vpack.c.b16 %v2353, %v2352
        %v2439 = vpack.c.b16 %v2355, %v2354
        %v2440 = vpack.c.b16 %v2357, %v2356
        %v2441 = vpack.c.b16 %v2359, %v2358
        %v2442 = vpack.c.b16 %v2361, %v2360
        %v2443 = vpack.c.b16 %v2363, %v2362
        %v2444 = vpack.c.b16 %v2365, %v2364
        %v2445 = vpack.c.b16 %v2367, %v2366
        %v2446 = vpack.c.b16 %v2369, %v2368
        %v2447 = vpack.c.b16 %v2371, %v2370
        %v2448 = vpack.c.b16 %v2373, %v2372
        %v2449 = vpack.c.b16 %v2375, %v2374
        %v2450 = vpack.c.b16 %v2377, %v2376
        %v2451 = vpack.c.b16 %v2379, %v2378
        %2524 = vmatpush.bf16.msra.mxu0 %v2387
        %2525 = vmatpush.bf16.msra.mxu0 %v2386
        %2526 = vmatpush.bf16.msra.mxu0 %v2385
        %2527 = vmatpush.bf16.msra.mxu0 %v2384
        %2528 = vmatpush.bf16.msra.mxu0 %v2383
        %2529 = vmatpush.bf16.msra.mxu0 %v2382
        %2530 = vmatpush.bf16.msra.mxu0 %v2381
        %2531 = vmatpush.bf16.msra.mxu0 %v2380
        %2532 = vmatmul.bf16.gmra.mxu0 %v1912
        %v2533 = vpop.f32.mrf.mxu0
        %v2534 = vadd.f32 0.0, %v2533
        %v2535 = vpop.f32.mrf.mxu0
        %v2536 = vadd.f32 0.0, %v2535
        %2537 = vmatmul.bf16.gmra.mxu0 %v1921
        %v2538 = vpop.f32.mrf.mxu0
        %v2539 = vadd.f32 0.0, %v2538
        %v2540 = vpop.f32.mrf.mxu0
        %v2541 = vadd.f32 0.0, %v2540
        %2542 = vmatmul.bf16.gmra.mxu0 %v1930
        %v2543 = vpop.f32.mrf.mxu0
        %v2544 = vadd.f32 0.0, %v2543
        %v2545 = vpop.f32.mrf.mxu0
        %v2546 = vadd.f32 0.0, %v2545
        %2547 = vmatmul.bf16.gmra.mxu0 %v1939
        %v2548 = vpop.f32.mrf.mxu0
        %v2549 = vadd.f32 0.0, %v2548
        %v2550 = vpop.f32.mrf.mxu0
        %v2551 = vadd.f32 0.0, %v2550
        %2552 = vdwg.mxu0
        %2553 = vmatpush.bf16.msra.mxu0 %v2395
        %2554 = vmatpush.bf16.msra.mxu0 %v2394
        %2555 = vmatpush.bf16.msra.mxu0 %v2393
        %2556 = vmatpush.bf16.msra.mxu0 %v2392
        %2557 = vmatpush.bf16.msra.mxu0 %v2391
        %2558 = vmatpush.bf16.msra.mxu0 %v2390
        %2559 = vmatpush.bf16.msra.mxu0 %v2389
        %2560 = vmatpush.bf16.msra.mxu0 %v2388
        %2561 = vmatmul.bf16.gmra.mxu0 %v1913
        %v2562 = vpop.f32.mrf.mxu0
        %v2563 = vadd.f32 %v2534, %v2562
        %v2564 = vpop.f32.mrf.mxu0
        %v2565 = vadd.f32 %v2536, %v2564
        %2566 = vmatmul.bf16.gmra.mxu0 %v1922
        %v2567 = vpop.f32.mrf.mxu0
        %v2568 = vadd.f32 %v2539, %v2567
        %v2569 = vpop.f32.mrf.mxu0
        %v2570 = vadd.f32 %v2541, %v2569
        %2571 = vmatmul.bf16.gmra.mxu0 %v1931
        %v2572 = vpop.f32.mrf.mxu0
        %v2573 = vadd.f32 %v2544, %v2572
        %v2574 = vpop.f32.mrf.mxu0
        %v2575 = vadd.f32 %v2546, %v2574
        %2576 = vmatmul.bf16.gmra.mxu0 %v1940
        %v2577 = vpop.f32.mrf.mxu0
        %v2578 = vadd.f32 %v2549, %v2577
        %v2579 = vpop.f32.mrf.mxu0
        %v2580 = vadd.f32 %v2551, %v2579
        %2581 = vdwg.mxu0
        %2582 = vmatpush.bf16.msra.mxu0 %v2403
        %2583 = vmatpush.bf16.msra.mxu0 %v2402
        %2584 = vmatpush.bf16.msra.mxu0 %v2401
        %2585 = vmatpush.bf16.msra.mxu0 %v2400
        %2586 = vmatpush.bf16.msra.mxu0 %v2399
        %2587 = vmatpush.bf16.msra.mxu0 %v2398
        %2588 = vmatpush.bf16.msra.mxu0 %v2397
        %2589 = vmatpush.bf16.msra.mxu0 %v2396
        %2590 = vmatmul.bf16.gmra.mxu0 %v1914
        %v2591 = vpop.f32.mrf.mxu0
        %v2592 = vadd.f32 %v2563, %v2591
        %v2593 = vpop.f32.mrf.mxu0
        %v2594 = vadd.f32 %v2565, %v2593
        %2595 = vmatmul.bf16.gmra.mxu0 %v1923
        %v2596 = vpop.f32.mrf.mxu0
        %v2597 = vadd.f32 %v2568, %v2596
        %v2598 = vpop.f32.mrf.mxu0
        %v2599 = vadd.f32 %v2570, %v2598
        %2600 = vmatmul.bf16.gmra.mxu0 %v1932
        %v2601 = vpop.f32.mrf.mxu0
        %v2602 = vadd.f32 %v2573, %v2601
        %v2603 = vpop.f32.mrf.mxu0
        %v2604 = vadd.f32 %v2575, %v2603
        %2605 = vmatmul.bf16.gmra.mxu0 %v1941
        %v2606 = vpop.f32.mrf.mxu0
        %v2607 = vadd.f32 %v2578, %v2606
        %v2608 = vpop.f32.mrf.mxu0
        %v2609 = vadd.f32 %v2580, %v2608
        %2610 = vdwg.mxu0
        %2611 = vmatpush.bf16.msra.mxu0 %v2411
        %2612 = vmatpush.bf16.msra.mxu0 %v2410
        %2613 = vmatpush.bf16.msra.mxu0 %v2409
        %2614 = vmatpush.bf16.msra.mxu0 %v2408
        %2615 = vmatpush.bf16.msra.mxu0 %v2407
        %2616 = vmatpush.bf16.msra.mxu0 %v2406
        %2617 = vmatpush.bf16.msra.mxu0 %v2405
        %2618 = vmatpush.bf16.msra.mxu0 %v2404
        %2619 = vmatmul.bf16.gmra.mxu0 %v1915
        %v2620 = vpop.f32.mrf.mxu0
        %v2621 = vadd.f32 %v2592, %v2620
        %v2622 = vpop.f32.mrf.mxu0
        %v2623 = vadd.f32 %v2594, %v2622
        %2624 = vmatmul.bf16.gmra.mxu0 %v1924
        %v2625 = vpop.f32.mrf.mxu0
        %v2626 = vadd.f32 %v2597, %v2625
        %v2627 = vpop.f32.mrf.mxu0
        %v2628 = vadd.f32 %v2599, %v2627
        %2629 = vmatmul.bf16.gmra.mxu0 %v1933
        %v2630 = vpop.f32.mrf.mxu0
        %v2631 = vadd.f32 %v2602, %v2630
        %v2632 = vpop.f32.mrf.mxu0
        %v2633 = vadd.f32 %v2604, %v2632
        %2634 = vmatmul.bf16.gmra.mxu0 %v1942
        %v2635 = vpop.f32.mrf.mxu0
        %v2636 = vadd.f32 %v2607, %v2635
        %v2637 = vpop.f32.mrf.mxu0
        %v2638 = vadd.f32 %v2609, %v2637
        %2639 = vdwg.mxu0
        %2640 = vmatpush.bf16.msra.mxu0 %v2419
        %2641 = vmatpush.bf16.msra.mxu0 %v2418
        %2642 = vmatpush.bf16.msra.mxu0 %v2417
        %2643 = vmatpush.bf16.msra.mxu0 %v2416
        %2644 = vmatpush.bf16.msra.mxu0 %v2415
        %2645 = vmatpush.bf16.msra.mxu0 %v2414
        %2646 = vmatpush.bf16.msra.mxu0 %v2413
        %2647 = vmatpush.bf16.msra.mxu0 %v2412
        %2648 = vmatmul.bf16.gmra.mxu0 %v1916
        %v2649 = vpop.f32.mrf.mxu0
        %v2650 = vadd.f32 %v2621, %v2649
        %v2651 = vpop.f32.mrf.mxu0
        %v2652 = vadd.f32 %v2623, %v2651
        %2653 = vmatmul.bf16.gmra.mxu0 %v1925
        %v2654 = vpop.f32.mrf.mxu0
        %v2655 = vadd.f32 %v2626, %v2654
        %v2656 = vpop.f32.mrf.mxu0
        %v2657 = vadd.f32 %v2628, %v2656
        %2658 = vmatmul.bf16.gmra.mxu0 %v1934
        %v2659 = vpop.f32.mrf.mxu0
        %v2660 = vadd.f32 %v2631, %v2659
        %v2661 = vpop.f32.mrf.mxu0
        %v2662 = vadd.f32 %v2633, %v2661
        %2663 = vmatmul.bf16.gmra.mxu0 %v1943
        %v2664 = vpop.f32.mrf.mxu0
        %v2665 = vadd.f32 %v2636, %v2664
        %v2666 = vpop.f32.mrf.mxu0
        %v2667 = vadd.f32 %v2638, %v2666
        %2668 = vdwg.mxu0
        %2669 = vmatpush.bf16.msra.mxu0 %v2427
        %2670 = vmatpush.bf16.msra.mxu0 %v2426
        %2671 = vmatpush.bf16.msra.mxu0 %v2425
        %2672 = vmatpush.bf16.msra.mxu0 %v2424
        %2673 = vmatpush.bf16.msra.mxu0 %v2423
        %2674 = vmatpush.bf16.msra.mxu0 %v2422
        %2675 = vmatpush.bf16.msra.mxu0 %v2421
        %2676 = vmatpush.bf16.msra.mxu0 %v2420
        %2677 = vmatmul.bf16.gmra.mxu0 %v1917
        %v2678 = vpop.f32.mrf.mxu0
        %v2679 = vadd.f32 %v2650, %v2678
        %v2680 = vpop.f32.mrf.mxu0
        %v2681 = vadd.f32 %v2652, %v2680
        %2682 = vmatmul.bf16.gmra.mxu0 %v1926
        %v2683 = vpop.f32.mrf.mxu0
        %v2684 = vadd.f32 %v2655, %v2683
        %v2685 = vpop.f32.mrf.mxu0
        %v2686 = vadd.f32 %v2657, %v2685
        %2687 = vmatmul.bf16.gmra.mxu0 %v1935
        %v2688 = vpop.f32.mrf.mxu0
        %v2689 = vadd.f32 %v2660, %v2688
        %v2690 = vpop.f32.mrf.mxu0
        %v2691 = vadd.f32 %v2662, %v2690
        %2692 = vmatmul.bf16.gmra.mxu0 %v1944
        %v2693 = vpop.f32.mrf.mxu0
        %v2694 = vadd.f32 %v2665, %v2693
        %v2695 = vpop.f32.mrf.mxu0
        %v2696 = vadd.f32 %v2667, %v2695
        %2697 = vdwg.mxu0
        %2698 = vmatpush.bf16.msra.mxu0 %v2435
        %2699 = vmatpush.bf16.msra.mxu0 %v2434
        %2700 = vmatpush.bf16.msra.mxu0 %v2433
        %2701 = vmatpush.bf16.msra.mxu0 %v2432
        %2702 = vmatpush.bf16.msra.mxu0 %v2431
        %2703 = vmatpush.bf16.msra.mxu0 %v2430
        %2704 = vmatpush.bf16.msra.mxu0 %v2429
        %2705 = vmatpush.bf16.msra.mxu0 %v2428
        %2706 = vmatmul.bf16.gmra.mxu0 %v1918
        %v2707 = vpop.f32.mrf.mxu0
        %v2708 = vadd.f32 %v2679, %v2707
        %v2709 = vpop.f32.mrf.mxu0
        %v2710 = vadd.f32 %v2681, %v2709
        %2711 = vmatmul.bf16.gmra.mxu0 %v1927
        %v2712 = vpop.f32.mrf.mxu0
        %v2713 = vadd.f32 %v2684, %v2712
        %v2714 = vpop.f32.mrf.mxu0
        %v2715 = vadd.f32 %v2686, %v2714
        %2716 = vmatmul.bf16.gmra.mxu0 %v1936
        %v2717 = vpop.f32.mrf.mxu0
        %v2718 = vadd.f32 %v2689, %v2717
        %v2719 = vpop.f32.mrf.mxu0
        %v2720 = vadd.f32 %v2691, %v2719
        %2721 = vmatmul.bf16.gmra.mxu0 %v1945
        %v2722 = vpop.f32.mrf.mxu0
        %v2723 = vadd.f32 %v2694, %v2722
        %v2724 = vpop.f32.mrf.mxu0
        %v2725 = vadd.f32 %v2696, %v2724
        %2726 = vdwg.mxu0
        %2727 = vmatpush.bf16.msra.mxu0 %v2443
        %2728 = vmatpush.bf16.msra.mxu0 %v2442
        %2729 = vmatpush.bf16.msra.mxu0 %v2441
        %2730 = vmatpush.bf16.msra.mxu0 %v2440
        %2731 = vmatpush.bf16.msra.mxu0 %v2439
        %2732 = vmatpush.bf16.msra.mxu0 %v2438
        %2733 = vmatpush.bf16.msra.mxu0 %v2437
        %2734 = vmatpush.bf16.msra.mxu0 %v2436
        %2735 = vmatmul.bf16.gmra.mxu0 %v1919
        %v2736 = vpop.f32.mrf.mxu0
        %v2737 = vadd.f32 %v2708, %v2736
        %v2738 = vpop.f32.mrf.mxu0
        %v2739 = vadd.f32 %v2710, %v2738
        %2740 = vmatmul.bf16.gmra.mxu0 %v1928
        %v2741 = vpop.f32.mrf.mxu0
        %v2742 = vadd.f32 %v2713, %v2741
        %v2743 = vpop.f32.mrf.mxu0
        %v2744 = vadd.f32 %v2715, %v2743
        %2745 = vmatmul.bf16.gmra.mxu0 %v1937
        %v2746 = vpop.f32.mrf.mxu0
        %v2747 = vadd.f32 %v2718, %v2746
        %v2748 = vpop.f32.mrf.mxu0
        %v2749 = vadd.f32 %v2720, %v2748
        %2750 = vmatmul.bf16.gmra.mxu0 %v1946
        %v2751 = vpop.f32.mrf.mxu0
        %v2752 = vadd.f32 %v2723, %v2751
        %v2753 = vpop.f32.mrf.mxu0
        %v2754 = vadd.f32 %v2725, %v2753
        %2755 = vdwg.mxu0
        %2756 = vmatpush.bf16.msra.mxu0 %v2451
        %2757 = vmatpush.bf16.msra.mxu0 %v2450
        %2758 = vmatpush.bf16.msra.mxu0 %v2449
        %2759 = vmatpush.bf16.msra.mxu0 %v2448
        %2760 = vmatpush.bf16.msra.mxu0 %v2447
        %2761 = vmatpush.bf16.msra.mxu0 %v2446
        %2762 = vmatpush.bf16.msra.mxu0 %v2445
        %2763 = vmatpush.bf16.msra.mxu0 %v2444
        %2764 = vmatmul.bf16.gmra.mxu0 %v1920
        %v2765 = vpop.f32.mrf.mxu0
        %v2766 = vadd.f32 %v2737, %v2765
        %v2767 = vpop.f32.mrf.mxu0
        %v2768 = vadd.f32 %v2739, %v2767
        %2769 = vmatmul.bf16.gmra.mxu0 %v1929
        %v2770 = vpop.f32.mrf.mxu0
        %v2771 = vadd.f32 %v2742, %v2770
        %v2772 = vpop.f32.mrf.mxu0
        %v2773 = vadd.f32 %v2744, %v2772
        %2774 = vmatmul.bf16.gmra.mxu0 %v1938
        %v2775 = vpop.f32.mrf.mxu0
        %v2776 = vadd.f32 %v2747, %v2775
        %v2777 = vpop.f32.mrf.mxu0
        %v2778 = vadd.f32 %v2749, %v2777
        %2779 = vmatmul.bf16.gmra.mxu0 %v1947
        %v2780 = vpop.f32.mrf.mxu0
        %v2781 = vadd.f32 %v2752, %v2780
        %v2782 = vpop.f32.mrf.mxu0
        %v2783 = vadd.f32 %v2754, %v2782
        %2784 = vdwg.mxu0
        %v2785 = vld [vmem:[%s5] sm:$0x1]
        %v2787 = vperm.slane %v2785, 0
        %v2789 = vmul.f32 %v2766, %v2787
        %v2790 = vmul.f32 %v2768, %v2787
        %v2791 = vmul.f32 %v2771, %v2787
        %v2792 = vmul.f32 %v2773, %v2787
        %v2793 = vmul.f32 %v2776, %v2787
        %v2794 = vmul.f32 %v2778, %v2787
        %v2795 = vmul.f32 %v2781, %v2787
        %v2796 = vmul.f32 %v2783, %v2787
        %v2797 = vld [vmem:[%s6] sm:$0x1]
        %v2799 = vperm.slane %v2797, 0
        %v2801 = vadd.f32 %v2789, %v2799
        %v2802 = vadd.f32 %v2790, %v2799
        %v2803 = vadd.f32 %v2791, %v2799
        %v2804 = vadd.f32 %v2792, %v2799
        %v2805 = vadd.f32 %v2793, %v2799
        %v2806 = vadd.f32 %v2794, %v2799
        %v2807 = vadd.f32 %v2795, %v2799
        %v2808 = vadd.f32 %v2796, %v2799
        %v2809 = vmax.f32 %v2801, 0.0
        %v2810 = vmax.f32 %v2802, 0.0
        %v2811 = vmax.f32 %v2803, 0.0
        %v2812 = vmax.f32 %v2804, 0.0
        %v2813 = vmax.f32 %v2805, 0.0
        %v2814 = vmax.f32 %v2806, 0.0
        %v2815 = vmax.f32 %v2807, 0.0
        %v2816 = vmax.f32 %v2808, 0.0
        %2817 = vst [vmem:[%s271] sm:$0xff] %v2809
        %2818 = vst [vmem:[%s271 + $0x8] sm:$0xff] %v2810
        %2819 = vst [vmem:[%s271 + $0x10] sm:$0xff] %v2811
        %2820 = vst [vmem:[%s271 + $0x18] sm:$0xff] %v2812
        %2821 = vst [vmem:[%s271 + $0x20] sm:$0xff] %v2813
        %2822 = vst [vmem:[%s271 + $0x28] sm:$0xff] %v2814
        %2823 = vst [vmem:[%s271 + $0x30] sm:$0xff] %v2815
        %2824 = vst [vmem:[%s271 + $0x38] sm:$0xff] %v2816
        %s2825 = sand.u32 %s181, 1
        %s2826 = scalar_lea.sflag [#allocation6], %s2825
        %s2827 = sand.u32 %s181, 1
        %s2828 = smul.addr %s2827, 64
        %s2829 = scalar_lea.vmem [#allocation5], %s2828
        // Predicated region
        $region49: #{unet_encoder_forward.3} parent=47 // pred_check
          %p2830 = pneg %p191
        $region50: #{unet_encoder_forward.3} parent=47 // pred_check_branch
          %2832 = sbr.rel (%p2830) target = $region52
        $region51: #{unet_encoder_forward.3} parent=47 // pred_region
          %2834 = vsyncadd %s2826, 0
          %s2835 = smul.addr %s21, 8
          %s2836 = smul.addr %s2835, 8
          %s2837 = scalar_lea.hbm %s7, %s2836
          %s2838 = sshll.u32 %s2829, 4
          %s2839 = int_to_ptr.vmem [resolvable:$true] %s2838
          %s2840 = sshll.u32 %s2837, 4
          %s2841 = int_to_ptr.hbm [resolvable:$true] %s2840
          %2846 = dma.vmem_to_hbm [thread:$0]  %s2839, 1024, %s2841, %s2826, 128, 128, 8
        $region52: #{unet_encoder_forward.3} parent=47 // pred_fallthru
          _
      $region48: #{unet_encoder_forward.3} parent=5 // pred_fallthru
        _
      %p2847 = scmp.le.s32.totalorder 2, %s16
      // Predicated region
      $region53: #{unet_encoder_forward.3} parent=5 // pred_check
        %p2848 = pneg %p2847
      $region54: #{unet_encoder_forward.3} parent=5 // pred_check_branch
        %2850 = sbr.rel (%p2848) target = $region56
      $region55: #{unet_encoder_forward.3} parent=5 // pred_region
        %s2851 = ssub.s32 %s16, 2
        // Predicated region
        $region57: #{unet_encoder_forward.3} parent=55 // pred_check
          %p2852 = pneg %p197
        $region58: #{unet_encoder_forward.3} parent=55 // pred_check_branch
          %2854 = sbr.rel (%p2852) target = $region60
        $region59: #{unet_encoder_forward.3} parent=55 // pred_region
          %s2855 = sand.u32 %s182, 1
          %s2856 = scalar_lea.sflag [#allocation6], %s2855
          %s2857 = sand.u32 %s182, 1
          %s2858 = smul.addr %s2857, 64
          %s2859 = scalar_lea.vmem [#allocation5], %s2858
          %2861 = dma.done %s2856, 1024
        $region60: #{unet_encoder_forward.3} parent=55 // pred_fallthru
          _
      $region56: #{unet_encoder_forward.3} parent=5 // pred_fallthru
        _
    $region6: #{unet_encoder_forward.3} parent=1 // loop_footer
      %s20 = sadd.s32 1, %s16
    $region7: #{unet_encoder_forward.3} parent=1 // loop_footer_branch
      %15 = sbr.rel target = $region3
    $region8: #{unet_encoder_forward.3} parent=1 // loop_exit
      _
    %2862 = vsyncpa [#allocation6], 1
    %s2863 = scalar_lea.sflag [#allocation6], 1
    %2864 = vsyncpa %s2863, 1

// kernel: unet_encoder_forward.2
$region0: #{unet_encoder_forward.2}
  #allocation0 [shape = 'u32[]', space=smem, size = 0x4, offset = 0x4, fixed_abs, tag = 'smem constant byte address 0x4 - core index']
  #allocation1 [shape = 'u32[72,128]{1,0:T(1,128)}', space=vmem, size = 0x9000, scoped, tag = 'internal scratch']
  #allocation2 [shape = 'f32[18,25,4]{2,1,0:T(8,128)}', space=vmem, size = 0x48000, scoped, tag = 'scratch operand']
  #allocation3 [shape = 'f32[18,25,64]{2,1,0:T(8,128)}', space=vmem, size = 0x48000, scoped, tag = 'scratch operand']
  #allocation4 [shape = 'f32[256,1152]{1,0:T(8,128)}', space=vmem, size = 0x120000, scoped, tag = 'scratch operand']
  %s0 = inlined_call_operand.vmem [shape: f32[2,16,16,4], index: 0, kind: input, shape index: {}]
  %s1 = inlined_call_operand.vmem [shape: bf16[1152,64], index: 1, kind: input, shape index: {}]
  %s2 = inlined_call_operand.vmem [shape: f32[1,64], index: 2, kind: input, shape index: {}]
  %s3 = inlined_call_operand.vmem [shape: f32[1,64], index: 3, kind: input, shape index: {}]
  %s4 = inlined_call_operand.vmem [shape: bf16[1152,64], index: 4, kind: input, shape index: {}]
  %s5 = inlined_call_operand.vmem [shape: f32[1,64], index: 5, kind: input, shape index: {}]
  %s6 = inlined_call_operand.vmem [shape: f32[1,64], index: 6, kind: input, shape index: {}]
  %s7 = inlined_call_operand.vmem [shape: f32[2,16,16,64], index: 7, kind: output, shape index: {}]
  %s8 = sld [smem:[#allocation0]]
  $region61: #{unet_encoder_forward.2} parent=0
    _
  %s10 = ssub.s32 1, %s8
  %s11 = scalar_select 0, %s10, %s8
  loop: start=0, step=1, limit=4
  $region2: #{unet_encoder_forward.2} parent=0 // loop_pre_header
    _
  $region3: #{unet_encoder_forward.2} parent=0 // loop_header
    %s13 = sphi 0, %s17
    %p14 = scmp.ge.s32.totalorder %s13, 4
    %s23 = sphi 0, %s25
    %s26 = sphi 0, %s23
    %s27 = sphi 0, %s26
    %s43 = sphi 0, %s27
    %s47 = sphi 0, %s47
    %s49 = sphi 0, %s47
    %s50 = sphi 0, %s49
    %s64 = sphi 0, %s50
    %s68 = sphi 0, %s68
    %s70 = sphi 0, %s68
    %s71 = sphi 0, %s70
    %s85 = sphi 0, %s71
    %s89 = sphi 0, %s89
    %s91 = sphi 0, %s89
    %s92 = sphi 0, %s91
    %s106 = sphi 0, %s92
    %s110 = sphi 0, %s110
    %s112 = sphi 0, %s110
    %s113 = sphi 0, %s112
    %s127 = sphi 0, %s113
    %s131 = sphi 0, %s131
    %s133 = sphi 0, %s131
    %s134 = sphi 0, %s133
    %s148 = sphi 0, %s134
    %s152 = sphi 0, %s152
    %s154 = sphi 0, %s152
    %s155 = sphi 0, %s154
    %s169 = sphi 0, %s155
    %s175 = sphi 0, %s177
    %s178 = sphi 0, %s175
    %s179 = sphi 0, %s178
    %s195 = sphi 0, %s179
  $region4: #{unet_encoder_forward.2} parent=0 // loop_header_branch
    %16 = sbr.rel (%p14) target = $region8
  $region5: #{unet_encoder_forward.2} parent=0 // loop_body
    %s18 = ssub.s32 %s13, 1
    %s19 = ssub.s32 %s13, 2
    %s20 = sadd.s32 %s13, 1
    %s21 = ssub.s32 %s13, %s20
    %p22 = scmp.eq.s32.totalorder %s21, 0
    %s24 = sadd.s32 %s23, 1
    %s25 = scalar_select %p22, %s23, %s24
    %p28 = pneg %p22
    %p29 = scmp.eq.s32.totalorder %s13, 1
    %p30 = por %p28, %p29
    %p31 = scmp.ne.s32.totalorder %s23, %s26
    %p32 = scmp.eq.s32.totalorder %s13, 0
    %p33 = por %p31, %p32
    %p34 = scmp.ne.s32.totalorder %s23, %s26
    %p35 = scmp.eq.s32.totalorder %s18, 1
    %p36 = por %p34, %p35
    %p37 = scmp.ne.s32.totalorder %s26, %s27
    %p38 = scmp.eq.s32.totalorder %s18, 0
    %p39 = por %p37, %p38
    %p40 = scmp.ne.s32.totalorder %s26, %s27
    %p41 = scmp.eq.s32.totalorder %s19, 1
    %p42 = por %p40, %p41
    %p44 = scmp.ne.s32.totalorder %s27, %s43
    %p45 = scmp.eq.s32.totalorder %s19, 0
    %p46 = por %p44, %p45
    %s48 = sadd.s32 %s47, 1
    %p51 = scmp.eq.s32.totalorder %s13, 1
    %p52 = scmp.ne.s32.totalorder %s47, %s49
    %p53 = scmp.eq.s32.totalorder %s13, 0
    %p54 = por %p52, %p53
    %p55 = scmp.ne.s32.totalorder %s47, %s49
    %p56 = scmp.eq.s32.totalorder %s18, 1
    %p57 = por %p55, %p56
    %p58 = scmp.ne.s32.totalorder %s49, %s50
    %p59 = scmp.eq.s32.totalorder %s18, 0
    %p60 = por %p58, %p59
    %p61 = scmp.ne.s32.totalorder %s49, %s50
    %p62 = scmp.eq.s32.totalorder %s19, 1
    %p63 = por %p61, %p62
    %p65 = scmp.ne.s32.totalorder %s50, %s64
    %p66 = scmp.eq.s32.totalorder %s19, 0
    %p67 = por %p65, %p66
    %s69 = sadd.s32 %s68, 1
    %p72 = scmp.eq.s32.totalorder %s13, 1
    %p73 = scmp.ne.s32.totalorder %s68, %s70
    %p74 = scmp.eq.s32.totalorder %s13, 0
    %p75 = por %p73, %p74
    %p76 = scmp.ne.s32.totalorder %s68, %s70
    %p77 = scmp.eq.s32.totalorder %s18, 1
    %p78 = por %p76, %p77
    %p79 = scmp.ne.s32.totalorder %s70, %s71
    %p80 = scmp.eq.s32.totalorder %s18, 0
    %p81 = por %p79, %p80
    %p82 = scmp.ne.s32.totalorder %s70, %s71
    %p83 = scmp.eq.s32.totalorder %s19, 1
    %p84 = por %p82, %p83
    %p86 = scmp.ne.s32.totalorder %s71, %s85
    %p87 = scmp.eq.s32.totalorder %s19, 0
    %p88 = por %p86, %p87
    %s90 = sadd.s32 %s89, 1
    %p93 = scmp.eq.s32.totalorder %s13, 1
    %p94 = scmp.ne.s32.totalorder %s89, %s91
    %p95 = scmp.eq.s32.totalorder %s13, 0
    %p96 = por %p94, %p95
    %p97 = scmp.ne.s32.totalorder %s89, %s91
    %p98 = scmp.eq.s32.totalorder %s18, 1
    %p99 = por %p97, %p98
    %p100 = scmp.ne.s32.totalorder %s91, %s92
    %p101 = scmp.eq.s32.totalorder %s18, 0
    %p102 = por %p100, %p101
    %p103 = scmp.ne.s32.totalorder %s91, %s92
    %p104 = scmp.eq.s32.totalorder %s19, 1
    %p105 = por %p103, %p104
    %p107 = scmp.ne.s32.totalorder %s92, %s106
    %p108 = scmp.eq.s32.totalorder %s19, 0
    %p109 = por %p107, %p108
    %s111 = sadd.s32 %s110, 1
    %p114 = scmp.eq.s32.totalorder %s13, 1
    %p115 = scmp.ne.s32.totalorder %s110, %s112
    %p116 = scmp.eq.s32.totalorder %s13, 0
    %p117 = por %p115, %p116
    %p118 = scmp.ne.s32.totalorder %s110, %s112
    %p119 = scmp.eq.s32.totalorder %s18, 1
    %p120 = por %p118, %p119
    %p121 = scmp.ne.s32.totalorder %s112, %s113
    %p122 = scmp.eq.s32.totalorder %s18, 0
    %p123 = por %p121, %p122
    %p124 = scmp.ne.s32.totalorder %s112, %s113
    %p125 = scmp.eq.s32.totalorder %s19, 1
    %p126 = por %p124, %p125
    %p128 = scmp.ne.s32.totalorder %s113, %s127
    %p129 = scmp.eq.s32.totalorder %s19, 0
    %p130 = por %p128, %p129
    %s132 = sadd.s32 %s131, 1
    %p135 = scmp.eq.s32.totalorder %s13, 1
    %p136 = scmp.ne.s32.totalorder %s131, %s133
    %p137 = scmp.eq.s32.totalorder %s13, 0
    %p138 = por %p136, %p137
    %p139 = scmp.ne.s32.totalorder %s131, %s133
    %p140 = scmp.eq.s32.totalorder %s18, 1
    %p141 = por %p139, %p140
    %p142 = scmp.ne.s32.totalorder %s133, %s134
    %p143 = scmp.eq.s32.totalorder %s18, 0
    %p144 = por %p142, %p143
    %p145 = scmp.ne.s32.totalorder %s133, %s134
    %p146 = scmp.eq.s32.totalorder %s19, 1
    %p147 = por %p145, %p146
    %p149 = scmp.ne.s32.totalorder %s134, %s148
    %p150 = scmp.eq.s32.totalorder %s19, 0
    %p151 = por %p149, %p150
    %s153 = sadd.s32 %s152, 1
    %p156 = scmp.eq.s32.totalorder %s13, 1
    %p157 = scmp.ne.s32.totalorder %s152, %s154
    %p158 = scmp.eq.s32.totalorder %s13, 0
    %p159 = por %p157, %p158
    %p160 = scmp.ne.s32.totalorder %s152, %s154
    %p161 = scmp.eq.s32.totalorder %s18, 1
    %p162 = por %p160, %p161
    %p163 = scmp.ne.s32.totalorder %s154, %s155
    %p164 = scmp.eq.s32.totalorder %s18, 0
    %p165 = por %p163, %p164
    %p166 = scmp.ne.s32.totalorder %s154, %s155
    %p167 = scmp.eq.s32.totalorder %s19, 1
    %p168 = por %p166, %p167
    %p170 = scmp.ne.s32.totalorder %s155, %s169
    %p171 = scmp.eq.s32.totalorder %s19, 0
    %p172 = por %p170, %p171
    %s173 = ssub.s32 %s13, %s20
    %p174 = scmp.eq.s32.totalorder %s173, 0
    %s176 = sadd.s32 %s175, 1
    %s177 = scalar_select %p174, %s175, %s176
    %p180 = pneg %p174
    %p181 = scmp.eq.s32.totalorder %s13, 1
    %p182 = por %p180, %p181
    %p183 = scmp.ne.s32.totalorder %s175, %s178
    %p184 = scmp.eq.s32.totalorder %s13, 0
    %p185 = por %p183, %p184
    %p186 = scmp.ne.s32.totalorder %s175, %s178
    %p187 = scmp.eq.s32.totalorder %s18, 1
    %p188 = por %p186, %p187
    %p189 = scmp.ne.s32.totalorder %s178, %s179
    %p190 = scmp.eq.s32.totalorder %s18, 0
    %p191 = por %p189, %p190
    %p192 = scmp.ne.s32.totalorder %s178, %s179
    %p193 = scmp.eq.s32.totalorder %s19, 1
    %p194 = por %p192, %p193
    %p196 = scmp.ne.s32.totalorder %s179, %s195
    %p197 = scmp.eq.s32.totalorder %s19, 0
    %p198 = por %p196, %p197
    %p199 = scmp.le.s32.totalorder 1, %s13
    %p200 = scmp.lt.s32.totalorder %s13, 3
    %p201 = pnand %p199, %p200
    %p202 = pneg %p201
    // Predicated region
    $region9: #{unet_encoder_forward.2} parent=5 // pred_check
      _
    $region10: #{unet_encoder_forward.2} parent=5 // pred_check_branch
      %204 = sbr.rel (%p201) target = $region12
    $region11: #{unet_encoder_forward.2} parent=5 // pred_region
      %s205 = ssub.s32 %s13, 1
      // Predicated region
      $region13: #{unet_encoder_forward.2} parent=11 // pred_check
        %p206 = pneg %p60
      $region14: #{unet_encoder_forward.2} parent=11 // pred_check_branch
        %208 = sbr.rel (%p206) target = $region16
      $region15: #{unet_encoder_forward.2} parent=11 // pred_region
        _
      $region16: #{unet_encoder_forward.2} parent=11 // pred_fallthru
        _
      // Predicated region
      $region17: #{unet_encoder_forward.2} parent=11 // pred_check
        %p209 = pneg %p81
      $region18: #{unet_encoder_forward.2} parent=11 // pred_check_branch
        %211 = sbr.rel (%p209) target = $region20
      $region19: #{unet_encoder_forward.2} parent=11 // pred_region
        _
      $region20: #{unet_encoder_forward.2} parent=11 // pred_fallthru
        _
      // Predicated region
      $region21: #{unet_encoder_forward.2} parent=11 // pred_check
        %p212 = pneg %p102
      $region22: #{unet_encoder_forward.2} parent=11 // pred_check_branch
        %214 = sbr.rel (%p212) target = $region24
      $region23: #{unet_encoder_forward.2} parent=11 // pred_region
        _
      $region24: #{unet_encoder_forward.2} parent=11 // pred_fallthru
        _
      // Predicated region
      $region25: #{unet_encoder_forward.2} parent=11 // pred_check
        %p215 = pneg %p123
      $region26: #{unet_encoder_forward.2} parent=11 // pred_check_branch
        %217 = sbr.rel (%p215) target = $region28
      $region27: #{unet_encoder_forward.2} parent=11 // pred_region
        _
      $region28: #{unet_encoder_forward.2} parent=11 // pred_fallthru
        _
      // Predicated region
      $region29: #{unet_encoder_forward.2} parent=11 // pred_check
        %p218 = pneg %p144
      $region30: #{unet_encoder_forward.2} parent=11 // pred_check_branch
        %220 = sbr.rel (%p218) target = $region32
      $region31: #{unet_encoder_forward.2} parent=11 // pred_region
        _
      $region32: #{unet_encoder_forward.2} parent=11 // pred_fallthru
        _
      // Predicated region
      $region33: #{unet_encoder_forward.2} parent=11 // pred_check
        %p221 = pneg %p165
      $region34: #{unet_encoder_forward.2} parent=11 // pred_check_branch
        %223 = sbr.rel (%p221) target = $region36
      $region35: #{unet_encoder_forward.2} parent=11 // pred_region
        _
      $region36: #{unet_encoder_forward.2} parent=11 // pred_fallthru
        _
    $region12: #{unet_encoder_forward.2} parent=5 // pred_fallthru
      _
    %p224 = scmp.lt.s32.totalorder %s13, 2
    // Predicated region
    $region37: #{unet_encoder_forward.2} parent=5 // pred_check
      %p225 = pneg %p224
    $region38: #{unet_encoder_forward.2} parent=5 // pred_check_branch
      %227 = sbr.rel (%p225) target = $region40
    $region39: #{unet_encoder_forward.2} parent=5 // pred_region
      // Predicated region
      $region41: #{unet_encoder_forward.2} parent=39 // pred_check
        %p228 = pneg %p33
      $region42: #{unet_encoder_forward.2} parent=39 // pred_check_branch
        %230 = sbr.rel (%p228) target = $region44
      $region43: #{unet_encoder_forward.2} parent=39 // pred_region
        %p231 = scmp.lt.s32.totalorder %s13, 1
        %s232 = scalar_select %p231, %s13, 1
        %s233 = smul.addr %s232, 32
        %s234 = smul.addr %s233, 8
        %s235 = scalar_lea.vmem %s0, %s234
      $region44: #{unet_encoder_forward.2} parent=39 // pred_fallthru
        _
    $region40: #{unet_encoder_forward.2} parent=5 // pred_fallthru
      _
    %p236 = scmp.le.s32.totalorder 1, %s13
    %p237 = scmp.lt.s32.totalorder %s13, 3
    %p238 = pnand %p236, %p237
    %p239 = pneg %p238
    // Predicated region
    $region45: #{unet_encoder_forward.2} parent=5 // pred_check
      _
    $region46: #{unet_encoder_forward.2} parent=5 // pred_check_branch
      %241 = sbr.rel (%p238) target = $region48
    $region47: #{unet_encoder_forward.2} parent=5 // pred_region
      %s242 = ssub.s32 %s13, 1
      %p243 = scmp.lt.s32.totalorder %s18, 1
      %s244 = scalar_select %p243, %s18, 1
      %s245 = smul.addr %s244, 32
      %s246 = smul.addr %s245, 8
      %s247 = scalar_lea.vmem %s0, %s246
      %p248 = pneg %p39
      %p249 = pneg %p36
      %p250 = pneg %p60
      %p251 = pneg %p57
      %p252 = pneg %p81
      %p253 = pneg %p78
      %p254 = pneg %p102
      %p255 = pneg %p99
      %p256 = pneg %p123
      %p257 = pneg %p120
      %p258 = pneg %p144
      %p259 = pneg %p141
      %p260 = pneg %p165
      %p261 = pneg %p162
      %p262 = pneg %p191
      %p263 = pneg %p188
      %p264 = scmp.lt.s32.totalorder %s18, 1
      %s265 = scalar_select %p264, %s18, 1
      %s266 = smul.addr %s265, 32
      %s267 = smul.addr %s266, 8
      %s268 = scalar_lea.vmem %s7, %s267
      %p269 = scmp.lt.s32.totalorder %s18, 1
      %s270 = scalar_select %p269, %s18, 1
      %s271 = smul.addr %s270, 32
      %s272 = smul.addr %s271, 8
      %s273 = scalar_lea.vmem %s0, %s272
      %p274 = scmp.lt.s32.totalorder %s18, 1
      %s275 = scalar_select %p274, %s18, 1
      %s276 = smul.addr %s275, 32
      %s277 = smul.addr %s276, 8
      %s278 = scalar_lea.vmem %s7, %s277
      %vm279 = vcmask 31744
      %280 = vst.msk [vmem:[#allocation2] sm:$0xff] %vm279, 0.0
      %281 = vst.msk [vmem:[#allocation2 + $0x8] sm:$0xff] %vm279, 0.0
      %282 = vst.msk [vmem:[#allocation2 + $0x10] sm:$0xff] %vm279, 0.0
      %vm283 = vcmask 24576
      %284 = vst.msk [vmem:[#allocation2 + $0x18] sm:$0x1] %vm283, 0.0
      %285 = vst.msk [vmem:[#allocation2 + $0x20] sm:$0xff] %vm279, 0.0
      %286 = vst.msk [vmem:[#allocation2 + $0x28] sm:$0xff] %vm279, 0.0
      %287 = vst.msk [vmem:[#allocation2 + $0x30] sm:$0xff] %vm279, 0.0
      %288 = vst.msk [vmem:[#allocation2 + $0x38] sm:$0x1] %vm283, 0.0
      %289 = vst.msk [vmem:[#allocation2 + $0x40] sm:$0xff] %vm279, 0.0
      %290 = vst.msk [vmem:[#allocation2 + $0x48] sm:$0xff] %vm279, 0.0
      %291 = vst.msk [vmem:[#allocation2 + $0x50] sm:$0xff] %vm279, 0.0
      %292 = vst.msk [vmem:[#allocation2 + $0x58] sm:$0x1] %vm283, 0.0
      %293 = vst.msk [vmem:[#allocation2 + $0x60] sm:$0xff] %vm279, 0.0
      %294 = vst.msk [vmem:[#allocation2 + $0x68] sm:$0xff] %vm279, 0.0
      %295 = vst.msk [vmem:[#allocation2 + $0x70] sm:$0xff] %vm279, 0.0
      %296 = vst.msk [vmem:[#allocation2 + $0x78] sm:$0x1] %vm283, 0.0
      %297 = vst.msk [vmem:[#allocation2 + $0x80] sm:$0xff] %vm279, 0.0
      %298 = vst.msk [vmem:[#allocation2 + $0x88] sm:$0xff] %vm279, 0.0
      %299 = vst.msk [vmem:[#allocation2 + $0x90] sm:$0xff] %vm279, 0.0
      %300 = vst.msk [vmem:[#allocation2 + $0x98] sm:$0x1] %vm283, 0.0
      %301 = vst.msk [vmem:[#allocation2 + $0xa0] sm:$0xff] %vm279, 0.0
      %302 = vst.msk [vmem:[#allocation2 + $0xa8] sm:$0xff] %vm279, 0.0
      %303 = vst.msk [vmem:[#allocation2 + $0xb0] sm:$0xff] %vm279, 0.0
      %304 = vst.msk [vmem:[#allocation2 + $0xb8] sm:$0x1] %vm283, 0.0
      %305 = vst.msk [vmem:[#allocation2 + $0xc0] sm:$0xff] %vm279, 0.0
      %306 = vst.msk [vmem:[#allocation2 + $0xc8] sm:$0xff] %vm279, 0.0
      %307 = vst.msk [vmem:[#allocation2 + $0xd0] sm:$0xff] %vm279, 0.0
      %308 = vst.msk [vmem:[#allocation2 + $0xd8] sm:$0x1] %vm283, 0.0
      %309 = vst.msk [vmem:[#allocation2 + $0xe0] sm:$0xff] %vm279, 0.0
      %310 = vst.msk [vmem:[#allocation2 + $0xe8] sm:$0xff] %vm279, 0.0
      %311 = vst.msk [vmem:[#allocation2 + $0xf0] sm:$0xff] %vm279, 0.0
      %312 = vst.msk [vmem:[#allocation2 + $0xf8] sm:$0x1] %vm283, 0.0
      %313 = vst.msk [vmem:[#allocation2 + $0x100] sm:$0xff] %vm279, 0.0
      %314 = vst.msk [vmem:[#allocation2 + $0x108] sm:$0xff] %vm279, 0.0
      %315 = vst.msk [vmem:[#allocation2 + $0x110] sm:$0xff] %vm279, 0.0
      %316 = vst.msk [vmem:[#allocation2 + $0x118] sm:$0x1] %vm283, 0.0
      %317 = vst.msk [vmem:[#allocation2 + $0x120] sm:$0xff] %vm279, 0.0
      %318 = vst.msk [vmem:[#allocation2 + $0x128] sm:$0xff] %vm279, 0.0
      %319 = vst.msk [vmem:[#allocation2 + $0x130] sm:$0xff] %vm279, 0.0
      %320 = vst.msk [vmem:[#allocation2 + $0x138] sm:$0x1] %vm283, 0.0
      %321 = vst.msk [vmem:[#allocation2 + $0x140] sm:$0xff] %vm279, 0.0
      %322 = vst.msk [vmem:[#allocation2 + $0x148] sm:$0xff] %vm279, 0.0
      %323 = vst.msk [vmem:[#allocation2 + $0x150] sm:$0xff] %vm279, 0.0
      %324 = vst.msk [vmem:[#allocation2 + $0x158] sm:$0x1] %vm283, 0.0
      %325 = vst.msk [vmem:[#allocation2 + $0x160] sm:$0xff] %vm279, 0.0
      %326 = vst.msk [vmem:[#allocation2 + $0x168] sm:$0xff] %vm279, 0.0
      %327 = vst.msk [vmem:[#allocation2 + $0x170] sm:$0xff] %vm279, 0.0
      %328 = vst.msk [vmem:[#allocation2 + $0x178] sm:$0x1] %vm283, 0.0
      %329 = vst.msk [vmem:[#allocation2 + $0x180] sm:$0xff] %vm279, 0.0
      %330 = vst.msk [vmem:[#allocation2 + $0x188] sm:$0xff] %vm279, 0.0
      %331 = vst.msk [vmem:[#allocation2 + $0x190] sm:$0xff] %vm279, 0.0
      %332 = vst.msk [vmem:[#allocation2 + $0x198] sm:$0x1] %vm283, 0.0
      %333 = vst.msk [vmem:[#allocation2 + $0x1a0] sm:$0xff] %vm279, 0.0
      %334 = vst.msk [vmem:[#allocation2 + $0x1a8] sm:$0xff] %vm279, 0.0
      %335 = vst.msk [vmem:[#allocation2 + $0x1b0] sm:$0xff] %vm279, 0.0
      %336 = vst.msk [vmem:[#allocation2 + $0x1b8] sm:$0x1] %vm283, 0.0
      %337 = vst.msk [vmem:[#allocation2 + $0x1c0] sm:$0xff] %vm279, 0.0
      %338 = vst.msk [vmem:[#allocation2 + $0x1c8] sm:$0xff] %vm279, 0.0
      %339 = vst.msk [vmem:[#allocation2 + $0x1d0] sm:$0xff] %vm279, 0.0
      %340 = vst.msk [vmem:[#allocation2 + $0x1d8] sm:$0x1] %vm283, 0.0
      %341 = vst.msk [vmem:[#allocation2 + $0x1e0] sm:$0xff] %vm279, 0.0
      %342 = vst.msk [vmem:[#allocation2 + $0x1e8] sm:$0xff] %vm279, 0.0
      %343 = vst.msk [vmem:[#allocation2 + $0x1f0] sm:$0xff] %vm279, 0.0
      %344 = vst.msk [vmem:[#allocation2 + $0x1f8] sm:$0x1] %vm283, 0.0
      %345 = vst.msk [vmem:[#allocation2 + $0x200] sm:$0xff] %vm279, 0.0
      %346 = vst.msk [vmem:[#allocation2 + $0x208] sm:$0xff] %vm279, 0.0
      %347 = vst.msk [vmem:[#allocation2 + $0x210] sm:$0xff] %vm279, 0.0
      %348 = vst.msk [vmem:[#allocation2 + $0x218] sm:$0x1] %vm283, 0.0
      %349 = vst.msk [vmem:[#allocation2 + $0x220] sm:$0xff] %vm279, 0.0
      %350 = vst.msk [vmem:[#allocation2 + $0x228] sm:$0xff] %vm279, 0.0
      %351 = vst.msk [vmem:[#allocation2 + $0x230] sm:$0xff] %vm279, 0.0
      %352 = vst.msk [vmem:[#allocation2 + $0x238] sm:$0x1] %vm283, 0.0
      %vm353 = vcmask 523264
      %354 = vst.msk [vmem:[#allocation3] sm:$0xff] %vm353, 0.0
      %355 = vst.msk [vmem:[#allocation3 + $0x8] sm:$0xff] %vm353, 0.0
      %356 = vst.msk [vmem:[#allocation3 + $0x10] sm:$0xff] %vm353, 0.0
      %vm357 = vcmask 516096
      %358 = vst.msk [vmem:[#allocation3 + $0x18] sm:$0x1] %vm357, 0.0
      %359 = vst.msk [vmem:[#allocation3 + $0x20] sm:$0xff] %vm353, 0.0
      %360 = vst.msk [vmem:[#allocation3 + $0x28] sm:$0xff] %vm353, 0.0
      %361 = vst.msk [vmem:[#allocation3 + $0x30] sm:$0xff] %vm353, 0.0
      %362 = vst.msk [vmem:[#allocation3 + $0x38] sm:$0x1] %vm357, 0.0
      %363 = vst.msk [vmem:[#allocation3 + $0x40] sm:$0xff] %vm353, 0.0
      %364 = vst.msk [vmem:[#allocation3 + $0x48] sm:$0xff] %vm353, 0.0
      %365 = vst.msk [vmem:[#allocation3 + $0x50] sm:$0xff] %vm353, 0.0
      %366 = vst.msk [vmem:[#allocation3 + $0x58] sm:$0x1] %vm357, 0.0
      %367 = vst.msk [vmem:[#allocation3 + $0x60] sm:$0xff] %vm353, 0.0
      %368 = vst.msk [vmem:[#allocation3 + $0x68] sm:$0xff] %vm353, 0.0
      %369 = vst.msk [vmem:[#allocation3 + $0x70] sm:$0xff] %vm353, 0.0
      %370 = vst.msk [vmem:[#allocation3 + $0x78] sm:$0x1] %vm357, 0.0
      %371 = vst.msk [vmem:[#allocation3 + $0x80] sm:$0xff] %vm353, 0.0
      %372 = vst.msk [vmem:[#allocation3 + $0x88] sm:$0xff] %vm353, 0.0
      %373 = vst.msk [vmem:[#allocation3 + $0x90] sm:$0xff] %vm353, 0.0
      %374 = vst.msk [vmem:[#allocation3 + $0x98] sm:$0x1] %vm357, 0.0
      %375 = vst.msk [vmem:[#allocation3 + $0xa0] sm:$0xff] %vm353, 0.0
      %376 = vst.msk [vmem:[#allocation3 + $0xa8] sm:$0xff] %vm353, 0.0
      %377 = vst.msk [vmem:[#allocation3 + $0xb0] sm:$0xff] %vm353, 0.0
      %378 = vst.msk [vmem:[#allocation3 + $0xb8] sm:$0x1] %vm357, 0.0
      %379 = vst.msk [vmem:[#allocation3 + $0xc0] sm:$0xff] %vm353, 0.0
      %380 = vst.msk [vmem:[#allocation3 + $0xc8] sm:$0xff] %vm353, 0.0
      %381 = vst.msk [vmem:[#allocation3 + $0xd0] sm:$0xff] %vm353, 0.0
      %382 = vst.msk [vmem:[#allocation3 + $0xd8] sm:$0x1] %vm357, 0.0
      %383 = vst.msk [vmem:[#allocation3 + $0xe0] sm:$0xff] %vm353, 0.0
      %384 = vst.msk [vmem:[#allocation3 + $0xe8] sm:$0xff] %vm353, 0.0
      %385 = vst.msk [vmem:[#allocation3 + $0xf0] sm:$0xff] %vm353, 0.0
      %386 = vst.msk [vmem:[#allocation3 + $0xf8] sm:$0x1] %vm357, 0.0
      %387 = vst.msk [vmem:[#allocation3 + $0x100] sm:$0xff] %vm353, 0.0
      %388 = vst.msk [vmem:[#allocation3 + $0x108] sm:$0xff] %vm353, 0.0
      %389 = vst.msk [vmem:[#allocation3 + $0x110] sm:$0xff] %vm353, 0.0
      %390 = vst.msk [vmem:[#allocation3 + $0x118] sm:$0x1] %vm357, 0.0
      %391 = vst.msk [vmem:[#allocation3 + $0x120] sm:$0xff] %vm353, 0.0
      %392 = vst.msk [vmem:[#allocation3 + $0x128] sm:$0xff] %vm353, 0.0
      %393 = vst.msk [vmem:[#allocation3 + $0x130] sm:$0xff] %vm353, 0.0
      %394 = vst.msk [vmem:[#allocation3 + $0x138] sm:$0x1] %vm357, 0.0
      %395 = vst.msk [vmem:[#allocation3 + $0x140] sm:$0xff] %vm353, 0.0
      %396 = vst.msk [vmem:[#allocation3 + $0x148] sm:$0xff] %vm353, 0.0
      %397 = vst.msk [vmem:[#allocation3 + $0x150] sm:$0xff] %vm353, 0.0
      %398 = vst.msk [vmem:[#allocation3 + $0x158] sm:$0x1] %vm357, 0.0
      %399 = vst.msk [vmem:[#allocation3 + $0x160] sm:$0xff] %vm353, 0.0
      %400 = vst.msk [vmem:[#allocation3 + $0x168] sm:$0xff] %vm353, 0.0
      %401 = vst.msk [vmem:[#allocation3 + $0x170] sm:$0xff] %vm353, 0.0
      %402 = vst.msk [vmem:[#allocation3 + $0x178] sm:$0x1] %vm357, 0.0
      %403 = vst.msk [vmem:[#allocation3 + $0x180] sm:$0xff] %vm353, 0.0
      %404 = vst.msk [vmem:[#allocation3 + $0x188] sm:$0xff] %vm353, 0.0
      %405 = vst.msk [vmem:[#allocation3 + $0x190] sm:$0xff] %vm353, 0.0
      %406 = vst.msk [vmem:[#allocation3 + $0x198] sm:$0x1] %vm357, 0.0
      %407 = vst.msk [vmem:[#allocation3 + $0x1a0] sm:$0xff] %vm353, 0.0
      %408 = vst.msk [vmem:[#allocation3 + $0x1a8] sm:$0xff] %vm353, 0.0
      %409 = vst.msk [vmem:[#allocation3 + $0x1b0] sm:$0xff] %vm353, 0.0
      %410 = vst.msk [vmem:[#allocation3 + $0x1b8] sm:$0x1] %vm357, 0.0
      %411 = vst.msk [vmem:[#allocation3 + $0x1c0] sm:$0xff] %vm353, 0.0
      %412 = vst.msk [vmem:[#allocation3 + $0x1c8] sm:$0xff] %vm353, 0.0
      %413 = vst.msk [vmem:[#allocation3 + $0x1d0] sm:$0xff] %vm353, 0.0
      %414 = vst.msk [vmem:[#allocation3 + $0x1d8] sm:$0x1] %vm357, 0.0
      %415 = vst.msk [vmem:[#allocation3 + $0x1e0] sm:$0xff] %vm353, 0.0
      %416 = vst.msk [vmem:[#allocation3 + $0x1e8] sm:$0xff] %vm353, 0.0
      %417 = vst.msk [vmem:[#allocation3 + $0x1f0] sm:$0xff] %vm353, 0.0
      %418 = vst.msk [vmem:[#allocation3 + $0x1f8] sm:$0x1] %vm357, 0.0
      %419 = vst.msk [vmem:[#allocation3 + $0x200] sm:$0xff] %vm353, 0.0
      %420 = vst.msk [vmem:[#allocation3 + $0x208] sm:$0xff] %vm353, 0.0
      %421 = vst.msk [vmem:[#allocation3 + $0x210] sm:$0xff] %vm353, 0.0
      %422 = vst.msk [vmem:[#allocation3 + $0x218] sm:$0x1] %vm357, 0.0
      %423 = vst.msk [vmem:[#allocation3 + $0x220] sm:$0xff] %vm353, 0.0
      %424 = vst.msk [vmem:[#allocation3 + $0x228] sm:$0xff] %vm353, 0.0
      %425 = vst.msk [vmem:[#allocation3 + $0x230] sm:$0xff] %vm353, 0.0
      %426 = vst.msk [vmem:[#allocation3 + $0x238] sm:$0x1] %vm357, 0.0
      %427 = vst [vmem:[#allocation4] sm:$0xff] 0.0
      %428 = vst [vmem:[#allocation4 + $0x8] sm:$0xff] 0.0
      %429 = vst [vmem:[#allocation4 + $0x10] sm:$0xff] 0.0
      %430 = vst [vmem:[#allocation4 + $0x18] sm:$0xff] 0.0
      %431 = vst [vmem:[#allocation4 + $0x20] sm:$0xff] 0.0
      %432 = vst [vmem:[#allocation4 + $0x28] sm:$0xff] 0.0
      %433 = vst [vmem:[#allocation4 + $0x30] sm:$0xff] 0.0
      %434 = vst [vmem:[#allocation4 + $0x38] sm:$0xff] 0.0
      %435 = vst [vmem:[#allocation4 + $0x40] sm:$0xff] 0.0
      %436 = vst [vmem:[#allocation4 + $0x48] sm:$0xff] 0.0
      %437 = vst [vmem:[#allocation4 + $0x50] sm:$0xff] 0.0
      %438 = vst [vmem:[#allocation4 + $0x58] sm:$0xff] 0.0
      %439 = vst [vmem:[#allocation4 + $0x60] sm:$0xff] 0.0
      %440 = vst [vmem:[#allocation4 + $0x68] sm:$0xff] 0.0
      %441 = vst [vmem:[#allocation4 + $0x70] sm:$0xff] 0.0
      %442 = vst [vmem:[#allocation4 + $0x78] sm:$0xff] 0.0
      %443 = vst [vmem:[#allocation4 + $0x80] sm:$0xff] 0.0
      %444 = vst [vmem:[#allocation4 + $0x88] sm:$0xff] 0.0
      %445 = vst [vmem:[#allocation4 + $0x90] sm:$0xff] 0.0
      %446 = vst [vmem:[#allocation4 + $0x98] sm:$0xff] 0.0
      %447 = vst [vmem:[#allocation4 + $0xa0] sm:$0xff] 0.0
      %448 = vst [vmem:[#allocation4 + $0xa8] sm:$0xff] 0.0
      %449 = vst [vmem:[#allocation4 + $0xb0] sm:$0xff] 0.0
      %450 = vst [vmem:[#allocation4 + $0xb8] sm:$0xff] 0.0
      %451 = vst [vmem:[#allocation4 + $0xc0] sm:$0xff] 0.0
      %452 = vst [vmem:[#allocation4 + $0xc8] sm:$0xff] 0.0
      %453 = vst [vmem:[#allocation4 + $0xd0] sm:$0xff] 0.0
      %454 = vst [vmem:[#allocation4 + $0xd8] sm:$0xff] 0.0
      %455 = vst [vmem:[#allocation4 + $0xe0] sm:$0xff] 0.0
      %456 = vst [vmem:[#allocation4 + $0xe8] sm:$0xff] 0.0
      %457 = vst [vmem:[#allocation4 + $0xf0] sm:$0xff] 0.0
      %458 = vst [vmem:[#allocation4 + $0xf8] sm:$0xff] 0.0
      %459 = vst [vmem:[#allocation4 + $0x100] sm:$0xff] 0.0
      %460 = vst [vmem:[#allocation4 + $0x108] sm:$0xff] 0.0
      %461 = vst [vmem:[#allocation4 + $0x110] sm:$0xff] 0.0
      %462 = vst [vmem:[#allocation4 + $0x118] sm:$0xff] 0.0
      %463 = vst [vmem:[#allocation4 + $0x120] sm:$0xff] 0.0
      %464 = vst [vmem:[#allocation4 + $0x128] sm:$0xff] 0.0
      %465 = vst [vmem:[#allocation4 + $0x130] sm:$0xff] 0.0
      %466 = vst [vmem:[#allocation4 + $0x138] sm:$0xff] 0.0
      %467 = vst [vmem:[#allocation4 + $0x140] sm:$0xff] 0.0
      %468 = vst [vmem:[#allocation4 + $0x148] sm:$0xff] 0.0
      %469 = vst [vmem:[#allocation4 + $0x150] sm:$0xff] 0.0
      %470 = vst [vmem:[#allocation4 + $0x158] sm:$0xff] 0.0
      %471 = vst [vmem:[#allocation4 + $0x160] sm:$0xff] 0.0
      %472 = vst [vmem:[#allocation4 + $0x168] sm:$0xff] 0.0
      %473 = vst [vmem:[#allocation4 + $0x170] sm:$0xff] 0.0
      %474 = vst [vmem:[#allocation4 + $0x178] sm:$0xff] 0.0
      %475 = vst [vmem:[#allocation4 + $0x180] sm:$0xff] 0.0
      %476 = vst [vmem:[#allocation4 + $0x188] sm:$0xff] 0.0
      %477 = vst [vmem:[#allocation4 + $0x190] sm:$0xff] 0.0
      %478 = vst [vmem:[#allocation4 + $0x198] sm:$0xff] 0.0
      %479 = vst [vmem:[#allocation4 + $0x1a0] sm:$0xff] 0.0
      %480 = vst [vmem:[#allocation4 + $0x1a8] sm:$0xff] 0.0
      %481 = vst [vmem:[#allocation4 + $0x1b0] sm:$0xff] 0.0
      %482 = vst [vmem:[#allocation4 + $0x1b8] sm:$0xff] 0.0
      %483 = vst [vmem:[#allocation4 + $0x1c0] sm:$0xff] 0.0
      %484 = vst [vmem:[#allocation4 + $0x1c8] sm:$0xff] 0.0
      %485 = vst [vmem:[#allocation4 + $0x1d0] sm:$0xff] 0.0
      %486 = vst [vmem:[#allocation4 + $0x1d8] sm:$0xff] 0.0
      %487 = vst [vmem:[#allocation4 + $0x1e0] sm:$0xff] 0.0
      %488 = vst [vmem:[#allocation4 + $0x1e8] sm:$0xff] 0.0
      %489 = vst [vmem:[#allocation4 + $0x1f0] sm:$0xff] 0.0
      %490 = vst [vmem:[#allocation4 + $0x1f8] sm:$0xff] 0.0
      %491 = vst [vmem:[#allocation4 + $0x200] sm:$0xff] 0.0
      %492 = vst [vmem:[#allocation4 + $0x208] sm:$0xff] 0.0
      %493 = vst [vmem:[#allocation4 + $0x210] sm:$0xff] 0.0
      %494 = vst [vmem:[#allocation4 + $0x218] sm:$0xff] 0.0
      %495 = vst [vmem:[#allocation4 + $0x220] sm:$0xff] 0.0
      %496 = vst [vmem:[#allocation4 + $0x228] sm:$0xff] 0.0
      %497 = vst [vmem:[#allocation4 + $0x230] sm:$0xff] 0.0
      %498 = vst [vmem:[#allocation4 + $0x238] sm:$0xff] 0.0
      %499 = vst [vmem:[#allocation4 + $0x240] sm:$0xff] 0.0
      %500 = vst [vmem:[#allocation4 + $0x248] sm:$0xff] 0.0
      %501 = vst [vmem:[#allocation4 + $0x250] sm:$0xff] 0.0
      %502 = vst [vmem:[#allocation4 + $0x258] sm:$0xff] 0.0
      %503 = vst [vmem:[#allocation4 + $0x260] sm:$0xff] 0.0
      %504 = vst [vmem:[#allocation4 + $0x268] sm:$0xff] 0.0
      %505 = vst [vmem:[#allocation4 + $0x270] sm:$0xff] 0.0
      %506 = vst [vmem:[#allocation4 + $0x278] sm:$0xff] 0.0
      %507 = vst [vmem:[#allocation4 + $0x280] sm:$0xff] 0.0
      %508 = vst [vmem:[#allocation4 + $0x288] sm:$0xff] 0.0
      %509 = vst [vmem:[#allocation4 + $0x290] sm:$0xff] 0.0
      %510 = vst [vmem:[#allocation4 + $0x298] sm:$0xff] 0.0
      %511 = vst [vmem:[#allocation4 + $0x2a0] sm:$0xff] 0.0
      %512 = vst [vmem:[#allocation4 + $0x2a8] sm:$0xff] 0.0
      %513 = vst [vmem:[#allocation4 + $0x2b0] sm:$0xff] 0.0
      %514 = vst [vmem:[#allocation4 + $0x2b8] sm:$0xff] 0.0
      %515 = vst [vmem:[#allocation4 + $0x2c0] sm:$0xff] 0.0
      %516 = vst [vmem:[#allocation4 + $0x2c8] sm:$0xff] 0.0
      %517 = vst [vmem:[#allocation4 + $0x2d0] sm:$0xff] 0.0
      %518 = vst [vmem:[#allocation4 + $0x2d8] sm:$0xff] 0.0
      %519 = vst [vmem:[#allocation4 + $0x2e0] sm:$0xff] 0.0
      %520 = vst [vmem:[#allocation4 + $0x2e8] sm:$0xff] 0.0
      %521 = vst [vmem:[#allocation4 + $0x2f0] sm:$0xff] 0.0
      %522 = vst [vmem:[#allocation4 + $0x2f8] sm:$0xff] 0.0
      %523 = vst [vmem:[#allocation4 + $0x300] sm:$0xff] 0.0
      %524 = vst [vmem:[#allocation4 + $0x308] sm:$0xff] 0.0
      %525 = vst [vmem:[#allocation4 + $0x310] sm:$0xff] 0.0
      %526 = vst [vmem:[#allocation4 + $0x318] sm:$0xff] 0.0
      %527 = vst [vmem:[#allocation4 + $0x320] sm:$0xff] 0.0
      %528 = vst [vmem:[#allocation4 + $0x328] sm:$0xff] 0.0
      %529 = vst [vmem:[#allocation4 + $0x330] sm:$0xff] 0.0
      %530 = vst [vmem:[#allocation4 + $0x338] sm:$0xff] 0.0
      %531 = vst [vmem:[#allocation4 + $0x340] sm:$0xff] 0.0
      %532 = vst [vmem:[#allocation4 + $0x348] sm:$0xff] 0.0
      %533 = vst [vmem:[#allocation4 + $0x350] sm:$0xff] 0.0
      %534 = vst [vmem:[#allocation4 + $0x358] sm:$0xff] 0.0
      %535 = vst [vmem:[#allocation4 + $0x360] sm:$0xff] 0.0
      %536 = vst [vmem:[#allocation4 + $0x368] sm:$0xff] 0.0
      %537 = vst [vmem:[#allocation4 + $0x370] sm:$0xff] 0.0
      %538 = vst [vmem:[#allocation4 + $0x378] sm:$0xff] 0.0
      %539 = vst [vmem:[#allocation4 + $0x380] sm:$0xff] 0.0
      %540 = vst [vmem:[#allocation4 + $0x388] sm:$0xff] 0.0
      %541 = vst [vmem:[#allocation4 + $0x390] sm:$0xff] 0.0
      %542 = vst [vmem:[#allocation4 + $0x398] sm:$0xff] 0.0
      %543 = vst [vmem:[#allocation4 + $0x3a0] sm:$0xff] 0.0
      %544 = vst [vmem:[#allocation4 + $0x3a8] sm:$0xff] 0.0
      %545 = vst [vmem:[#allocation4 + $0x3b0] sm:$0xff] 0.0
      %546 = vst [vmem:[#allocation4 + $0x3b8] sm:$0xff] 0.0
      %547 = vst [vmem:[#allocation4 + $0x3c0] sm:$0xff] 0.0
      %548 = vst [vmem:[#allocation4 + $0x3c8] sm:$0xff] 0.0
      %549 = vst [vmem:[#allocation4 + $0x3d0] sm:$0xff] 0.0
      %550 = vst [vmem:[#allocation4 + $0x3d8] sm:$0xff] 0.0
      %551 = vst [vmem:[#allocation4 + $0x3e0] sm:$0xff] 0.0
      %552 = vst [vmem:[#allocation4 + $0x3e8] sm:$0xff] 0.0
      %553 = vst [vmem:[#allocation4 + $0x3f0] sm:$0xff] 0.0
      %554 = vst [vmem:[#allocation4 + $0x3f8] sm:$0xff] 0.0
      %555 = vst [vmem:[#allocation4 + $0x400] sm:$0xff] 0.0
      %556 = vst [vmem:[#allocation4 + $0x408] sm:$0xff] 0.0
      %557 = vst [vmem:[#allocation4 + $0x410] sm:$0xff] 0.0
      %558 = vst [vmem:[#allocation4 + $0x418] sm:$0xff] 0.0
      %559 = vst [vmem:[#allocation4 + $0x420] sm:$0xff] 0.0
      %560 = vst [vmem:[#allocation4 + $0x428] sm:$0xff] 0.0
      %561 = vst [vmem:[#allocation4 + $0x430] sm:$0xff] 0.0
      %562 = vst [vmem:[#allocation4 + $0x438] sm:$0xff] 0.0
      %563 = vst [vmem:[#allocation4 + $0x440] sm:$0xff] 0.0
      %564 = vst [vmem:[#allocation4 + $0x448] sm:$0xff] 0.0
      %565 = vst [vmem:[#allocation4 + $0x450] sm:$0xff] 0.0
      %566 = vst [vmem:[#allocation4 + $0x458] sm:$0xff] 0.0
      %567 = vst [vmem:[#allocation4 + $0x460] sm:$0xff] 0.0
      %568 = vst [vmem:[#allocation4 + $0x468] sm:$0xff] 0.0
      %569 = vst [vmem:[#allocation4 + $0x470] sm:$0xff] 0.0
      %570 = vst [vmem:[#allocation4 + $0x478] sm:$0xff] 0.0
      %571 = vst [vmem:[#allocation4 + $0x480] sm:$0xff] 0.0
      %572 = vst [vmem:[#allocation4 + $0x488] sm:$0xff] 0.0
      %573 = vst [vmem:[#allocation4 + $0x490] sm:$0xff] 0.0
      %574 = vst [vmem:[#allocation4 + $0x498] sm:$0xff] 0.0
      %575 = vst [vmem:[#allocation4 + $0x4a0] sm:$0xff] 0.0
      %576 = vst [vmem:[#allocation4 + $0x4a8] sm:$0xff] 0.0
      %577 = vst [vmem:[#allocation4 + $0x4b0] sm:$0xff] 0.0
      %578 = vst [vmem:[#allocation4 + $0x4b8] sm:$0xff] 0.0
      %579 = vst [vmem:[#allocation4 + $0x4c0] sm:$0xff] 0.0
      %580 = vst [vmem:[#allocation4 + $0x4c8] sm:$0xff] 0.0
      %581 = vst [vmem:[#allocation4 + $0x4d0] sm:$0xff] 0.0
      %582 = vst [vmem:[#allocation4 + $0x4d8] sm:$0xff] 0.0
      %583 = vst [vmem:[#allocation4 + $0x4e0] sm:$0xff] 0.0
      %584 = vst [vmem:[#allocation4 + $0x4e8] sm:$0xff] 0.0
      %585 = vst [vmem:[#allocation4 + $0x4f0] sm:$0xff] 0.0
      %586 = vst [vmem:[#allocation4 + $0x4f8] sm:$0xff] 0.0
      %587 = vst [vmem:[#allocation4 + $0x500] sm:$0xff] 0.0
      %588 = vst [vmem:[#allocation4 + $0x508] sm:$0xff] 0.0
      %589 = vst [vmem:[#allocation4 + $0x510] sm:$0xff] 0.0
      %590 = vst [vmem:[#allocation4 + $0x518] sm:$0xff] 0.0
      %591 = vst [vmem:[#allocation4 + $0x520] sm:$0xff] 0.0
      %592 = vst [vmem:[#allocation4 + $0x528] sm:$0xff] 0.0
      %593 = vst [vmem:[#allocation4 + $0x530] sm:$0xff] 0.0
      %594 = vst [vmem:[#allocation4 + $0x538] sm:$0xff] 0.0
      %595 = vst [vmem:[#allocation4 + $0x540] sm:$0xff] 0.0
      %596 = vst [vmem:[#allocation4 + $0x548] sm:$0xff] 0.0
      %597 = vst [vmem:[#allocation4 + $0x550] sm:$0xff] 0.0
      %598 = vst [vmem:[#allocation4 + $0x558] sm:$0xff] 0.0
      %599 = vst [vmem:[#allocation4 + $0x560] sm:$0xff] 0.0
      %600 = vst [vmem:[#allocation4 + $0x568] sm:$0xff] 0.0
      %601 = vst [vmem:[#allocation4 + $0x570] sm:$0xff] 0.0
      %602 = vst [vmem:[#allocation4 + $0x578] sm:$0xff] 0.0
      %603 = vst [vmem:[#allocation4 + $0x580] sm:$0xff] 0.0
      %604 = vst [vmem:[#allocation4 + $0x588] sm:$0xff] 0.0
      %605 = vst [vmem:[#allocation4 + $0x590] sm:$0xff] 0.0
      %606 = vst [vmem:[#allocation4 + $0x598] sm:$0xff] 0.0
      %607 = vst [vmem:[#allocation4 + $0x5a0] sm:$0xff] 0.0
      %608 = vst [vmem:[#allocation4 + $0x5a8] sm:$0xff] 0.0
      %609 = vst [vmem:[#allocation4 + $0x5b0] sm:$0xff] 0.0
      %610 = vst [vmem:[#allocation4 + $0x5b8] sm:$0xff] 0.0
      %611 = vst [vmem:[#allocation4 + $0x5c0] sm:$0xff] 0.0
      %612 = vst [vmem:[#allocation4 + $0x5c8] sm:$0xff] 0.0
      %613 = vst [vmem:[#allocation4 + $0x5d0] sm:$0xff] 0.0
      %614 = vst [vmem:[#allocation4 + $0x5d8] sm:$0xff] 0.0
      %615 = vst [vmem:[#allocation4 + $0x5e0] sm:$0xff] 0.0
      %616 = vst [vmem:[#allocation4 + $0x5e8] sm:$0xff] 0.0
      %617 = vst [vmem:[#allocation4 + $0x5f0] sm:$0xff] 0.0
      %618 = vst [vmem:[#allocation4 + $0x5f8] sm:$0xff] 0.0
      %619 = vst [vmem:[#allocation4 + $0x600] sm:$0xff] 0.0
      %620 = vst [vmem:[#allocation4 + $0x608] sm:$0xff] 0.0
      %621 = vst [vmem:[#allocation4 + $0x610] sm:$0xff] 0.0
      %622 = vst [vmem:[#allocation4 + $0x618] sm:$0xff] 0.0
      %623 = vst [vmem:[#allocation4 + $0x620] sm:$0xff] 0.0
      %624 = vst [vmem:[#allocation4 + $0x628] sm:$0xff] 0.0
      %625 = vst [vmem:[#allocation4 + $0x630] sm:$0xff] 0.0
      %626 = vst [vmem:[#allocation4 + $0x638] sm:$0xff] 0.0
      %627 = vst [vmem:[#allocation4 + $0x640] sm:$0xff] 0.0
      %628 = vst [vmem:[#allocation4 + $0x648] sm:$0xff] 0.0
      %629 = vst [vmem:[#allocation4 + $0x650] sm:$0xff] 0.0
      %630 = vst [vmem:[#allocation4 + $0x658] sm:$0xff] 0.0
      %631 = vst [vmem:[#allocation4 + $0x660] sm:$0xff] 0.0
      %632 = vst [vmem:[#allocation4 + $0x668] sm:$0xff] 0.0
      %633 = vst [vmem:[#allocation4 + $0x670] sm:$0xff] 0.0
      %634 = vst [vmem:[#allocation4 + $0x678] sm:$0xff] 0.0
      %635 = vst [vmem:[#allocation4 + $0x680] sm:$0xff] 0.0
      %636 = vst [vmem:[#allocation4 + $0x688] sm:$0xff] 0.0
      %637 = vst [vmem:[#allocation4 + $0x690] sm:$0xff] 0.0
      %638 = vst [vmem:[#allocation4 + $0x698] sm:$0xff] 0.0
      %639 = vst [vmem:[#allocation4 + $0x6a0] sm:$0xff] 0.0
      %640 = vst [vmem:[#allocation4 + $0x6a8] sm:$0xff] 0.0
      %641 = vst [vmem:[#allocation4 + $0x6b0] sm:$0xff] 0.0
      %642 = vst [vmem:[#allocation4 + $0x6b8] sm:$0xff] 0.0
      %643 = vst [vmem:[#allocation4 + $0x6c0] sm:$0xff] 0.0
      %644 = vst [vmem:[#allocation4 + $0x6c8] sm:$0xff] 0.0
      %645 = vst [vmem:[#allocation4 + $0x6d0] sm:$0xff] 0.0
      %646 = vst [vmem:[#allocation4 + $0x6d8] sm:$0xff] 0.0
      %647 = vst [vmem:[#allocation4 + $0x6e0] sm:$0xff] 0.0
      %648 = vst [vmem:[#allocation4 + $0x6e8] sm:$0xff] 0.0
      %649 = vst [vmem:[#allocation4 + $0x6f0] sm:$0xff] 0.0
      %650 = vst [vmem:[#allocation4 + $0x6f8] sm:$0xff] 0.0
      %651 = vst [vmem:[#allocation4 + $0x700] sm:$0xff] 0.0
      %652 = vst [vmem:[#allocation4 + $0x708] sm:$0xff] 0.0
      %653 = vst [vmem:[#allocation4 + $0x710] sm:$0xff] 0.0
      %654 = vst [vmem:[#allocation4 + $0x718] sm:$0xff] 0.0
      %655 = vst [vmem:[#allocation4 + $0x720] sm:$0xff] 0.0
      %656 = vst [vmem:[#allocation4 + $0x728] sm:$0xff] 0.0
      %657 = vst [vmem:[#allocation4 + $0x730] sm:$0xff] 0.0
      %658 = vst [vmem:[#allocation4 + $0x738] sm:$0xff] 0.0
      %659 = vst [vmem:[#allocation4 + $0x740] sm:$0xff] 0.0
      %660 = vst [vmem:[#allocation4 + $0x748] sm:$0xff] 0.0
      %661 = vst [vmem:[#allocation4 + $0x750] sm:$0xff] 0.0
      %662 = vst [vmem:[#allocation4 + $0x758] sm:$0xff] 0.0
      %663 = vst [vmem:[#allocation4 + $0x760] sm:$0xff] 0.0
      %664 = vst [vmem:[#allocation4 + $0x768] sm:$0xff] 0.0
      %665 = vst [vmem:[#allocation4 + $0x770] sm:$0xff] 0.0
      %666 = vst [vmem:[#allocation4 + $0x778] sm:$0xff] 0.0
      %667 = vst [vmem:[#allocation4 + $0x780] sm:$0xff] 0.0
      %668 = vst [vmem:[#allocation4 + $0x788] sm:$0xff] 0.0
      %669 = vst [vmem:[#allocation4 + $0x790] sm:$0xff] 0.0
      %670 = vst [vmem:[#allocation4 + $0x798] sm:$0xff] 0.0
      %671 = vst [vmem:[#allocation4 + $0x7a0] sm:$0xff] 0.0
      %672 = vst [vmem:[#allocation4 + $0x7a8] sm:$0xff] 0.0
      %673 = vst [vmem:[#allocation4 + $0x7b0] sm:$0xff] 0.0
      %674 = vst [vmem:[#allocation4 + $0x7b8] sm:$0xff] 0.0
      %675 = vst [vmem:[#allocation4 + $0x7c0] sm:$0xff] 0.0
      %676 = vst [vmem:[#allocation4 + $0x7c8] sm:$0xff] 0.0
      %677 = vst [vmem:[#allocation4 + $0x7d0] sm:$0xff] 0.0
      %678 = vst [vmem:[#allocation4 + $0x7d8] sm:$0xff] 0.0
      %679 = vst [vmem:[#allocation4 + $0x7e0] sm:$0xff] 0.0
      %680 = vst [vmem:[#allocation4 + $0x7e8] sm:$0xff] 0.0
      %681 = vst [vmem:[#allocation4 + $0x7f0] sm:$0xff] 0.0
      %682 = vst [vmem:[#allocation4 + $0x7f8] sm:$0xff] 0.0
      %683 = vst [vmem:[#allocation4 + $0x800] sm:$0xff] 0.0
      %684 = vst [vmem:[#allocation4 + $0x808] sm:$0xff] 0.0
      %685 = vst [vmem:[#allocation4 + $0x810] sm:$0xff] 0.0
      %686 = vst [vmem:[#allocation4 + $0x818] sm:$0xff] 0.0
      %687 = vst [vmem:[#allocation4 + $0x820] sm:$0xff] 0.0
      %688 = vst [vmem:[#allocation4 + $0x828] sm:$0xff] 0.0
      %689 = vst [vmem:[#allocation4 + $0x830] sm:$0xff] 0.0
      %690 = vst [vmem:[#allocation4 + $0x838] sm:$0xff] 0.0
      %691 = vst [vmem:[#allocation4 + $0x840] sm:$0xff] 0.0
      %692 = vst [vmem:[#allocation4 + $0x848] sm:$0xff] 0.0
      %693 = vst [vmem:[#allocation4 + $0x850] sm:$0xff] 0.0
      %694 = vst [vmem:[#allocation4 + $0x858] sm:$0xff] 0.0
      %695 = vst [vmem:[#allocation4 + $0x860] sm:$0xff] 0.0
      %696 = vst [vmem:[#allocation4 + $0x868] sm:$0xff] 0.0
      %697 = vst [vmem:[#allocation4 + $0x870] sm:$0xff] 0.0
      %698 = vst [vmem:[#allocation4 + $0x878] sm:$0xff] 0.0
      %699 = vst [vmem:[#allocation4 + $0x880] sm:$0xff] 0.0
      %700 = vst [vmem:[#allocation4 + $0x888] sm:$0xff] 0.0
      %701 = vst [vmem:[#allocation4 + $0x890] sm:$0xff] 0.0
      %702 = vst [vmem:[#allocation4 + $0x898] sm:$0xff] 0.0
      %703 = vst [vmem:[#allocation4 + $0x8a0] sm:$0xff] 0.0
      %704 = vst [vmem:[#allocation4 + $0x8a8] sm:$0xff] 0.0
      %705 = vst [vmem:[#allocation4 + $0x8b0] sm:$0xff] 0.0
      %706 = vst [vmem:[#allocation4 + $0x8b8] sm:$0xff] 0.0
      %707 = vst [vmem:[#allocation4 + $0x8c0] sm:$0xff] 0.0
      %708 = vst [vmem:[#allocation4 + $0x8c8] sm:$0xff] 0.0
      %709 = vst [vmem:[#allocation4 + $0x8d0] sm:$0xff] 0.0
      %710 = vst [vmem:[#allocation4 + $0x8d8] sm:$0xff] 0.0
      %711 = vst [vmem:[#allocation4 + $0x8e0] sm:$0xff] 0.0
      %712 = vst [vmem:[#allocation4 + $0x8e8] sm:$0xff] 0.0
      %713 = vst [vmem:[#allocation4 + $0x8f0] sm:$0xff] 0.0
      %714 = vst [vmem:[#allocation4 + $0x8f8] sm:$0xff] 0.0
      %v715 = vld [vmem:[%s273] sm:$0xff]
      %v716 = vld [vmem:[%s273 + $0x8] sm:$0xff]
      %v717 = vld [vmem:[%s273 + $0x10] sm:$0xff]
      %v718 = vld [vmem:[%s273 + $0x18] sm:$0xff]
      %v719 = vld [vmem:[%s273 + $0x20] sm:$0xff]
      %v720 = vld [vmem:[%s273 + $0x28] sm:$0xff]
      %v721 = vld [vmem:[%s273 + $0x30] sm:$0xff]
      %v722 = vld [vmem:[%s273 + $0x38] sm:$0xff]
      %v723 = vld [vmem:[%s273 + $0x40] sm:$0xff]
      %v724 = vld [vmem:[%s273 + $0x48] sm:$0xff]
      %v725 = vld [vmem:[%s273 + $0x50] sm:$0xff]
      %v726 = vld [vmem:[%s273 + $0x58] sm:$0xff]
      %v727 = vld [vmem:[%s273 + $0x60] sm:$0xff]
      %v728 = vld [vmem:[%s273 + $0x68] sm:$0xff]
      %v729 = vld [vmem:[%s273 + $0x70] sm:$0xff]
      %v730 = vld [vmem:[%s273 + $0x78] sm:$0xff]
      %v731 = vld [vmem:[%s273 + $0x80] sm:$0xff]
      %v732 = vld [vmem:[%s273 + $0x88] sm:$0xff]
      %v733 = vld [vmem:[%s273 + $0x90] sm:$0xff]
      %v734 = vld [vmem:[%s273 + $0x98] sm:$0xff]
      %v735 = vld [vmem:[%s273 + $0xa0] sm:$0xff]
      %v736 = vld [vmem:[%s273 + $0xa8] sm:$0xff]
      %v737 = vld [vmem:[%s273 + $0xb0] sm:$0xff]
      %v738 = vld [vmem:[%s273 + $0xb8] sm:$0xff]
      %v739 = vld [vmem:[%s273 + $0xc0] sm:$0xff]
      %v740 = vld [vmem:[%s273 + $0xc8] sm:$0xff]
      %v741 = vld [vmem:[%s273 + $0xd0] sm:$0xff]
      %v742 = vld [vmem:[%s273 + $0xd8] sm:$0xff]
      %v743 = vld [vmem:[%s273 + $0xe0] sm:$0xff]
      %v744 = vld [vmem:[%s273 + $0xe8] sm:$0xff]
      %v745 = vld [vmem:[%s273 + $0xf0] sm:$0xff]
      %v746 = vld [vmem:[%s273 + $0xf8] sm:$0xff]
      %s747 = scalar_lea.vmem [#allocation2], 32
      %748 = vst.msk [vmem:[%s747 + $0x8] sm:$0xff] %vm279, %v715
      %749 = vst.msk [vmem:[%s747 + $0x10] sm:$0xff] %vm279, %v716
      %750 = vst.msk [vmem:[%s747 + $0x28] sm:$0xff] %vm279, %v717
      %751 = vst.msk [vmem:[%s747 + $0x30] sm:$0xff] %vm279, %v718
      %752 = vst.msk [vmem:[%s747 + $0x48] sm:$0xff] %vm279, %v719
      %753 = vst.msk [vmem:[%s747 + $0x50] sm:$0xff] %vm279, %v720
      %754 = vst.msk [vmem:[%s747 + $0x68] sm:$0xff] %vm279, %v721
      %755 = vst.msk [vmem:[%s747 + $0x70] sm:$0xff] %vm279, %v722
      %756 = vst.msk [vmem:[%s747 + $0x88] sm:$0xff] %vm279, %v723
      %757 = vst.msk [vmem:[%s747 + $0x90] sm:$0xff] %vm279, %v724
      %758 = vst.msk [vmem:[%s747 + $0xa8] sm:$0xff] %vm279, %v725
      %759 = vst.msk [vmem:[%s747 + $0xb0] sm:$0xff] %vm279, %v726
      %760 = vst.msk [vmem:[%s747 + $0xc8] sm:$0xff] %vm279, %v727
      %761 = vst.msk [vmem:[%s747 + $0xd0] sm:$0xff] %vm279, %v728
      %762 = vst.msk [vmem:[%s747 + $0xe8] sm:$0xff] %vm279, %v729
      %763 = vst.msk [vmem:[%s747 + $0xf0] sm:$0xff] %vm279, %v730
      %764 = vst.msk [vmem:[%s747 + $0x108] sm:$0xff] %vm279, %v731
      %765 = vst.msk [vmem:[%s747 + $0x110] sm:$0xff] %vm279, %v732
      %766 = vst.msk [vmem:[%s747 + $0x128] sm:$0xff] %vm279, %v733
      %767 = vst.msk [vmem:[%s747 + $0x130] sm:$0xff] %vm279, %v734
      %768 = vst.msk [vmem:[%s747 + $0x148] sm:$0xff] %vm279, %v735
      %769 = vst.msk [vmem:[%s747 + $0x150] sm:$0xff] %vm279, %v736
      %770 = vst.msk [vmem:[%s747 + $0x168] sm:$0xff] %vm279, %v737
      %771 = vst.msk [vmem:[%s747 + $0x170] sm:$0xff] %vm279, %v738
      %772 = vst.msk [vmem:[%s747 + $0x188] sm:$0xff] %vm279, %v739
      %773 = vst.msk [vmem:[%s747 + $0x190] sm:$0xff] %vm279, %v740
      %774 = vst.msk [vmem:[%s747 + $0x1a8] sm:$0xff] %vm279, %v741
      %775 = vst.msk [vmem:[%s747 + $0x1b0] sm:$0xff] %vm279, %v742
      %776 = vst.msk [vmem:[%s747 + $0x1c8] sm:$0xff] %vm279, %v743
      %777 = vst.msk [vmem:[%s747 + $0x1d0] sm:$0xff] %vm279, %v744
      %778 = vst.msk [vmem:[%s747 + $0x1e8] sm:$0xff] %vm279, %v745
      %779 = vst.msk [vmem:[%s747 + $0x1f0] sm:$0xff] %vm279, %v746
      %v780 = vld [vmem:[#allocation2] sm:$0xff]
      %v781 = vld [vmem:[#allocation2 + $0x8] sm:$0xff]
      %v782 = vld [vmem:[#allocation2 + $0x10] sm:$0xff]
      %v783 = vld [vmem:[#allocation2 + $0x18] sm:$0x1]
      %v784 = vld [vmem:[#allocation2 + $0x20] sm:$0xff]
      %v785 = vld [vmem:[#allocation2 + $0x28] sm:$0xff]
      %v786 = vld [vmem:[#allocation2 + $0x30] sm:$0xff]
      %v787 = vld [vmem:[#allocation2 + $0x38] sm:$0x1]
      %v788 = vld [vmem:[#allocation2 + $0x40] sm:$0xff]
      %v789 = vld [vmem:[#allocation2 + $0x48] sm:$0xff]
      %v790 = vld [vmem:[#allocation2 + $0x50] sm:$0xff]
      %v791 = vld [vmem:[#allocation2 + $0x58] sm:$0x1]
      %v792 = vld [vmem:[#allocation2 + $0x60] sm:$0xff]
      %v793 = vld [vmem:[#allocation2 + $0x68] sm:$0xff]
      %v794 = vld [vmem:[#allocation2 + $0x70] sm:$0xff]
      %v795 = vld [vmem:[#allocation2 + $0x78] sm:$0x1]
      %v796 = vld [vmem:[#allocation2 + $0x80] sm:$0xff]
      %v797 = vld [vmem:[#allocation2 + $0x88] sm:$0xff]
      %v798 = vld [vmem:[#allocation2 + $0x90] sm:$0xff]
      %v799 = vld [vmem:[#allocation2 + $0x98] sm:$0x1]
      %v800 = vld [vmem:[#allocation2 + $0xa0] sm:$0xff]
      %v801 = vld [vmem:[#allocation2 + $0xa8] sm:$0xff]
      %v802 = vld [vmem:[#allocation2 + $0xb0] sm:$0xff]
      %v803 = vld [vmem:[#allocation2 + $0xb8] sm:$0x1]
      %v804 = vld [vmem:[#allocation2 + $0xc0] sm:$0xff]
      %v805 = vld [vmem:[#allocation2 + $0xc8] sm:$0xff]
      %v806 = vld [vmem:[#allocation2 + $0xd0] sm:$0xff]
      %v807 = vld [vmem:[#allocation2 + $0xd8] sm:$0x1]
      %v808 = vld [vmem:[#allocation2 + $0xe0] sm:$0xff]
      %v809 = vld [vmem:[#allocation2 + $0xe8] sm:$0xff]
      %v810 = vld [vmem:[#allocation2 + $0xf0] sm:$0xff]
      %v811 = vld [vmem:[#allocation2 + $0xf8] sm:$0x1]
      %v812 = vld [vmem:[#allocation2 + $0x100] sm:$0xff]
      %v813 = vld [vmem:[#allocation2 + $0x108] sm:$0xff]
      %v814 = vld [vmem:[#allocation2 + $0x110] sm:$0xff]
      %v815 = vld [vmem:[#allocation2 + $0x118] sm:$0x1]
      %v816 = vld [vmem:[#allocation2 + $0x120] sm:$0xff]
      %v817 = vld [vmem:[#allocation2 + $0x128] sm:$0xff]
      %v818 = vld [vmem:[#allocation2 + $0x130] sm:$0xff]
      %v819 = vld [vmem:[#allocation2 + $0x138] sm:$0x1]
      %v820 = vld [vmem:[#allocation2 + $0x140] sm:$0xff]
      %v821 = vld [vmem:[#allocation2 + $0x148] sm:$0xff]
      %v822 = vld [vmem:[#allocation2 + $0x150] sm:$0xff]
      %v823 = vld [vmem:[#allocation2 + $0x158] sm:$0x1]
      %v824 = vld [vmem:[#allocation2 + $0x160] sm:$0xff]
      %v825 = vld [vmem:[#allocation2 + $0x168] sm:$0xff]
      %v826 = vld [vmem:[#allocation2 + $0x170] sm:$0xff]
      %v827 = vld [vmem:[#allocation2 + $0x178] sm:$0x1]
      %v828 = vld [vmem:[#allocation2 + $0x180] sm:$0xff]
      %v829 = vld [vmem:[#allocation2 + $0x188] sm:$0xff]
      %v830 = vld [vmem:[#allocation2 + $0x190] sm:$0xff]
      %v831 = vld [vmem:[#allocation2 + $0x198] sm:$0x1]
      %v832 = vld [vmem:[#allocation2 + $0x1a0] sm:$0xff]
      %v833 = vld [vmem:[#allocation2 + $0x1a8] sm:$0xff]
      %v834 = vld [vmem:[#allocation2 + $0x1b0] sm:$0xff]
      %v835 = vld [vmem:[#allocation2 + $0x1b8] sm:$0x1]
      %v836 = vld [vmem:[#allocation2 + $0x1c0] sm:$0xff]
      %v837 = vld [vmem:[#allocation2 + $0x1c8] sm:$0xff]
      %v838 = vld [vmem:[#allocation2 + $0x1d0] sm:$0xff]
      %v839 = vld [vmem:[#allocation2 + $0x1d8] sm:$0x1]
      %v840 = vld [vmem:[#allocation2 + $0x1e0] sm:$0xff]
      %v841 = vld [vmem:[#allocation2 + $0x1e8] sm:$0xff]
      %v842 = vld [vmem:[#allocation2 + $0x1f0] sm:$0xff]
      %v843 = vld [vmem:[#allocation2 + $0x1f8] sm:$0x1]
      %v844 = vld [vmem:[#allocation2 + $0x200] sm:$0xff]
      %v845 = vld [vmem:[#allocation2 + $0x208] sm:$0xff]
      %v846 = vld [vmem:[#allocation2 + $0x210] sm:$0xff]
      %v847 = vld [vmem:[#allocation2 + $0x218] sm:$0x1]
      %v848 = vld [vmem:[#allocation2 + $0x220] sm:$0xff]
      %v849 = vld [vmem:[#allocation2 + $0x228] sm:$0xff]
      %v850 = vld [vmem:[#allocation2 + $0x230] sm:$0xff]
      %v851 = vld [vmem:[#allocation2 + $0x238] sm:$0x1]
      %vm900 = vcmask 1040384
      %v901 = vrot.slane %v780, 7
      %v902 = vrot.slane %v781, 7
      %v903 = vsel %vm900, %v901, %v902
      %v904 = vrot.slane %v782, 7
      %v905 = vsel %vm900, %v902, %v904
      %v906 = vrot.slane %v784, 7
      %v907 = vrot.slane %v785, 7
      %v908 = vsel %vm900, %v906, %v907
      %v909 = vrot.slane %v786, 7
      %v910 = vsel %vm900, %v907, %v909
      %v911 = vrot.slane %v788, 7
      %v912 = vrot.slane %v789, 7
      %v913 = vsel %vm900, %v911, %v912
      %v914 = vrot.slane %v790, 7
      %v915 = vsel %vm900, %v912, %v914
      %v916 = vrot.slane %v792, 7
      %v917 = vrot.slane %v793, 7
      %v918 = vsel %vm900, %v916, %v917
      %v919 = vrot.slane %v794, 7
      %v920 = vsel %vm900, %v917, %v919
      %v921 = vrot.slane %v796, 7
      %v922 = vrot.slane %v797, 7
      %v923 = vsel %vm900, %v921, %v922
      %v924 = vrot.slane %v798, 7
      %v925 = vsel %vm900, %v922, %v924
      %v926 = vrot.slane %v800, 7
      %v927 = vrot.slane %v801, 7
      %v928 = vsel %vm900, %v926, %v927
      %v929 = vrot.slane %v802, 7
      %v930 = vsel %vm900, %v927, %v929
      %v931 = vrot.slane %v804, 7
      %v932 = vrot.slane %v805, 7
      %v933 = vsel %vm900, %v931, %v932
      %v934 = vrot.slane %v806, 7
      %v935 = vsel %vm900, %v932, %v934
      %v936 = vrot.slane %v808, 7
      %v937 = vrot.slane %v809, 7
      %v938 = vsel %vm900, %v936, %v937
      %v939 = vrot.slane %v810, 7
      %v940 = vsel %vm900, %v937, %v939
      %v941 = vrot.slane %v812, 7
      %v942 = vrot.slane %v813, 7
      %v943 = vsel %vm900, %v941, %v942
      %v944 = vrot.slane %v814, 7
      %v945 = vsel %vm900, %v942, %v944
      %v946 = vrot.slane %v816, 7
      %v947 = vrot.slane %v817, 7
      %v948 = vsel %vm900, %v946, %v947
      %v949 = vrot.slane %v818, 7
      %v950 = vsel %vm900, %v947, %v949
      %v951 = vrot.slane %v820, 7
      %v952 = vrot.slane %v821, 7
      %v953 = vsel %vm900, %v951, %v952
      %v954 = vrot.slane %v822, 7
      %v955 = vsel %vm900, %v952, %v954
      %v956 = vrot.slane %v824, 7
      %v957 = vrot.slane %v825, 7
      %v958 = vsel %vm900, %v956, %v957
      %v959 = vrot.slane %v826, 7
      %v960 = vsel %vm900, %v957, %v959
      %v961 = vrot.slane %v828, 7
      %v962 = vrot.slane %v829, 7
      %v963 = vsel %vm900, %v961, %v962
      %v964 = vrot.slane %v830, 7
      %v965 = vsel %vm900, %v962, %v964
      %v966 = vrot.slane %v832, 7
      %v967 = vrot.slane %v833, 7
      %v968 = vsel %vm900, %v966, %v967
      %v969 = vrot.slane %v834, 7
      %v970 = vsel %vm900, %v967, %v969
      %v971 = vrot.slane %v836, 7
      %v972 = vrot.slane %v837, 7
      %v973 = vsel %vm900, %v971, %v972
      %v974 = vrot.slane %v838, 7
      %v975 = vsel %vm900, %v972, %v974
      %v976 = vrot.slane %v840, 7
      %v977 = vrot.slane %v841, 7
      %v978 = vsel %vm900, %v976, %v977
      %v979 = vrot.slane %v842, 7
      %v980 = vsel %vm900, %v977, %v979
      %1013 = vst.msk [vmem:[#allocation4] sm:$0xff] %vm279, %v903
      %1014 = vst.msk [vmem:[#allocation4 + $0x48] sm:$0xff] %vm279, %v905
      %1015 = vst.msk [vmem:[#allocation4 + $0x90] sm:$0xff] %vm279, %v908
      %1016 = vst.msk [vmem:[#allocation4 + $0xd8] sm:$0xff] %vm279, %v910
      %1017 = vst.msk [vmem:[#allocation4 + $0x120] sm:$0xff] %vm279, %v913
      %1018 = vst.msk [vmem:[#allocation4 + $0x168] sm:$0xff] %vm279, %v915
      %1019 = vst.msk [vmem:[#allocation4 + $0x1b0] sm:$0xff] %vm279, %v918
      %1020 = vst.msk [vmem:[#allocation4 + $0x1f8] sm:$0xff] %vm279, %v920
      %1021 = vst.msk [vmem:[#allocation4 + $0x240] sm:$0xff] %vm279, %v923
      %1022 = vst.msk [vmem:[#allocation4 + $0x288] sm:$0xff] %vm279, %v925
      %1023 = vst.msk [vmem:[#allocation4 + $0x2d0] sm:$0xff] %vm279, %v928
      %1024 = vst.msk [vmem:[#allocation4 + $0x318] sm:$0xff] %vm279, %v930
      %1025 = vst.msk [vmem:[#allocation4 + $0x360] sm:$0xff] %vm279, %v933
      %1026 = vst.msk [vmem:[#allocation4 + $0x3a8] sm:$0xff] %vm279, %v935
      %1027 = vst.msk [vmem:[#allocation4 + $0x3f0] sm:$0xff] %vm279, %v938
      %1028 = vst.msk [vmem:[#allocation4 + $0x438] sm:$0xff] %vm279, %v940
      %1029 = vst.msk [vmem:[#allocation4 + $0x480] sm:$0xff] %vm279, %v943
      %1030 = vst.msk [vmem:[#allocation4 + $0x4c8] sm:$0xff] %vm279, %v945
      %1031 = vst.msk [vmem:[#allocation4 + $0x510] sm:$0xff] %vm279, %v948
      %1032 = vst.msk [vmem:[#allocation4 + $0x558] sm:$0xff] %vm279, %v950
      %1033 = vst.msk [vmem:[#allocation4 + $0x5a0] sm:$0xff] %vm279, %v953
      %1034 = vst.msk [vmem:[#allocation4 + $0x5e8] sm:$0xff] %vm279, %v955
      %1035 = vst.msk [vmem:[#allocation4 + $0x630] sm:$0xff] %vm279, %v958
      %1036 = vst.msk [vmem:[#allocation4 + $0x678] sm:$0xff] %vm279, %v960
      %1037 = vst.msk [vmem:[#allocation4 + $0x6c0] sm:$0xff] %vm279, %v963
      %1038 = vst.msk [vmem:[#allocation4 + $0x708] sm:$0xff] %vm279, %v965
      %1039 = vst.msk [vmem:[#allocation4 + $0x750] sm:$0xff] %vm279, %v968
      %1040 = vst.msk [vmem:[#allocation4 + $0x798] sm:$0xff] %vm279, %v970
      %1041 = vst.msk [vmem:[#allocation4 + $0x7e0] sm:$0xff] %vm279, %v973
      %1042 = vst.msk [vmem:[#allocation4 + $0x828] sm:$0xff] %vm279, %v975
      %1043 = vst.msk [vmem:[#allocation4 + $0x870] sm:$0xff] %vm279, %v978
      %1044 = vst.msk [vmem:[#allocation4 + $0x8b8] sm:$0xff] %vm279, %v980
      %1045 = vst.msk [vmem:[#allocation4 + $0x8] sm:$0xff] %vm279, %v781
      %1046 = vst.msk [vmem:[#allocation4 + $0x50] sm:$0xff] %vm279, %v782
      %1047 = vst.msk [vmem:[#allocation4 + $0x98] sm:$0xff] %vm279, %v785
      %1048 = vst.msk [vmem:[#allocation4 + $0xe0] sm:$0xff] %vm279, %v786
      %1049 = vst.msk [vmem:[#allocation4 + $0x128] sm:$0xff] %vm279, %v789
      %1050 = vst.msk [vmem:[#allocation4 + $0x170] sm:$0xff] %vm279, %v790
      %1051 = vst.msk [vmem:[#allocation4 + $0x1b8] sm:$0xff] %vm279, %v793
      %1052 = vst.msk [vmem:[#allocation4 + $0x200] sm:$0xff] %vm279, %v794
      %1053 = vst.msk [vmem:[#allocation4 + $0x248] sm:$0xff] %vm279, %v797
      %1054 = vst.msk [vmem:[#allocation4 + $0x290] sm:$0xff] %vm279, %v798
      %1055 = vst.msk [vmem:[#allocation4 + $0x2d8] sm:$0xff] %vm279, %v801
      %1056 = vst.msk [vmem:[#allocation4 + $0x320] sm:$0xff] %vm279, %v802
      %1057 = vst.msk [vmem:[#allocation4 + $0x368] sm:$0xff] %vm279, %v805
      %1058 = vst.msk [vmem:[#allocation4 + $0x3b0] sm:$0xff] %vm279, %v806
      %1059 = vst.msk [vmem:[#allocation4 + $0x3f8] sm:$0xff] %vm279, %v809
      %1060 = vst.msk [vmem:[#allocation4 + $0x440] sm:$0xff] %vm279, %v810
      %1061 = vst.msk [vmem:[#allocation4 + $0x488] sm:$0xff] %vm279, %v813
      %1062 = vst.msk [vmem:[#allocation4 + $0x4d0] sm:$0xff] %vm279, %v814
      %1063 = vst.msk [vmem:[#allocation4 + $0x518] sm:$0xff] %vm279, %v817
      %1064 = vst.msk [vmem:[#allocation4 + $0x560] sm:$0xff] %vm279, %v818
      %1065 = vst.msk [vmem:[#allocation4 + $0x5a8] sm:$0xff] %vm279, %v821
      %1066 = vst.msk [vmem:[#allocation4 + $0x5f0] sm:$0xff] %vm279, %v822
      %1067 = vst.msk [vmem:[#allocation4 + $0x638] sm:$0xff] %vm279, %v825
      %1068 = vst.msk [vmem:[#allocation4 + $0x680] sm:$0xff] %vm279, %v826
      %1069 = vst.msk [vmem:[#allocation4 + $0x6c8] sm:$0xff] %vm279, %v829
      %1070 = vst.msk [vmem:[#allocation4 + $0x710] sm:$0xff] %vm279, %v830
      %1071 = vst.msk [vmem:[#allocation4 + $0x758] sm:$0xff] %vm279, %v833
      %1072 = vst.msk [vmem:[#allocation4 + $0x7a0] sm:$0xff] %vm279, %v834
      %1073 = vst.msk [vmem:[#allocation4 + $0x7e8] sm:$0xff] %vm279, %v837
      %1074 = vst.msk [vmem:[#allocation4 + $0x830] sm:$0xff] %vm279, %v838
      %1075 = vst.msk [vmem:[#allocation4 + $0x878] sm:$0xff] %vm279, %v841
      %1076 = vst.msk [vmem:[#allocation4 + $0x8c0] sm:$0xff] %vm279, %v842
      %vm1093 = vcmask 1046528
      %v1094 = vrot.slane %v781, 1
      %v1095 = vrot.slane %v782, 1
      %v1096 = vsel %vm1093, %v1094, %v1095
      %v1097 = vrot.slane %v783, 1
      %v1098 = vsel %vm1093, %v1095, %v1097
      %v1099 = vrot.slane %v785, 1
      %v1100 = vrot.slane %v786, 1
      %v1101 = vsel %vm1093, %v1099, %v1100
      %v1102 = vrot.slane %v787, 1
      %v1103 = vsel %vm1093, %v1100, %v1102
      %v1104 = vrot.slane %v789, 1
      %v1105 = vrot.slane %v790, 1
      %v1106 = vsel %vm1093, %v1104, %v1105
      %v1107 = vrot.slane %v791, 1
      %v1108 = vsel %vm1093, %v1105, %v1107
      %v1109 = vrot.slane %v793, 1
      %v1110 = vrot.slane %v794, 1
      %v1111 = vsel %vm1093, %v1109, %v1110
      %v1112 = vrot.slane %v795, 1
      %v1113 = vsel %vm1093, %v1110, %v1112
      %v1114 = vrot.slane %v797, 1
      %v1115 = vrot.slane %v798, 1
      %v1116 = vsel %vm1093, %v1114, %v1115
      %v1117 = vrot.slane %v799, 1
      %v1118 = vsel %vm1093, %v1115, %v1117
      %v1119 = vrot.slane %v801, 1
      %v1120 = vrot.slane %v802, 1
      %v1121 = vsel %vm1093, %v1119, %v1120
      %v1122 = vrot.slane %v803, 1
      %v1123 = vsel %vm1093, %v1120, %v1122
      %v1124 = vrot.slane %v805, 1
      %v1125 = vrot.slane %v806, 1
      %v1126 = vsel %vm1093, %v1124, %v1125
      %v1127 = vrot.slane %v807, 1
      %v1128 = vsel %vm1093, %v1125, %v1127
      %v1129 = vrot.slane %v809, 1
      %v1130 = vrot.slane %v810, 1
      %v1131 = vsel %vm1093, %v1129, %v1130
      %v1132 = vrot.slane %v811, 1
      %v1133 = vsel %vm1093, %v1130, %v1132
      %v1134 = vrot.slane %v813, 1
      %v1135 = vrot.slane %v814, 1
      %v1136 = vsel %vm1093, %v1134, %v1135
      %v1137 = vrot.slane %v815, 1
      %v1138 = vsel %vm1093, %v1135, %v1137
      %v1139 = vrot.slane %v817, 1
      %v1140 = vrot.slane %v818, 1
      %v1141 = vsel %vm1093, %v1139, %v1140
      %v1142 = vrot.slane %v819, 1
      %v1143 = vsel %vm1093, %v1140, %v1142
      %v1144 = vrot.slane %v821, 1
      %v1145 = vrot.slane %v822, 1
      %v1146 = vsel %vm1093, %v1144, %v1145
      %v1147 = vrot.slane %v823, 1
      %v1148 = vsel %vm1093, %v1145, %v1147
      %v1149 = vrot.slane %v825, 1
      %v1150 = vrot.slane %v826, 1
      %v1151 = vsel %vm1093, %v1149, %v1150
      %v1152 = vrot.slane %v827, 1
      %v1153 = vsel %vm1093, %v1150, %v1152
      %v1154 = vrot.slane %v829, 1
      %v1155 = vrot.slane %v830, 1
      %v1156 = vsel %vm1093, %v1154, %v1155
      %v1157 = vrot.slane %v831, 1
      %v1158 = vsel %vm1093, %v1155, %v1157
      %v1159 = vrot.slane %v833, 1
      %v1160 = vrot.slane %v834, 1
      %v1161 = vsel %vm1093, %v1159, %v1160
      %v1162 = vrot.slane %v835, 1
      %v1163 = vsel %vm1093, %v1160, %v1162
      %v1164 = vrot.slane %v837, 1
      %v1165 = vrot.slane %v838, 1
      %v1166 = vsel %vm1093, %v1164, %v1165
      %v1167 = vrot.slane %v839, 1
      %v1168 = vsel %vm1093, %v1165, %v1167
      %v1169 = vrot.slane %v841, 1
      %v1170 = vrot.slane %v842, 1
      %v1171 = vsel %vm1093, %v1169, %v1170
      %v1172 = vrot.slane %v843, 1
      %v1173 = vsel %vm1093, %v1170, %v1172
      %1206 = vst.msk [vmem:[#allocation4 + $0x10] sm:$0xff] %vm279, %v1096
      %1207 = vst.msk [vmem:[#allocation4 + $0x58] sm:$0xff] %vm279, %v1098
      %1208 = vst.msk [vmem:[#allocation4 + $0xa0] sm:$0xff] %vm279, %v1101
      %1209 = vst.msk [vmem:[#allocation4 + $0xe8] sm:$0xff] %vm279, %v1103
      %1210 = vst.msk [vmem:[#allocation4 + $0x130] sm:$0xff] %vm279, %v1106
      %1211 = vst.msk [vmem:[#allocation4 + $0x178] sm:$0xff] %vm279, %v1108
      %1212 = vst.msk [vmem:[#allocation4 + $0x1c0] sm:$0xff] %vm279, %v1111
      %1213 = vst.msk [vmem:[#allocation4 + $0x208] sm:$0xff] %vm279, %v1113
      %1214 = vst.msk [vmem:[#allocation4 + $0x250] sm:$0xff] %vm279, %v1116
      %1215 = vst.msk [vmem:[#allocation4 + $0x298] sm:$0xff] %vm279, %v1118
      %1216 = vst.msk [vmem:[#allocation4 + $0x2e0] sm:$0xff] %vm279, %v1121
      %1217 = vst.msk [vmem:[#allocation4 + $0x328] sm:$0xff] %vm279, %v1123
      %1218 = vst.msk [vmem:[#allocation4 + $0x370] sm:$0xff] %vm279, %v1126
      %1219 = vst.msk [vmem:[#allocation4 + $0x3b8] sm:$0xff] %vm279, %v1128
      %1220 = vst.msk [vmem:[#allocation4 + $0x400] sm:$0xff] %vm279, %v1131
      %1221 = vst.msk [vmem:[#allocation4 + $0x448] sm:$0xff] %vm279, %v1133
      %1222 = vst.msk [vmem:[#allocation4 + $0x490] sm:$0xff] %vm279, %v1136
      %1223 = vst.msk [vmem:[#allocation4 + $0x4d8] sm:$0xff] %vm279, %v1138
      %1224 = vst.msk [vmem:[#allocation4 + $0x520] sm:$0xff] %vm279, %v1141
      %1225 = vst.msk [vmem:[#allocation4 + $0x568] sm:$0xff] %vm279, %v1143
      %1226 = vst.msk [vmem:[#allocation4 + $0x5b0] sm:$0xff] %vm279, %v1146
      %1227 = vst.msk [vmem:[#allocation4 + $0x5f8] sm:$0xff] %vm279, %v1148
      %1228 = vst.msk [vmem:[#allocation4 + $0x640] sm:$0xff] %vm279, %v1151
      %1229 = vst.msk [vmem:[#allocation4 + $0x688] sm:$0xff] %vm279, %v1153
      %1230 = vst.msk [vmem:[#allocation4 + $0x6d0] sm:$0xff] %vm279, %v1156
      %1231 = vst.msk [vmem:[#allocation4 + $0x718] sm:$0xff] %vm279, %v1158
      %1232 = vst.msk [vmem:[#allocation4 + $0x760] sm:$0xff] %vm279, %v1161
      %1233 = vst.msk [vmem:[#allocation4 + $0x7a8] sm:$0xff] %vm279, %v1163
      %1234 = vst.msk [vmem:[#allocation4 + $0x7f0] sm:$0xff] %vm279, %v1166
      %1235 = vst.msk [vmem:[#allocation4 + $0x838] sm:$0xff] %vm279, %v1168
      %1236 = vst.msk [vmem:[#allocation4 + $0x880] sm:$0xff] %vm279, %v1171
      %1237 = vst.msk [vmem:[#allocation4 + $0x8c8] sm:$0xff] %vm279, %v1173
      %v1241 = vrot.slane %v844, 7
      %v1242 = vrot.slane %v845, 7
      %v1243 = vsel %vm900, %v1241, %v1242
      %v1244 = vrot.slane %v846, 7
      %v1245 = vsel %vm900, %v1242, %v1244
      %1248 = vst.msk [vmem:[#allocation4 + $0x18] sm:$0xff] %vm279, %v908
      %1249 = vst.msk [vmem:[#allocation4 + $0x60] sm:$0xff] %vm279, %v910
      %1250 = vst.msk [vmem:[#allocation4 + $0xa8] sm:$0xff] %vm279, %v913
      %1251 = vst.msk [vmem:[#allocation4 + $0xf0] sm:$0xff] %vm279, %v915
      %1252 = vst.msk [vmem:[#allocation4 + $0x138] sm:$0xff] %vm279, %v918
      %1253 = vst.msk [vmem:[#allocation4 + $0x180] sm:$0xff] %vm279, %v920
      %1254 = vst.msk [vmem:[#allocation4 + $0x1c8] sm:$0xff] %vm279, %v923
      %1255 = vst.msk [vmem:[#allocation4 + $0x210] sm:$0xff] %vm279, %v925
      %1256 = vst.msk [vmem:[#allocation4 + $0x258] sm:$0xff] %vm279, %v928
      %1257 = vst.msk [vmem:[#allocation4 + $0x2a0] sm:$0xff] %vm279, %v930
      %1258 = vst.msk [vmem:[#allocation4 + $0x2e8] sm:$0xff] %vm279, %v933
      %1259 = vst.msk [vmem:[#allocation4 + $0x330] sm:$0xff] %vm279, %v935
      %1260 = vst.msk [vmem:[#allocation4 + $0x378] sm:$0xff] %vm279, %v938
      %1261 = vst.msk [vmem:[#allocation4 + $0x3c0] sm:$0xff] %vm279, %v940
      %1262 = vst.msk [vmem:[#allocation4 + $0x408] sm:$0xff] %vm279, %v943
      %1263 = vst.msk [vmem:[#allocation4 + $0x450] sm:$0xff] %vm279, %v945
      %1264 = vst.msk [vmem:[#allocation4 + $0x498] sm:$0xff] %vm279, %v948
      %1265 = vst.msk [vmem:[#allocation4 + $0x4e0] sm:$0xff] %vm279, %v950
      %1266 = vst.msk [vmem:[#allocation4 + $0x528] sm:$0xff] %vm279, %v953
      %1267 = vst.msk [vmem:[#allocation4 + $0x570] sm:$0xff] %vm279, %v955
      %1268 = vst.msk [vmem:[#allocation4 + $0x5b8] sm:$0xff] %vm279, %v958
      %1269 = vst.msk [vmem:[#allocation4 + $0x600] sm:$0xff] %vm279, %v960
      %1270 = vst.msk [vmem:[#allocation4 + $0x648] sm:$0xff] %vm279, %v963
      %1271 = vst.msk [vmem:[#allocation4 + $0x690] sm:$0xff] %vm279, %v965
      %1272 = vst.msk [vmem:[#allocation4 + $0x6d8] sm:$0xff] %vm279, %v968
      %1273 = vst.msk [vmem:[#allocation4 + $0x720] sm:$0xff] %vm279, %v970
      %1274 = vst.msk [vmem:[#allocation4 + $0x768] sm:$0xff] %vm279, %v973
      %1275 = vst.msk [vmem:[#allocation4 + $0x7b0] sm:$0xff] %vm279, %v975
      %1276 = vst.msk [vmem:[#allocation4 + $0x7f8] sm:$0xff] %vm279, %v978
      %1277 = vst.msk [vmem:[#allocation4 + $0x840] sm:$0xff] %vm279, %v980
      %1278 = vst.msk [vmem:[#allocation4 + $0x888] sm:$0xff] %vm279, %v1243
      %1279 = vst.msk [vmem:[#allocation4 + $0x8d0] sm:$0xff] %vm279, %v1245
      %1280 = vst.msk [vmem:[#allocation4 + $0x20] sm:$0xff] %vm279, %v785
      %1281 = vst.msk [vmem:[#allocation4 + $0x68] sm:$0xff] %vm279, %v786
      %1282 = vst.msk [vmem:[#allocation4 + $0xb0] sm:$0xff] %vm279, %v789
      %1283 = vst.msk [vmem:[#allocation4 + $0xf8] sm:$0xff] %vm279, %v790
      %1284 = vst.msk [vmem:[#allocation4 + $0x140] sm:$0xff] %vm279, %v793
      %1285 = vst.msk [vmem:[#allocation4 + $0x188] sm:$0xff] %vm279, %v794
      %1286 = vst.msk [vmem:[#allocation4 + $0x1d0] sm:$0xff] %vm279, %v797
      %1287 = vst.msk [vmem:[#allocation4 + $0x218] sm:$0xff] %vm279, %v798
      %1288 = vst.msk [vmem:[#allocation4 + $0x260] sm:$0xff] %vm279, %v801
      %1289 = vst.msk [vmem:[#allocation4 + $0x2a8] sm:$0xff] %vm279, %v802
      %1290 = vst.msk [vmem:[#allocation4 + $0x2f0] sm:$0xff] %vm279, %v805
      %1291 = vst.msk [vmem:[#allocation4 + $0x338] sm:$0xff] %vm279, %v806
      %1292 = vst.msk [vmem:[#allocation4 + $0x380] sm:$0xff] %vm279, %v809
      %1293 = vst.msk [vmem:[#allocation4 + $0x3c8] sm:$0xff] %vm279, %v810
      %1294 = vst.msk [vmem:[#allocation4 + $0x410] sm:$0xff] %vm279, %v813
      %1295 = vst.msk [vmem:[#allocation4 + $0x458] sm:$0xff] %vm279, %v814
      %1296 = vst.msk [vmem:[#allocation4 + $0x4a0] sm:$0xff] %vm279, %v817
      %1297 = vst.msk [vmem:[#allocation4 + $0x4e8] sm:$0xff] %vm279, %v818
      %1298 = vst.msk [vmem:[#allocation4 + $0x530] sm:$0xff] %vm279, %v821
      %1299 = vst.msk [vmem:[#allocation4 + $0x578] sm:$0xff] %vm279, %v822
      %1300 = vst.msk [vmem:[#allocation4 + $0x5c0] sm:$0xff] %vm279, %v825
      %1301 = vst.msk [vmem:[#allocation4 + $0x608] sm:$0xff] %vm279, %v826
      %1302 = vst.msk [vmem:[#allocation4 + $0x650] sm:$0xff] %vm279, %v829
      %1303 = vst.msk [vmem:[#allocation4 + $0x698] sm:$0xff] %vm279, %v830
      %1304 = vst.msk [vmem:[#allocation4 + $0x6e0] sm:$0xff] %vm279, %v833
      %1305 = vst.msk [vmem:[#allocation4 + $0x728] sm:$0xff] %vm279, %v834
      %1306 = vst.msk [vmem:[#allocation4 + $0x770] sm:$0xff] %vm279, %v837
      %1307 = vst.msk [vmem:[#allocation4 + $0x7b8] sm:$0xff] %vm279, %v838
      %1308 = vst.msk [vmem:[#allocation4 + $0x800] sm:$0xff] %vm279, %v841
      %1309 = vst.msk [vmem:[#allocation4 + $0x848] sm:$0xff] %vm279, %v842
      %1310 = vst.msk [vmem:[#allocation4 + $0x890] sm:$0xff] %vm279, %v845
      %1311 = vst.msk [vmem:[#allocation4 + $0x8d8] sm:$0xff] %vm279, %v846
      %v1313 = vrot.slane %v845, 1
      %v1314 = vrot.slane %v846, 1
      %v1315 = vsel %vm1093, %v1313, %v1314
      %v1316 = vrot.slane %v847, 1
      %v1317 = vsel %vm1093, %v1314, %v1316
      %1320 = vst.msk [vmem:[#allocation4 + $0x28] sm:$0xff] %vm279, %v1101
      %1321 = vst.msk [vmem:[#allocation4 + $0x70] sm:$0xff] %vm279, %v1103
      %1322 = vst.msk [vmem:[#allocation4 + $0xb8] sm:$0xff] %vm279, %v1106
      %1323 = vst.msk [vmem:[#allocation4 + $0x100] sm:$0xff] %vm279, %v1108
      %1324 = vst.msk [vmem:[#allocation4 + $0x148] sm:$0xff] %vm279, %v1111
      %1325 = vst.msk [vmem:[#allocation4 + $0x190] sm:$0xff] %vm279, %v1113
      %1326 = vst.msk [vmem:[#allocation4 + $0x1d8] sm:$0xff] %vm279, %v1116
      %1327 = vst.msk [vmem:[#allocation4 + $0x220] sm:$0xff] %vm279, %v1118
      %1328 = vst.msk [vmem:[#allocation4 + $0x268] sm:$0xff] %vm279, %v1121
      %1329 = vst.msk [vmem:[#allocation4 + $0x2b0] sm:$0xff] %vm279, %v1123
      %1330 = vst.msk [vmem:[#allocation4 + $0x2f8] sm:$0xff] %vm279, %v1126
      %1331 = vst.msk [vmem:[#allocation4 + $0x340] sm:$0xff] %vm279, %v1128
      %1332 = vst.msk [vmem:[#allocation4 + $0x388] sm:$0xff] %vm279, %v1131
      %1333 = vst.msk [vmem:[#allocation4 + $0x3d0] sm:$0xff] %vm279, %v1133
      %1334 = vst.msk [vmem:[#allocation4 + $0x418] sm:$0xff] %vm279, %v1136
      %1335 = vst.msk [vmem:[#allocation4 + $0x460] sm:$0xff] %vm279, %v1138
      %1336 = vst.msk [vmem:[#allocation4 + $0x4a8] sm:$0xff] %vm279, %v1141
      %1337 = vst.msk [vmem:[#allocation4 + $0x4f0] sm:$0xff] %vm279, %v1143
      %1338 = vst.msk [vmem:[#allocation4 + $0x538] sm:$0xff] %vm279, %v1146
      %1339 = vst.msk [vmem:[#allocation4 + $0x580] sm:$0xff] %vm279, %v1148
      %1340 = vst.msk [vmem:[#allocation4 + $0x5c8] sm:$0xff] %vm279, %v1151
      %1341 = vst.msk [vmem:[#allocation4 + $0x610] sm:$0xff] %vm279, %v1153
      %1342 = vst.msk [vmem:[#allocation4 + $0x658] sm:$0xff] %vm279, %v1156
      %1343 = vst.msk [vmem:[#allocation4 + $0x6a0] sm:$0xff] %vm279, %v1158
      %1344 = vst.msk [vmem:[#allocation4 + $0x6e8] sm:$0xff] %vm279, %v1161
      %1345 = vst.msk [vmem:[#allocation4 + $0x730] sm:$0xff] %vm279, %v1163
      %1346 = vst.msk [vmem:[#allocation4 + $0x778] sm:$0xff] %vm279, %v1166
      %1347 = vst.msk [vmem:[#allocation4 + $0x7c0] sm:$0xff] %vm279, %v1168
      %1348 = vst.msk [vmem:[#allocation4 + $0x808] sm:$0xff] %vm279, %v1171
      %1349 = vst.msk [vmem:[#allocation4 + $0x850] sm:$0xff] %vm279, %v1173
      %1350 = vst.msk [vmem:[#allocation4 + $0x898] sm:$0xff] %vm279, %v1315
      %1351 = vst.msk [vmem:[#allocation4 + $0x8e0] sm:$0xff] %vm279, %v1317
      %v1355 = vrot.slane %v848, 7
      %v1356 = vrot.slane %v849, 7
      %v1357 = vsel %vm900, %v1355, %v1356
      %v1358 = vrot.slane %v850, 7
      %v1359 = vsel %vm900, %v1356, %v1358
      %1362 = vst.msk [vmem:[#allocation4 + $0x30] sm:$0xff] %vm279, %v913
      %1363 = vst.msk [vmem:[#allocation4 + $0x78] sm:$0xff] %vm279, %v915
      %1364 = vst.msk [vmem:[#allocation4 + $0xc0] sm:$0xff] %vm279, %v918
      %1365 = vst.msk [vmem:[#allocation4 + $0x108] sm:$0xff] %vm279, %v920
      %1366 = vst.msk [vmem:[#allocation4 + $0x150] sm:$0xff] %vm279, %v923
      %1367 = vst.msk [vmem:[#allocation4 + $0x198] sm:$0xff] %vm279, %v925
      %1368 = vst.msk [vmem:[#allocation4 + $0x1e0] sm:$0xff] %vm279, %v928
      %1369 = vst.msk [vmem:[#allocation4 + $0x228] sm:$0xff] %vm279, %v930
      %1370 = vst.msk [vmem:[#allocation4 + $0x270] sm:$0xff] %vm279, %v933
      %1371 = vst.msk [vmem:[#allocation4 + $0x2b8] sm:$0xff] %vm279, %v935
      %1372 = vst.msk [vmem:[#allocation4 + $0x300] sm:$0xff] %vm279, %v938
      %1373 = vst.msk [vmem:[#allocation4 + $0x348] sm:$0xff] %vm279, %v940
      %1374 = vst.msk [vmem:[#allocation4 + $0x390] sm:$0xff] %vm279, %v943
      %1375 = vst.msk [vmem:[#allocation4 + $0x3d8] sm:$0xff] %vm279, %v945
      %1376 = vst.msk [vmem:[#allocation4 + $0x420] sm:$0xff] %vm279, %v948
      %1377 = vst.msk [vmem:[#allocation4 + $0x468] sm:$0xff] %vm279, %v950
      %1378 = vst.msk [vmem:[#allocation4 + $0x4b0] sm:$0xff] %vm279, %v953
      %1379 = vst.msk [vmem:[#allocation4 + $0x4f8] sm:$0xff] %vm279, %v955
      %1380 = vst.msk [vmem:[#allocation4 + $0x540] sm:$0xff] %vm279, %v958
      %1381 = vst.msk [vmem:[#allocation4 + $0x588] sm:$0xff] %vm279, %v960
      %1382 = vst.msk [vmem:[#allocation4 + $0x5d0] sm:$0xff] %vm279, %v963
      %1383 = vst.msk [vmem:[#allocation4 + $0x618] sm:$0xff] %vm279, %v965
      %1384 = vst.msk [vmem:[#allocation4 + $0x660] sm:$0xff] %vm279, %v968
      %1385 = vst.msk [vmem:[#allocation4 + $0x6a8] sm:$0xff] %vm279, %v970
      %1386 = vst.msk [vmem:[#allocation4 + $0x6f0] sm:$0xff] %vm279, %v973
      %1387 = vst.msk [vmem:[#allocation4 + $0x738] sm:$0xff] %vm279, %v975
      %1388 = vst.msk [vmem:[#allocation4 + $0x780] sm:$0xff] %vm279, %v978
      %1389 = vst.msk [vmem:[#allocation4 + $0x7c8] sm:$0xff] %vm279, %v980
      %1390 = vst.msk [vmem:[#allocation4 + $0x810] sm:$0xff] %vm279, %v1243
      %1391 = vst.msk [vmem:[#allocation4 + $0x858] sm:$0xff] %vm279, %v1245
      %1392 = vst.msk [vmem:[#allocation4 + $0x8a0] sm:$0xff] %vm279, %v1357
      %1393 = vst.msk [vmem:[#allocation4 + $0x8e8] sm:$0xff] %vm279, %v1359
      %1394 = vst.msk [vmem:[#allocation4 + $0x38] sm:$0xff] %vm279, %v789
      %1395 = vst.msk [vmem:[#allocation4 + $0x80] sm:$0xff] %vm279, %v790
      %1396 = vst.msk [vmem:[#allocation4 + $0xc8] sm:$0xff] %vm279, %v793
      %1397 = vst.msk [vmem:[#allocation4 + $0x110] sm:$0xff] %vm279, %v794
      %1398 = vst.msk [vmem:[#allocation4 + $0x158] sm:$0xff] %vm279, %v797
      %1399 = vst.msk [vmem:[#allocation4 + $0x1a0] sm:$0xff] %vm279, %v798
      %1400 = vst.msk [vmem:[#allocation4 + $0x1e8] sm:$0xff] %vm279, %v801
      %1401 = vst.msk [vmem:[#allocation4 + $0x230] sm:$0xff] %vm279, %v802
      %1402 = vst.msk [vmem:[#allocation4 + $0x278] sm:$0xff] %vm279, %v805
      %1403 = vst.msk [vmem:[#allocation4 + $0x2c0] sm:$0xff] %vm279, %v806
      %1404 = vst.msk [vmem:[#allocation4 + $0x308] sm:$0xff] %vm279, %v809
      %1405 = vst.msk [vmem:[#allocation4 + $0x350] sm:$0xff] %vm279, %v810
      %1406 = vst.msk [vmem:[#allocation4 + $0x398] sm:$0xff] %vm279, %v813
      %1407 = vst.msk [vmem:[#allocation4 + $0x3e0] sm:$0xff] %vm279, %v814
      %1408 = vst.msk [vmem:[#allocation4 + $0x428] sm:$0xff] %vm279, %v817
      %1409 = vst.msk [vmem:[#allocation4 + $0x470] sm:$0xff] %vm279, %v818
      %1410 = vst.msk [vmem:[#allocation4 + $0x4b8] sm:$0xff] %vm279, %v821
      %1411 = vst.msk [vmem:[#allocation4 + $0x500] sm:$0xff] %vm279, %v822
      %1412 = vst.msk [vmem:[#allocation4 + $0x548] sm:$0xff] %vm279, %v825
      %1413 = vst.msk [vmem:[#allocation4 + $0x590] sm:$0xff] %vm279, %v826
      %1414 = vst.msk [vmem:[#allocation4 + $0x5d8] sm:$0xff] %vm279, %v829
      %1415 = vst.msk [vmem:[#allocation4 + $0x620] sm:$0xff] %vm279, %v830
      %1416 = vst.msk [vmem:[#allocation4 + $0x668] sm:$0xff] %vm279, %v833
      %1417 = vst.msk [vmem:[#allocation4 + $0x6b0] sm:$0xff] %vm279, %v834
      %1418 = vst.msk [vmem:[#allocation4 + $0x6f8] sm:$0xff] %vm279, %v837
      %1419 = vst.msk [vmem:[#allocation4 + $0x740] sm:$0xff] %vm279, %v838
      %1420 = vst.msk [vmem:[#allocation4 + $0x788] sm:$0xff] %vm279, %v841
      %1421 = vst.msk [vmem:[#allocation4 + $0x7d0] sm:$0xff] %vm279, %v842
      %1422 = vst.msk [vmem:[#allocation4 + $0x818] sm:$0xff] %vm279, %v845
      %1423 = vst.msk [vmem:[#allocation4 + $0x860] sm:$0xff] %vm279, %v846
      %1424 = vst.msk [vmem:[#allocation4 + $0x8a8] sm:$0xff] %vm279, %v849
      %1425 = vst.msk [vmem:[#allocation4 + $0x8f0] sm:$0xff] %vm279, %v850
      %v1427 = vrot.slane %v849, 1
      %v1428 = vrot.slane %v850, 1
      %v1429 = vsel %vm1093, %v1427, %v1428
      %v1430 = vrot.slane %v851, 1
      %v1431 = vsel %vm1093, %v1428, %v1430
      %1434 = vst.msk [vmem:[#allocation4 + $0x40] sm:$0xff] %vm279, %v1106
      %1435 = vst.msk [vmem:[#allocation4 + $0x88] sm:$0xff] %vm279, %v1108
      %1436 = vst.msk [vmem:[#allocation4 + $0xd0] sm:$0xff] %vm279, %v1111
      %1437 = vst.msk [vmem:[#allocation4 + $0x118] sm:$0xff] %vm279, %v1113
      %1438 = vst.msk [vmem:[#allocation4 + $0x160] sm:$0xff] %vm279, %v1116
      %1439 = vst.msk [vmem:[#allocation4 + $0x1a8] sm:$0xff] %vm279, %v1118
      %1440 = vst.msk [vmem:[#allocation4 + $0x1f0] sm:$0xff] %vm279, %v1121
      %1441 = vst.msk [vmem:[#allocation4 + $0x238] sm:$0xff] %vm279, %v1123
      %1442 = vst.msk [vmem:[#allocation4 + $0x280] sm:$0xff] %vm279, %v1126
      %1443 = vst.msk [vmem:[#allocation4 + $0x2c8] sm:$0xff] %vm279, %v1128
      %1444 = vst.msk [vmem:[#allocation4 + $0x310] sm:$0xff] %vm279, %v1131
      %1445 = vst.msk [vmem:[#allocation4 + $0x358] sm:$0xff] %vm279, %v1133
      %1446 = vst.msk [vmem:[#allocation4 + $0x3a0] sm:$0xff] %vm279, %v1136
      %1447 = vst.msk [vmem:[#allocation4 + $0x3e8] sm:$0xff] %vm279, %v1138
      %1448 = vst.msk [vmem:[#allocation4 + $0x430] sm:$0xff] %vm279, %v1141
      %1449 = vst.msk [vmem:[#allocation4 + $0x478] sm:$0xff] %vm279, %v1143
      %1450 = vst.msk [vmem:[#allocation4 + $0x4c0] sm:$0xff] %vm279, %v1146
      %1451 = vst.msk [vmem:[#allocation4 + $0x508] sm:$0xff] %vm279, %v1148
      %1452 = vst.msk [vmem:[#allocation4 + $0x550] sm:$0xff] %vm279, %v1151
      %1453 = vst.msk [vmem:[#allocation4 + $0x598] sm:$0xff] %vm279, %v1153
      %1454 = vst.msk [vmem:[#allocation4 + $0x5e0] sm:$0xff] %vm279, %v1156
      %1455 = vst.msk [vmem:[#allocation4 + $0x628] sm:$0xff] %vm279, %v1158
      %1456 = vst.msk [vmem:[#allocation4 + $0x670] sm:$0xff] %vm279, %v1161
      %1457 = vst.msk [vmem:[#allocation4 + $0x6b8] sm:$0xff] %vm279, %v1163
      %1458 = vst.msk [vmem:[#allocation4 + $0x700] sm:$0xff] %vm279, %v1166
      %1459 = vst.msk [vmem:[#allocation4 + $0x748] sm:$0xff] %vm279, %v1168
      %1460 = vst.msk [vmem:[#allocation4 + $0x790] sm:$0xff] %vm279, %v1171
      %1461 = vst.msk [vmem:[#allocation4 + $0x7d8] sm:$0xff] %vm279, %v1173
      %1462 = vst.msk [vmem:[#allocation4 + $0x820] sm:$0xff] %vm279, %v1315
      %1463 = vst.msk [vmem:[#allocation4 + $0x868] sm:$0xff] %vm279, %v1317
      %1464 = vst.msk [vmem:[#allocation4 + $0x8b0] sm:$0xff] %vm279, %v1429
      %1465 = vst.msk [vmem:[#allocation4 + $0x8f8] sm:$0xff] %vm279, %v1431
      %v1466 = vld [vmem:[#allocation4] sm:$0xff]
      %v1467 = vld [vmem:[#allocation4 + $0x8] sm:$0xff]
      %v1468 = vld [vmem:[#allocation4 + $0x10] sm:$0xff]
      %v1469 = vld [vmem:[#allocation4 + $0x18] sm:$0xff]
      %v1470 = vld [vmem:[#allocation4 + $0x20] sm:$0xff]
      %v1471 = vld [vmem:[#allocation4 + $0x28] sm:$0xff]
      %v1472 = vld [vmem:[#allocation4 + $0x30] sm:$0xff]
      %v1473 = vld [vmem:[#allocation4 + $0x38] sm:$0xff]
      %v1474 = vld [vmem:[#allocation4 + $0x40] sm:$0xff]
      %v1475 = vld [vmem:[#allocation4 + $0x48] sm:$0xff]
      %v1476 = vld [vmem:[#allocation4 + $0x50] sm:$0xff]
      %v1477 = vld [vmem:[#allocation4 + $0x58] sm:$0xff]
      %v1478 = vld [vmem:[#allocation4 + $0x60] sm:$0xff]
      %v1479 = vld [vmem:[#allocation4 + $0x68] sm:$0xff]
      %v1480 = vld [vmem:[#allocation4 + $0x70] sm:$0xff]
      %v1481 = vld [vmem:[#allocation4 + $0x78] sm:$0xff]
      %v1482 = vld [vmem:[#allocation4 + $0x80] sm:$0xff]
      %v1483 = vld [vmem:[#allocation4 + $0x88] sm:$0xff]
      %v1484 = vld [vmem:[#allocation4 + $0x90] sm:$0xff]
      %v1485 = vld [vmem:[#allocation4 + $0x98] sm:$0xff]
      %v1486 = vld [vmem:[#allocation4 + $0xa0] sm:$0xff]
      %v1487 = vld [vmem:[#allocation4 + $0xa8] sm:$0xff]
      %v1488 = vld [vmem:[#allocation4 + $0xb0] sm:$0xff]
      %v1489 = vld [vmem:[#allocation4 + $0xb8] sm:$0xff]
      %v1490 = vld [vmem:[#allocation4 + $0xc0] sm:$0xff]
      %v1491 = vld [vmem:[#allocation4 + $0xc8] sm:$0xff]
      %v1492 = vld [vmem:[#allocation4 + $0xd0] sm:$0xff]
      %v1493 = vld [vmem:[#allocation4 + $0xd8] sm:$0xff]
      %v1494 = vld [vmem:[#allocation4 + $0xe0] sm:$0xff]
      %v1495 = vld [vmem:[#allocation4 + $0xe8] sm:$0xff]
      %v1496 = vld [vmem:[#allocation4 + $0xf0] sm:$0xff]
      %v1497 = vld [vmem:[#allocation4 + $0xf8] sm:$0xff]
      %v1498 = vld [vmem:[#allocation4 + $0x100] sm:$0xff]
      %v1499 = vld [vmem:[#allocation4 + $0x108] sm:$0xff]
      %v1500 = vld [vmem:[#allocation4 + $0x110] sm:$0xff]
      %v1501 = vld [vmem:[#allocation4 + $0x118] sm:$0xff]
      %v1502 = vld [vmem:[#allocation4 + $0x120] sm:$0xff]
      %v1503 = vld [vmem:[#allocation4 + $0x128] sm:$0xff]
      %v1504 = vld [vmem:[#allocation4 + $0x130] sm:$0xff]
      %v1505 = vld [vmem:[#allocation4 + $0x138] sm:$0xff]
      %v1506 = vld [vmem:[#allocation4 + $0x140] sm:$0xff]
      %v1507 = vld [vmem:[#allocation4 + $0x148] sm:$0xff]
      %v1508 = vld [vmem:[#allocation4 + $0x150] sm:$0xff]
      %v1509 = vld [vmem:[#allocation4 + $0x158] sm:$0xff]
      %v1510 = vld [vmem:[#allocation4 + $0x160] sm:$0xff]
      %v1511 = vld [vmem:[#allocation4 + $0x168] sm:$0xff]
      %v1512 = vld [vmem:[#allocation4 + $0x170] sm:$0xff]
      %v1513 = vld [vmem:[#allocation4 + $0x178] sm:$0xff]
      %v1514 = vld [vmem:[#allocation4 + $0x180] sm:$0xff]
      %v1515 = vld [vmem:[#allocation4 + $0x188] sm:$0xff]
      %v1516 = vld [vmem:[#allocation4 + $0x190] sm:$0xff]
      %v1517 = vld [vmem:[#allocation4 + $0x198] sm:$0xff]
      %v1518 = vld [vmem:[#allocation4 + $0x1a0] sm:$0xff]
      %v1519 = vld [vmem:[#allocation4 + $0x1a8] sm:$0xff]
      %v1520 = vld [vmem:[#allocation4 + $0x1b0] sm:$0xff]
      %v1521 = vld [vmem:[#allocation4 + $0x1b8] sm:$0xff]
      %v1522 = vld [vmem:[#allocation4 + $0x1c0] sm:$0xff]
      %v1523 = vld [vmem:[#allocation4 + $0x1c8] sm:$0xff]
      %v1524 = vld [vmem:[#allocation4 + $0x1d0] sm:$0xff]
      %v1525 = vld [vmem:[#allocation4 + $0x1d8] sm:$0xff]
      %v1526 = vld [vmem:[#allocation4 + $0x1e0] sm:$0xff]
      %v1527 = vld [vmem:[#allocation4 + $0x1e8] sm:$0xff]
      %v1528 = vld [vmem:[#allocation4 + $0x1f0] sm:$0xff]
      %v1529 = vld [vmem:[#allocation4 + $0x1f8] sm:$0xff]
      %v1530 = vld [vmem:[#allocation4 + $0x200] sm:$0xff]
      %v1531 = vld [vmem:[#allocation4 + $0x208] sm:$0xff]
      %v1532 = vld [vmem:[#allocation4 + $0x210] sm:$0xff]
      %v1533 = vld [vmem:[#allocation4 + $0x218] sm:$0xff]
      %v1534 = vld [vmem:[#allocation4 + $0x220] sm:$0xff]
      %v1535 = vld [vmem:[#allocation4 + $0x228] sm:$0xff]
      %v1536 = vld [vmem:[#allocation4 + $0x230] sm:$0xff]
      %v1537 = vld [vmem:[#allocation4 + $0x238] sm:$0xff]
      %v1538 = vld [vmem:[#allocation4 + $0x240] sm:$0xff]
      %v1539 = vld [vmem:[#allocation4 + $0x248] sm:$0xff]
      %v1540 = vld [vmem:[#allocation4 + $0x250] sm:$0xff]
      %v1541 = vld [vmem:[#allocation4 + $0x258] sm:$0xff]
      %v1542 = vld [vmem:[#allocation4 + $0x260] sm:$0xff]
      %v1543 = vld [vmem:[#allocation4 + $0x268] sm:$0xff]
      %v1544 = vld [vmem:[#allocation4 + $0x270] sm:$0xff]
      %v1545 = vld [vmem:[#allocation4 + $0x278] sm:$0xff]
      %v1546 = vld [vmem:[#allocation4 + $0x280] sm:$0xff]
      %v1547 = vld [vmem:[#allocation4 + $0x288] sm:$0xff]
      %v1548 = vld [vmem:[#allocation4 + $0x290] sm:$0xff]
      %v1549 = vld [vmem:[#allocation4 + $0x298] sm:$0xff]
      %v1550 = vld [vmem:[#allocation4 + $0x2a0] sm:$0xff]
      %v1551 = vld [vmem:[#allocation4 + $0x2a8] sm:$0xff]
      %v1552 = vld [vmem:[#allocation4 + $0x2b0] sm:$0xff]
      %v1553 = vld [vmem:[#allocation4 + $0x2b8] sm:$0xff]
      %v1554 = vld [vmem:[#allocation4 + $0x2c0] sm:$0xff]
      %v1555 = vld [vmem:[#allocation4 + $0x2c8] sm:$0xff]
      %v1556 = vld [vmem:[#allocation4 + $0x2d0] sm:$0xff]
      %v1557 = vld [vmem:[#allocation4 + $0x2d8] sm:$0xff]
      %v1558 = vld [vmem:[#allocation4 + $0x2e0] sm:$0xff]
      %v1559 = vld [vmem:[#allocation4 + $0x2e8] sm:$0xff]
      %v1560 = vld [vmem:[#allocation4 + $0x2f0] sm:$0xff]
      %v1561 = vld [vmem:[#allocation4 + $0x2f8] sm:$0xff]
      %v1562 = vld [vmem:[#allocation4 + $0x300] sm:$0xff]
      %v1563 = vld [vmem:[#allocation4 + $0x308] sm:$0xff]
      %v1564 = vld [vmem:[#allocation4 + $0x310] sm:$0xff]
      %v1565 = vld [vmem:[#allocation4 + $0x318] sm:$0xff]
      %v1566 = vld [vmem:[#allocation4 + $0x320] sm:$0xff]
      %v1567 = vld [vmem:[#allocation4 + $0x328] sm:$0xff]
      %v1568 = vld [vmem:[#allocation4 + $0x330] sm:$0xff]
      %v1569 = vld [vmem:[#allocation4 + $0x338] sm:$0xff]
      %v1570 = vld [vmem:[#allocation4 + $0x340] sm:$0xff]
      %v1571 = vld [vmem:[#allocation4 + $0x348] sm:$0xff]
      %v1572 = vld [vmem:[#allocation4 + $0x350] sm:$0xff]
      %v1573 = vld [vmem:[#allocation4 + $0x358] sm:$0xff]
      %v1574 = vld [vmem:[#allocation4 + $0x360] sm:$0xff]
      %v1575 = vld [vmem:[#allocation4 + $0x368] sm:$0xff]
      %v1576 = vld [vmem:[#allocation4 + $0x370] sm:$0xff]
      %v1577 = vld [vmem:[#allocation4 + $0x378] sm:$0xff]
      %v1578 = vld [vmem:[#allocation4 + $0x380] sm:$0xff]
      %v1579 = vld [vmem:[#allocation4 + $0x388] sm:$0xff]
      %v1580 = vld [vmem:[#allocation4 + $0x390] sm:$0xff]
      %v1581 = vld [vmem:[#allocation4 + $0x398] sm:$0xff]
      %v1582 = vld [vmem:[#allocation4 + $0x3a0] sm:$0xff]
      %v1583 = vld [vmem:[#allocation4 + $0x3a8] sm:$0xff]
      %v1584 = vld [vmem:[#allocation4 + $0x3b0] sm:$0xff]
      %v1585 = vld [vmem:[#allocation4 + $0x3b8] sm:$0xff]
      %v1586 = vld [vmem:[#allocation4 + $0x3c0] sm:$0xff]
      %v1587 = vld [vmem:[#allocation4 + $0x3c8] sm:$0xff]
      %v1588 = vld [vmem:[#allocation4 + $0x3d0] sm:$0xff]
      %v1589 = vld [vmem:[#allocation4 + $0x3d8] sm:$0xff]
      %v1590 = vld [vmem:[#allocation4 + $0x3e0] sm:$0xff]
      %v1591 = vld [vmem:[#allocation4 + $0x3e8] sm:$0xff]
      %v1592 = vld [vmem:[#allocation4 + $0x3f0] sm:$0xff]
      %v1593 = vld [vmem:[#allocation4 + $0x3f8] sm:$0xff]
      %v1594 = vld [vmem:[#allocation4 + $0x400] sm:$0xff]
      %v1595 = vld [vmem:[#allocation4 + $0x408] sm:$0xff]
      %v1596 = vld [vmem:[#allocation4 + $0x410] sm:$0xff]
      %v1597 = vld [vmem:[#allocation4 + $0x418] sm:$0xff]
      %v1598 = vld [vmem:[#allocation4 + $0x420] sm:$0xff]
      %v1599 = vld [vmem:[#allocation4 + $0x428] sm:$0xff]
      %v1600 = vld [vmem:[#allocation4 + $0x430] sm:$0xff]
      %v1601 = vld [vmem:[#allocation4 + $0x438] sm:$0xff]
      %v1602 = vld [vmem:[#allocation4 + $0x440] sm:$0xff]
      %v1603 = vld [vmem:[#allocation4 + $0x448] sm:$0xff]
      %v1604 = vld [vmem:[#allocation4 + $0x450] sm:$0xff]
      %v1605 = vld [vmem:[#allocation4 + $0x458] sm:$0xff]
      %v1606 = vld [vmem:[#allocation4 + $0x460] sm:$0xff]
      %v1607 = vld [vmem:[#allocation4 + $0x468] sm:$0xff]
      %v1608 = vld [vmem:[#allocation4 + $0x470] sm:$0xff]
      %v1609 = vld [vmem:[#allocation4 + $0x478] sm:$0xff]
      %v1610 = vld [vmem:[#allocation4 + $0x480] sm:$0xff]
      %v1611 = vld [vmem:[#allocation4 + $0x488] sm:$0xff]
      %v1612 = vld [vmem:[#allocation4 + $0x490] sm:$0xff]
      %v1613 = vld [vmem:[#allocation4 + $0x498] sm:$0xff]
      %v1614 = vld [vmem:[#allocation4 + $0x4a0] sm:$0xff]
      %v1615 = vld [vmem:[#allocation4 + $0x4a8] sm:$0xff]
      %v1616 = vld [vmem:[#allocation4 + $0x4b0] sm:$0xff]
      %v1617 = vld [vmem:[#allocation4 + $0x4b8] sm:$0xff]
      %v1618 = vld [vmem:[#allocation4 + $0x4c0] sm:$0xff]
      %v1619 = vld [vmem:[#allocation4 + $0x4c8] sm:$0xff]
      %v1620 = vld [vmem:[#allocation4 + $0x4d0] sm:$0xff]
      %v1621 = vld [vmem:[#allocation4 + $0x4d8] sm:$0xff]
      %v1622 = vld [vmem:[#allocation4 + $0x4e0] sm:$0xff]
      %v1623 = vld [vmem:[#allocation4 + $0x4e8] sm:$0xff]
      %v1624 = vld [vmem:[#allocation4 + $0x4f0] sm:$0xff]
      %v1625 = vld [vmem:[#allocation4 + $0x4f8] sm:$0xff]
      %v1626 = vld [vmem:[#allocation4 + $0x500] sm:$0xff]
      %v1627 = vld [vmem:[#allocation4 + $0x508] sm:$0xff]
      %v1628 = vld [vmem:[#allocation4 + $0x510] sm:$0xff]
      %v1629 = vld [vmem:[#allocation4 + $0x518] sm:$0xff]
      %v1630 = vld [vmem:[#allocation4 + $0x520] sm:$0xff]
      %v1631 = vld [vmem:[#allocation4 + $0x528] sm:$0xff]
      %v1632 = vld [vmem:[#allocation4 + $0x530] sm:$0xff]
      %v1633 = vld [vmem:[#allocation4 + $0x538] sm:$0xff]
      %v1634 = vld [vmem:[#allocation4 + $0x540] sm:$0xff]
      %v1635 = vld [vmem:[#allocation4 + $0x548] sm:$0xff]
      %v1636 = vld [vmem:[#allocation4 + $0x550] sm:$0xff]
      %v1637 = vld [vmem:[#allocation4 + $0x558] sm:$0xff]
      %v1638 = vld [vmem:[#allocation4 + $0x560] sm:$0xff]
      %v1639 = vld [vmem:[#allocation4 + $0x568] sm:$0xff]
      %v1640 = vld [vmem:[#allocation4 + $0x570] sm:$0xff]
      %v1641 = vld [vmem:[#allocation4 + $0x578] sm:$0xff]
      %v1642 = vld [vmem:[#allocation4 + $0x580] sm:$0xff]
      %v1643 = vld [vmem:[#allocation4 + $0x588] sm:$0xff]
      %v1644 = vld [vmem:[#allocation4 + $0x590] sm:$0xff]
      %v1645 = vld [vmem:[#allocation4 + $0x598] sm:$0xff]
      %v1646 = vld [vmem:[#allocation4 + $0x5a0] sm:$0xff]
      %v1647 = vld [vmem:[#allocation4 + $0x5a8] sm:$0xff]
      %v1648 = vld [vmem:[#allocation4 + $0x5b0] sm:$0xff]
      %v1649 = vld [vmem:[#allocation4 + $0x5b8] sm:$0xff]
      %v1650 = vld [vmem:[#allocation4 + $0x5c0] sm:$0xff]
      %v1651 = vld [vmem:[#allocation4 + $0x5c8] sm:$0xff]
      %v1652 = vld [vmem:[#allocation4 + $0x5d0] sm:$0xff]
      %v1653 = vld [vmem:[#allocation4 + $0x5d8] sm:$0xff]
      %v1654 = vld [vmem:[#allocation4 + $0x5e0] sm:$0xff]
      %v1655 = vld [vmem:[#allocation4 + $0x5e8] sm:$0xff]
      %v1656 = vld [vmem:[#allocation4 + $0x5f0] sm:$0xff]
      %v1657 = vld [vmem:[#allocation4 + $0x5f8] sm:$0xff]
      %v1658 = vld [vmem:[#allocation4 + $0x600] sm:$0xff]
      %v1659 = vld [vmem:[#allocation4 + $0x608] sm:$0xff]
      %v1660 = vld [vmem:[#allocation4 + $0x610] sm:$0xff]
      %v1661 = vld [vmem:[#allocation4 + $0x618] sm:$0xff]
      %v1662 = vld [vmem:[#allocation4 + $0x620] sm:$0xff]
      %v1663 = vld [vmem:[#allocation4 + $0x628] sm:$0xff]
      %v1664 = vld [vmem:[#allocation4 + $0x630] sm:$0xff]
      %v1665 = vld [vmem:[#allocation4 + $0x638] sm:$0xff]
      %v1666 = vld [vmem:[#allocation4 + $0x640] sm:$0xff]
      %v1667 = vld [vmem:[#allocation4 + $0x648] sm:$0xff]
      %v1668 = vld [vmem:[#allocation4 + $0x650] sm:$0xff]
      %v1669 = vld [vmem:[#allocation4 + $0x658] sm:$0xff]
      %v1670 = vld [vmem:[#allocation4 + $0x660] sm:$0xff]
      %v1671 = vld [vmem:[#allocation4 + $0x668] sm:$0xff]
      %v1672 = vld [vmem:[#allocation4 + $0x670] sm:$0xff]
      %v1673 = vld [vmem:[#allocation4 + $0x678] sm:$0xff]
      %v1674 = vld [vmem:[#allocation4 + $0x680] sm:$0xff]
      %v1675 = vld [vmem:[#allocation4 + $0x688] sm:$0xff]
      %v1676 = vld [vmem:[#allocation4 + $0x690] sm:$0xff]
      %v1677 = vld [vmem:[#allocation4 + $0x698] sm:$0xff]
      %v1678 = vld [vmem:[#allocation4 + $0x6a0] sm:$0xff]
      %v1679 = vld [vmem:[#allocation4 + $0x6a8] sm:$0xff]
      %v1680 = vld [vmem:[#allocation4 + $0x6b0] sm:$0xff]
      %v1681 = vld [vmem:[#allocation4 + $0x6b8] sm:$0xff]
      %v1682 = vld [vmem:[#allocation4 + $0x6c0] sm:$0xff]
      %v1683 = vld [vmem:[#allocation4 + $0x6c8] sm:$0xff]
      %v1684 = vld [vmem:[#allocation4 + $0x6d0] sm:$0xff]
      %v1685 = vld [vmem:[#allocation4 + $0x6d8] sm:$0xff]
      %v1686 = vld [vmem:[#allocation4 + $0x6e0] sm:$0xff]
      %v1687 = vld [vmem:[#allocation4 + $0x6e8] sm:$0xff]
      %v1688 = vld [vmem:[#allocation4 + $0x6f0] sm:$0xff]
      %v1689 = vld [vmem:[#allocation4 + $0x6f8] sm:$0xff]
      %v1690 = vld [vmem:[#allocation4 + $0x700] sm:$0xff]
      %v1691 = vld [vmem:[#allocation4 + $0x708] sm:$0xff]
      %v1692 = vld [vmem:[#allocation4 + $0x710] sm:$0xff]
      %v1693 = vld [vmem:[#allocation4 + $0x718] sm:$0xff]
      %v1694 = vld [vmem:[#allocation4 + $0x720] sm:$0xff]
      %v1695 = vld [vmem:[#allocation4 + $0x728] sm:$0xff]
      %v1696 = vld [vmem:[#allocation4 + $0x730] sm:$0xff]
      %v1697 = vld [vmem:[#allocation4 + $0x738] sm:$0xff]
      %v1698 = vld [vmem:[#allocation4 + $0x740] sm:$0xff]
      %v1699 = vld [vmem:[#allocation4 + $0x748] sm:$0xff]
      %v1700 = vld [vmem:[#allocation4 + $0x750] sm:$0xff]
      %v1701 = vld [vmem:[#allocation4 + $0x758] sm:$0xff]
      %v1702 = vld [vmem:[#allocation4 + $0x760] sm:$0xff]
      %v1703 = vld [vmem:[#allocation4 + $0x768] sm:$0xff]
      %v1704 = vld [vmem:[#allocation4 + $0x770] sm:$0xff]
      %v1705 = vld [vmem:[#allocation4 + $0x778] sm:$0xff]
      %v1706 = vld [vmem:[#allocation4 + $0x780] sm:$0xff]
      %v1707 = vld [vmem:[#allocation4 + $0x788] sm:$0xff]
      %v1708 = vld [vmem:[#allocation4 + $0x790] sm:$0xff]
      %v1709 = vld [vmem:[#allocation4 + $0x798] sm:$0xff]
      %v1710 = vld [vmem:[#allocation4 + $0x7a0] sm:$0xff]
      %v1711 = vld [vmem:[#allocation4 + $0x7a8] sm:$0xff]
      %v1712 = vld [vmem:[#allocation4 + $0x7b0] sm:$0xff]
      %v1713 = vld [vmem:[#allocation4 + $0x7b8] sm:$0xff]
      %v1714 = vld [vmem:[#allocation4 + $0x7c0] sm:$0xff]
      %v1715 = vld [vmem:[#allocation4 + $0x7c8] sm:$0xff]
      %v1716 = vld [vmem:[#allocation4 + $0x7d0] sm:$0xff]
      %v1717 = vld [vmem:[#allocation4 + $0x7d8] sm:$0xff]
      %v1718 = vld [vmem:[#allocation4 + $0x7e0] sm:$0xff]
      %v1719 = vld [vmem:[#allocation4 + $0x7e8] sm:$0xff]
      %v1720 = vld [vmem:[#allocation4 + $0x7f0] sm:$0xff]
      %v1721 = vld [vmem:[#allocation4 + $0x7f8] sm:$0xff]
      %v1722 = vld [vmem:[#allocation4 + $0x800] sm:$0xff]
      %v1723 = vld [vmem:[#allocation4 + $0x808] sm:$0xff]
      %v1724 = vld [vmem:[#allocation4 + $0x810] sm:$0xff]
      %v1725 = vld [vmem:[#allocation4 + $0x818] sm:$0xff]
      %v1726 = vld [vmem:[#allocation4 + $0x820] sm:$0xff]
      %v1727 = vld [vmem:[#allocation4 + $0x828] sm:$0xff]
      %v1728 = vld [vmem:[#allocation4 + $0x830] sm:$0xff]
      %v1729 = vld [vmem:[#allocation4 + $0x838] sm:$0xff]
      %v1730 = vld [vmem:[#allocation4 + $0x840] sm:$0xff]
      %v1731 = vld [vmem:[#allocation4 + $0x848] sm:$0xff]
      %v1732 = vld [vmem:[#allocation4 + $0x850] sm:$0xff]
      %v1733 = vld [vmem:[#allocation4 + $0x858] sm:$0xff]
      %v1734 = vld [vmem:[#allocation4 + $0x860] sm:$0xff]
      %v1735 = vld [vmem:[#allocation4 + $0x868] sm:$0xff]
      %v1736 = vld [vmem:[#allocation4 + $0x870] sm:$0xff]
      %v1737 = vld [vmem:[#allocation4 + $0x878] sm:$0xff]
      %v1738 = vld [vmem:[#allocation4 + $0x880] sm:$0xff]
      %v1739 = vld [vmem:[#allocation4 + $0x888] sm:$0xff]
      %v1740 = vld [vmem:[#allocation4 + $0x890] sm:$0xff]
      %v1741 = vld [vmem:[#allocation4 + $0x898] sm:$0xff]
      %v1742 = vld [vmem:[#allocation4 + $0x8a0] sm:$0xff]
      %v1743 = vld [vmem:[#allocation4 + $0x8a8] sm:$0xff]
      %v1744 = vld [vmem:[#allocation4 + $0x8b0] sm:$0xff]
      %v1745 = vld [vmem:[#allocation4 + $0x8b8] sm:$0xff]
      %v1746 = vld [vmem:[#allocation4 + $0x8c0] sm:$0xff]
      %v1747 = vld [vmem:[#allocation4 + $0x8c8] sm:$0xff]
      %v1748 = vld [vmem:[#allocation4 + $0x8d0] sm:$0xff]
      %v1749 = vld [vmem:[#allocation4 + $0x8d8] sm:$0xff]
      %v1750 = vld [vmem:[#allocation4 + $0x8e0] sm:$0xff]
      %v1751 = vld [vmem:[#allocation4 + $0x8e8] sm:$0xff]
      %v1752 = vld [vmem:[#allocation4 + $0x8f0] sm:$0xff]
      %v1753 = vld [vmem:[#allocation4 + $0x8f8] sm:$0xff]
      %v1754 = vpack.c.bf16 %v1475, %v1466
      %v1755 = vpack.c.bf16 %v1476, %v1467
      %v1756 = vpack.c.bf16 %v1477, %v1468
      %v1757 = vpack.c.bf16 %v1478, %v1469
      %v1758 = vpack.c.bf16 %v1479, %v1470
      %v1759 = vpack.c.bf16 %v1480, %v1471
      %v1760 = vpack.c.bf16 %v1481, %v1472
      %v1761 = vpack.c.bf16 %v1482, %v1473
      %v1762 = vpack.c.bf16 %v1483, %v1474
      %v1763 = vpack.c.bf16 %v1493, %v1484
      %v1764 = vpack.c.bf16 %v1494, %v1485
      %v1765 = vpack.c.bf16 %v1495, %v1486
      %v1766 = vpack.c.bf16 %v1496, %v1487
      %v1767 = vpack.c.bf16 %v1497, %v1488
      %v1768 = vpack.c.bf16 %v1498, %v1489
      %v1769 = vpack.c.bf16 %v1499, %v1490
      %v1770 = vpack.c.bf16 %v1500, %v1491
      %v1771 = vpack.c.bf16 %v1501, %v1492
      %v1772 = vpack.c.bf16 %v1511, %v1502
      %v1773 = vpack.c.bf16 %v1512, %v1503
      %v1774 = vpack.c.bf16 %v1513, %v1504
      %v1775 = vpack.c.bf16 %v1514, %v1505
      %v1776 = vpack.c.bf16 %v1515, %v1506
      %v1777 = vpack.c.bf16 %v1516, %v1507
      %v1778 = vpack.c.bf16 %v1517, %v1508
      %v1779 = vpack.c.bf16 %v1518, %v1509
      %v1780 = vpack.c.bf16 %v1519, %v1510
      %v1781 = vpack.c.bf16 %v1529, %v1520
      %v1782 = vpack.c.bf16 %v1530, %v1521
      %v1783 = vpack.c.bf16 %v1531, %v1522
      %v1784 = vpack.c.bf16 %v1532, %v1523
      %v1785 = vpack.c.bf16 %v1533, %v1524
      %v1786 = vpack.c.bf16 %v1534, %v1525
      %v1787 = vpack.c.bf16 %v1535, %v1526
      %v1788 = vpack.c.bf16 %v1536, %v1527
      %v1789 = vpack.c.bf16 %v1537, %v1528
      %v1790 = vpack.c.bf16 %v1547, %v1538
      %v1791 = vpack.c.bf16 %v1548, %v1539
      %v1792 = vpack.c.bf16 %v1549, %v1540
      %v1793 = vpack.c.bf16 %v1550, %v1541
      %v1794 = vpack.c.bf16 %v1551, %v1542
      %v1795 = vpack.c.bf16 %v1552, %v1543
      %v1796 = vpack.c.bf16 %v1553, %v1544
      %v1797 = vpack.c.bf16 %v1554, %v1545
      %v1798 = vpack.c.bf16 %v1555, %v1546
      %v1799 = vpack.c.bf16 %v1565, %v1556
      %v1800 = vpack.c.bf16 %v1566, %v1557
      %v1801 = vpack.c.bf16 %v1567, %v1558
      %v1802 = vpack.c.bf16 %v1568, %v1559
      %v1803 = vpack.c.bf16 %v1569, %v1560
      %v1804 = vpack.c.bf16 %v1570, %v1561
      %v1805 = vpack.c.bf16 %v1571, %v1562
      %v1806 = vpack.c.bf16 %v1572, %v1563
      %v1807 = vpack.c.bf16 %v1573, %v1564
      %v1808 = vpack.c.bf16 %v1583, %v1574
      %v1809 = vpack.c.bf16 %v1584, %v1575
      %v1810 = vpack.c.bf16 %v1585, %v1576
      %v1811 = vpack.c.bf16 %v1586, %v1577
      %v1812 = vpack.c.bf16 %v1587, %v1578
      %v1813 = vpack.c.bf16 %v1588, %v1579
      %v1814 = vpack.c.bf16 %v1589, %v1580
      %v1815 = vpack.c.bf16 %v1590, %v1581
      %v1816 = vpack.c.bf16 %v1591, %v1582
      %v1817 = vpack.c.bf16 %v1601, %v1592
      %v1818 = vpack.c.bf16 %v1602, %v1593
      %v1819 = vpack.c.bf16 %v1603, %v1594
      %v1820 = vpack.c.bf16 %v1604, %v1595
      %v1821 = vpack.c.bf16 %v1605, %v1596
      %v1822 = vpack.c.bf16 %v1606, %v1597
      %v1823 = vpack.c.bf16 %v1607, %v1598
      %v1824 = vpack.c.bf16 %v1608, %v1599
      %v1825 = vpack.c.bf16 %v1609, %v1600
      %v1826 = vpack.c.bf16 %v1619, %v1610
      %v1827 = vpack.c.bf16 %v1620, %v1611
      %v1828 = vpack.c.bf16 %v1621, %v1612
      %v1829 = vpack.c.bf16 %v1622, %v1613
      %v1830 = vpack.c.bf16 %v1623, %v1614
      %v1831 = vpack.c.bf16 %v1624, %v1615
      %v1832 = vpack.c.bf16 %v1625, %v1616
      %v1833 = vpack.c.bf16 %v1626, %v1617
      %v1834 = vpack.c.bf16 %v1627, %v1618
      %v1835 = vpack.c.bf16 %v1637, %v1628
      %v1836 = vpack.c.bf16 %v1638, %v1629
      %v1837 = vpack.c.bf16 %v1639, %v1630
      %v1838 = vpack.c.bf16 %v1640, %v1631
      %v1839 = vpack.c.bf16 %v1641, %v1632
      %v1840 = vpack.c.bf16 %v1642, %v1633
      %v1841 = vpack.c.bf16 %v1643, %v1634
      %v1842 = vpack.c.bf16 %v1644, %v1635
      %v1843 = vpack.c.bf16 %v1645, %v1636
      %v1844 = vpack.c.bf16 %v1655, %v1646
      %v1845 = vpack.c.bf16 %v1656, %v1647
      %v1846 = vpack.c.bf16 %v1657, %v1648
      %v1847 = vpack.c.bf16 %v1658, %v1649
      %v1848 = vpack.c.bf16 %v1659, %v1650
      %v1849 = vpack.c.bf16 %v1660, %v1651
      %v1850 = vpack.c.bf16 %v1661, %v1652
      %v1851 = vpack.c.bf16 %v1662, %v1653
      %v1852 = vpack.c.bf16 %v1663, %v1654
      %v1853 = vpack.c.bf16 %v1673, %v1664
      %v1854 = vpack.c.bf16 %v1674, %v1665
      %v1855 = vpack.c.bf16 %v1675, %v1666
      %v1856 = vpack.c.bf16 %v1676, %v1667
      %v1857 = vpack.c.bf16 %v1677, %v1668
      %v1858 = vpack.c.bf16 %v1678, %v1669
      %v1859 = vpack.c.bf16 %v1679, %v1670
      %v1860 = vpack.c.bf16 %v1680, %v1671
      %v1861 = vpack.c.bf16 %v1681, %v1672
      %v1862 = vpack.c.bf16 %v1691, %v1682
      %v1863 = vpack.c.bf16 %v1692, %v1683
      %v1864 = vpack.c.bf16 %v1693, %v1684
      %v1865 = vpack.c.bf16 %v1694, %v1685
      %v1866 = vpack.c.bf16 %v1695, %v1686
      %v1867 = vpack.c.bf16 %v1696, %v1687
      %v1868 = vpack.c.bf16 %v1697, %v1688
      %v1869 = vpack.c.bf16 %v1698, %v1689
      %v1870 = vpack.c.bf16 %v1699, %v1690
      %v1871 = vpack.c.bf16 %v1709, %v1700
      %v1872 = vpack.c.bf16 %v1710, %v1701
      %v1873 = vpack.c.bf16 %v1711, %v1702
      %v1874 = vpack.c.bf16 %v1712, %v1703
      %v1875 = vpack.c.bf16 %v1713, %v1704
      %v1876 = vpack.c.bf16 %v1714, %v1705
      %v1877 = vpack.c.bf16 %v1715, %v1706
      %v1878 = vpack.c.bf16 %v1716, %v1707
      %v1879 = vpack.c.bf16 %v1717, %v1708
      %v1880 = vpack.c.bf16 %v1727, %v1718
      %v1881 = vpack.c.bf16 %v1728, %v1719
      %v1882 = vpack.c.bf16 %v1729, %v1720
      %v1883 = vpack.c.bf16 %v1730, %v1721
      %v1884 = vpack.c.bf16 %v1731, %v1722
      %v1885 = vpack.c.bf16 %v1732, %v1723
      %v1886 = vpack.c.bf16 %v1733, %v1724
      %v1887 = vpack.c.bf16 %v1734, %v1725
      %v1888 = vpack.c.bf16 %v1735, %v1726
      %v1889 = vpack.c.bf16 %v1745, %v1736
      %v1890 = vpack.c.bf16 %v1746, %v1737
      %v1891 = vpack.c.bf16 %v1747, %v1738
      %v1892 = vpack.c.bf16 %v1748, %v1739
      %v1893 = vpack.c.bf16 %v1749, %v1740
      %v1894 = vpack.c.bf16 %v1750, %v1741
      %v1895 = vpack.c.bf16 %v1751, %v1742
      %v1896 = vpack.c.bf16 %v1752, %v1743
      %v1897 = vpack.c.bf16 %v1753, %v1744
      %v1898 = vld [vmem:[%s1] sm:$0xf]
      %v1899 = vld [vmem:[%s1 + $0x4] sm:$0xf]
      %v1900 = vld [vmem:[%s1 + $0x8] sm:$0xf]
      %v1901 = vld [vmem:[%s1 + $0xc] sm:$0xf]
      %v1902 = vld [vmem:[%s1 + $0x10] sm:$0xf]
      %v1903 = vld [vmem:[%s1 + $0x14] sm:$0xf]
      %v1904 = vld [vmem:[%s1 + $0x18] sm:$0xf]
      %v1905 = vld [vmem:[%s1 + $0x1c] sm:$0xf]
      %v1906 = vld [vmem:[%s1 + $0x20] sm:$0xf]
      %v1907 = vld [vmem:[%s1 + $0x24] sm:$0xf]
      %v1908 = vld [vmem:[%s1 + $0x28] sm:$0xf]
      %v1909 = vld [vmem:[%s1 + $0x2c] sm:$0xf]
      %v1910 = vld [vmem:[%s1 + $0x30] sm:$0xf]
      %v1911 = vld [vmem:[%s1 + $0x34] sm:$0xf]
      %v1912 = vld [vmem:[%s1 + $0x38] sm:$0xf]
      %v1913 = vld [vmem:[%s1 + $0x3c] sm:$0xf]
      %v1914 = vld [vmem:[%s1 + $0x40] sm:$0xf]
      %v1915 = vld [vmem:[%s1 + $0x44] sm:$0xf]
      %v1916 = vld [vmem:[%s1 + $0x48] sm:$0xf]
      %v1917 = vld [vmem:[%s1 + $0x4c] sm:$0xf]
      %v1918 = vld [vmem:[%s1 + $0x50] sm:$0xf]
      %v1919 = vld [vmem:[%s1 + $0x54] sm:$0xf]
      %v1920 = vld [vmem:[%s1 + $0x58] sm:$0xf]
      %v1921 = vld [vmem:[%s1 + $0x5c] sm:$0xf]
      %v1922 = vld [vmem:[%s1 + $0x60] sm:$0xf]
      %v1923 = vld [vmem:[%s1 + $0x64] sm:$0xf]
      %v1924 = vld [vmem:[%s1 + $0x68] sm:$0xf]
      %v1925 = vld [vmem:[%s1 + $0x6c] sm:$0xf]
      %v1926 = vld [vmem:[%s1 + $0x70] sm:$0xf]
      %v1927 = vld [vmem:[%s1 + $0x74] sm:$0xf]
      %v1928 = vld [vmem:[%s1 + $0x78] sm:$0xf]
      %v1929 = vld [vmem:[%s1 + $0x7c] sm:$0xf]
      %v1930 = vld [vmem:[%s1 + $0x80] sm:$0xf]
      %v1931 = vld [vmem:[%s1 + $0x84] sm:$0xf]
      %v1932 = vld [vmem:[%s1 + $0x88] sm:$0xf]
      %v1933 = vld [vmem:[%s1 + $0x8c] sm:$0xf]
      %v1934 = vld [vmem:[%s1 + $0x90] sm:$0xf]
      %v1935 = vld [vmem:[%s1 + $0x94] sm:$0xf]
      %v1936 = vld [vmem:[%s1 + $0x98] sm:$0xf]
      %v1937 = vld [vmem:[%s1 + $0x9c] sm:$0xf]
      %v1938 = vld [vmem:[%s1 + $0xa0] sm:$0xf]
      %v1939 = vld [vmem:[%s1 + $0xa4] sm:$0xf]
      %v1940 = vld [vmem:[%s1 + $0xa8] sm:$0xf]
      %v1941 = vld [vmem:[%s1 + $0xac] sm:$0xf]
      %v1942 = vld [vmem:[%s1 + $0xb0] sm:$0xf]
      %v1943 = vld [vmem:[%s1 + $0xb4] sm:$0xf]
      %v1944 = vld [vmem:[%s1 + $0xb8] sm:$0xf]
      %v1945 = vld [vmem:[%s1 + $0xbc] sm:$0xf]
      %v1946 = vld [vmem:[%s1 + $0xc0] sm:$0xf]
      %v1947 = vld [vmem:[%s1 + $0xc4] sm:$0xf]
      %v1948 = vld [vmem:[%s1 + $0xc8] sm:$0xf]
      %v1949 = vld [vmem:[%s1 + $0xcc] sm:$0xf]
      %v1950 = vld [vmem:[%s1 + $0xd0] sm:$0xf]
      %v1951 = vld [vmem:[%s1 + $0xd4] sm:$0xf]
      %v1952 = vld [vmem:[%s1 + $0xd8] sm:$0xf]
      %v1953 = vld [vmem:[%s1 + $0xdc] sm:$0xf]
      %v1954 = vld [vmem:[%s1 + $0xe0] sm:$0xf]
      %v1955 = vld [vmem:[%s1 + $0xe4] sm:$0xf]
      %v1956 = vld [vmem:[%s1 + $0xe8] sm:$0xf]
      %v1957 = vld [vmem:[%s1 + $0xec] sm:$0xf]
      %v1958 = vld [vmem:[%s1 + $0xf0] sm:$0xf]
      %v1959 = vld [vmem:[%s1 + $0xf4] sm:$0xf]
      %v1960 = vld [vmem:[%s1 + $0xf8] sm:$0xf]
      %v1961 = vld [vmem:[%s1 + $0xfc] sm:$0xf]
      %v1962 = vld [vmem:[%s1 + $0x100] sm:$0xf]
      %v1963 = vld [vmem:[%s1 + $0x104] sm:$0xf]
      %v1964 = vld [vmem:[%s1 + $0x108] sm:$0xf]
      %v1965 = vld [vmem:[%s1 + $0x10c] sm:$0xf]
      %v1966 = vld [vmem:[%s1 + $0x110] sm:$0xf]
      %v1967 = vld [vmem:[%s1 + $0x114] sm:$0xf]
      %v1968 = vld [vmem:[%s1 + $0x118] sm:$0xf]
      %v1969 = vld [vmem:[%s1 + $0x11c] sm:$0xf]
      %v1970 = vld [vmem:[%s1 + $0x120] sm:$0xf]
      %v1971 = vld [vmem:[%s1 + $0x124] sm:$0xf]
      %v1972 = vld [vmem:[%s1 + $0x128] sm:$0xf]
      %v1973 = vld [vmem:[%s1 + $0x12c] sm:$0xf]
      %v1974 = vld [vmem:[%s1 + $0x130] sm:$0xf]
      %v1975 = vld [vmem:[%s1 + $0x134] sm:$0xf]
      %v1976 = vld [vmem:[%s1 + $0x138] sm:$0xf]
      %v1977 = vld [vmem:[%s1 + $0x13c] sm:$0xf]
      %v1978 = vld [vmem:[%s1 + $0x140] sm:$0xf]
      %v1979 = vld [vmem:[%s1 + $0x144] sm:$0xf]
      %v1980 = vld [vmem:[%s1 + $0x148] sm:$0xf]
      %v1981 = vld [vmem:[%s1 + $0x14c] sm:$0xf]
      %v1982 = vld [vmem:[%s1 + $0x150] sm:$0xf]
      %v1983 = vld [vmem:[%s1 + $0x154] sm:$0xf]
      %v1984 = vld [vmem:[%s1 + $0x158] sm:$0xf]
      %v1985 = vld [vmem:[%s1 + $0x15c] sm:$0xf]
      %v1986 = vld [vmem:[%s1 + $0x160] sm:$0xf]
      %v1987 = vld [vmem:[%s1 + $0x164] sm:$0xf]
      %v1988 = vld [vmem:[%s1 + $0x168] sm:$0xf]
      %v1989 = vld [vmem:[%s1 + $0x16c] sm:$0xf]
      %v1990 = vld [vmem:[%s1 + $0x170] sm:$0xf]
      %v1991 = vld [vmem:[%s1 + $0x174] sm:$0xf]
      %v1992 = vld [vmem:[%s1 + $0x178] sm:$0xf]
      %v1993 = vld [vmem:[%s1 + $0x17c] sm:$0xf]
      %v1994 = vld [vmem:[%s1 + $0x180] sm:$0xf]
      %v1995 = vld [vmem:[%s1 + $0x184] sm:$0xf]
      %v1996 = vld [vmem:[%s1 + $0x188] sm:$0xf]
      %v1997 = vld [vmem:[%s1 + $0x18c] sm:$0xf]
      %v1998 = vld [vmem:[%s1 + $0x190] sm:$0xf]
      %v1999 = vld [vmem:[%s1 + $0x194] sm:$0xf]
      %v2000 = vld [vmem:[%s1 + $0x198] sm:$0xf]
      %v2001 = vld [vmem:[%s1 + $0x19c] sm:$0xf]
      %v2002 = vld [vmem:[%s1 + $0x1a0] sm:$0xf]
      %v2003 = vld [vmem:[%s1 + $0x1a4] sm:$0xf]
      %v2004 = vld [vmem:[%s1 + $0x1a8] sm:$0xf]
      %v2005 = vld [vmem:[%s1 + $0x1ac] sm:$0xf]
      %v2006 = vld [vmem:[%s1 + $0x1b0] sm:$0xf]
      %v2007 = vld [vmem:[%s1 + $0x1b4] sm:$0xf]
      %v2008 = vld [vmem:[%s1 + $0x1b8] sm:$0xf]
      %v2009 = vld [vmem:[%s1 + $0x1bc] sm:$0xf]
      %v2010 = vld [vmem:[%s1 + $0x1c0] sm:$0xf]
      %v2011 = vld [vmem:[%s1 + $0x1c4] sm:$0xf]
      %v2012 = vld [vmem:[%s1 + $0x1c8] sm:$0xf]
      %v2013 = vld [vmem:[%s1 + $0x1cc] sm:$0xf]
      %v2014 = vld [vmem:[%s1 + $0x1d0] sm:$0xf]
      %v2015 = vld [vmem:[%s1 + $0x1d4] sm:$0xf]
      %v2016 = vld [vmem:[%s1 + $0x1d8] sm:$0xf]
      %v2017 = vld [vmem:[%s1 + $0x1dc] sm:$0xf]
      %v2018 = vld [vmem:[%s1 + $0x1e0] sm:$0xf]
      %v2019 = vld [vmem:[%s1 + $0x1e4] sm:$0xf]
      %v2020 = vld [vmem:[%s1 + $0x1e8] sm:$0xf]
      %v2021 = vld [vmem:[%s1 + $0x1ec] sm:$0xf]
      %v2022 = vld [vmem:[%s1 + $0x1f0] sm:$0xf]
      %v2023 = vld [vmem:[%s1 + $0x1f4] sm:$0xf]
      %v2024 = vld [vmem:[%s1 + $0x1f8] sm:$0xf]
      %v2025 = vld [vmem:[%s1 + $0x1fc] sm:$0xf]
      %v2026 = vld [vmem:[%s1 + $0x200] sm:$0xf]
      %v2027 = vld [vmem:[%s1 + $0x204] sm:$0xf]
      %v2028 = vld [vmem:[%s1 + $0x208] sm:$0xf]
      %v2029 = vld [vmem:[%s1 + $0x20c] sm:$0xf]
      %v2030 = vld [vmem:[%s1 + $0x210] sm:$0xf]
      %v2031 = vld [vmem:[%s1 + $0x214] sm:$0xf]
      %v2032 = vld [vmem:[%s1 + $0x218] sm:$0xf]
      %v2033 = vld [vmem:[%s1 + $0x21c] sm:$0xf]
      %v2034 = vld [vmem:[%s1 + $0x220] sm:$0xf]
      %v2035 = vld [vmem:[%s1 + $0x224] sm:$0xf]
      %v2036 = vld [vmem:[%s1 + $0x228] sm:$0xf]
      %v2037 = vld [vmem:[%s1 + $0x22c] sm:$0xf]
      %v2038 = vld [vmem:[%s1 + $0x230] sm:$0xf]
      %v2039 = vld [vmem:[%s1 + $0x234] sm:$0xf]
      %v2040 = vld [vmem:[%s1 + $0x238] sm:$0xf]
      %v2041 = vld [vmem:[%s1 + $0x23c] sm:$0xf]
      %v2186 = vunpack.c.l.b16 %v1898
      %v2187 = vunpack.c.l.b16 %v1899
      %v2188 = vunpack.c.l.b16 %v1900
      %v2189 = vunpack.c.l.b16 %v1901
      %v2190 = vunpack.c.l.b16 %v1902
      %v2191 = vunpack.c.l.b16 %v1903
      %v2192 = vunpack.c.l.b16 %v1904
      %v2193 = vunpack.c.l.b16 %v1905
      %v2194 = vunpack.c.l.b16 %v1906
      %v2195 = vunpack.c.l.b16 %v1907
      %v2196 = vunpack.c.l.b16 %v1908
      %v2197 = vunpack.c.l.b16 %v1909
      %v2198 = vunpack.c.l.b16 %v1910
      %v2199 = vunpack.c.l.b16 %v1911
      %v2200 = vunpack.c.l.b16 %v1912
      %v2201 = vunpack.c.l.b16 %v1913
      %v2202 = vunpack.c.l.b16 %v1914
      %v2203 = vunpack.c.l.b16 %v1915
      %v2204 = vunpack.c.l.b16 %v1916
      %v2205 = vunpack.c.l.b16 %v1917
      %v2206 = vunpack.c.l.b16 %v1918
      %v2207 = vunpack.c.l.b16 %v1919
      %v2208 = vunpack.c.l.b16 %v1920
      %v2209 = vunpack.c.l.b16 %v1921
      %v2210 = vunpack.c.l.b16 %v1922
      %v2211 = vunpack.c.l.b16 %v1923
      %v2212 = vunpack.c.l.b16 %v1924
      %v2213 = vunpack.c.l.b16 %v1925
      %v2214 = vunpack.c.l.b16 %v1926
      %v2215 = vunpack.c.l.b16 %v1927
      %v2216 = vunpack.c.l.b16 %v1928
      %v2217 = vunpack.c.l.b16 %v1929
      %v2218 = vunpack.c.l.b16 %v1930
      %v2219 = vunpack.c.l.b16 %v1931
      %v2220 = vunpack.c.l.b16 %v1932
      %v2221 = vunpack.c.l.b16 %v1933
      %v2222 = vunpack.c.l.b16 %v1934
      %v2223 = vunpack.c.l.b16 %v1935
      %v2224 = vunpack.c.l.b16 %v1936
      %v2225 = vunpack.c.l.b16 %v1937
      %v2226 = vunpack.c.l.b16 %v1938
      %v2227 = vunpack.c.l.b16 %v1939
      %v2228 = vunpack.c.l.b16 %v1940
      %v2229 = vunpack.c.l.b16 %v1941
      %v2230 = vunpack.c.l.b16 %v1942
      %v2231 = vunpack.c.l.b16 %v1943
      %v2232 = vunpack.c.l.b16 %v1944
      %v2233 = vunpack.c.l.b16 %v1945
      %v2234 = vunpack.c.l.b16 %v1946
      %v2235 = vunpack.c.l.b16 %v1947
      %v2236 = vunpack.c.l.b16 %v1948
      %v2237 = vunpack.c.l.b16 %v1949
      %v2238 = vunpack.c.l.b16 %v1950
      %v2239 = vunpack.c.l.b16 %v1951
      %v2240 = vunpack.c.l.b16 %v1952
      %v2241 = vunpack.c.l.b16 %v1953
      %v2242 = vunpack.c.l.b16 %v1954
      %v2243 = vunpack.c.l.b16 %v1955
      %v2244 = vunpack.c.l.b16 %v1956
      %v2245 = vunpack.c.l.b16 %v1957
      %v2246 = vunpack.c.l.b16 %v1958
      %v2247 = vunpack.c.l.b16 %v1959
      %v2248 = vunpack.c.l.b16 %v1960
      %v2249 = vunpack.c.l.b16 %v1961
      %v2250 = vunpack.c.l.b16 %v1962
      %v2251 = vunpack.c.l.b16 %v1963
      %v2252 = vunpack.c.l.b16 %v1964
      %v2253 = vunpack.c.l.b16 %v1965
      %v2254 = vunpack.c.l.b16 %v1966
      %v2255 = vunpack.c.l.b16 %v1967
      %v2256 = vunpack.c.l.b16 %v1968
      %v2257 = vunpack.c.l.b16 %v1969
      %v2258 = vunpack.c.l.b16 %v1970
      %v2259 = vunpack.c.l.b16 %v1971
      %v2260 = vunpack.c.l.b16 %v1972
      %v2261 = vunpack.c.l.b16 %v1973
      %v2262 = vunpack.c.l.b16 %v1974
      %v2263 = vunpack.c.l.b16 %v1975
      %v2264 = vunpack.c.l.b16 %v1976
      %v2265 = vunpack.c.l.b16 %v1977
      %v2266 = vunpack.c.l.b16 %v1978
      %v2267 = vunpack.c.l.b16 %v1979
      %v2268 = vunpack.c.l.b16 %v1980
      %v2269 = vunpack.c.l.b16 %v1981
      %v2270 = vunpack.c.l.b16 %v1982
      %v2271 = vunpack.c.l.b16 %v1983
      %v2272 = vunpack.c.l.b16 %v1984
      %v2273 = vunpack.c.l.b16 %v1985
      %v2274 = vunpack.c.l.b16 %v1986
      %v2275 = vunpack.c.l.b16 %v1987
      %v2276 = vunpack.c.l.b16 %v1988
      %v2277 = vunpack.c.l.b16 %v1989
      %v2278 = vunpack.c.l.b16 %v1990
      %v2279 = vunpack.c.l.b16 %v1991
      %v2280 = vunpack.c.l.b16 %v1992
      %v2281 = vunpack.c.l.b16 %v1993
      %v2282 = vunpack.c.l.b16 %v1994
      %v2283 = vunpack.c.l.b16 %v1995
      %v2284 = vunpack.c.l.b16 %v1996
      %v2285 = vunpack.c.l.b16 %v1997
      %v2286 = vunpack.c.l.b16 %v1998
      %v2287 = vunpack.c.l.b16 %v1999
      %v2288 = vunpack.c.l.b16 %v2000
      %v2289 = vunpack.c.l.b16 %v2001
      %v2290 = vunpack.c.l.b16 %v2002
      %v2291 = vunpack.c.l.b16 %v2003
      %v2292 = vunpack.c.l.b16 %v2004
      %v2293 = vunpack.c.l.b16 %v2005
      %v2294 = vunpack.c.l.b16 %v2006
      %v2295 = vunpack.c.l.b16 %v2007
      %v2296 = vunpack.c.l.b16 %v2008
      %v2297 = vunpack.c.l.b16 %v2009
      %v2298 = vunpack.c.l.b16 %v2010
      %v2299 = vunpack.c.l.b16 %v2011
      %v2300 = vunpack.c.l.b16 %v2012
      %v2301 = vunpack.c.l.b16 %v2013
      %v2302 = vunpack.c.l.b16 %v2014
      %v2303 = vunpack.c.l.b16 %v2015
      %v2304 = vunpack.c.l.b16 %v2016
      %v2305 = vunpack.c.l.b16 %v2017
      %v2306 = vunpack.c.l.b16 %v2018
      %v2307 = vunpack.c.l.b16 %v2019
      %v2308 = vunpack.c.l.b16 %v2020
      %v2309 = vunpack.c.l.b16 %v2021
      %v2310 = vunpack.c.l.b16 %v2022
      %v2311 = vunpack.c.l.b16 %v2023
      %v2312 = vunpack.c.l.b16 %v2024
      %v2313 = vunpack.c.l.b16 %v2025
      %v2314 = vunpack.c.l.b16 %v2026
      %v2315 = vunpack.c.l.b16 %v2027
      %v2316 = vunpack.c.l.b16 %v2028
      %v2317 = vunpack.c.l.b16 %v2029
      %v2318 = vunpack.c.l.b16 %v2030
      %v2319 = vunpack.c.l.b16 %v2031
      %v2320 = vunpack.c.l.b16 %v2032
      %v2321 = vunpack.c.l.b16 %v2033
      %v2322 = vunpack.c.l.b16 %v2034
      %v2323 = vunpack.c.l.b16 %v2035
      %v2324 = vunpack.c.l.b16 %v2036
      %v2325 = vunpack.c.l.b16 %v2037
      %v2326 = vunpack.c.l.b16 %v2038
      %v2327 = vunpack.c.l.b16 %v2039
      %v2328 = vunpack.c.l.b16 %v2040
      %v2329 = vunpack.c.l.b16 %v2041
      %v2330 = vpack.c.b16 %v2187, %v2186
      %v2331 = vpack.c.b16 %v2189, %v2188
      %v2332 = vpack.c.b16 %v2191, %v2190
      %v2333 = vpack.c.b16 %v2193, %v2192
      %v2334 = vpack.c.b16 %v2195, %v2194
      %v2335 = vpack.c.b16 %v2197, %v2196
      %v2336 = vpack.c.b16 %v2199, %v2198
      %v2337 = vpack.c.b16 %v2201, %v2200
      %v2338 = vpack.c.b16 %v2203, %v2202
      %v2339 = vpack.c.b16 %v2205, %v2204
      %v2340 = vpack.c.b16 %v2207, %v2206
      %v2341 = vpack.c.b16 %v2209, %v2208
      %v2342 = vpack.c.b16 %v2211, %v2210
      %v2343 = vpack.c.b16 %v2213, %v2212
      %v2344 = vpack.c.b16 %v2215, %v2214
      %v2345 = vpack.c.b16 %v2217, %v2216
      %v2346 = vpack.c.b16 %v2219, %v2218
      %v2347 = vpack.c.b16 %v2221, %v2220
      %v2348 = vpack.c.b16 %v2223, %v2222
      %v2349 = vpack.c.b16 %v2225, %v2224
      %v2350 = vpack.c.b16 %v2227, %v2226
      %v2351 = vpack.c.b16 %v2229, %v2228
      %v2352 = vpack.c.b16 %v2231, %v2230
      %v2353 = vpack.c.b16 %v2233, %v2232
      %v2354 = vpack.c.b16 %v2235, %v2234
      %v2355 = vpack.c.b16 %v2237, %v2236
      %v2356 = vpack.c.b16 %v2239, %v2238
      %v2357 = vpack.c.b16 %v2241, %v2240
      %v2358 = vpack.c.b16 %v2243, %v2242
      %v2359 = vpack.c.b16 %v2245, %v2244
      %v2360 = vpack.c.b16 %v2247, %v2246
      %v2361 = vpack.c.b16 %v2249, %v2248
      %v2362 = vpack.c.b16 %v2251, %v2250
      %v2363 = vpack.c.b16 %v2253, %v2252
      %v2364 = vpack.c.b16 %v2255, %v2254
      %v2365 = vpack.c.b16 %v2257, %v2256
      %v2366 = vpack.c.b16 %v2259, %v2258
      %v2367 = vpack.c.b16 %v2261, %v2260
      %v2368 = vpack.c.b16 %v2263, %v2262
      %v2369 = vpack.c.b16 %v2265, %v2264
      %v2370 = vpack.c.b16 %v2267, %v2266
      %v2371 = vpack.c.b16 %v2269, %v2268
      %v2372 = vpack.c.b16 %v2271, %v2270
      %v2373 = vpack.c.b16 %v2273, %v2272
      %v2374 = vpack.c.b16 %v2275, %v2274
      %v2375 = vpack.c.b16 %v2277, %v2276
      %v2376 = vpack.c.b16 %v2279, %v2278
      %v2377 = vpack.c.b16 %v2281, %v2280
      %v2378 = vpack.c.b16 %v2283, %v2282
      %v2379 = vpack.c.b16 %v2285, %v2284
      %v2380 = vpack.c.b16 %v2287, %v2286
      %v2381 = vpack.c.b16 %v2289, %v2288
      %v2382 = vpack.c.b16 %v2291, %v2290
      %v2383 = vpack.c.b16 %v2293, %v2292
      %v2384 = vpack.c.b16 %v2295, %v2294
      %v2385 = vpack.c.b16 %v2297, %v2296
      %v2386 = vpack.c.b16 %v2299, %v2298
      %v2387 = vpack.c.b16 %v2301, %v2300
      %v2388 = vpack.c.b16 %v2303, %v2302
      %v2389 = vpack.c.b16 %v2305, %v2304
      %v2390 = vpack.c.b16 %v2307, %v2306
      %v2391 = vpack.c.b16 %v2309, %v2308
      %v2392 = vpack.c.b16 %v2311, %v2310
      %v2393 = vpack.c.b16 %v2313, %v2312
      %v2394 = vpack.c.b16 %v2315, %v2314
      %v2395 = vpack.c.b16 %v2317, %v2316
      %v2396 = vpack.c.b16 %v2319, %v2318
      %v2397 = vpack.c.b16 %v2321, %v2320
      %v2398 = vpack.c.b16 %v2323, %v2322
      %v2399 = vpack.c.b16 %v2325, %v2324
      %v2400 = vpack.c.b16 %v2327, %v2326
      %v2401 = vpack.c.b16 %v2329, %v2328
      %2474 = vmatpush.bf16.msra.mxu0 %v2337
      %2475 = vmatpush.bf16.msra.mxu0 %v2336
      %2476 = vmatpush.bf16.msra.mxu0 %v2335
      %2477 = vmatpush.bf16.msra.mxu0 %v2334
      %2478 = vmatpush.bf16.msra.mxu0 %v2333
      %2479 = vmatpush.bf16.msra.mxu0 %v2332
      %2480 = vmatpush.bf16.msra.mxu0 %v2331
      %2481 = vmatpush.bf16.msra.mxu0 %v2330
      %2482 = vmatmul.bf16.gmra.mxu0 %v1754
      %v2483 = vpop.f32.mrf.mxu0
      %v2484 = vadd.f32 0.0, %v2483
      %v2485 = vpop.f32.mrf.mxu0
      %v2486 = vadd.f32 0.0, %v2485
      %2487 = vmatmul.bf16.gmra.mxu0 %v1763
      %v2488 = vpop.f32.mrf.mxu0
      %v2489 = vadd.f32 0.0, %v2488
      %v2490 = vpop.f32.mrf.mxu0
      %v2491 = vadd.f32 0.0, %v2490
      %2492 = vmatmul.bf16.gmra.mxu0 %v1772
      %v2493 = vpop.f32.mrf.mxu0
      %v2494 = vadd.f32 0.0, %v2493
      %v2495 = vpop.f32.mrf.mxu0
      %v2496 = vadd.f32 0.0, %v2495
      %2497 = vmatmul.bf16.gmra.mxu0 %v1781
      %v2498 = vpop.f32.mrf.mxu0
      %v2499 = vadd.f32 0.0, %v2498
      %v2500 = vpop.f32.mrf.mxu0
      %v2501 = vadd.f32 0.0, %v2500
      %2502 = vmatmul.bf16.gmra.mxu0 %v1790
      %v2503 = vpop.f32.mrf.mxu0
      %v2504 = vadd.f32 0.0, %v2503
      %v2505 = vpop.f32.mrf.mxu0
      %v2506 = vadd.f32 0.0, %v2505
      %2507 = vmatmul.bf16.gmra.mxu0 %v1799
      %v2508 = vpop.f32.mrf.mxu0
      %v2509 = vadd.f32 0.0, %v2508
      %v2510 = vpop.f32.mrf.mxu0
      %v2511 = vadd.f32 0.0, %v2510
      %2512 = vmatmul.bf16.gmra.mxu0 %v1808
      %v2513 = vpop.f32.mrf.mxu0
      %v2514 = vadd.f32 0.0, %v2513
      %v2515 = vpop.f32.mrf.mxu0
      %v2516 = vadd.f32 0.0, %v2515
      %2517 = vmatmul.bf16.gmra.mxu0 %v1817
      %v2518 = vpop.f32.mrf.mxu0
      %v2519 = vadd.f32 0.0, %v2518
      %v2520 = vpop.f32.mrf.mxu0
      %v2521 = vadd.f32 0.0, %v2520
      %2522 = vmatmul.bf16.gmra.mxu0 %v1826
      %v2523 = vpop.f32.mrf.mxu0
      %v2524 = vadd.f32 0.0, %v2523
      %v2525 = vpop.f32.mrf.mxu0
      %v2526 = vadd.f32 0.0, %v2525
      %2527 = vmatmul.bf16.gmra.mxu0 %v1835
      %v2528 = vpop.f32.mrf.mxu0
      %v2529 = vadd.f32 0.0, %v2528
      %v2530 = vpop.f32.mrf.mxu0
      %v2531 = vadd.f32 0.0, %v2530
      %2532 = vmatmul.bf16.gmra.mxu0 %v1844
      %v2533 = vpop.f32.mrf.mxu0
      %v2534 = vadd.f32 0.0, %v2533
      %v2535 = vpop.f32.mrf.mxu0
      %v2536 = vadd.f32 0.0, %v2535
      %2537 = vmatmul.bf16.gmra.mxu0 %v1853
      %v2538 = vpop.f32.mrf.mxu0
      %v2539 = vadd.f32 0.0, %v2538
      %v2540 = vpop.f32.mrf.mxu0
      %v2541 = vadd.f32 0.0, %v2540
      %2542 = vmatmul.bf16.gmra.mxu0 %v1862
      %v2543 = vpop.f32.mrf.mxu0
      %v2544 = vadd.f32 0.0, %v2543
      %v2545 = vpop.f32.mrf.mxu0
      %v2546 = vadd.f32 0.0, %v2545
      %2547 = vmatmul.bf16.gmra.mxu0 %v1871
      %v2548 = vpop.f32.mrf.mxu0
      %v2549 = vadd.f32 0.0, %v2548
      %v2550 = vpop.f32.mrf.mxu0
      %v2551 = vadd.f32 0.0, %v2550
      %2552 = vmatmul.bf16.gmra.mxu0 %v1880
      %v2553 = vpop.f32.mrf.mxu0
      %v2554 = vadd.f32 0.0, %v2553
      %v2555 = vpop.f32.mrf.mxu0
      %v2556 = vadd.f32 0.0, %v2555
      %2557 = vmatmul.bf16.gmra.mxu0 %v1889
      %v2558 = vpop.f32.mrf.mxu0
      %v2559 = vadd.f32 0.0, %v2558
      %v2560 = vpop.f32.mrf.mxu0
      %v2561 = vadd.f32 0.0, %v2560
      %2562 = vdwg.mxu0
      %2563 = vmatpush.bf16.msra.mxu0 %v2345
      %2564 = vmatpush.bf16.msra.mxu0 %v2344
      %2565 = vmatpush.bf16.msra.mxu0 %v2343
      %2566 = vmatpush.bf16.msra.mxu0 %v2342
      %2567 = vmatpush.bf16.msra.mxu0 %v2341
      %2568 = vmatpush.bf16.msra.mxu0 %v2340
      %2569 = vmatpush.bf16.msra.mxu0 %v2339
      %2570 = vmatpush.bf16.msra.mxu0 %v2338
      %2571 = vmatmul.bf16.gmra.mxu0 %v1755
      %v2572 = vpop.f32.mrf.mxu0
      %v2573 = vadd.f32 %v2484, %v2572
      %v2574 = vpop.f32.mrf.mxu0
      %v2575 = vadd.f32 %v2486, %v2574
      %2576 = vmatmul.bf16.gmra.mxu0 %v1764
      %v2577 = vpop.f32.mrf.mxu0
      %v2578 = vadd.f32 %v2489, %v2577
      %v2579 = vpop.f32.mrf.mxu0
      %v2580 = vadd.f32 %v2491, %v2579
      %2581 = vmatmul.bf16.gmra.mxu0 %v1773
      %v2582 = vpop.f32.mrf.mxu0
      %v2583 = vadd.f32 %v2494, %v2582
      %v2584 = vpop.f32.mrf.mxu0
      %v2585 = vadd.f32 %v2496, %v2584
      %2586 = vmatmul.bf16.gmra.mxu0 %v1782
      %v2587 = vpop.f32.mrf.mxu0
      %v2588 = vadd.f32 %v2499, %v2587
      %v2589 = vpop.f32.mrf.mxu0
      %v2590 = vadd.f32 %v2501, %v2589
      %2591 = vmatmul.bf16.gmra.mxu0 %v1791
      %v2592 = vpop.f32.mrf.mxu0
      %v2593 = vadd.f32 %v2504, %v2592
      %v2594 = vpop.f32.mrf.mxu0
      %v2595 = vadd.f32 %v2506, %v2594
      %2596 = vmatmul.bf16.gmra.mxu0 %v1800
      %v2597 = vpop.f32.mrf.mxu0
      %v2598 = vadd.f32 %v2509, %v2597
      %v2599 = vpop.f32.mrf.mxu0
      %v2600 = vadd.f32 %v2511, %v2599
      %2601 = vmatmul.bf16.gmra.mxu0 %v1809
      %v2602 = vpop.f32.mrf.mxu0
      %v2603 = vadd.f32 %v2514, %v2602
      %v2604 = vpop.f32.mrf.mxu0
      %v2605 = vadd.f32 %v2516, %v2604
      %2606 = vmatmul.bf16.gmra.mxu0 %v1818
      %v2607 = vpop.f32.mrf.mxu0
      %v2608 = vadd.f32 %v2519, %v2607
      %v2609 = vpop.f32.mrf.mxu0
      %v2610 = vadd.f32 %v2521, %v2609
      %2611 = vmatmul.bf16.gmra.mxu0 %v1827
      %v2612 = vpop.f32.mrf.mxu0
      %v2613 = vadd.f32 %v2524, %v2612
      %v2614 = vpop.f32.mrf.mxu0
      %v2615 = vadd.f32 %v2526, %v2614
      %2616 = vmatmul.bf16.gmra.mxu0 %v1836
      %v2617 = vpop.f32.mrf.mxu0
      %v2618 = vadd.f32 %v2529, %v2617
      %v2619 = vpop.f32.mrf.mxu0
      %v2620 = vadd.f32 %v2531, %v2619
      %2621 = vmatmul.bf16.gmra.mxu0 %v1845
      %v2622 = vpop.f32.mrf.mxu0
      %v2623 = vadd.f32 %v2534, %v2622
      %v2624 = vpop.f32.mrf.mxu0
      %v2625 = vadd.f32 %v2536, %v2624
      %2626 = vmatmul.bf16.gmra.mxu0 %v1854
      %v2627 = vpop.f32.mrf.mxu0
      %v2628 = vadd.f32 %v2539, %v2627
      %v2629 = vpop.f32.mrf.mxu0
      %v2630 = vadd.f32 %v2541, %v2629
      %2631 = vmatmul.bf16.gmra.mxu0 %v1863
      %v2632 = vpop.f32.mrf.mxu0
      %v2633 = vadd.f32 %v2544, %v2632
      %v2634 = vpop.f32.mrf.mxu0
      %v2635 = vadd.f32 %v2546, %v2634
      %2636 = vmatmul.bf16.gmra.mxu0 %v1872
      %v2637 = vpop.f32.mrf.mxu0
      %v2638 = vadd.f32 %v2549, %v2637
      %v2639 = vpop.f32.mrf.mxu0
      %v2640 = vadd.f32 %v2551, %v2639
      %2641 = vmatmul.bf16.gmra.mxu0 %v1881
      %v2642 = vpop.f32.mrf.mxu0
      %v2643 = vadd.f32 %v2554, %v2642
      %v2644 = vpop.f32.mrf.mxu0
      %v2645 = vadd.f32 %v2556, %v2644
      %2646 = vmatmul.bf16.gmra.mxu0 %v1890
      %v2647 = vpop.f32.mrf.mxu0
      %v2648 = vadd.f32 %v2559, %v2647
      %v2649 = vpop.f32.mrf.mxu0
      %v2650 = vadd.f32 %v2561, %v2649
      %2651 = vdwg.mxu0
      %2652 = vmatpush.bf16.msra.mxu0 %v2353
      %2653 = vmatpush.bf16.msra.mxu0 %v2352
      %2654 = vmatpush.bf16.msra.mxu0 %v2351
      %2655 = vmatpush.bf16.msra.mxu0 %v2350
      %2656 = vmatpush.bf16.msra.mxu0 %v2349
      %2657 = vmatpush.bf16.msra.mxu0 %v2348
      %2658 = vmatpush.bf16.msra.mxu0 %v2347
      %2659 = vmatpush.bf16.msra.mxu0 %v2346
      %2660 = vmatmul.bf16.gmra.mxu0 %v1756
      %v2661 = vpop.f32.mrf.mxu0
      %v2662 = vadd.f32 %v2573, %v2661
      %v2663 = vpop.f32.mrf.mxu0
      %v2664 = vadd.f32 %v2575, %v2663
      %2665 = vmatmul.bf16.gmra.mxu0 %v1765
      %v2666 = vpop.f32.mrf.mxu0
      %v2667 = vadd.f32 %v2578, %v2666
      %v2668 = vpop.f32.mrf.mxu0
      %v2669 = vadd.f32 %v2580, %v2668
      %2670 = vmatmul.bf16.gmra.mxu0 %v1774
      %v2671 = vpop.f32.mrf.mxu0
      %v2672 = vadd.f32 %v2583, %v2671
      %v2673 = vpop.f32.mrf.mxu0
      %v2674 = vadd.f32 %v2585, %v2673
      %2675 = vmatmul.bf16.gmra.mxu0 %v1783
      %v2676 = vpop.f32.mrf.mxu0
      %v2677 = vadd.f32 %v2588, %v2676
      %v2678 = vpop.f32.mrf.mxu0
      %v2679 = vadd.f32 %v2590, %v2678
      %2680 = vmatmul.bf16.gmra.mxu0 %v1792
      %v2681 = vpop.f32.mrf.mxu0
      %v2682 = vadd.f32 %v2593, %v2681
      %v2683 = vpop.f32.mrf.mxu0
      %v2684 = vadd.f32 %v2595, %v2683
      %2685 = vmatmul.bf16.gmra.mxu0 %v1801
      %v2686 = vpop.f32.mrf.mxu0
      %v2687 = vadd.f32 %v2598, %v2686
      %v2688 = vpop.f32.mrf.mxu0
      %v2689 = vadd.f32 %v2600, %v2688
      %2690 = vmatmul.bf16.gmra.mxu0 %v1810
      %v2691 = vpop.f32.mrf.mxu0
      %v2692 = vadd.f32 %v2603, %v2691
      %v2693 = vpop.f32.mrf.mxu0
      %v2694 = vadd.f32 %v2605, %v2693
      %2695 = vmatmul.bf16.gmra.mxu0 %v1819
      %v2696 = vpop.f32.mrf.mxu0
      %v2697 = vadd.f32 %v2608, %v2696
      %v2698 = vpop.f32.mrf.mxu0
      %v2699 = vadd.f32 %v2610, %v2698
      %2700 = vmatmul.bf16.gmra.mxu0 %v1828
      %v2701 = vpop.f32.mrf.mxu0
      %v2702 = vadd.f32 %v2613, %v2701
      %v2703 = vpop.f32.mrf.mxu0
      %v2704 = vadd.f32 %v2615, %v2703
      %2705 = vmatmul.bf16.gmra.mxu0 %v1837
      %v2706 = vpop.f32.mrf.mxu0
      %v2707 = vadd.f32 %v2618, %v2706
      %v2708 = vpop.f32.mrf.mxu0
      %v2709 = vadd.f32 %v2620, %v2708
      %2710 = vmatmul.bf16.gmra.mxu0 %v1846
      %v2711 = vpop.f32.mrf.mxu0
      %v2712 = vadd.f32 %v2623, %v2711
      %v2713 = vpop.f32.mrf.mxu0
      %v2714 = vadd.f32 %v2625, %v2713
      %2715 = vmatmul.bf16.gmra.mxu0 %v1855
      %v2716 = vpop.f32.mrf.mxu0
      %v2717 = vadd.f32 %v2628, %v2716
      %v2718 = vpop.f32.mrf.mxu0
      %v2719 = vadd.f32 %v2630, %v2718
      %2720 = vmatmul.bf16.gmra.mxu0 %v1864
      %v2721 = vpop.f32.mrf.mxu0
      %v2722 = vadd.f32 %v2633, %v2721
      %v2723 = vpop.f32.mrf.mxu0
      %v2724 = vadd.f32 %v2635, %v2723
      %2725 = vmatmul.bf16.gmra.mxu0 %v1873
      %v2726 = vpop.f32.mrf.mxu0
      %v2727 = vadd.f32 %v2638, %v2726
      %v2728 = vpop.f32.mrf.mxu0
      %v2729 = vadd.f32 %v2640, %v2728
      %2730 = vmatmul.bf16.gmra.mxu0 %v1882
      %v2731 = vpop.f32.mrf.mxu0
      %v2732 = vadd.f32 %v2643, %v2731
      %v2733 = vpop.f32.mrf.mxu0
      %v2734 = vadd.f32 %v2645, %v2733
      %2735 = vmatmul.bf16.gmra.mxu0 %v1891
      %v2736 = vpop.f32.mrf.mxu0
      %v2737 = vadd.f32 %v2648, %v2736
      %v2738 = vpop.f32.mrf.mxu0
      %v2739 = vadd.f32 %v2650, %v2738
      %2740 = vdwg.mxu0
      %2741 = vmatpush.bf16.msra.mxu0 %v2361
      %2742 = vmatpush.bf16.msra.mxu0 %v2360
      %2743 = vmatpush.bf16.msra.mxu0 %v2359
      %2744 = vmatpush.bf16.msra.mxu0 %v2358
      %2745 = vmatpush.bf16.msra.mxu0 %v2357
      %2746 = vmatpush.bf16.msra.mxu0 %v2356
      %2747 = vmatpush.bf16.msra.mxu0 %v2355
      %2748 = vmatpush.bf16.msra.mxu0 %v2354
      %2749 = vmatmul.bf16.gmra.mxu0 %v1757
      %v2750 = vpop.f32.mrf.mxu0
      %v2751 = vadd.f32 %v2662, %v2750
      %v2752 = vpop.f32.mrf.mxu0
      %v2753 = vadd.f32 %v2664, %v2752
      %2754 = vmatmul.bf16.gmra.mxu0 %v1766
      %v2755 = vpop.f32.mrf.mxu0
      %v2756 = vadd.f32 %v2667, %v2755
      %v2757 = vpop.f32.mrf.mxu0
      %v2758 = vadd.f32 %v2669, %v2757
      %2759 = vmatmul.bf16.gmra.mxu0 %v1775
      %v2760 = vpop.f32.mrf.mxu0
      %v2761 = vadd.f32 %v2672, %v2760
      %v2762 = vpop.f32.mrf.mxu0
      %v2763 = vadd.f32 %v2674, %v2762
      %2764 = vmatmul.bf16.gmra.mxu0 %v1784
      %v2765 = vpop.f32.mrf.mxu0
      %v2766 = vadd.f32 %v2677, %v2765
      %v2767 = vpop.f32.mrf.mxu0
      %v2768 = vadd.f32 %v2679, %v2767
      %2769 = vmatmul.bf16.gmra.mxu0 %v1793
      %v2770 = vpop.f32.mrf.mxu0
      %v2771 = vadd.f32 %v2682, %v2770
      %v2772 = vpop.f32.mrf.mxu0
      %v2773 = vadd.f32 %v2684, %v2772
      %2774 = vmatmul.bf16.gmra.mxu0 %v1802
      %v2775 = vpop.f32.mrf.mxu0
      %v2776 = vadd.f32 %v2687, %v2775
      %v2777 = vpop.f32.mrf.mxu0
      %v2778 = vadd.f32 %v2689, %v2777
      %2779 = vmatmul.bf16.gmra.mxu0 %v1811
      %v2780 = vpop.f32.mrf.mxu0
      %v2781 = vadd.f32 %v2692, %v2780
      %v2782 = vpop.f32.mrf.mxu0
      %v2783 = vadd.f32 %v2694, %v2782
      %2784 = vmatmul.bf16.gmra.mxu0 %v1820
      %v2785 = vpop.f32.mrf.mxu0
      %v2786 = vadd.f32 %v2697, %v2785
      %v2787 = vpop.f32.mrf.mxu0
      %v2788 = vadd.f32 %v2699, %v2787
      %2789 = vmatmul.bf16.gmra.mxu0 %v1829
      %v2790 = vpop.f32.mrf.mxu0
      %v2791 = vadd.f32 %v2702, %v2790
      %v2792 = vpop.f32.mrf.mxu0
      %v2793 = vadd.f32 %v2704, %v2792
      %2794 = vmatmul.bf16.gmra.mxu0 %v1838
      %v2795 = vpop.f32.mrf.mxu0
      %v2796 = vadd.f32 %v2707, %v2795
      %v2797 = vpop.f32.mrf.mxu0
      %v2798 = vadd.f32 %v2709, %v2797
      %2799 = vmatmul.bf16.gmra.mxu0 %v1847
      %v2800 = vpop.f32.mrf.mxu0
      %v2801 = vadd.f32 %v2712, %v2800
      %v2802 = vpop.f32.mrf.mxu0
      %v2803 = vadd.f32 %v2714, %v2802
      %2804 = vmatmul.bf16.gmra.mxu0 %v1856
      %v2805 = vpop.f32.mrf.mxu0
      %v2806 = vadd.f32 %v2717, %v2805
      %v2807 = vpop.f32.mrf.mxu0
      %v2808 = vadd.f32 %v2719, %v2807
      %2809 = vmatmul.bf16.gmra.mxu0 %v1865
      %v2810 = vpop.f32.mrf.mxu0
      %v2811 = vadd.f32 %v2722, %v2810
      %v2812 = vpop.f32.mrf.mxu0
      %v2813 = vadd.f32 %v2724, %v2812
      %2814 = vmatmul.bf16.gmra.mxu0 %v1874
      %v2815 = vpop.f32.mrf.mxu0
      %v2816 = vadd.f32 %v2727, %v2815
      %v2817 = vpop.f32.mrf.mxu0
      %v2818 = vadd.f32 %v2729, %v2817
      %2819 = vmatmul.bf16.gmra.mxu0 %v1883
      %v2820 = vpop.f32.mrf.mxu0
      %v2821 = vadd.f32 %v2732, %v2820
      %v2822 = vpop.f32.mrf.mxu0
      %v2823 = vadd.f32 %v2734, %v2822
      %2824 = vmatmul.bf16.gmra.mxu0 %v1892
      %v2825 = vpop.f32.mrf.mxu0
      %v2826 = vadd.f32 %v2737, %v2825
      %v2827 = vpop.f32.mrf.mxu0
      %v2828 = vadd.f32 %v2739, %v2827
      %2829 = vdwg.mxu0
      %2830 = vmatpush.bf16.msra.mxu0 %v2369
      %2831 = vmatpush.bf16.msra.mxu0 %v2368
      %2832 = vmatpush.bf16.msra.mxu0 %v2367
      %2833 = vmatpush.bf16.msra.mxu0 %v2366
      %2834 = vmatpush.bf16.msra.mxu0 %v2365
      %2835 = vmatpush.bf16.msra.mxu0 %v2364
      %2836 = vmatpush.bf16.msra.mxu0 %v2363
      %2837 = vmatpush.bf16.msra.mxu0 %v2362
      %2838 = vmatmul.bf16.gmra.mxu0 %v1758
      %v2839 = vpop.f32.mrf.mxu0
      %v2840 = vadd.f32 %v2751, %v2839
      %v2841 = vpop.f32.mrf.mxu0
      %v2842 = vadd.f32 %v2753, %v2841
      %2843 = vmatmul.bf16.gmra.mxu0 %v1767
      %v2844 = vpop.f32.mrf.mxu0
      %v2845 = vadd.f32 %v2756, %v2844
      %v2846 = vpop.f32.mrf.mxu0
      %v2847 = vadd.f32 %v2758, %v2846
      %2848 = vmatmul.bf16.gmra.mxu0 %v1776
      %v2849 = vpop.f32.mrf.mxu0
      %v2850 = vadd.f32 %v2761, %v2849
      %v2851 = vpop.f32.mrf.mxu0
      %v2852 = vadd.f32 %v2763, %v2851
      %2853 = vmatmul.bf16.gmra.mxu0 %v1785
      %v2854 = vpop.f32.mrf.mxu0
      %v2855 = vadd.f32 %v2766, %v2854
      %v2856 = vpop.f32.mrf.mxu0
      %v2857 = vadd.f32 %v2768, %v2856
      %2858 = vmatmul.bf16.gmra.mxu0 %v1794
      %v2859 = vpop.f32.mrf.mxu0
      %v2860 = vadd.f32 %v2771, %v2859
      %v2861 = vpop.f32.mrf.mxu0
      %v2862 = vadd.f32 %v2773, %v2861
      %2863 = vmatmul.bf16.gmra.mxu0 %v1803
      %v2864 = vpop.f32.mrf.mxu0
      %v2865 = vadd.f32 %v2776, %v2864
      %v2866 = vpop.f32.mrf.mxu0
      %v2867 = vadd.f32 %v2778, %v2866
      %2868 = vmatmul.bf16.gmra.mxu0 %v1812
      %v2869 = vpop.f32.mrf.mxu0
      %v2870 = vadd.f32 %v2781, %v2869
      %v2871 = vpop.f32.mrf.mxu0
      %v2872 = vadd.f32 %v2783, %v2871
      %2873 = vmatmul.bf16.gmra.mxu0 %v1821
      %v2874 = vpop.f32.mrf.mxu0
      %v2875 = vadd.f32 %v2786, %v2874
      %v2876 = vpop.f32.mrf.mxu0
      %v2877 = vadd.f32 %v2788, %v2876
      %2878 = vmatmul.bf16.gmra.mxu0 %v1830
      %v2879 = vpop.f32.mrf.mxu0
      %v2880 = vadd.f32 %v2791, %v2879
      %v2881 = vpop.f32.mrf.mxu0
      %v2882 = vadd.f32 %v2793, %v2881
      %2883 = vmatmul.bf16.gmra.mxu0 %v1839
      %v2884 = vpop.f32.mrf.mxu0
      %v2885 = vadd.f32 %v2796, %v2884
      %v2886 = vpop.f32.mrf.mxu0
      %v2887 = vadd.f32 %v2798, %v2886
      %2888 = vmatmul.bf16.gmra.mxu0 %v1848
      %v2889 = vpop.f32.mrf.mxu0
      %v2890 = vadd.f32 %v2801, %v2889
      %v2891 = vpop.f32.mrf.mxu0
      %v2892 = vadd.f32 %v2803, %v2891
      %2893 = vmatmul.bf16.gmra.mxu0 %v1857
      %v2894 = vpop.f32.mrf.mxu0
      %v2895 = vadd.f32 %v2806, %v2894
      %v2896 = vpop.f32.mrf.mxu0
      %v2897 = vadd.f32 %v2808, %v2896
      %2898 = vmatmul.bf16.gmra.mxu0 %v1866
      %v2899 = vpop.f32.mrf.mxu0
      %v2900 = vadd.f32 %v2811, %v2899
      %v2901 = vpop.f32.mrf.mxu0
      %v2902 = vadd.f32 %v2813, %v2901
      %2903 = vmatmul.bf16.gmra.mxu0 %v1875
      %v2904 = vpop.f32.mrf.mxu0
      %v2905 = vadd.f32 %v2816, %v2904
      %v2906 = vpop.f32.mrf.mxu0
      %v2907 = vadd.f32 %v2818, %v2906
      %2908 = vmatmul.bf16.gmra.mxu0 %v1884
      %v2909 = vpop.f32.mrf.mxu0
      %v2910 = vadd.f32 %v2821, %v2909
      %v2911 = vpop.f32.mrf.mxu0
      %v2912 = vadd.f32 %v2823, %v2911
      %2913 = vmatmul.bf16.gmra.mxu0 %v1893
      %v2914 = vpop.f32.mrf.mxu0
      %v2915 = vadd.f32 %v2826, %v2914
      %v2916 = vpop.f32.mrf.mxu0
      %v2917 = vadd.f32 %v2828, %v2916
      %2918 = vdwg.mxu0
      %2919 = vmatpush.bf16.msra.mxu0 %v2377
      %2920 = vmatpush.bf16.msra.mxu0 %v2376
      %2921 = vmatpush.bf16.msra.mxu0 %v2375
      %2922 = vmatpush.bf16.msra.mxu0 %v2374
      %2923 = vmatpush.bf16.msra.mxu0 %v2373
      %2924 = vmatpush.bf16.msra.mxu0 %v2372
      %2925 = vmatpush.bf16.msra.mxu0 %v2371
      %2926 = vmatpush.bf16.msra.mxu0 %v2370
      %2927 = vmatmul.bf16.gmra.mxu0 %v1759
      %v2928 = vpop.f32.mrf.mxu0
      %v2929 = vadd.f32 %v2840, %v2928
      %v2930 = vpop.f32.mrf.mxu0
      %v2931 = vadd.f32 %v2842, %v2930
      %2932 = vmatmul.bf16.gmra.mxu0 %v1768
      %v2933 = vpop.f32.mrf.mxu0
      %v2934 = vadd.f32 %v2845, %v2933
      %v2935 = vpop.f32.mrf.mxu0
      %v2936 = vadd.f32 %v2847, %v2935
      %2937 = vmatmul.bf16.gmra.mxu0 %v1777
      %v2938 = vpop.f32.mrf.mxu0
      %v2939 = vadd.f32 %v2850, %v2938
      %v2940 = vpop.f32.mrf.mxu0
      %v2941 = vadd.f32 %v2852, %v2940
      %2942 = vmatmul.bf16.gmra.mxu0 %v1786
      %v2943 = vpop.f32.mrf.mxu0
      %v2944 = vadd.f32 %v2855, %v2943
      %v2945 = vpop.f32.mrf.mxu0
      %v2946 = vadd.f32 %v2857, %v2945
      %2947 = vmatmul.bf16.gmra.mxu0 %v1795
      %v2948 = vpop.f32.mrf.mxu0
      %v2949 = vadd.f32 %v2860, %v2948
      %v2950 = vpop.f32.mrf.mxu0
      %v2951 = vadd.f32 %v2862, %v2950
      %2952 = vmatmul.bf16.gmra.mxu0 %v1804
      %v2953 = vpop.f32.mrf.mxu0
      %v2954 = vadd.f32 %v2865, %v2953
      %v2955 = vpop.f32.mrf.mxu0
      %v2956 = vadd.f32 %v2867, %v2955
      %2957 = vmatmul.bf16.gmra.mxu0 %v1813
      %v2958 = vpop.f32.mrf.mxu0
      %v2959 = vadd.f32 %v2870, %v2958
      %v2960 = vpop.f32.mrf.mxu0
      %v2961 = vadd.f32 %v2872, %v2960
      %2962 = vmatmul.bf16.gmra.mxu0 %v1822
      %v2963 = vpop.f32.mrf.mxu0
      %v2964 = vadd.f32 %v2875, %v2963
      %v2965 = vpop.f32.mrf.mxu0
      %v2966 = vadd.f32 %v2877, %v2965
      %2967 = vmatmul.bf16.gmra.mxu0 %v1831
      %v2968 = vpop.f32.mrf.mxu0
      %v2969 = vadd.f32 %v2880, %v2968
      %v2970 = vpop.f32.mrf.mxu0
      %v2971 = vadd.f32 %v2882, %v2970
      %2972 = vmatmul.bf16.gmra.mxu0 %v1840
      %v2973 = vpop.f32.mrf.mxu0
      %v2974 = vadd.f32 %v2885, %v2973
      %v2975 = vpop.f32.mrf.mxu0
      %v2976 = vadd.f32 %v2887, %v2975
      %2977 = vmatmul.bf16.gmra.mxu0 %v1849
      %v2978 = vpop.f32.mrf.mxu0
      %v2979 = vadd.f32 %v2890, %v2978
      %v2980 = vpop.f32.mrf.mxu0
      %v2981 = vadd.f32 %v2892, %v2980
      %2982 = vmatmul.bf16.gmra.mxu0 %v1858
      %v2983 = vpop.f32.mrf.mxu0
      %v2984 = vadd.f32 %v2895, %v2983
      %v2985 = vpop.f32.mrf.mxu0
      %v2986 = vadd.f32 %v2897, %v2985
      %2987 = vmatmul.bf16.gmra.mxu0 %v1867
      %v2988 = vpop.f32.mrf.mxu0
      %v2989 = vadd.f32 %v2900, %v2988
      %v2990 = vpop.f32.mrf.mxu0
      %v2991 = vadd.f32 %v2902, %v2990
      %2992 = vmatmul.bf16.gmra.mxu0 %v1876
      %v2993 = vpop.f32.mrf.mxu0
      %v2994 = vadd.f32 %v2905, %v2993
      %v2995 = vpop.f32.mrf.mxu0
      %v2996 = vadd.f32 %v2907, %v2995
      %2997 = vmatmul.bf16.gmra.mxu0 %v1885
      %v2998 = vpop.f32.mrf.mxu0
      %v2999 = vadd.f32 %v2910, %v2998
      %v3000 = vpop.f32.mrf.mxu0
      %v3001 = vadd.f32 %v2912, %v3000
      %3002 = vmatmul.bf16.gmra.mxu0 %v1894
      %v3003 = vpop.f32.mrf.mxu0
      %v3004 = vadd.f32 %v2915, %v3003
      %v3005 = vpop.f32.mrf.mxu0
      %v3006 = vadd.f32 %v2917, %v3005
      %3007 = vdwg.mxu0
      %3008 = vmatpush.bf16.msra.mxu0 %v2385
      %3009 = vmatpush.bf16.msra.mxu0 %v2384
      %3010 = vmatpush.bf16.msra.mxu0 %v2383
      %3011 = vmatpush.bf16.msra.mxu0 %v2382
      %3012 = vmatpush.bf16.msra.mxu0 %v2381
      %3013 = vmatpush.bf16.msra.mxu0 %v2380
      %3014 = vmatpush.bf16.msra.mxu0 %v2379
      %3015 = vmatpush.bf16.msra.mxu0 %v2378
      %3016 = vmatmul.bf16.gmra.mxu0 %v1760
      %v3017 = vpop.f32.mrf.mxu0
      %v3018 = vadd.f32 %v2929, %v3017
      %v3019 = vpop.f32.mrf.mxu0
      %v3020 = vadd.f32 %v2931, %v3019
      %3021 = vmatmul.bf16.gmra.mxu0 %v1769
      %v3022 = vpop.f32.mrf.mxu0
      %v3023 = vadd.f32 %v2934, %v3022
      %v3024 = vpop.f32.mrf.mxu0
      %v3025 = vadd.f32 %v2936, %v3024
      %3026 = vmatmul.bf16.gmra.mxu0 %v1778
      %v3027 = vpop.f32.mrf.mxu0
      %v3028 = vadd.f32 %v2939, %v3027
      %v3029 = vpop.f32.mrf.mxu0
      %v3030 = vadd.f32 %v2941, %v3029
      %3031 = vmatmul.bf16.gmra.mxu0 %v1787
      %v3032 = vpop.f32.mrf.mxu0
      %v3033 = vadd.f32 %v2944, %v3032
      %v3034 = vpop.f32.mrf.mxu0
      %v3035 = vadd.f32 %v2946, %v3034
      %3036 = vmatmul.bf16.gmra.mxu0 %v1796
      %v3037 = vpop.f32.mrf.mxu0
      %v3038 = vadd.f32 %v2949, %v3037
      %v3039 = vpop.f32.mrf.mxu0
      %v3040 = vadd.f32 %v2951, %v3039
      %3041 = vmatmul.bf16.gmra.mxu0 %v1805
      %v3042 = vpop.f32.mrf.mxu0
      %v3043 = vadd.f32 %v2954, %v3042
      %v3044 = vpop.f32.mrf.mxu0
      %v3045 = vadd.f32 %v2956, %v3044
      %3046 = vmatmul.bf16.gmra.mxu0 %v1814
      %v3047 = vpop.f32.mrf.mxu0
      %v3048 = vadd.f32 %v2959, %v3047
      %v3049 = vpop.f32.mrf.mxu0
      %v3050 = vadd.f32 %v2961, %v3049
      %3051 = vmatmul.bf16.gmra.mxu0 %v1823
      %v3052 = vpop.f32.mrf.mxu0
      %v3053 = vadd.f32 %v2964, %v3052
      %v3054 = vpop.f32.mrf.mxu0
      %v3055 = vadd.f32 %v2966, %v3054
      %3056 = vmatmul.bf16.gmra.mxu0 %v1832
      %v3057 = vpop.f32.mrf.mxu0
      %v3058 = vadd.f32 %v2969, %v3057
      %v3059 = vpop.f32.mrf.mxu0
      %v3060 = vadd.f32 %v2971, %v3059
      %3061 = vmatmul.bf16.gmra.mxu0 %v1841
      %v3062 = vpop.f32.mrf.mxu0
      %v3063 = vadd.f32 %v2974, %v3062
      %v3064 = vpop.f32.mrf.mxu0
      %v3065 = vadd.f32 %v2976, %v3064
      %3066 = vmatmul.bf16.gmra.mxu0 %v1850
      %v3067 = vpop.f32.mrf.mxu0
      %v3068 = vadd.f32 %v2979, %v3067
      %v3069 = vpop.f32.mrf.mxu0
      %v3070 = vadd.f32 %v2981, %v3069
      %3071 = vmatmul.bf16.gmra.mxu0 %v1859
      %v3072 = vpop.f32.mrf.mxu0
      %v3073 = vadd.f32 %v2984, %v3072
      %v3074 = vpop.f32.mrf.mxu0
      %v3075 = vadd.f32 %v2986, %v3074
      %3076 = vmatmul.bf16.gmra.mxu0 %v1868
      %v3077 = vpop.f32.mrf.mxu0
      %v3078 = vadd.f32 %v2989, %v3077
      %v3079 = vpop.f32.mrf.mxu0
      %v3080 = vadd.f32 %v2991, %v3079
      %3081 = vmatmul.bf16.gmra.mxu0 %v1877
      %v3082 = vpop.f32.mrf.mxu0
      %v3083 = vadd.f32 %v2994, %v3082
      %v3084 = vpop.f32.mrf.mxu0
      %v3085 = vadd.f32 %v2996, %v3084
      %3086 = vmatmul.bf16.gmra.mxu0 %v1886
      %v3087 = vpop.f32.mrf.mxu0
      %v3088 = vadd.f32 %v2999, %v3087
      %v3089 = vpop.f32.mrf.mxu0
      %v3090 = vadd.f32 %v3001, %v3089
      %3091 = vmatmul.bf16.gmra.mxu0 %v1895
      %v3092 = vpop.f32.mrf.mxu0
      %v3093 = vadd.f32 %v3004, %v3092
      %v3094 = vpop.f32.mrf.mxu0
      %v3095 = vadd.f32 %v3006, %v3094
      %3096 = vdwg.mxu0
      %3097 = vmatpush.bf16.msra.mxu0 %v2393
      %3098 = vmatpush.bf16.msra.mxu0 %v2392
      %3099 = vmatpush.bf16.msra.mxu0 %v2391
      %3100 = vmatpush.bf16.msra.mxu0 %v2390
      %3101 = vmatpush.bf16.msra.mxu0 %v2389
      %3102 = vmatpush.bf16.msra.mxu0 %v2388
      %3103 = vmatpush.bf16.msra.mxu0 %v2387
      %3104 = vmatpush.bf16.msra.mxu0 %v2386
      %3105 = vmatmul.bf16.gmra.mxu0 %v1761
      %v3106 = vpop.f32.mrf.mxu0
      %v3107 = vadd.f32 %v3018, %v3106
      %v3108 = vpop.f32.mrf.mxu0
      %v3109 = vadd.f32 %v3020, %v3108
      %3110 = vmatmul.bf16.gmra.mxu0 %v1770
      %v3111 = vpop.f32.mrf.mxu0
      %v3112 = vadd.f32 %v3023, %v3111
      %v3113 = vpop.f32.mrf.mxu0
      %v3114 = vadd.f32 %v3025, %v3113
      %3115 = vmatmul.bf16.gmra.mxu0 %v1779
      %v3116 = vpop.f32.mrf.mxu0
      %v3117 = vadd.f32 %v3028, %v3116
      %v3118 = vpop.f32.mrf.mxu0
      %v3119 = vadd.f32 %v3030, %v3118
      %3120 = vmatmul.bf16.gmra.mxu0 %v1788
      %v3121 = vpop.f32.mrf.mxu0
      %v3122 = vadd.f32 %v3033, %v3121
      %v3123 = vpop.f32.mrf.mxu0
      %v3124 = vadd.f32 %v3035, %v3123
      %3125 = vmatmul.bf16.gmra.mxu0 %v1797
      %v3126 = vpop.f32.mrf.mxu0
      %v3127 = vadd.f32 %v3038, %v3126
      %v3128 = vpop.f32.mrf.mxu0
      %v3129 = vadd.f32 %v3040, %v3128
      %3130 = vmatmul.bf16.gmra.mxu0 %v1806
      %v3131 = vpop.f32.mrf.mxu0
      %v3132 = vadd.f32 %v3043, %v3131
      %v3133 = vpop.f32.mrf.mxu0
      %v3134 = vadd.f32 %v3045, %v3133
      %3135 = vmatmul.bf16.gmra.mxu0 %v1815
      %v3136 = vpop.f32.mrf.mxu0
      %v3137 = vadd.f32 %v3048, %v3136
      %v3138 = vpop.f32.mrf.mxu0
      %v3139 = vadd.f32 %v3050, %v3138
      %3140 = vmatmul.bf16.gmra.mxu0 %v1824
      %v3141 = vpop.f32.mrf.mxu0
      %v3142 = vadd.f32 %v3053, %v3141
      %v3143 = vpop.f32.mrf.mxu0
      %v3144 = vadd.f32 %v3055, %v3143
      %3145 = vmatmul.bf16.gmra.mxu0 %v1833
      %v3146 = vpop.f32.mrf.mxu0
      %v3147 = vadd.f32 %v3058, %v3146
      %v3148 = vpop.f32.mrf.mxu0
      %v3149 = vadd.f32 %v3060, %v3148
      %3150 = vmatmul.bf16.gmra.mxu0 %v1842
      %v3151 = vpop.f32.mrf.mxu0
      %v3152 = vadd.f32 %v3063, %v3151
      %v3153 = vpop.f32.mrf.mxu0
      %v3154 = vadd.f32 %v3065, %v3153
      %3155 = vmatmul.bf16.gmra.mxu0 %v1851
      %v3156 = vpop.f32.mrf.mxu0
      %v3157 = vadd.f32 %v3068, %v3156
      %v3158 = vpop.f32.mrf.mxu0
      %v3159 = vadd.f32 %v3070, %v3158
      %3160 = vmatmul.bf16.gmra.mxu0 %v1860
      %v3161 = vpop.f32.mrf.mxu0
      %v3162 = vadd.f32 %v3073, %v3161
      %v3163 = vpop.f32.mrf.mxu0
      %v3164 = vadd.f32 %v3075, %v3163
      %3165 = vmatmul.bf16.gmra.mxu0 %v1869
      %v3166 = vpop.f32.mrf.mxu0
      %v3167 = vadd.f32 %v3078, %v3166
      %v3168 = vpop.f32.mrf.mxu0
      %v3169 = vadd.f32 %v3080, %v3168
      %3170 = vmatmul.bf16.gmra.mxu0 %v1878
      %v3171 = vpop.f32.mrf.mxu0
      %v3172 = vadd.f32 %v3083, %v3171
      %v3173 = vpop.f32.mrf.mxu0
      %v3174 = vadd.f32 %v3085, %v3173
      %3175 = vmatmul.bf16.gmra.mxu0 %v1887
      %v3176 = vpop.f32.mrf.mxu0
      %v3177 = vadd.f32 %v3088, %v3176
      %v3178 = vpop.f32.mrf.mxu0
      %v3179 = vadd.f32 %v3090, %v3178
      %3180 = vmatmul.bf16.gmra.mxu0 %v1896
      %v3181 = vpop.f32.mrf.mxu0
      %v3182 = vadd.f32 %v3093, %v3181
      %v3183 = vpop.f32.mrf.mxu0
      %v3184 = vadd.f32 %v3095, %v3183
      %3185 = vdwg.mxu0
      %3186 = vmatpush.bf16.msra.mxu0 %v2401
      %3187 = vmatpush.bf16.msra.mxu0 %v2400
      %3188 = vmatpush.bf16.msra.mxu0 %v2399
      %3189 = vmatpush.bf16.msra.mxu0 %v2398
      %3190 = vmatpush.bf16.msra.mxu0 %v2397
      %3191 = vmatpush.bf16.msra.mxu0 %v2396
      %3192 = vmatpush.bf16.msra.mxu0 %v2395
      %3193 = vmatpush.bf16.msra.mxu0 %v2394
      %3194 = vmatmul.bf16.gmra.mxu0 %v1762
      %v3195 = vpop.f32.mrf.mxu0
      %v3196 = vadd.f32 %v3107, %v3195
      %v3197 = vpop.f32.mrf.mxu0
      %v3198 = vadd.f32 %v3109, %v3197
      %3199 = vmatmul.bf16.gmra.mxu0 %v1771
      %v3200 = vpop.f32.mrf.mxu0
      %v3201 = vadd.f32 %v3112, %v3200
      %v3202 = vpop.f32.mrf.mxu0
      %v3203 = vadd.f32 %v3114, %v3202
      %3204 = vmatmul.bf16.gmra.mxu0 %v1780
      %v3205 = vpop.f32.mrf.mxu0
      %v3206 = vadd.f32 %v3117, %v3205
      %v3207 = vpop.f32.mrf.mxu0
      %v3208 = vadd.f32 %v3119, %v3207
      %3209 = vmatmul.bf16.gmra.mxu0 %v1789
      %v3210 = vpop.f32.mrf.mxu0
      %v3211 = vadd.f32 %v3122, %v3210
      %v3212 = vpop.f32.mrf.mxu0
      %v3213 = vadd.f32 %v3124, %v3212
      %3214 = vmatmul.bf16.gmra.mxu0 %v1798
      %v3215 = vpop.f32.mrf.mxu0
      %v3216 = vadd.f32 %v3127, %v3215
      %v3217 = vpop.f32.mrf.mxu0
      %v3218 = vadd.f32 %v3129, %v3217
      %3219 = vmatmul.bf16.gmra.mxu0 %v1807
      %v3220 = vpop.f32.mrf.mxu0
      %v3221 = vadd.f32 %v3132, %v3220
      %v3222 = vpop.f32.mrf.mxu0
      %v3223 = vadd.f32 %v3134, %v3222
      %3224 = vmatmul.bf16.gmra.mxu0 %v1816
      %v3225 = vpop.f32.mrf.mxu0
      %v3226 = vadd.f32 %v3137, %v3225
      %v3227 = vpop.f32.mrf.mxu0
      %v3228 = vadd.f32 %v3139, %v3227
      %3229 = vmatmul.bf16.gmra.mxu0 %v1825
      %v3230 = vpop.f32.mrf.mxu0
      %v3231 = vadd.f32 %v3142, %v3230
      %v3232 = vpop.f32.mrf.mxu0
      %v3233 = vadd.f32 %v3144, %v3232
      %3234 = vmatmul.bf16.gmra.mxu0 %v1834
      %v3235 = vpop.f32.mrf.mxu0
      %v3236 = vadd.f32 %v3147, %v3235
      %v3237 = vpop.f32.mrf.mxu0
      %v3238 = vadd.f32 %v3149, %v3237
      %3239 = vmatmul.bf16.gmra.mxu0 %v1843
      %v3240 = vpop.f32.mrf.mxu0
      %v3241 = vadd.f32 %v3152, %v3240
      %v3242 = vpop.f32.mrf.mxu0
      %v3243 = vadd.f32 %v3154, %v3242
      %3244 = vmatmul.bf16.gmra.mxu0 %v1852
      %v3245 = vpop.f32.mrf.mxu0
      %v3246 = vadd.f32 %v3157, %v3245
      %v3247 = vpop.f32.mrf.mxu0
      %v3248 = vadd.f32 %v3159, %v3247
      %3249 = vmatmul.bf16.gmra.mxu0 %v1861
      %v3250 = vpop.f32.mrf.mxu0
      %v3251 = vadd.f32 %v3162, %v3250
      %v3252 = vpop.f32.mrf.mxu0
      %v3253 = vadd.f32 %v3164, %v3252
      %3254 = vmatmul.bf16.gmra.mxu0 %v1870
      %v3255 = vpop.f32.mrf.mxu0
      %v3256 = vadd.f32 %v3167, %v3255
      %v3257 = vpop.f32.mrf.mxu0
      %v3258 = vadd.f32 %v3169, %v3257
      %3259 = vmatmul.bf16.gmra.mxu0 %v1879
      %v3260 = vpop.f32.mrf.mxu0
      %v3261 = vadd.f32 %v3172, %v3260
      %v3262 = vpop.f32.mrf.mxu0
      %v3263 = vadd.f32 %v3174, %v3262
      %3264 = vmatmul.bf16.gmra.mxu0 %v1888
      %v3265 = vpop.f32.mrf.mxu0
      %v3266 = vadd.f32 %v3177, %v3265
      %v3267 = vpop.f32.mrf.mxu0
      %v3268 = vadd.f32 %v3179, %v3267
      %3269 = vmatmul.bf16.gmra.mxu0 %v1897
      %v3270 = vpop.f32.mrf.mxu0
      %v3271 = vadd.f32 %v3182, %v3270
      %v3272 = vpop.f32.mrf.mxu0
      %v3273 = vadd.f32 %v3184, %v3272
      %3274 = vdwg.mxu0
      %v3275 = vld [vmem:[%s2] sm:$0x1]
      %v3277 = vperm.slane %v3275, 0
      %v3279 = vmul.f32 %v3196, %v3277
      %v3280 = vmul.f32 %v3198, %v3277
      %v3281 = vmul.f32 %v3201, %v3277
      %v3282 = vmul.f32 %v3203, %v3277
      %v3283 = vmul.f32 %v3206, %v3277
      %v3284 = vmul.f32 %v3208, %v3277
      %v3285 = vmul.f32 %v3211, %v3277
      %v3286 = vmul.f32 %v3213, %v3277
      %v3287 = vmul.f32 %v3216, %v3277
      %v3288 = vmul.f32 %v3218, %v3277
      %v3289 = vmul.f32 %v3221, %v3277
      %v3290 = vmul.f32 %v3223, %v3277
      %v3291 = vmul.f32 %v3226, %v3277
      %v3292 = vmul.f32 %v3228, %v3277
      %v3293 = vmul.f32 %v3231, %v3277
      %v3294 = vmul.f32 %v3233, %v3277
      %v3295 = vmul.f32 %v3236, %v3277
      %v3296 = vmul.f32 %v3238, %v3277
      %v3297 = vmul.f32 %v3241, %v3277
      %v3298 = vmul.f32 %v3243, %v3277
      %v3299 = vmul.f32 %v3246, %v3277
      %v3300 = vmul.f32 %v3248, %v3277
      %v3301 = vmul.f32 %v3251, %v3277
      %v3302 = vmul.f32 %v3253, %v3277
      %v3303 = vmul.f32 %v3256, %v3277
      %v3304 = vmul.f32 %v3258, %v3277
      %v3305 = vmul.f32 %v3261, %v3277
      %v3306 = vmul.f32 %v3263, %v3277
      %v3307 = vmul.f32 %v3266, %v3277
      %v3308 = vmul.f32 %v3268, %v3277
      %v3309 = vmul.f32 %v3271, %v3277
      %v3310 = vmul.f32 %v3273, %v3277
      %v3311 = vld [vmem:[%s3] sm:$0x1]
      %v3313 = vperm.slane %v3311, 0
      %v3315 = vadd.f32 %v3279, %v3313
      %v3316 = vadd.f32 %v3280, %v3313
      %v3317 = vadd.f32 %v3281, %v3313
      %v3318 = vadd.f32 %v3282, %v3313
      %v3319 = vadd.f32 %v3283, %v3313
      %v3320 = vadd.f32 %v3284, %v3313
      %v3321 = vadd.f32 %v3285, %v3313
      %v3322 = vadd.f32 %v3286, %v3313
      %v3323 = vadd.f32 %v3287, %v3313
      %v3324 = vadd.f32 %v3288, %v3313
      %v3325 = vadd.f32 %v3289, %v3313
      %v3326 = vadd.f32 %v3290, %v3313
      %v3327 = vadd.f32 %v3291, %v3313
      %v3328 = vadd.f32 %v3292, %v3313
      %v3329 = vadd.f32 %v3293, %v3313
      %v3330 = vadd.f32 %v3294, %v3313
      %v3331 = vadd.f32 %v3295, %v3313
      %v3332 = vadd.f32 %v3296, %v3313
      %v3333 = vadd.f32 %v3297, %v3313
      %v3334 = vadd.f32 %v3298, %v3313
      %v3335 = vadd.f32 %v3299, %v3313
      %v3336 = vadd.f32 %v3300, %v3313
      %v3337 = vadd.f32 %v3301, %v3313
      %v3338 = vadd.f32 %v3302, %v3313
      %v3339 = vadd.f32 %v3303, %v3313
      %v3340 = vadd.f32 %v3304, %v3313
      %v3341 = vadd.f32 %v3305, %v3313
      %v3342 = vadd.f32 %v3306, %v3313
      %v3343 = vadd.f32 %v3307, %v3313
      %v3344 = vadd.f32 %v3308, %v3313
      %v3345 = vadd.f32 %v3309, %v3313
      %v3346 = vadd.f32 %v3310, %v3313
      %v3347 = vmax.f32 %v3315, 0.0
      %v3348 = vmax.f32 %v3316, 0.0
      %v3349 = vmax.f32 %v3317, 0.0
      %v3350 = vmax.f32 %v3318, 0.0
      %v3351 = vmax.f32 %v3319, 0.0
      %v3352 = vmax.f32 %v3320, 0.0
      %v3353 = vmax.f32 %v3321, 0.0
      %v3354 = vmax.f32 %v3322, 0.0
      %v3355 = vmax.f32 %v3323, 0.0
      %v3356 = vmax.f32 %v3324, 0.0
      %v3357 = vmax.f32 %v3325, 0.0
      %v3358 = vmax.f32 %v3326, 0.0
      %v3359 = vmax.f32 %v3327, 0.0
      %v3360 = vmax.f32 %v3328, 0.0
      %v3361 = vmax.f32 %v3329, 0.0
      %v3362 = vmax.f32 %v3330, 0.0
      %v3363 = vmax.f32 %v3331, 0.0
      %v3364 = vmax.f32 %v3332, 0.0
      %v3365 = vmax.f32 %v3333, 0.0
      %v3366 = vmax.f32 %v3334, 0.0
      %v3367 = vmax.f32 %v3335, 0.0
      %v3368 = vmax.f32 %v3336, 0.0
      %v3369 = vmax.f32 %v3337, 0.0
      %v3370 = vmax.f32 %v3338, 0.0
      %v3371 = vmax.f32 %v3339, 0.0
      %v3372 = vmax.f32 %v3340, 0.0
      %v3373 = vmax.f32 %v3341, 0.0
      %v3374 = vmax.f32 %v3342, 0.0
      %v3375 = vmax.f32 %v3343, 0.0
      %v3376 = vmax.f32 %v3344, 0.0
      %v3377 = vmax.f32 %v3345, 0.0
      %v3378 = vmax.f32 %v3346, 0.0
      %s3379 = scalar_lea.vmem [#allocation3], 32
      %3380 = vst.msk [vmem:[%s3379 + $0x8] sm:$0xff] %vm353, %v3347
      %3381 = vst.msk [vmem:[%s3379 + $0x10] sm:$0xff] %vm353, %v3348
      %3382 = vst.msk [vmem:[%s3379 + $0x28] sm:$0xff] %vm353, %v3349
      %3383 = vst.msk [vmem:[%s3379 + $0x30] sm:$0xff] %vm353, %v3350
      %3384 = vst.msk [vmem:[%s3379 + $0x48] sm:$0xff] %vm353, %v3351
      %3385 = vst.msk [vmem:[%s3379 + $0x50] sm:$0xff] %vm353, %v3352
      %3386 = vst.msk [vmem:[%s3379 + $0x68] sm:$0xff] %vm353, %v3353
      %3387 = vst.msk [vmem:[%s3379 + $0x70] sm:$0xff] %vm353, %v3354
      %3388 = vst.msk [vmem:[%s3379 + $0x88] sm:$0xff] %vm353, %v3355
      %3389 = vst.msk [vmem:[%s3379 + $0x90] sm:$0xff] %vm353, %v3356
      %3390 = vst.msk [vmem:[%s3379 + $0xa8] sm:$0xff] %vm353, %v3357
      %3391 = vst.msk [vmem:[%s3379 + $0xb0] sm:$0xff] %vm353, %v3358
      %3392 = vst.msk [vmem:[%s3379 + $0xc8] sm:$0xff] %vm353, %v3359
      %3393 = vst.msk [vmem:[%s3379 + $0xd0] sm:$0xff] %vm353, %v3360
      %3394 = vst.msk [vmem:[%s3379 + $0xe8] sm:$0xff] %vm353, %v3361
      %3395 = vst.msk [vmem:[%s3379 + $0xf0] sm:$0xff] %vm353, %v3362
      %3396 = vst.msk [vmem:[%s3379 + $0x108] sm:$0xff] %vm353, %v3363
      %3397 = vst.msk [vmem:[%s3379 + $0x110] sm:$0xff] %vm353, %v3364
      %3398 = vst.msk [vmem:[%s3379 + $0x128] sm:$0xff] %vm353, %v3365
      %3399 = vst.msk [vmem:[%s3379 + $0x130] sm:$0xff] %vm353, %v3366
      %3400 = vst.msk [vmem:[%s3379 + $0x148] sm:$0xff] %vm353, %v3367
      %3401 = vst.msk [vmem:[%s3379 + $0x150] sm:$0xff] %vm353, %v3368
      %3402 = vst.msk [vmem:[%s3379 + $0x168] sm:$0xff] %vm353, %v3369
      %3403 = vst.msk [vmem:[%s3379 + $0x170] sm:$0xff] %vm353, %v3370
      %3404 = vst.msk [vmem:[%s3379 + $0x188] sm:$0xff] %vm353, %v3371
      %3405 = vst.msk [vmem:[%s3379 + $0x190] sm:$0xff] %vm353, %v3372
      %3406 = vst.msk [vmem:[%s3379 + $0x1a8] sm:$0xff] %vm353, %v3373
      %3407 = vst.msk [vmem:[%s3379 + $0x1b0] sm:$0xff] %vm353, %v3374
      %3408 = vst.msk [vmem:[%s3379 + $0x1c8] sm:$0xff] %vm353, %v3375
      %3409 = vst.msk [vmem:[%s3379 + $0x1d0] sm:$0xff] %vm353, %v3376
      %3410 = vst.msk [vmem:[%s3379 + $0x1e8] sm:$0xff] %vm353, %v3377
      %3411 = vst.msk [vmem:[%s3379 + $0x1f0] sm:$0xff] %vm353, %v3378
      %v3412 = vld [vmem:[#allocation3] sm:$0xff]
      %v3413 = vld [vmem:[#allocation3 + $0x8] sm:$0xff]
      %v3414 = vld [vmem:[#allocation3 + $0x10] sm:$0xff]
      %v3415 = vld [vmem:[#allocation3 + $0x18] sm:$0x1]
      %v3416 = vld [vmem:[#allocation3 + $0x20] sm:$0xff]
      %v3417 = vld [vmem:[#allocation3 + $0x28] sm:$0xff]
      %v3418 = vld [vmem:[#allocation3 + $0x30] sm:$0xff]
      %v3419 = vld [vmem:[#allocation3 + $0x38] sm:$0x1]
      %v3420 = vld [vmem:[#allocation3 + $0x40] sm:$0xff]
      %v3421 = vld [vmem:[#allocation3 + $0x48] sm:$0xff]
      %v3422 = vld [vmem:[#allocation3 + $0x50] sm:$0xff]
      %v3423 = vld [vmem:[#allocation3 + $0x58] sm:$0x1]
      %v3424 = vld [vmem:[#allocation3 + $0x60] sm:$0xff]
      %v3425 = vld [vmem:[#allocation3 + $0x68] sm:$0xff]
      %v3426 = vld [vmem:[#allocation3 + $0x70] sm:$0xff]
      %v3427 = vld [vmem:[#allocation3 + $0x78] sm:$0x1]
      %v3428 = vld [vmem:[#allocation3 + $0x80] sm:$0xff]
      %v3429 = vld [vmem:[#allocation3 + $0x88] sm:$0xff]
      %v3430 = vld [vmem:[#allocation3 + $0x90] sm:$0xff]
      %v3431 = vld [vmem:[#allocation3 + $0x98] sm:$0x1]
      %v3432 = vld [vmem:[#allocation3 + $0xa0] sm:$0xff]
      %v3433 = vld [vmem:[#allocation3 + $0xa8] sm:$0xff]
      %v3434 = vld [vmem:[#allocation3 + $0xb0] sm:$0xff]
      %v3435 = vld [vmem:[#allocation3 + $0xb8] sm:$0x1]
      %v3436 = vld [vmem:[#allocation3 + $0xc0] sm:$0xff]
      %v3437 = vld [vmem:[#allocation3 + $0xc8] sm:$0xff]
      %v3438 = vld [vmem:[#allocation3 + $0xd0] sm:$0xff]
      %v3439 = vld [vmem:[#allocation3 + $0xd8] sm:$0x1]
      %v3440 = vld [vmem:[#allocation3 + $0xe0] sm:$0xff]
      %v3441 = vld [vmem:[#allocation3 + $0xe8] sm:$0xff]
      %v3442 = vld [vmem:[#allocation3 + $0xf0] sm:$0xff]
      %v3443 = vld [vmem:[#allocation3 + $0xf8] sm:$0x1]
      %v3444 = vld [vmem:[#allocation3 + $0x100] sm:$0xff]
      %v3445 = vld [vmem:[#allocation3 + $0x108] sm:$0xff]
      %v3446 = vld [vmem:[#allocation3 + $0x110] sm:$0xff]
      %v3447 = vld [vmem:[#allocation3 + $0x118] sm:$0x1]
      %v3448 = vld [vmem:[#allocation3 + $0x120] sm:$0xff]
      %v3449 = vld [vmem:[#allocation3 + $0x128] sm:$0xff]
      %v3450 = vld [vmem:[#allocation3 + $0x130] sm:$0xff]
      %v3451 = vld [vmem:[#allocation3 + $0x138] sm:$0x1]
      %v3452 = vld [vmem:[#allocation3 + $0x140] sm:$0xff]
      %v3453 = vld [vmem:[#allocation3 + $0x148] sm:$0xff]
      %v3454 = vld [vmem:[#allocation3 + $0x150] sm:$0xff]
      %v3455 = vld [vmem:[#allocation3 + $0x158] sm:$0x1]
      %v3456 = vld [vmem:[#allocation3 + $0x160] sm:$0xff]
      %v3457 = vld [vmem:[#allocation3 + $0x168] sm:$0xff]
      %v3458 = vld [vmem:[#allocation3 + $0x170] sm:$0xff]
      %v3459 = vld [vmem:[#allocation3 + $0x178] sm:$0x1]
      %v3460 = vld [vmem:[#allocation3 + $0x180] sm:$0xff]
      %v3461 = vld [vmem:[#allocation3 + $0x188] sm:$0xff]
      %v3462 = vld [vmem:[#allocation3 + $0x190] sm:$0xff]
      %v3463 = vld [vmem:[#allocation3 + $0x198] sm:$0x1]
      %v3464 = vld [vmem:[#allocation3 + $0x1a0] sm:$0xff]
      %v3465 = vld [vmem:[#allocation3 + $0x1a8] sm:$0xff]
      %v3466 = vld [vmem:[#allocation3 + $0x1b0] sm:$0xff]
      %v3467 = vld [vmem:[#allocation3 + $0x1b8] sm:$0x1]
      %v3468 = vld [vmem:[#allocation3 + $0x1c0] sm:$0xff]
      %v3469 = vld [vmem:[#allocation3 + $0x1c8] sm:$0xff]
      %v3470 = vld [vmem:[#allocation3 + $0x1d0] sm:$0xff]
      %v3471 = vld [vmem:[#allocation3 + $0x1d8] sm:$0x1]
      %v3472 = vld [vmem:[#allocation3 + $0x1e0] sm:$0xff]
      %v3473 = vld [vmem:[#allocation3 + $0x1e8] sm:$0xff]
      %v3474 = vld [vmem:[#allocation3 + $0x1f0] sm:$0xff]
      %v3475 = vld [vmem:[#allocation3 + $0x1f8] sm:$0x1]
      %v3476 = vld [vmem:[#allocation3 + $0x200] sm:$0xff]
      %v3477 = vld [vmem:[#allocation3 + $0x208] sm:$0xff]
      %v3478 = vld [vmem:[#allocation3 + $0x210] sm:$0xff]
      %v3479 = vld [vmem:[#allocation3 + $0x218] sm:$0x1]
      %v3480 = vld [vmem:[#allocation3 + $0x220] sm:$0xff]
      %v3481 = vld [vmem:[#allocation3 + $0x228] sm:$0xff]
      %v3482 = vld [vmem:[#allocation3 + $0x230] sm:$0xff]
      %v3483 = vld [vmem:[#allocation3 + $0x238] sm:$0x1]
      %v3532 = vrot.slane %v3412, 7
      %v3533 = vrot.slane %v3413, 7
      %v3534 = vsel %vm900, %v3532, %v3533
      %v3535 = vrot.slane %v3414, 7
      %v3536 = vsel %vm900, %v3533, %v3535
      %v3537 = vrot.slane %v3416, 7
      %v3538 = vrot.slane %v3417, 7
      %v3539 = vsel %vm900, %v3537, %v3538
      %v3540 = vrot.slane %v3418, 7
      %v3541 = vsel %vm900, %v3538, %v3540
      %v3542 = vrot.slane %v3420, 7
      %v3543 = vrot.slane %v3421, 7
      %v3544 = vsel %vm900, %v3542, %v3543
      %v3545 = vrot.slane %v3422, 7
      %v3546 = vsel %vm900, %v3543, %v3545
      %v3547 = vrot.slane %v3424, 7
      %v3548 = vrot.slane %v3425, 7
      %v3549 = vsel %vm900, %v3547, %v3548
      %v3550 = vrot.slane %v3426, 7
      %v3551 = vsel %vm900, %v3548, %v3550
      %v3552 = vrot.slane %v3428, 7
      %v3553 = vrot.slane %v3429, 7
      %v3554 = vsel %vm900, %v3552, %v3553
      %v3555 = vrot.slane %v3430, 7
      %v3556 = vsel %vm900, %v3553, %v3555
      %v3557 = vrot.slane %v3432, 7
      %v3558 = vrot.slane %v3433, 7
      %v3559 = vsel %vm900, %v3557, %v3558
      %v3560 = vrot.slane %v3434, 7
      %v3561 = vsel %vm900, %v3558, %v3560
      %v3562 = vrot.slane %v3436, 7
      %v3563 = vrot.slane %v3437, 7
      %v3564 = vsel %vm900, %v3562, %v3563
      %v3565 = vrot.slane %v3438, 7
      %v3566 = vsel %vm900, %v3563, %v3565
      %v3567 = vrot.slane %v3440, 7
      %v3568 = vrot.slane %v3441, 7
      %v3569 = vsel %vm900, %v3567, %v3568
      %v3570 = vrot.slane %v3442, 7
      %v3571 = vsel %vm900, %v3568, %v3570
      %v3572 = vrot.slane %v3444, 7
      %v3573 = vrot.slane %v3445, 7
      %v3574 = vsel %vm900, %v3572, %v3573
      %v3575 = vrot.slane %v3446, 7
      %v3576 = vsel %vm900, %v3573, %v3575
      %v3577 = vrot.slane %v3448, 7
      %v3578 = vrot.slane %v3449, 7
      %v3579 = vsel %vm900, %v3577, %v3578
      %v3580 = vrot.slane %v3450, 7
      %v3581 = vsel %vm900, %v3578, %v3580
      %v3582 = vrot.slane %v3452, 7
      %v3583 = vrot.slane %v3453, 7
      %v3584 = vsel %vm900, %v3582, %v3583
      %v3585 = vrot.slane %v3454, 7
      %v3586 = vsel %vm900, %v3583, %v3585
      %v3587 = vrot.slane %v3456, 7
      %v3588 = vrot.slane %v3457, 7
      %v3589 = vsel %vm900, %v3587, %v3588
      %v3590 = vrot.slane %v3458, 7
      %v3591 = vsel %vm900, %v3588, %v3590
      %v3592 = vrot.slane %v3460, 7
      %v3593 = vrot.slane %v3461, 7
      %v3594 = vsel %vm900, %v3592, %v3593
      %v3595 = vrot.slane %v3462, 7
      %v3596 = vsel %vm900, %v3593, %v3595
      %v3597 = vrot.slane %v3464, 7
      %v3598 = vrot.slane %v3465, 7
      %v3599 = vsel %vm900, %v3597, %v3598
      %v3600 = vrot.slane %v3466, 7
      %v3601 = vsel %vm900, %v3598, %v3600
      %v3602 = vrot.slane %v3468, 7
      %v3603 = vrot.slane %v3469, 7
      %v3604 = vsel %vm900, %v3602, %v3603
      %v3605 = vrot.slane %v3470, 7
      %v3606 = vsel %vm900, %v3603, %v3605
      %v3607 = vrot.slane %v3472, 7
      %v3608 = vrot.slane %v3473, 7
      %v3609 = vsel %vm900, %v3607, %v3608
      %v3610 = vrot.slane %v3474, 7
      %v3611 = vsel %vm900, %v3608, %v3610
      %3644 = vst.msk [vmem:[#allocation4] sm:$0xff] %vm353, %v3534
      %3645 = vst.msk [vmem:[#allocation4 + $0x48] sm:$0xff] %vm353, %v3536
      %3646 = vst.msk [vmem:[#allocation4 + $0x90] sm:$0xff] %vm353, %v3539
      %3647 = vst.msk [vmem:[#allocation4 + $0xd8] sm:$0xff] %vm353, %v3541
      %3648 = vst.msk [vmem:[#allocation4 + $0x120] sm:$0xff] %vm353, %v3544
      %3649 = vst.msk [vmem:[#allocation4 + $0x168] sm:$0xff] %vm353, %v3546
      %3650 = vst.msk [vmem:[#allocation4 + $0x1b0] sm:$0xff] %vm353, %v3549
      %3651 = vst.msk [vmem:[#allocation4 + $0x1f8] sm:$0xff] %vm353, %v3551
      %3652 = vst.msk [vmem:[#allocation4 + $0x240] sm:$0xff] %vm353, %v3554
      %3653 = vst.msk [vmem:[#allocation4 + $0x288] sm:$0xff] %vm353, %v3556
      %3654 = vst.msk [vmem:[#allocation4 + $0x2d0] sm:$0xff] %vm353, %v3559
      %3655 = vst.msk [vmem:[#allocation4 + $0x318] sm:$0xff] %vm353, %v3561
      %3656 = vst.msk [vmem:[#allocation4 + $0x360] sm:$0xff] %vm353, %v3564
      %3657 = vst.msk [vmem:[#allocation4 + $0x3a8] sm:$0xff] %vm353, %v3566
      %3658 = vst.msk [vmem:[#allocation4 + $0x3f0] sm:$0xff] %vm353, %v3569
      %3659 = vst.msk [vmem:[#allocation4 + $0x438] sm:$0xff] %vm353, %v3571
      %3660 = vst.msk [vmem:[#allocation4 + $0x480] sm:$0xff] %vm353, %v3574
      %3661 = vst.msk [vmem:[#allocation4 + $0x4c8] sm:$0xff] %vm353, %v3576
      %3662 = vst.msk [vmem:[#allocation4 + $0x510] sm:$0xff] %vm353, %v3579
      %3663 = vst.msk [vmem:[#allocation4 + $0x558] sm:$0xff] %vm353, %v3581
      %3664 = vst.msk [vmem:[#allocation4 + $0x5a0] sm:$0xff] %vm353, %v3584
      %3665 = vst.msk [vmem:[#allocation4 + $0x5e8] sm:$0xff] %vm353, %v3586
      %3666 = vst.msk [vmem:[#allocation4 + $0x630] sm:$0xff] %vm353, %v3589
      %3667 = vst.msk [vmem:[#allocation4 + $0x678] sm:$0xff] %vm353, %v3591
      %3668 = vst.msk [vmem:[#allocation4 + $0x6c0] sm:$0xff] %vm353, %v3594
      %3669 = vst.msk [vmem:[#allocation4 + $0x708] sm:$0xff] %vm353, %v3596
      %3670 = vst.msk [vmem:[#allocation4 + $0x750] sm:$0xff] %vm353, %v3599
      %3671 = vst.msk [vmem:[#allocation4 + $0x798] sm:$0xff] %vm353, %v3601
      %3672 = vst.msk [vmem:[#allocation4 + $0x7e0] sm:$0xff] %vm353, %v3604
      %3673 = vst.msk [vmem:[#allocation4 + $0x828] sm:$0xff] %vm353, %v3606
      %3674 = vst.msk [vmem:[#allocation4 + $0x870] sm:$0xff] %vm353, %v3609
      %3675 = vst.msk [vmem:[#allocation4 + $0x8b8] sm:$0xff] %vm353, %v3611
      %3676 = vst.msk [vmem:[#allocation4 + $0x8] sm:$0xff] %vm353, %v3413
      %3677 = vst.msk [vmem:[#allocation4 + $0x50] sm:$0xff] %vm353, %v3414
      %3678 = vst.msk [vmem:[#allocation4 + $0x98] sm:$0xff] %vm353, %v3417
      %3679 = vst.msk [vmem:[#allocation4 + $0xe0] sm:$0xff] %vm353, %v3418
      %3680 = vst.msk [vmem:[#allocation4 + $0x128] sm:$0xff] %vm353, %v3421
      %3681 = vst.msk [vmem:[#allocation4 + $0x170] sm:$0xff] %vm353, %v3422
      %3682 = vst.msk [vmem:[#allocation4 + $0x1b8] sm:$0xff] %vm353, %v3425
      %3683 = vst.msk [vmem:[#allocation4 + $0x200] sm:$0xff] %vm353, %v3426
      %3684 = vst.msk [vmem:[#allocation4 + $0x248] sm:$0xff] %vm353, %v3429
      %3685 = vst.msk [vmem:[#allocation4 + $0x290] sm:$0xff] %vm353, %v3430
      %3686 = vst.msk [vmem:[#allocation4 + $0x2d8] sm:$0xff] %vm353, %v3433
      %3687 = vst.msk [vmem:[#allocation4 + $0x320] sm:$0xff] %vm353, %v3434
      %3688 = vst.msk [vmem:[#allocation4 + $0x368] sm:$0xff] %vm353, %v3437
      %3689 = vst.msk [vmem:[#allocation4 + $0x3b0] sm:$0xff] %vm353, %v3438
      %3690 = vst.msk [vmem:[#allocation4 + $0x3f8] sm:$0xff] %vm353, %v3441
      %3691 = vst.msk [vmem:[#allocation4 + $0x440] sm:$0xff] %vm353, %v3442
      %3692 = vst.msk [vmem:[#allocation4 + $0x488] sm:$0xff] %vm353, %v3445
      %3693 = vst.msk [vmem:[#allocation4 + $0x4d0] sm:$0xff] %vm353, %v3446
      %3694 = vst.msk [vmem:[#allocation4 + $0x518] sm:$0xff] %vm353, %v3449
      %3695 = vst.msk [vmem:[#allocation4 + $0x560] sm:$0xff] %vm353, %v3450
      %3696 = vst.msk [vmem:[#allocation4 + $0x5a8] sm:$0xff] %vm353, %v3453
      %3697 = vst.msk [vmem:[#allocation4 + $0x5f0] sm:$0xff] %vm353, %v3454
      %3698 = vst.msk [vmem:[#allocation4 + $0x638] sm:$0xff] %vm353, %v3457
      %3699 = vst.msk [vmem:[#allocation4 + $0x680] sm:$0xff] %vm353, %v3458
      %3700 = vst.msk [vmem:[#allocation4 + $0x6c8] sm:$0xff] %vm353, %v3461
      %3701 = vst.msk [vmem:[#allocation4 + $0x710] sm:$0xff] %vm353, %v3462
      %3702 = vst.msk [vmem:[#allocation4 + $0x758] sm:$0xff] %vm353, %v3465
      %3703 = vst.msk [vmem:[#allocation4 + $0x7a0] sm:$0xff] %vm353, %v3466
      %3704 = vst.msk [vmem:[#allocation4 + $0x7e8] sm:$0xff] %vm353, %v3469
      %3705 = vst.msk [vmem:[#allocation4 + $0x830] sm:$0xff] %vm353, %v3470
      %3706 = vst.msk [vmem:[#allocation4 + $0x878] sm:$0xff] %vm353, %v3473
      %3707 = vst.msk [vmem:[#allocation4 + $0x8c0] sm:$0xff] %vm353, %v3474
      %v3724 = vrot.slane %v3413, 1
      %v3725 = vrot.slane %v3414, 1
      %v3726 = vsel %vm1093, %v3724, %v3725
      %v3727 = vrot.slane %v3415, 1
      %v3728 = vsel %vm1093, %v3725, %v3727
      %v3729 = vrot.slane %v3417, 1
      %v3730 = vrot.slane %v3418, 1
      %v3731 = vsel %vm1093, %v3729, %v3730
      %v3732 = vrot.slane %v3419, 1
      %v3733 = vsel %vm1093, %v3730, %v3732
      %v3734 = vrot.slane %v3421, 1
      %v3735 = vrot.slane %v3422, 1
      %v3736 = vsel %vm1093, %v3734, %v3735
      %v3737 = vrot.slane %v3423, 1
      %v3738 = vsel %vm1093, %v3735, %v3737
      %v3739 = vrot.slane %v3425, 1
      %v3740 = vrot.slane %v3426, 1
      %v3741 = vsel %vm1093, %v3739, %v3740
      %v3742 = vrot.slane %v3427, 1
      %v3743 = vsel %vm1093, %v3740, %v3742
      %v3744 = vrot.slane %v3429, 1
      %v3745 = vrot.slane %v3430, 1
      %v3746 = vsel %vm1093, %v3744, %v3745
      %v3747 = vrot.slane %v3431, 1
      %v3748 = vsel %vm1093, %v3745, %v3747
      %v3749 = vrot.slane %v3433, 1
      %v3750 = vrot.slane %v3434, 1
      %v3751 = vsel %vm1093, %v3749, %v3750
      %v3752 = vrot.slane %v3435, 1
      %v3753 = vsel %vm1093, %v3750, %v3752
      %v3754 = vrot.slane %v3437, 1
      %v3755 = vrot.slane %v3438, 1
      %v3756 = vsel %vm1093, %v3754, %v3755
      %v3757 = vrot.slane %v3439, 1
      %v3758 = vsel %vm1093, %v3755, %v3757
      %v3759 = vrot.slane %v3441, 1
      %v3760 = vrot.slane %v3442, 1
      %v3761 = vsel %vm1093, %v3759, %v3760
      %v3762 = vrot.slane %v3443, 1
      %v3763 = vsel %vm1093, %v3760, %v3762
      %v3764 = vrot.slane %v3445, 1
      %v3765 = vrot.slane %v3446, 1
      %v3766 = vsel %vm1093, %v3764, %v3765
      %v3767 = vrot.slane %v3447, 1
      %v3768 = vsel %vm1093, %v3765, %v3767
      %v3769 = vrot.slane %v3449, 1
      %v3770 = vrot.slane %v3450, 1
      %v3771 = vsel %vm1093, %v3769, %v3770
      %v3772 = vrot.slane %v3451, 1
      %v3773 = vsel %vm1093, %v3770, %v3772
      %v3774 = vrot.slane %v3453, 1
      %v3775 = vrot.slane %v3454, 1
      %v3776 = vsel %vm1093, %v3774, %v3775
      %v3777 = vrot.slane %v3455, 1
      %v3778 = vsel %vm1093, %v3775, %v3777
      %v3779 = vrot.slane %v3457, 1
      %v3780 = vrot.slane %v3458, 1
      %v3781 = vsel %vm1093, %v3779, %v3780
      %v3782 = vrot.slane %v3459, 1
      %v3783 = vsel %vm1093, %v3780, %v3782
      %v3784 = vrot.slane %v3461, 1
      %v3785 = vrot.slane %v3462, 1
      %v3786 = vsel %vm1093, %v3784, %v3785
      %v3787 = vrot.slane %v3463, 1
      %v3788 = vsel %vm1093, %v3785, %v3787
      %v3789 = vrot.slane %v3465, 1
      %v3790 = vrot.slane %v3466, 1
      %v3791 = vsel %vm1093, %v3789, %v3790
      %v3792 = vrot.slane %v3467, 1
      %v3793 = vsel %vm1093, %v3790, %v3792
      %v3794 = vrot.slane %v3469, 1
      %v3795 = vrot.slane %v3470, 1
      %v3796 = vsel %vm1093, %v3794, %v3795
      %v3797 = vrot.slane %v3471, 1
      %v3798 = vsel %vm1093, %v3795, %v3797
      %v3799 = vrot.slane %v3473, 1
      %v3800 = vrot.slane %v3474, 1
      %v3801 = vsel %vm1093, %v3799, %v3800
      %v3802 = vrot.slane %v3475, 1
      %v3803 = vsel %vm1093, %v3800, %v3802
      %3836 = vst.msk [vmem:[#allocation4 + $0x10] sm:$0xff] %vm353, %v3726
      %3837 = vst.msk [vmem:[#allocation4 + $0x58] sm:$0xff] %vm353, %v3728
      %3838 = vst.msk [vmem:[#allocation4 + $0xa0] sm:$0xff] %vm353, %v3731
      %3839 = vst.msk [vmem:[#allocation4 + $0xe8] sm:$0xff] %vm353, %v3733
      %3840 = vst.msk [vmem:[#allocation4 + $0x130] sm:$0xff] %vm353, %v3736
      %3841 = vst.msk [vmem:[#allocation4 + $0x178] sm:$0xff] %vm353, %v3738
      %3842 = vst.msk [vmem:[#allocation4 + $0x1c0] sm:$0xff] %vm353, %v3741
      %3843 = vst.msk [vmem:[#allocation4 + $0x208] sm:$0xff] %vm353, %v3743
      %3844 = vst.msk [vmem:[#allocation4 + $0x250] sm:$0xff] %vm353, %v3746
      %3845 = vst.msk [vmem:[#allocation4 + $0x298] sm:$0xff] %vm353, %v3748
      %3846 = vst.msk [vmem:[#allocation4 + $0x2e0] sm:$0xff] %vm353, %v3751
      %3847 = vst.msk [vmem:[#allocation4 + $0x328] sm:$0xff] %vm353, %v3753
      %3848 = vst.msk [vmem:[#allocation4 + $0x370] sm:$0xff] %vm353, %v3756
      %3849 = vst.msk [vmem:[#allocation4 + $0x3b8] sm:$0xff] %vm353, %v3758
      %3850 = vst.msk [vmem:[#allocation4 + $0x400] sm:$0xff] %vm353, %v3761
      %3851 = vst.msk [vmem:[#allocation4 + $0x448] sm:$0xff] %vm353, %v3763
      %3852 = vst.msk [vmem:[#allocation4 + $0x490] sm:$0xff] %vm353, %v3766
      %3853 = vst.msk [vmem:[#allocation4 + $0x4d8] sm:$0xff] %vm353, %v3768
      %3854 = vst.msk [vmem:[#allocation4 + $0x520] sm:$0xff] %vm353, %v3771
      %3855 = vst.msk [vmem:[#allocation4 + $0x568] sm:$0xff] %vm353, %v3773
      %3856 = vst.msk [vmem:[#allocation4 + $0x5b0] sm:$0xff] %vm353, %v3776
      %3857 = vst.msk [vmem:[#allocation4 + $0x5f8] sm:$0xff] %vm353, %v3778
      %3858 = vst.msk [vmem:[#allocation4 + $0x640] sm:$0xff] %vm353, %v3781
      %3859 = vst.msk [vmem:[#allocation4 + $0x688] sm:$0xff] %vm353, %v3783
      %3860 = vst.msk [vmem:[#allocation4 + $0x6d0] sm:$0xff] %vm353, %v3786
      %3861 = vst.msk [vmem:[#allocation4 + $0x718] sm:$0xff] %vm353, %v3788
      %3862 = vst.msk [vmem:[#allocation4 + $0x760] sm:$0xff] %vm353, %v3791
      %3863 = vst.msk [vmem:[#allocation4 + $0x7a8] sm:$0xff] %vm353, %v3793
      %3864 = vst.msk [vmem:[#allocation4 + $0x7f0] sm:$0xff] %vm353, %v3796
      %3865 = vst.msk [vmem:[#allocation4 + $0x838] sm:$0xff] %vm353, %v3798
      %3866 = vst.msk [vmem:[#allocation4 + $0x880] sm:$0xff] %vm353, %v3801
      %3867 = vst.msk [vmem:[#allocation4 + $0x8c8] sm:$0xff] %vm353, %v3803
      %v3871 = vrot.slane %v3476, 7
      %v3872 = vrot.slane %v3477, 7
      %v3873 = vsel %vm900, %v3871, %v3872
      %v3874 = vrot.slane %v3478, 7
      %v3875 = vsel %vm900, %v3872, %v3874
      %3878 = vst.msk [vmem:[#allocation4 + $0x18] sm:$0xff] %vm353, %v3539
      %3879 = vst.msk [vmem:[#allocation4 + $0x60] sm:$0xff] %vm353, %v3541
      %3880 = vst.msk [vmem:[#allocation4 + $0xa8] sm:$0xff] %vm353, %v3544
      %3881 = vst.msk [vmem:[#allocation4 + $0xf0] sm:$0xff] %vm353, %v3546
      %3882 = vst.msk [vmem:[#allocation4 + $0x138] sm:$0xff] %vm353, %v3549
      %3883 = vst.msk [vmem:[#allocation4 + $0x180] sm:$0xff] %vm353, %v3551
      %3884 = vst.msk [vmem:[#allocation4 + $0x1c8] sm:$0xff] %vm353, %v3554
      %3885 = vst.msk [vmem:[#allocation4 + $0x210] sm:$0xff] %vm353, %v3556
      %3886 = vst.msk [vmem:[#allocation4 + $0x258] sm:$0xff] %vm353, %v3559
      %3887 = vst.msk [vmem:[#allocation4 + $0x2a0] sm:$0xff] %vm353, %v3561
      %3888 = vst.msk [vmem:[#allocation4 + $0x2e8] sm:$0xff] %vm353, %v3564
      %3889 = vst.msk [vmem:[#allocation4 + $0x330] sm:$0xff] %vm353, %v3566
      %3890 = vst.msk [vmem:[#allocation4 + $0x378] sm:$0xff] %vm353, %v3569
      %3891 = vst.msk [vmem:[#allocation4 + $0x3c0] sm:$0xff] %vm353, %v3571
      %3892 = vst.msk [vmem:[#allocation4 + $0x408] sm:$0xff] %vm353, %v3574
      %3893 = vst.msk [vmem:[#allocation4 + $0x450] sm:$0xff] %vm353, %v3576
      %3894 = vst.msk [vmem:[#allocation4 + $0x498] sm:$0xff] %vm353, %v3579
      %3895 = vst.msk [vmem:[#allocation4 + $0x4e0] sm:$0xff] %vm353, %v3581
      %3896 = vst.msk [vmem:[#allocation4 + $0x528] sm:$0xff] %vm353, %v3584
      %3897 = vst.msk [vmem:[#allocation4 + $0x570] sm:$0xff] %vm353, %v3586
      %3898 = vst.msk [vmem:[#allocation4 + $0x5b8] sm:$0xff] %vm353, %v3589
      %3899 = vst.msk [vmem:[#allocation4 + $0x600] sm:$0xff] %vm353, %v3591
      %3900 = vst.msk [vmem:[#allocation4 + $0x648] sm:$0xff] %vm353, %v3594
      %3901 = vst.msk [vmem:[#allocation4 + $0x690] sm:$0xff] %vm353, %v3596
      %3902 = vst.msk [vmem:[#allocation4 + $0x6d8] sm:$0xff] %vm353, %v3599
      %3903 = vst.msk [vmem:[#allocation4 + $0x720] sm:$0xff] %vm353, %v3601
      %3904 = vst.msk [vmem:[#allocation4 + $0x768] sm:$0xff] %vm353, %v3604
      %3905 = vst.msk [vmem:[#allocation4 + $0x7b0] sm:$0xff] %vm353, %v3606
      %3906 = vst.msk [vmem:[#allocation4 + $0x7f8] sm:$0xff] %vm353, %v3609
      %3907 = vst.msk [vmem:[#allocation4 + $0x840] sm:$0xff] %vm353, %v3611
      %3908 = vst.msk [vmem:[#allocation4 + $0x888] sm:$0xff] %vm353, %v3873
      %3909 = vst.msk [vmem:[#allocation4 + $0x8d0] sm:$0xff] %vm353, %v3875
      %3910 = vst.msk [vmem:[#allocation4 + $0x20] sm:$0xff] %vm353, %v3417
      %3911 = vst.msk [vmem:[#allocation4 + $0x68] sm:$0xff] %vm353, %v3418
      %3912 = vst.msk [vmem:[#allocation4 + $0xb0] sm:$0xff] %vm353, %v3421
      %3913 = vst.msk [vmem:[#allocation4 + $0xf8] sm:$0xff] %vm353, %v3422
      %3914 = vst.msk [vmem:[#allocation4 + $0x140] sm:$0xff] %vm353, %v3425
      %3915 = vst.msk [vmem:[#allocation4 + $0x188] sm:$0xff] %vm353, %v3426
      %3916 = vst.msk [vmem:[#allocation4 + $0x1d0] sm:$0xff] %vm353, %v3429
      %3917 = vst.msk [vmem:[#allocation4 + $0x218] sm:$0xff] %vm353, %v3430
      %3918 = vst.msk [vmem:[#allocation4 + $0x260] sm:$0xff] %vm353, %v3433
      %3919 = vst.msk [vmem:[#allocation4 + $0x2a8] sm:$0xff] %vm353, %v3434
      %3920 = vst.msk [vmem:[#allocation4 + $0x2f0] sm:$0xff] %vm353, %v3437
      %3921 = vst.msk [vmem:[#allocation4 + $0x338] sm:$0xff] %vm353, %v3438
      %3922 = vst.msk [vmem:[#allocation4 + $0x380] sm:$0xff] %vm353, %v3441
      %3923 = vst.msk [vmem:[#allocation4 + $0x3c8] sm:$0xff] %vm353, %v3442
      %3924 = vst.msk [vmem:[#allocation4 + $0x410] sm:$0xff] %vm353, %v3445
      %3925 = vst.msk [vmem:[#allocation4 + $0x458] sm:$0xff] %vm353, %v3446
      %3926 = vst.msk [vmem:[#allocation4 + $0x4a0] sm:$0xff] %vm353, %v3449
      %3927 = vst.msk [vmem:[#allocation4 + $0x4e8] sm:$0xff] %vm353, %v3450
      %3928 = vst.msk [vmem:[#allocation4 + $0x530] sm:$0xff] %vm353, %v3453
      %3929 = vst.msk [vmem:[#allocation4 + $0x578] sm:$0xff] %vm353, %v3454
      %3930 = vst.msk [vmem:[#allocation4 + $0x5c0] sm:$0xff] %vm353, %v3457
      %3931 = vst.msk [vmem:[#allocation4 + $0x608] sm:$0xff] %vm353, %v3458
      %3932 = vst.msk [vmem:[#allocation4 + $0x650] sm:$0xff] %vm353, %v3461
      %3933 = vst.msk [vmem:[#allocation4 + $0x698] sm:$0xff] %vm353, %v3462
      %3934 = vst.msk [vmem:[#allocation4 + $0x6e0] sm:$0xff] %vm353, %v3465
      %3935 = vst.msk [vmem:[#allocation4 + $0x728] sm:$0xff] %vm353, %v3466
      %3936 = vst.msk [vmem:[#allocation4 + $0x770] sm:$0xff] %vm353, %v3469
      %3937 = vst.msk [vmem:[#allocation4 + $0x7b8] sm:$0xff] %vm353, %v3470
      %3938 = vst.msk [vmem:[#allocation4 + $0x800] sm:$0xff] %vm353, %v3473
      %3939 = vst.msk [vmem:[#allocation4 + $0x848] sm:$0xff] %vm353, %v3474
      %3940 = vst.msk [vmem:[#allocation4 + $0x890] sm:$0xff] %vm353, %v3477
      %3941 = vst.msk [vmem:[#allocation4 + $0x8d8] sm:$0xff] %vm353, %v3478
      %v3943 = vrot.slane %v3477, 1
      %v3944 = vrot.slane %v3478, 1
      %v3945 = vsel %vm1093, %v3943, %v3944
      %v3946 = vrot.slane %v3479, 1
      %v3947 = vsel %vm1093, %v3944, %v3946
      %3950 = vst.msk [vmem:[#allocation4 + $0x28] sm:$0xff] %vm353, %v3731
      %3951 = vst.msk [vmem:[#allocation4 + $0x70] sm:$0xff] %vm353, %v3733
      %3952 = vst.msk [vmem:[#allocation4 + $0xb8] sm:$0xff] %vm353, %v3736
      %3953 = vst.msk [vmem:[#allocation4 + $0x100] sm:$0xff] %vm353, %v3738
      %3954 = vst.msk [vmem:[#allocation4 + $0x148] sm:$0xff] %vm353, %v3741
      %3955 = vst.msk [vmem:[#allocation4 + $0x190] sm:$0xff] %vm353, %v3743
      %3956 = vst.msk [vmem:[#allocation4 + $0x1d8] sm:$0xff] %vm353, %v3746
      %3957 = vst.msk [vmem:[#allocation4 + $0x220] sm:$0xff] %vm353, %v3748
      %3958 = vst.msk [vmem:[#allocation4 + $0x268] sm:$0xff] %vm353, %v3751
      %3959 = vst.msk [vmem:[#allocation4 + $0x2b0] sm:$0xff] %vm353, %v3753
      %3960 = vst.msk [vmem:[#allocation4 + $0x2f8] sm:$0xff] %vm353, %v3756
      %3961 = vst.msk [vmem:[#allocation4 + $0x340] sm:$0xff] %vm353, %v3758
      %3962 = vst.msk [vmem:[#allocation4 + $0x388] sm:$0xff] %vm353, %v3761
      %3963 = vst.msk [vmem:[#allocation4 + $0x3d0] sm:$0xff] %vm353, %v3763
      %3964 = vst.msk [vmem:[#allocation4 + $0x418] sm:$0xff] %vm353, %v3766
      %3965 = vst.msk [vmem:[#allocation4 + $0x460] sm:$0xff] %vm353, %v3768
      %3966 = vst.msk [vmem:[#allocation4 + $0x4a8] sm:$0xff] %vm353, %v3771
      %3967 = vst.msk [vmem:[#allocation4 + $0x4f0] sm:$0xff] %vm353, %v3773
      %3968 = vst.msk [vmem:[#allocation4 + $0x538] sm:$0xff] %vm353, %v3776
      %3969 = vst.msk [vmem:[#allocation4 + $0x580] sm:$0xff] %vm353, %v3778
      %3970 = vst.msk [vmem:[#allocation4 + $0x5c8] sm:$0xff] %vm353, %v3781
      %3971 = vst.msk [vmem:[#allocation4 + $0x610] sm:$0xff] %vm353, %v3783
      %3972 = vst.msk [vmem:[#allocation4 + $0x658] sm:$0xff] %vm353, %v3786
      %3973 = vst.msk [vmem:[#allocation4 + $0x6a0] sm:$0xff] %vm353, %v3788
      %3974 = vst.msk [vmem:[#allocation4 + $0x6e8] sm:$0xff] %vm353, %v3791
      %3975 = vst.msk [vmem:[#allocation4 + $0x730] sm:$0xff] %vm353, %v3793
      %3976 = vst.msk [vmem:[#allocation4 + $0x778] sm:$0xff] %vm353, %v3796
      %3977 = vst.msk [vmem:[#allocation4 + $0x7c0] sm:$0xff] %vm353, %v3798
      %3978 = vst.msk [vmem:[#allocation4 + $0x808] sm:$0xff] %vm353, %v3801
      %3979 = vst.msk [vmem:[#allocation4 + $0x850] sm:$0xff] %vm353, %v3803
      %3980 = vst.msk [vmem:[#allocation4 + $0x898] sm:$0xff] %vm353, %v3945
      %3981 = vst.msk [vmem:[#allocation4 + $0x8e0] sm:$0xff] %vm353, %v3947
      %v3985 = vrot.slane %v3480, 7
      %v3986 = vrot.slane %v3481, 7
      %v3987 = vsel %vm900, %v3985, %v3986
      %v3988 = vrot.slane %v3482, 7
      %v3989 = vsel %vm900, %v3986, %v3988
      %3992 = vst.msk [vmem:[#allocation4 + $0x30] sm:$0xff] %vm353, %v3544
      %3993 = vst.msk [vmem:[#allocation4 + $0x78] sm:$0xff] %vm353, %v3546
      %3994 = vst.msk [vmem:[#allocation4 + $0xc0] sm:$0xff] %vm353, %v3549
      %3995 = vst.msk [vmem:[#allocation4 + $0x108] sm:$0xff] %vm353, %v3551
      %3996 = vst.msk [vmem:[#allocation4 + $0x150] sm:$0xff] %vm353, %v3554
      %3997 = vst.msk [vmem:[#allocation4 + $0x198] sm:$0xff] %vm353, %v3556
      %3998 = vst.msk [vmem:[#allocation4 + $0x1e0] sm:$0xff] %vm353, %v3559
      %3999 = vst.msk [vmem:[#allocation4 + $0x228] sm:$0xff] %vm353, %v3561
      %4000 = vst.msk [vmem:[#allocation4 + $0x270] sm:$0xff] %vm353, %v3564
      %4001 = vst.msk [vmem:[#allocation4 + $0x2b8] sm:$0xff] %vm353, %v3566
      %4002 = vst.msk [vmem:[#allocation4 + $0x300] sm:$0xff] %vm353, %v3569
      %4003 = vst.msk [vmem:[#allocation4 + $0x348] sm:$0xff] %vm353, %v3571
      %4004 = vst.msk [vmem:[#allocation4 + $0x390] sm:$0xff] %vm353, %v3574
      %4005 = vst.msk [vmem:[#allocation4 + $0x3d8] sm:$0xff] %vm353, %v3576
      %4006 = vst.msk [vmem:[#allocation4 + $0x420] sm:$0xff] %vm353, %v3579
      %4007 = vst.msk [vmem:[#allocation4 + $0x468] sm:$0xff] %vm353, %v3581
      %4008 = vst.msk [vmem:[#allocation4 + $0x4b0] sm:$0xff] %vm353, %v3584
      %4009 = vst.msk [vmem:[#allocation4 + $0x4f8] sm:$0xff] %vm353, %v3586
      %4010 = vst.msk [vmem:[#allocation4 + $0x540] sm:$0xff] %vm353, %v3589
      %4011 = vst.msk [vmem:[#allocation4 + $0x588] sm:$0xff] %vm353, %v3591
      %4012 = vst.msk [vmem:[#allocation4 + $0x5d0] sm:$0xff] %vm353, %v3594
      %4013 = vst.msk [vmem:[#allocation4 + $0x618] sm:$0xff] %vm353, %v3596
      %4014 = vst.msk [vmem:[#allocation4 + $0x660] sm:$0xff] %vm353, %v3599
      %4015 = vst.msk [vmem:[#allocation4 + $0x6a8] sm:$0xff] %vm353, %v3601
      %4016 = vst.msk [vmem:[#allocation4 + $0x6f0] sm:$0xff] %vm353, %v3604
      %4017 = vst.msk [vmem:[#allocation4 + $0x738] sm:$0xff] %vm353, %v3606
      %4018 = vst.msk [vmem:[#allocation4 + $0x780] sm:$0xff] %vm353, %v3609
      %4019 = vst.msk [vmem:[#allocation4 + $0x7c8] sm:$0xff] %vm353, %v3611
      %4020 = vst.msk [vmem:[#allocation4 + $0x810] sm:$0xff] %vm353, %v3873
      %4021 = vst.msk [vmem:[#allocation4 + $0x858] sm:$0xff] %vm353, %v3875
      %4022 = vst.msk [vmem:[#allocation4 + $0x8a0] sm:$0xff] %vm353, %v3987
      %4023 = vst.msk [vmem:[#allocation4 + $0x8e8] sm:$0xff] %vm353, %v3989
      %4024 = vst.msk [vmem:[#allocation4 + $0x38] sm:$0xff] %vm353, %v3421
      %4025 = vst.msk [vmem:[#allocation4 + $0x80] sm:$0xff] %vm353, %v3422
      %4026 = vst.msk [vmem:[#allocation4 + $0xc8] sm:$0xff] %vm353, %v3425
      %4027 = vst.msk [vmem:[#allocation4 + $0x110] sm:$0xff] %vm353, %v3426
      %4028 = vst.msk [vmem:[#allocation4 + $0x158] sm:$0xff] %vm353, %v3429
      %4029 = vst.msk [vmem:[#allocation4 + $0x1a0] sm:$0xff] %vm353, %v3430
      %4030 = vst.msk [vmem:[#allocation4 + $0x1e8] sm:$0xff] %vm353, %v3433
      %4031 = vst.msk [vmem:[#allocation4 + $0x230] sm:$0xff] %vm353, %v3434
      %4032 = vst.msk [vmem:[#allocation4 + $0x278] sm:$0xff] %vm353, %v3437
      %4033 = vst.msk [vmem:[#allocation4 + $0x2c0] sm:$0xff] %vm353, %v3438
      %4034 = vst.msk [vmem:[#allocation4 + $0x308] sm:$0xff] %vm353, %v3441
      %4035 = vst.msk [vmem:[#allocation4 + $0x350] sm:$0xff] %vm353, %v3442
      %4036 = vst.msk [vmem:[#allocation4 + $0x398] sm:$0xff] %vm353, %v3445
      %4037 = vst.msk [vmem:[#allocation4 + $0x3e0] sm:$0xff] %vm353, %v3446
      %4038 = vst.msk [vmem:[#allocation4 + $0x428] sm:$0xff] %vm353, %v3449
      %4039 = vst.msk [vmem:[#allocation4 + $0x470] sm:$0xff] %vm353, %v3450
      %4040 = vst.msk [vmem:[#allocation4 + $0x4b8] sm:$0xff] %vm353, %v3453
      %4041 = vst.msk [vmem:[#allocation4 + $0x500] sm:$0xff] %vm353, %v3454
      %4042 = vst.msk [vmem:[#allocation4 + $0x548] sm:$0xff] %vm353, %v3457
      %4043 = vst.msk [vmem:[#allocation4 + $0x590] sm:$0xff] %vm353, %v3458
      %4044 = vst.msk [vmem:[#allocation4 + $0x5d8] sm:$0xff] %vm353, %v3461
      %4045 = vst.msk [vmem:[#allocation4 + $0x620] sm:$0xff] %vm353, %v3462
      %4046 = vst.msk [vmem:[#allocation4 + $0x668] sm:$0xff] %vm353, %v3465
      %4047 = vst.msk [vmem:[#allocation4 + $0x6b0] sm:$0xff] %vm353, %v3466
      %4048 = vst.msk [vmem:[#allocation4 + $0x6f8] sm:$0xff] %vm353, %v3469
      %4049 = vst.msk [vmem:[#allocation4 + $0x740] sm:$0xff] %vm353, %v3470
      %4050 = vst.msk [vmem:[#allocation4 + $0x788] sm:$0xff] %vm353, %v3473
      %4051 = vst.msk [vmem:[#allocation4 + $0x7d0] sm:$0xff] %vm353, %v3474
      %4052 = vst.msk [vmem:[#allocation4 + $0x818] sm:$0xff] %vm353, %v3477
      %4053 = vst.msk [vmem:[#allocation4 + $0x860] sm:$0xff] %vm353, %v3478
      %4054 = vst.msk [vmem:[#allocation4 + $0x8a8] sm:$0xff] %vm353, %v3481
      %4055 = vst.msk [vmem:[#allocation4 + $0x8f0] sm:$0xff] %vm353, %v3482
      %v4057 = vrot.slane %v3481, 1
      %v4058 = vrot.slane %v3482, 1
      %v4059 = vsel %vm1093, %v4057, %v4058
      %v4060 = vrot.slane %v3483, 1
      %v4061 = vsel %vm1093, %v4058, %v4060
      %4064 = vst.msk [vmem:[#allocation4 + $0x40] sm:$0xff] %vm353, %v3736
      %4065 = vst.msk [vmem:[#allocation4 + $0x88] sm:$0xff] %vm353, %v3738
      %4066 = vst.msk [vmem:[#allocation4 + $0xd0] sm:$0xff] %vm353, %v3741
      %4067 = vst.msk [vmem:[#allocation4 + $0x118] sm:$0xff] %vm353, %v3743
      %4068 = vst.msk [vmem:[#allocation4 + $0x160] sm:$0xff] %vm353, %v3746
      %4069 = vst.msk [vmem:[#allocation4 + $0x1a8] sm:$0xff] %vm353, %v3748
      %4070 = vst.msk [vmem:[#allocation4 + $0x1f0] sm:$0xff] %vm353, %v3751
      %4071 = vst.msk [vmem:[#allocation4 + $0x238] sm:$0xff] %vm353, %v3753
      %4072 = vst.msk [vmem:[#allocation4 + $0x280] sm:$0xff] %vm353, %v3756
      %4073 = vst.msk [vmem:[#allocation4 + $0x2c8] sm:$0xff] %vm353, %v3758
      %4074 = vst.msk [vmem:[#allocation4 + $0x310] sm:$0xff] %vm353, %v3761
      %4075 = vst.msk [vmem:[#allocation4 + $0x358] sm:$0xff] %vm353, %v3763
      %4076 = vst.msk [vmem:[#allocation4 + $0x3a0] sm:$0xff] %vm353, %v3766
      %4077 = vst.msk [vmem:[#allocation4 + $0x3e8] sm:$0xff] %vm353, %v3768
      %4078 = vst.msk [vmem:[#allocation4 + $0x430] sm:$0xff] %vm353, %v3771
      %4079 = vst.msk [vmem:[#allocation4 + $0x478] sm:$0xff] %vm353, %v3773
      %4080 = vst.msk [vmem:[#allocation4 + $0x4c0] sm:$0xff] %vm353, %v3776
      %4081 = vst.msk [vmem:[#allocation4 + $0x508] sm:$0xff] %vm353, %v3778
      %4082 = vst.msk [vmem:[#allocation4 + $0x550] sm:$0xff] %vm353, %v3781
      %4083 = vst.msk [vmem:[#allocation4 + $0x598] sm:$0xff] %vm353, %v3783
      %4084 = vst.msk [vmem:[#allocation4 + $0x5e0] sm:$0xff] %vm353, %v3786
      %4085 = vst.msk [vmem:[#allocation4 + $0x628] sm:$0xff] %vm353, %v3788
      %4086 = vst.msk [vmem:[#allocation4 + $0x670] sm:$0xff] %vm353, %v3791
      %4087 = vst.msk [vmem:[#allocation4 + $0x6b8] sm:$0xff] %vm353, %v3793
      %4088 = vst.msk [vmem:[#allocation4 + $0x700] sm:$0xff] %vm353, %v3796
      %4089 = vst.msk [vmem:[#allocation4 + $0x748] sm:$0xff] %vm353, %v3798
      %4090 = vst.msk [vmem:[#allocation4 + $0x790] sm:$0xff] %vm353, %v3801
      %4091 = vst.msk [vmem:[#allocation4 + $0x7d8] sm:$0xff] %vm353, %v3803
      %4092 = vst.msk [vmem:[#allocation4 + $0x820] sm:$0xff] %vm353, %v3945
      %4093 = vst.msk [vmem:[#allocation4 + $0x868] sm:$0xff] %vm353, %v3947
      %4094 = vst.msk [vmem:[#allocation4 + $0x8b0] sm:$0xff] %vm353, %v4059
      %4095 = vst.msk [vmem:[#allocation4 + $0x8f8] sm:$0xff] %vm353, %v4061
      %v4096 = vld [vmem:[#allocation4] sm:$0xff]
      %v4097 = vld [vmem:[#allocation4 + $0x8] sm:$0xff]
      %v4098 = vld [vmem:[#allocation4 + $0x10] sm:$0xff]
      %v4099 = vld [vmem:[#allocation4 + $0x18] sm:$0xff]
      %v4100 = vld [vmem:[#allocation4 + $0x20] sm:$0xff]
      %v4101 = vld [vmem:[#allocation4 + $0x28] sm:$0xff]
      %v4102 = vld [vmem:[#allocation4 + $0x30] sm:$0xff]
      %v4103 = vld [vmem:[#allocation4 + $0x38] sm:$0xff]
      %v4104 = vld [vmem:[#allocation4 + $0x40] sm:$0xff]
      %v4105 = vld [vmem:[#allocation4 + $0x48] sm:$0xff]
      %v4106 = vld [vmem:[#allocation4 + $0x50] sm:$0xff]
      %v4107 = vld [vmem:[#allocation4 + $0x58] sm:$0xff]
      %v4108 = vld [vmem:[#allocation4 + $0x60] sm:$0xff]
      %v4109 = vld [vmem:[#allocation4 + $0x68] sm:$0xff]
      %v4110 = vld [vmem:[#allocation4 + $0x70] sm:$0xff]
      %v4111 = vld [vmem:[#allocation4 + $0x78] sm:$0xff]
      %v4112 = vld [vmem:[#allocation4 + $0x80] sm:$0xff]
      %v4113 = vld [vmem:[#allocation4 + $0x88] sm:$0xff]
      %v4114 = vld [vmem:[#allocation4 + $0x90] sm:$0xff]
      %v4115 = vld [vmem:[#allocation4 + $0x98] sm:$0xff]
      %v4116 = vld [vmem:[#allocation4 + $0xa0] sm:$0xff]
      %v4117 = vld [vmem:[#allocation4 + $0xa8] sm:$0xff]
      %v4118 = vld [vmem:[#allocation4 + $0xb0] sm:$0xff]
      %v4119 = vld [vmem:[#allocation4 + $0xb8] sm:$0xff]
      %v4120 = vld [vmem:[#allocation4 + $0xc0] sm:$0xff]
      %v4121 = vld [vmem:[#allocation4 + $0xc8] sm:$0xff]
      %v4122 = vld [vmem:[#allocation4 + $0xd0] sm:$0xff]
      %v4123 = vld [vmem:[#allocation4 + $0xd8] sm:$0xff]
      %v4124 = vld [vmem:[#allocation4 + $0xe0] sm:$0xff]
      %v4125 = vld [vmem:[#allocation4 + $0xe8] sm:$0xff]
      %v4126 = vld [vmem:[#allocation4 + $0xf0] sm:$0xff]
      %v4127 = vld [vmem:[#allocation4 + $0xf8] sm:$0xff]
      %v4128 = vld [vmem:[#allocation4 + $0x100] sm:$0xff]
      %v4129 = vld [vmem:[#allocation4 + $0x108] sm:$0xff]
      %v4130 = vld [vmem:[#allocation4 + $0x110] sm:$0xff]
      %v4131 = vld [vmem:[#allocation4 + $0x118] sm:$0xff]
      %v4132 = vld [vmem:[#allocation4 + $0x120] sm:$0xff]
      %v4133 = vld [vmem:[#allocation4 + $0x128] sm:$0xff]
      %v4134 = vld [vmem:[#allocation4 + $0x130] sm:$0xff]
      %v4135 = vld [vmem:[#allocation4 + $0x138] sm:$0xff]
      %v4136 = vld [vmem:[#allocation4 + $0x140] sm:$0xff]
      %v4137 = vld [vmem:[#allocation4 + $0x148] sm:$0xff]
      %v4138 = vld [vmem:[#allocation4 + $0x150] sm:$0xff]
      %v4139 = vld [vmem:[#allocation4 + $0x158] sm:$0xff]
      %v4140 = vld [vmem:[#allocation4 + $0x160] sm:$0xff]
      %v4141 = vld [vmem:[#allocation4 + $0x168] sm:$0xff]
      %v4142 = vld [vmem:[#allocation4 + $0x170] sm:$0xff]
      %v4143 = vld [vmem:[#allocation4 + $0x178] sm:$0xff]
      %v4144 = vld [vmem:[#allocation4 + $0x180] sm:$0xff]
      %v4145 = vld [vmem:[#allocation4 + $0x188] sm:$0xff]
      %v4146 = vld [vmem:[#allocation4 + $0x190] sm:$0xff]
      %v4147 = vld [vmem:[#allocation4 + $0x198] sm:$0xff]
      %v4148 = vld [vmem:[#allocation4 + $0x1a0] sm:$0xff]
      %v4149 = vld [vmem:[#allocation4 + $0x1a8] sm:$0xff]
      %v4150 = vld [vmem:[#allocation4 + $0x1b0] sm:$0xff]
      %v4151 = vld [vmem:[#allocation4 + $0x1b8] sm:$0xff]
      %v4152 = vld [vmem:[#allocation4 + $0x1c0] sm:$0xff]
      %v4153 = vld [vmem:[#allocation4 + $0x1c8] sm:$0xff]
      %v4154 = vld [vmem:[#allocation4 + $0x1d0] sm:$0xff]
      %v4155 = vld [vmem:[#allocation4 + $0x1d8] sm:$0xff]
      %v4156 = vld [vmem:[#allocation4 + $0x1e0] sm:$0xff]
      %v4157 = vld [vmem:[#allocation4 + $0x1e8] sm:$0xff]
      %v4158 = vld [vmem:[#allocation4 + $0x1f0] sm:$0xff]
      %v4159 = vld [vmem:[#allocation4 + $0x1f8] sm:$0xff]
      %v4160 = vld [vmem:[#allocation4 + $0x200] sm:$0xff]
      %v4161 = vld [vmem:[#allocation4 + $0x208] sm:$0xff]
      %v4162 = vld [vmem:[#allocation4 + $0x210] sm:$0xff]
      %v4163 = vld [vmem:[#allocation4 + $0x218] sm:$0xff]
      %v4164 = vld [vmem:[#allocation4 + $0x220] sm:$0xff]
      %v4165 = vld [vmem:[#allocation4 + $0x228] sm:$0xff]
      %v4166 = vld [vmem:[#allocation4 + $0x230] sm:$0xff]
      %v4167 = vld [vmem:[#allocation4 + $0x238] sm:$0xff]
      %v4168 = vld [vmem:[#allocation4 + $0x240] sm:$0xff]
      %v4169 = vld [vmem:[#allocation4 + $0x248] sm:$0xff]
      %v4170 = vld [vmem:[#allocation4 + $0x250] sm:$0xff]
      %v4171 = vld [vmem:[#allocation4 + $0x258] sm:$0xff]
      %v4172 = vld [vmem:[#allocation4 + $0x260] sm:$0xff]
      %v4173 = vld [vmem:[#allocation4 + $0x268] sm:$0xff]
      %v4174 = vld [vmem:[#allocation4 + $0x270] sm:$0xff]
      %v4175 = vld [vmem:[#allocation4 + $0x278] sm:$0xff]
      %v4176 = vld [vmem:[#allocation4 + $0x280] sm:$0xff]
      %v4177 = vld [vmem:[#allocation4 + $0x288] sm:$0xff]
      %v4178 = vld [vmem:[#allocation4 + $0x290] sm:$0xff]
      %v4179 = vld [vmem:[#allocation4 + $0x298] sm:$0xff]
      %v4180 = vld [vmem:[#allocation4 + $0x2a0] sm:$0xff]
      %v4181 = vld [vmem:[#allocation4 + $0x2a8] sm:$0xff]
      %v4182 = vld [vmem:[#allocation4 + $0x2b0] sm:$0xff]
      %v4183 = vld [vmem:[#allocation4 + $0x2b8] sm:$0xff]
      %v4184 = vld [vmem:[#allocation4 + $0x2c0] sm:$0xff]
      %v4185 = vld [vmem:[#allocation4 + $0x2c8] sm:$0xff]
      %v4186 = vld [vmem:[#allocation4 + $0x2d0] sm:$0xff]
      %v4187 = vld [vmem:[#allocation4 + $0x2d8] sm:$0xff]
      %v4188 = vld [vmem:[#allocation4 + $0x2e0] sm:$0xff]
      %v4189 = vld [vmem:[#allocation4 + $0x2e8] sm:$0xff]
      %v4190 = vld [vmem:[#allocation4 + $0x2f0] sm:$0xff]
      %v4191 = vld [vmem:[#allocation4 + $0x2f8] sm:$0xff]
      %v4192 = vld [vmem:[#allocation4 + $0x300] sm:$0xff]
      %v4193 = vld [vmem:[#allocation4 + $0x308] sm:$0xff]
      %v4194 = vld [vmem:[#allocation4 + $0x310] sm:$0xff]
      %v4195 = vld [vmem:[#allocation4 + $0x318] sm:$0xff]
      %v4196 = vld [vmem:[#allocation4 + $0x320] sm:$0xff]
      %v4197 = vld [vmem:[#allocation4 + $0x328] sm:$0xff]
      %v4198 = vld [vmem:[#allocation4 + $0x330] sm:$0xff]
      %v4199 = vld [vmem:[#allocation4 + $0x338] sm:$0xff]
      %v4200 = vld [vmem:[#allocation4 + $0x340] sm:$0xff]
      %v4201 = vld [vmem:[#allocation4 + $0x348] sm:$0xff]
      %v4202 = vld [vmem:[#allocation4 + $0x350] sm:$0xff]
      %v4203 = vld [vmem:[#allocation4 + $0x358] sm:$0xff]
      %v4204 = vld [vmem:[#allocation4 + $0x360] sm:$0xff]
      %v4205 = vld [vmem:[#allocation4 + $0x368] sm:$0xff]
      %v4206 = vld [vmem:[#allocation4 + $0x370] sm:$0xff]
      %v4207 = vld [vmem:[#allocation4 + $0x378] sm:$0xff]
      %v4208 = vld [vmem:[#allocation4 + $0x380] sm:$0xff]
      %v4209 = vld [vmem:[#allocation4 + $0x388] sm:$0xff]
      %v4210 = vld [vmem:[#allocation4 + $0x390] sm:$0xff]
      %v4211 = vld [vmem:[#allocation4 + $0x398] sm:$0xff]
      %v4212 = vld [vmem:[#allocation4 + $0x3a0] sm:$0xff]
      %v4213 = vld [vmem:[#allocation4 + $0x3a8] sm:$0xff]
      %v4214 = vld [vmem:[#allocation4 + $0x3b0] sm:$0xff]
      %v4215 = vld [vmem:[#allocation4 + $0x3b8] sm:$0xff]
      %v4216 = vld [vmem:[#allocation4 + $0x3c0] sm:$0xff]
      %v4217 = vld [vmem:[#allocation4 + $0x3c8] sm:$0xff]
      %v4218 = vld [vmem:[#allocation4 + $0x3d0] sm:$0xff]
      %v4219 = vld [vmem:[#allocation4 + $0x3d8] sm:$0xff]
      %v4220 = vld [vmem:[#allocation4 + $0x3e0] sm:$0xff]
      %v4221 = vld [vmem:[#allocation4 + $0x3e8] sm:$0xff]
      %v4222 = vld [vmem:[#allocation4 + $0x3f0] sm:$0xff]
      %v4223 = vld [vmem:[#allocation4 + $0x3f8] sm:$0xff]
      %v4224 = vld [vmem:[#allocation4 + $0x400] sm:$0xff]
      %v4225 = vld [vmem:[#allocation4 + $0x408] sm:$0xff]
      %v4226 = vld [vmem:[#allocation4 + $0x410] sm:$0xff]
      %v4227 = vld [vmem:[#allocation4 + $0x418] sm:$0xff]
      %v4228 = vld [vmem:[#allocation4 + $0x420] sm:$0xff]
      %v4229 = vld [vmem:[#allocation4 + $0x428] sm:$0xff]
      %v4230 = vld [vmem:[#allocation4 + $0x430] sm:$0xff]
      %v4231 = vld [vmem:[#allocation4 + $0x438] sm:$0xff]
      %v4232 = vld [vmem:[#allocation4 + $0x440] sm:$0xff]
      %v4233 = vld [vmem:[#allocation4 + $0x448] sm:$0xff]
      %v4234 = vld [vmem:[#allocation4 + $0x450] sm:$0xff]
      %v4235 = vld [vmem:[#allocation4 + $0x458] sm:$0xff]
      %v4236 = vld [vmem:[#allocation4 + $0x460] sm:$0xff]
      %v4237 = vld [vmem:[#allocation4 + $0x468] sm:$0xff]
      %v4238 = vld [vmem:[#allocation4 + $0x470] sm:$0xff]
      %v4239 = vld [vmem:[#allocation4 + $0x478] sm:$0xff]
      %v4240 = vld [vmem:[#allocation4 + $0x480] sm:$0xff]
      %v4241 = vld [vmem:[#allocation4 + $0x488] sm:$0xff]
      %v4242 = vld [vmem:[#allocation4 + $0x490] sm:$0xff]
      %v4243 = vld [vmem:[#allocation4 + $0x498] sm:$0xff]
      %v4244 = vld [vmem:[#allocation4 + $0x4a0] sm:$0xff]
      %v4245 = vld [vmem:[#allocation4 + $0x4a8] sm:$0xff]
      %v4246 = vld [vmem:[#allocation4 + $0x4b0] sm:$0xff]
      %v4247 = vld [vmem:[#allocation4 + $0x4b8] sm:$0xff]
      %v4248 = vld [vmem:[#allocation4 + $0x4c0] sm:$0xff]
      %v4249 = vld [vmem:[#allocation4 + $0x4c8] sm:$0xff]
      %v4250 = vld [vmem:[#allocation4 + $0x4d0] sm:$0xff]
      %v4251 = vld [vmem:[#allocation4 + $0x4d8] sm:$0xff]
      %v4252 = vld [vmem:[#allocation4 + $0x4e0] sm:$0xff]
      %v4253 = vld [vmem:[#allocation4 + $0x4e8] sm:$0xff]
      %v4254 = vld [vmem:[#allocation4 + $0x4f0] sm:$0xff]
      %v4255 = vld [vmem:[#allocation4 + $0x4f8] sm:$0xff]
      %v4256 = vld [vmem:[#allocation4 + $0x500] sm:$0xff]
      %v4257 = vld [vmem:[#allocation4 + $0x508] sm:$0xff]
      %v4258 = vld [vmem:[#allocation4 + $0x510] sm:$0xff]
      %v4259 = vld [vmem:[#allocation4 + $0x518] sm:$0xff]
      %v4260 = vld [vmem:[#allocation4 + $0x520] sm:$0xff]
      %v4261 = vld [vmem:[#allocation4 + $0x528] sm:$0xff]
      %v4262 = vld [vmem:[#allocation4 + $0x530] sm:$0xff]
      %v4263 = vld [vmem:[#allocation4 + $0x538] sm:$0xff]
      %v4264 = vld [vmem:[#allocation4 + $0x540] sm:$0xff]
      %v4265 = vld [vmem:[#allocation4 + $0x548] sm:$0xff]
      %v4266 = vld [vmem:[#allocation4 + $0x550] sm:$0xff]
      %v4267 = vld [vmem:[#allocation4 + $0x558] sm:$0xff]
      %v4268 = vld [vmem:[#allocation4 + $0x560] sm:$0xff]
      %v4269 = vld [vmem:[#allocation4 + $0x568] sm:$0xff]
      %v4270 = vld [vmem:[#allocation4 + $0x570] sm:$0xff]
      %v4271 = vld [vmem:[#allocation4 + $0x578] sm:$0xff]
      %v4272 = vld [vmem:[#allocation4 + $0x580] sm:$0xff]
      %v4273 = vld [vmem:[#allocation4 + $0x588] sm:$0xff]
      %v4274 = vld [vmem:[#allocation4 + $0x590] sm:$0xff]
      %v4275 = vld [vmem:[#allocation4 + $0x598] sm:$0xff]
      %v4276 = vld [vmem:[#allocation4 + $0x5a0] sm:$0xff]
      %v4277 = vld [vmem:[#allocation4 + $0x5a8] sm:$0xff]
      %v4278 = vld [vmem:[#allocation4 + $0x5b0] sm:$0xff]
      %v4279 = vld [vmem:[#allocation4 + $0x5b8] sm:$0xff]
      %v4280 = vld [vmem:[#allocation4 + $0x5c0] sm:$0xff]
      %v4281 = vld [vmem:[#allocation4 + $0x5c8] sm:$0xff]
      %v4282 = vld [vmem:[#allocation4 + $0x5d0] sm:$0xff]
      %v4283 = vld [vmem:[#allocation4 + $0x5d8] sm:$0xff]
      %v4284 = vld [vmem:[#allocation4 + $0x5e0] sm:$0xff]
      %v4285 = vld [vmem:[#allocation4 + $0x5e8] sm:$0xff]
      %v4286 = vld [vmem:[#allocation4 + $0x5f0] sm:$0xff]
      %v4287 = vld [vmem:[#allocation4 + $0x5f8] sm:$0xff]
      %v4288 = vld [vmem:[#allocation4 + $0x600] sm:$0xff]
      %v4289 = vld [vmem:[#allocation4 + $0x608] sm:$0xff]
      %v4290 = vld [vmem:[#allocation4 + $0x610] sm:$0xff]
      %v4291 = vld [vmem:[#allocation4 + $0x618] sm:$0xff]
      %v4292 = vld [vmem:[#allocation4 + $0x620] sm:$0xff]
      %v4293 = vld [vmem:[#allocation4 + $0x628] sm:$0xff]
      %v4294 = vld [vmem:[#allocation4 + $0x630] sm:$0xff]
      %v4295 = vld [vmem:[#allocation4 + $0x638] sm:$0xff]
      %v4296 = vld [vmem:[#allocation4 + $0x640] sm:$0xff]
      %v4297 = vld [vmem:[#allocation4 + $0x648] sm:$0xff]
      %v4298 = vld [vmem:[#allocation4 + $0x650] sm:$0xff]
      %v4299 = vld [vmem:[#allocation4 + $0x658] sm:$0xff]
      %v4300 = vld [vmem:[#allocation4 + $0x660] sm:$0xff]
      %v4301 = vld [vmem:[#allocation4 + $0x668] sm:$0xff]
      %v4302 = vld [vmem:[#allocation4 + $0x670] sm:$0xff]
      %v4303 = vld [vmem:[#allocation4 + $0x678] sm:$0xff]
      %v4304 = vld [vmem:[#allocation4 + $0x680] sm:$0xff]
      %v4305 = vld [vmem:[#allocation4 + $0x688] sm:$0xff]
      %v4306 = vld [vmem:[#allocation4 + $0x690] sm:$0xff]
      %v4307 = vld [vmem:[#allocation4 + $0x698] sm:$0xff]
      %v4308 = vld [vmem:[#allocation4 + $0x6a0] sm:$0xff]
      %v4309 = vld [vmem:[#allocation4 + $0x6a8] sm:$0xff]
      %v4310 = vld [vmem:[#allocation4 + $0x6b0] sm:$0xff]
      %v4311 = vld [vmem:[#allocation4 + $0x6b8] sm:$0xff]
      %v4312 = vld [vmem:[#allocation4 + $0x6c0] sm:$0xff]
      %v4313 = vld [vmem:[#allocation4 + $0x6c8] sm:$0xff]
      %v4314 = vld [vmem:[#allocation4 + $0x6d0] sm:$0xff]
      %v4315 = vld [vmem:[#allocation4 + $0x6d8] sm:$0xff]
      %v4316 = vld [vmem:[#allocation4 + $0x6e0] sm:$0xff]
      %v4317 = vld [vmem:[#allocation4 + $0x6e8] sm:$0xff]
      %v4318 = vld [vmem:[#allocation4 + $0x6f0] sm:$0xff]
      %v4319 = vld [vmem:[#allocation4 + $0x6f8] sm:$0xff]
      %v4320 = vld [vmem:[#allocation4 + $0x700] sm:$0xff]
      %v4321 = vld [vmem:[#allocation4 + $0x708] sm:$0xff]
      %v4322 = vld [vmem:[#allocation4 + $0x710] sm:$0xff]
      %v4323 = vld [vmem:[#allocation4 + $0x718] sm:$0xff]
      %v4324 = vld [vmem:[#allocation4 + $0x720] sm:$0xff]
      %v4325 = vld [vmem:[#allocation4 + $0x728] sm:$0xff]
      %v4326 = vld [vmem:[#allocation4 + $0x730] sm:$0xff]
      %v4327 = vld [vmem:[#allocation4 + $0x738] sm:$0xff]
      %v4328 = vld [vmem:[#allocation4 + $0x740] sm:$0xff]
      %v4329 = vld [vmem:[#allocation4 + $0x748] sm:$0xff]
      %v4330 = vld [vmem:[#allocation4 + $0x750] sm:$0xff]
      %v4331 = vld [vmem:[#allocation4 + $0x758] sm:$0xff]
      %v4332 = vld [vmem:[#allocation4 + $0x760] sm:$0xff]
      %v4333 = vld [vmem:[#allocation4 + $0x768] sm:$0xff]
      %v4334 = vld [vmem:[#allocation4 + $0x770] sm:$0xff]
      %v4335 = vld [vmem:[#allocation4 + $0x778] sm:$0xff]
      %v4336 = vld [vmem:[#allocation4 + $0x780] sm:$0xff]
      %v4337 = vld [vmem:[#allocation4 + $0x788] sm:$0xff]
      %v4338 = vld [vmem:[#allocation4 + $0x790] sm:$0xff]
      %v4339 = vld [vmem:[#allocation4 + $0x798] sm:$0xff]
      %v4340 = vld [vmem:[#allocation4 + $0x7a0] sm:$0xff]
      %v4341 = vld [vmem:[#allocation4 + $0x7a8] sm:$0xff]
      %v4342 = vld [vmem:[#allocation4 + $0x7b0] sm:$0xff]
      %v4343 = vld [vmem:[#allocation4 + $0x7b8] sm:$0xff]
      %v4344 = vld [vmem:[#allocation4 + $0x7c0] sm:$0xff]
      %v4345 = vld [vmem:[#allocation4 + $0x7c8] sm:$0xff]
      %v4346 = vld [vmem:[#allocation4 + $0x7d0] sm:$0xff]
      %v4347 = vld [vmem:[#allocation4 + $0x7d8] sm:$0xff]
      %v4348 = vld [vmem:[#allocation4 + $0x7e0] sm:$0xff]
      %v4349 = vld [vmem:[#allocation4 + $0x7e8] sm:$0xff]
      %v4350 = vld [vmem:[#allocation4 + $0x7f0] sm:$0xff]
      %v4351 = vld [vmem:[#allocation4 + $0x7f8] sm:$0xff]
      %v4352 = vld [vmem:[#allocation4 + $0x800] sm:$0xff]
      %v4353 = vld [vmem:[#allocation4 + $0x808] sm:$0xff]
      %v4354 = vld [vmem:[#allocation4 + $0x810] sm:$0xff]
      %v4355 = vld [vmem:[#allocation4 + $0x818] sm:$0xff]
      %v4356 = vld [vmem:[#allocation4 + $0x820] sm:$0xff]
      %v4357 = vld [vmem:[#allocation4 + $0x828] sm:$0xff]
      %v4358 = vld [vmem:[#allocation4 + $0x830] sm:$0xff]
      %v4359 = vld [vmem:[#allocation4 + $0x838] sm:$0xff]
      %v4360 = vld [vmem:[#allocation4 + $0x840] sm:$0xff]
      %v4361 = vld [vmem:[#allocation4 + $0x848] sm:$0xff]
      %v4362 = vld [vmem:[#allocation4 + $0x850] sm:$0xff]
      %v4363 = vld [vmem:[#allocation4 + $0x858] sm:$0xff]
      %v4364 = vld [vmem:[#allocation4 + $0x860] sm:$0xff]
      %v4365 = vld [vmem:[#allocation4 + $0x868] sm:$0xff]
      %v4366 = vld [vmem:[#allocation4 + $0x870] sm:$0xff]
      %v4367 = vld [vmem:[#allocation4 + $0x878] sm:$0xff]
      %v4368 = vld [vmem:[#allocation4 + $0x880] sm:$0xff]
      %v4369 = vld [vmem:[#allocation4 + $0x888] sm:$0xff]
      %v4370 = vld [vmem:[#allocation4 + $0x890] sm:$0xff]
      %v4371 = vld [vmem:[#allocation4 + $0x898] sm:$0xff]
      %v4372 = vld [vmem:[#allocation4 + $0x8a0] sm:$0xff]
      %v4373 = vld [vmem:[#allocation4 + $0x8a8] sm:$0xff]
      %v4374 = vld [vmem:[#allocation4 + $0x8b0] sm:$0xff]
      %v4375 = vld [vmem:[#allocation4 + $0x8b8] sm:$0xff]
      %v4376 = vld [vmem:[#allocation4 + $0x8c0] sm:$0xff]
      %v4377 = vld [vmem:[#allocation4 + $0x8c8] sm:$0xff]
      %v4378 = vld [vmem:[#allocation4 + $0x8d0] sm:$0xff]
      %v4379 = vld [vmem:[#allocation4 + $0x8d8] sm:$0xff]
      %v4380 = vld [vmem:[#allocation4 + $0x8e0] sm:$0xff]
      %v4381 = vld [vmem:[#allocation4 + $0x8e8] sm:$0xff]
      %v4382 = vld [vmem:[#allocation4 + $0x8f0] sm:$0xff]
      %v4383 = vld [vmem:[#allocation4 + $0x8f8] sm:$0xff]
      %v4384 = vpack.c.bf16 %v4105, %v4096
      %v4385 = vpack.c.bf16 %v4106, %v4097
      %v4386 = vpack.c.bf16 %v4107, %v4098
      %v4387 = vpack.c.bf16 %v4108, %v4099
      %v4388 = vpack.c.bf16 %v4109, %v4100
      %v4389 = vpack.c.bf16 %v4110, %v4101
      %v4390 = vpack.c.bf16 %v4111, %v4102
      %v4391 = vpack.c.bf16 %v4112, %v4103
      %v4392 = vpack.c.bf16 %v4113, %v4104
      %v4393 = vpack.c.bf16 %v4123, %v4114
      %v4394 = vpack.c.bf16 %v4124, %v4115
      %v4395 = vpack.c.bf16 %v4125, %v4116
      %v4396 = vpack.c.bf16 %v4126, %v4117
      %v4397 = vpack.c.bf16 %v4127, %v4118
      %v4398 = vpack.c.bf16 %v4128, %v4119
      %v4399 = vpack.c.bf16 %v4129, %v4120
      %v4400 = vpack.c.bf16 %v4130, %v4121
      %v4401 = vpack.c.bf16 %v4131, %v4122
      %v4402 = vpack.c.bf16 %v4141, %v4132
      %v4403 = vpack.c.bf16 %v4142, %v4133
      %v4404 = vpack.c.bf16 %v4143, %v4134
      %v4405 = vpack.c.bf16 %v4144, %v4135
      %v4406 = vpack.c.bf16 %v4145, %v4136
      %v4407 = vpack.c.bf16 %v4146, %v4137
      %v4408 = vpack.c.bf16 %v4147, %v4138
      %v4409 = vpack.c.bf16 %v4148, %v4139
      %v4410 = vpack.c.bf16 %v4149, %v4140
      %v4411 = vpack.c.bf16 %v4159, %v4150
      %v4412 = vpack.c.bf16 %v4160, %v4151
      %v4413 = vpack.c.bf16 %v4161, %v4152
      %v4414 = vpack.c.bf16 %v4162, %v4153
      %v4415 = vpack.c.bf16 %v4163, %v4154
      %v4416 = vpack.c.bf16 %v4164, %v4155
      %v4417 = vpack.c.bf16 %v4165, %v4156
      %v4418 = vpack.c.bf16 %v4166, %v4157
      %v4419 = vpack.c.bf16 %v4167, %v4158
      %v4420 = vpack.c.bf16 %v4177, %v4168
      %v4421 = vpack.c.bf16 %v4178, %v4169
      %v4422 = vpack.c.bf16 %v4179, %v4170
      %v4423 = vpack.c.bf16 %v4180, %v4171
      %v4424 = vpack.c.bf16 %v4181, %v4172
      %v4425 = vpack.c.bf16 %v4182, %v4173
      %v4426 = vpack.c.bf16 %v4183, %v4174
      %v4427 = vpack.c.bf16 %v4184, %v4175
      %v4428 = vpack.c.bf16 %v4185, %v4176
      %v4429 = vpack.c.bf16 %v4195, %v4186
      %v4430 = vpack.c.bf16 %v4196, %v4187
      %v4431 = vpack.c.bf16 %v4197, %v4188
      %v4432 = vpack.c.bf16 %v4198, %v4189
      %v4433 = vpack.c.bf16 %v4199, %v4190
      %v4434 = vpack.c.bf16 %v4200, %v4191
      %v4435 = vpack.c.bf16 %v4201, %v4192
      %v4436 = vpack.c.bf16 %v4202, %v4193
      %v4437 = vpack.c.bf16 %v4203, %v4194
      %v4438 = vpack.c.bf16 %v4213, %v4204
      %v4439 = vpack.c.bf16 %v4214, %v4205
      %v4440 = vpack.c.bf16 %v4215, %v4206
      %v4441 = vpack.c.bf16 %v4216, %v4207
      %v4442 = vpack.c.bf16 %v4217, %v4208
      %v4443 = vpack.c.bf16 %v4218, %v4209
      %v4444 = vpack.c.bf16 %v4219, %v4210
      %v4445 = vpack.c.bf16 %v4220, %v4211
      %v4446 = vpack.c.bf16 %v4221, %v4212
      %v4447 = vpack.c.bf16 %v4231, %v4222
      %v4448 = vpack.c.bf16 %v4232, %v4223
      %v4449 = vpack.c.bf16 %v4233, %v4224
      %v4450 = vpack.c.bf16 %v4234, %v4225
      %v4451 = vpack.c.bf16 %v4235, %v4226
      %v4452 = vpack.c.bf16 %v4236, %v4227
      %v4453 = vpack.c.bf16 %v4237, %v4228
      %v4454 = vpack.c.bf16 %v4238, %v4229
      %v4455 = vpack.c.bf16 %v4239, %v4230
      %v4456 = vpack.c.bf16 %v4249, %v4240
      %v4457 = vpack.c.bf16 %v4250, %v4241
      %v4458 = vpack.c.bf16 %v4251, %v4242
      %v4459 = vpack.c.bf16 %v4252, %v4243
      %v4460 = vpack.c.bf16 %v4253, %v4244
      %v4461 = vpack.c.bf16 %v4254, %v4245
      %v4462 = vpack.c.bf16 %v4255, %v4246
      %v4463 = vpack.c.bf16 %v4256, %v4247
      %v4464 = vpack.c.bf16 %v4257, %v4248
      %v4465 = vpack.c.bf16 %v4267, %v4258
      %v4466 = vpack.c.bf16 %v4268, %v4259
      %v4467 = vpack.c.bf16 %v4269, %v4260
      %v4468 = vpack.c.bf16 %v4270, %v4261
      %v4469 = vpack.c.bf16 %v4271, %v4262
      %v4470 = vpack.c.bf16 %v4272, %v4263
      %v4471 = vpack.c.bf16 %v4273, %v4264
      %v4472 = vpack.c.bf16 %v4274, %v4265
      %v4473 = vpack.c.bf16 %v4275, %v4266
      %v4474 = vpack.c.bf16 %v4285, %v4276
      %v4475 = vpack.c.bf16 %v4286, %v4277
      %v4476 = vpack.c.bf16 %v4287, %v4278
      %v4477 = vpack.c.bf16 %v4288, %v4279
      %v4478 = vpack.c.bf16 %v4289, %v4280
      %v4479 = vpack.c.bf16 %v4290, %v4281
      %v4480 = vpack.c.bf16 %v4291, %v4282
      %v4481 = vpack.c.bf16 %v4292, %v4283
      %v4482 = vpack.c.bf16 %v4293, %v4284
      %v4483 = vpack.c.bf16 %v4303, %v4294
      %v4484 = vpack.c.bf16 %v4304, %v4295
      %v4485 = vpack.c.bf16 %v4305, %v4296
      %v4486 = vpack.c.bf16 %v4306, %v4297
      %v4487 = vpack.c.bf16 %v4307, %v4298
      %v4488 = vpack.c.bf16 %v4308, %v4299
      %v4489 = vpack.c.bf16 %v4309, %v4300
      %v4490 = vpack.c.bf16 %v4310, %v4301
      %v4491 = vpack.c.bf16 %v4311, %v4302
      %v4492 = vpack.c.bf16 %v4321, %v4312
      %v4493 = vpack.c.bf16 %v4322, %v4313
      %v4494 = vpack.c.bf16 %v4323, %v4314
      %v4495 = vpack.c.bf16 %v4324, %v4315
      %v4496 = vpack.c.bf16 %v4325, %v4316
      %v4497 = vpack.c.bf16 %v4326, %v4317
      %v4498 = vpack.c.bf16 %v4327, %v4318
      %v4499 = vpack.c.bf16 %v4328, %v4319
      %v4500 = vpack.c.bf16 %v4329, %v4320
      %v4501 = vpack.c.bf16 %v4339, %v4330
      %v4502 = vpack.c.bf16 %v4340, %v4331
      %v4503 = vpack.c.bf16 %v4341, %v4332
      %v4504 = vpack.c.bf16 %v4342, %v4333
      %v4505 = vpack.c.bf16 %v4343, %v4334
      %v4506 = vpack.c.bf16 %v4344, %v4335
      %v4507 = vpack.c.bf16 %v4345, %v4336
      %v4508 = vpack.c.bf16 %v4346, %v4337
      %v4509 = vpack.c.bf16 %v4347, %v4338
      %v4510 = vpack.c.bf16 %v4357, %v4348
      %v4511 = vpack.c.bf16 %v4358, %v4349
      %v4512 = vpack.c.bf16 %v4359, %v4350
      %v4513 = vpack.c.bf16 %v4360, %v4351
      %v4514 = vpack.c.bf16 %v4361, %v4352
      %v4515 = vpack.c.bf16 %v4362, %v4353
      %v4516 = vpack.c.bf16 %v4363, %v4354
      %v4517 = vpack.c.bf16 %v4364, %v4355
      %v4518 = vpack.c.bf16 %v4365, %v4356
      %v4519 = vpack.c.bf16 %v4375, %v4366
      %v4520 = vpack.c.bf16 %v4376, %v4367
      %v4521 = vpack.c.bf16 %v4377, %v4368
      %v4522 = vpack.c.bf16 %v4378, %v4369
      %v4523 = vpack.c.bf16 %v4379, %v4370
      %v4524 = vpack.c.bf16 %v4380, %v4371
      %v4525 = vpack.c.bf16 %v4381, %v4372
      %v4526 = vpack.c.bf16 %v4382, %v4373
      %v4527 = vpack.c.bf16 %v4383, %v4374
      %v4528 = vld [vmem:[%s4] sm:$0xf]
      %v4529 = vld [vmem:[%s4 + $0x4] sm:$0xf]
      %v4530 = vld [vmem:[%s4 + $0x8] sm:$0xf]
      %v4531 = vld [vmem:[%s4 + $0xc] sm:$0xf]
      %v4532 = vld [vmem:[%s4 + $0x10] sm:$0xf]
      %v4533 = vld [vmem:[%s4 + $0x14] sm:$0xf]
      %v4534 = vld [vmem:[%s4 + $0x18] sm:$0xf]
      %v4535 = vld [vmem:[%s4 + $0x1c] sm:$0xf]
      %v4536 = vld [vmem:[%s4 + $0x20] sm:$0xf]
      %v4537 = vld [vmem:[%s4 + $0x24] sm:$0xf]
      %v4538 = vld [vmem:[%s4 + $0x28] sm:$0xf]
      %v4539 = vld [vmem:[%s4 + $0x2c] sm:$0xf]
      %v4540 = vld [vmem:[%s4 + $0x30] sm:$0xf]
      %v4541 = vld [vmem:[%s4 + $0x34] sm:$0xf]
      %v4542 = vld [vmem:[%s4 + $0x38] sm:$0xf]
      %v4543 = vld [vmem:[%s4 + $0x3c] sm:$0xf]
      %v4544 = vld [vmem:[%s4 + $0x40] sm:$0xf]
      %v4545 = vld [vmem:[%s4 + $0x44] sm:$0xf]
      %v4546 = vld [vmem:[%s4 + $0x48] sm:$0xf]
      %v4547 = vld [vmem:[%s4 + $0x4c] sm:$0xf]
      %v4548 = vld [vmem:[%s4 + $0x50] sm:$0xf]
      %v4549 = vld [vmem:[%s4 + $0x54] sm:$0xf]
      %v4550 = vld [vmem:[%s4 + $0x58] sm:$0xf]
      %v4551 = vld [vmem:[%s4 + $0x5c] sm:$0xf]
      %v4552 = vld [vmem:[%s4 + $0x60] sm:$0xf]
      %v4553 = vld [vmem:[%s4 + $0x64] sm:$0xf]
      %v4554 = vld [vmem:[%s4 + $0x68] sm:$0xf]
      %v4555 = vld [vmem:[%s4 + $0x6c] sm:$0xf]
      %v4556 = vld [vmem:[%s4 + $0x70] sm:$0xf]
      %v4557 = vld [vmem:[%s4 + $0x74] sm:$0xf]
      %v4558 = vld [vmem:[%s4 + $0x78] sm:$0xf]
      %v4559 = vld [vmem:[%s4 + $0x7c] sm:$0xf]
      %v4560 = vld [vmem:[%s4 + $0x80] sm:$0xf]
      %v4561 = vld [vmem:[%s4 + $0x84] sm:$0xf]
      %v4562 = vld [vmem:[%s4 + $0x88] sm:$0xf]
      %v4563 = vld [vmem:[%s4 + $0x8c] sm:$0xf]
      %v4564 = vld [vmem:[%s4 + $0x90] sm:$0xf]
      %v4565 = vld [vmem:[%s4 + $0x94] sm:$0xf]
      %v4566 = vld [vmem:[%s4 + $0x98] sm:$0xf]
      %v4567 = vld [vmem:[%s4 + $0x9c] sm:$0xf]
      %v4568 = vld [vmem:[%s4 + $0xa0] sm:$0xf]
      %v4569 = vld [vmem:[%s4 + $0xa4] sm:$0xf]
      %v4570 = vld [vmem:[%s4 + $0xa8] sm:$0xf]
      %v4571 = vld [vmem:[%s4 + $0xac] sm:$0xf]
      %v4572 = vld [vmem:[%s4 + $0xb0] sm:$0xf]
      %v4573 = vld [vmem:[%s4 + $0xb4] sm:$0xf]
      %v4574 = vld [vmem:[%s4 + $0xb8] sm:$0xf]
      %v4575 = vld [vmem:[%s4 + $0xbc] sm:$0xf]
      %v4576 = vld [vmem:[%s4 + $0xc0] sm:$0xf]
      %v4577 = vld [vmem:[%s4 + $0xc4] sm:$0xf]
      %v4578 = vld [vmem:[%s4 + $0xc8] sm:$0xf]
      %v4579 = vld [vmem:[%s4 + $0xcc] sm:$0xf]
      %v4580 = vld [vmem:[%s4 + $0xd0] sm:$0xf]
      %v4581 = vld [vmem:[%s4 + $0xd4] sm:$0xf]
      %v4582 = vld [vmem:[%s4 + $0xd8] sm:$0xf]
      %v4583 = vld [vmem:[%s4 + $0xdc] sm:$0xf]
      %v4584 = vld [vmem:[%s4 + $0xe0] sm:$0xf]
      %v4585 = vld [vmem:[%s4 + $0xe4] sm:$0xf]
      %v4586 = vld [vmem:[%s4 + $0xe8] sm:$0xf]
      %v4587 = vld [vmem:[%s4 + $0xec] sm:$0xf]
      %v4588 = vld [vmem:[%s4 + $0xf0] sm:$0xf]
      %v4589 = vld [vmem:[%s4 + $0xf4] sm:$0xf]
      %v4590 = vld [vmem:[%s4 + $0xf8] sm:$0xf]
      %v4591 = vld [vmem:[%s4 + $0xfc] sm:$0xf]
      %v4592 = vld [vmem:[%s4 + $0x100] sm:$0xf]
      %v4593 = vld [vmem:[%s4 + $0x104] sm:$0xf]
      %v4594 = vld [vmem:[%s4 + $0x108] sm:$0xf]
      %v4595 = vld [vmem:[%s4 + $0x10c] sm:$0xf]
      %v4596 = vld [vmem:[%s4 + $0x110] sm:$0xf]
      %v4597 = vld [vmem:[%s4 + $0x114] sm:$0xf]
      %v4598 = vld [vmem:[%s4 + $0x118] sm:$0xf]
      %v4599 = vld [vmem:[%s4 + $0x11c] sm:$0xf]
      %v4600 = vld [vmem:[%s4 + $0x120] sm:$0xf]
      %v4601 = vld [vmem:[%s4 + $0x124] sm:$0xf]
      %v4602 = vld [vmem:[%s4 + $0x128] sm:$0xf]
      %v4603 = vld [vmem:[%s4 + $0x12c] sm:$0xf]
      %v4604 = vld [vmem:[%s4 + $0x130] sm:$0xf]
      %v4605 = vld [vmem:[%s4 + $0x134] sm:$0xf]
      %v4606 = vld [vmem:[%s4 + $0x138] sm:$0xf]
      %v4607 = vld [vmem:[%s4 + $0x13c] sm:$0xf]
      %v4608 = vld [vmem:[%s4 + $0x140] sm:$0xf]
      %v4609 = vld [vmem:[%s4 + $0x144] sm:$0xf]
      %v4610 = vld [vmem:[%s4 + $0x148] sm:$0xf]
      %v4611 = vld [vmem:[%s4 + $0x14c] sm:$0xf]
      %v4612 = vld [vmem:[%s4 + $0x150] sm:$0xf]
      %v4613 = vld [vmem:[%s4 + $0x154] sm:$0xf]
      %v4614 = vld [vmem:[%s4 + $0x158] sm:$0xf]
      %v4615 = vld [vmem:[%s4 + $0x15c] sm:$0xf]
      %v4616 = vld [vmem:[%s4 + $0x160] sm:$0xf]
      %v4617 = vld [vmem:[%s4 + $0x164] sm:$0xf]
      %v4618 = vld [vmem:[%s4 + $0x168] sm:$0xf]
      %v4619 = vld [vmem:[%s4 + $0x16c] sm:$0xf]
      %v4620 = vld [vmem:[%s4 + $0x170] sm:$0xf]
      %v4621 = vld [vmem:[%s4 + $0x174] sm:$0xf]
      %v4622 = vld [vmem:[%s4 + $0x178] sm:$0xf]
      %v4623 = vld [vmem:[%s4 + $0x17c] sm:$0xf]
      %v4624 = vld [vmem:[%s4 + $0x180] sm:$0xf]
      %v4625 = vld [vmem:[%s4 + $0x184] sm:$0xf]
      %v4626 = vld [vmem:[%s4 + $0x188] sm:$0xf]
      %v4627 = vld [vmem:[%s4 + $0x18c] sm:$0xf]
      %v4628 = vld [vmem:[%s4 + $0x190] sm:$0xf]
      %v4629 = vld [vmem:[%s4 + $0x194] sm:$0xf]
      %v4630 = vld [vmem:[%s4 + $0x198] sm:$0xf]
      %v4631 = vld [vmem:[%s4 + $0x19c] sm:$0xf]
      %v4632 = vld [vmem:[%s4 + $0x1a0] sm:$0xf]
      %v4633 = vld [vmem:[%s4 + $0x1a4] sm:$0xf]
      %v4634 = vld [vmem:[%s4 + $0x1a8] sm:$0xf]
      %v4635 = vld [vmem:[%s4 + $0x1ac] sm:$0xf]
      %v4636 = vld [vmem:[%s4 + $0x1b0] sm:$0xf]
      %v4637 = vld [vmem:[%s4 + $0x1b4] sm:$0xf]
      %v4638 = vld [vmem:[%s4 + $0x1b8] sm:$0xf]
      %v4639 = vld [vmem:[%s4 + $0x1bc] sm:$0xf]
      %v4640 = vld [vmem:[%s4 + $0x1c0] sm:$0xf]
      %v4641 = vld [vmem:[%s4 + $0x1c4] sm:$0xf]
      %v4642 = vld [vmem:[%s4 + $0x1c8] sm:$0xf]
      %v4643 = vld [vmem:[%s4 + $0x1cc] sm:$0xf]
      %v4644 = vld [vmem:[%s4 + $0x1d0] sm:$0xf]
      %v4645 = vld [vmem:[%s4 + $0x1d4] sm:$0xf]
      %v4646 = vld [vmem:[%s4 + $0x1d8] sm:$0xf]
      %v4647 = vld [vmem:[%s4 + $0x1dc] sm:$0xf]
      %v4648 = vld [vmem:[%s4 + $0x1e0] sm:$0xf]
      %v4649 = vld [vmem:[%s4 + $0x1e4] sm:$0xf]
      %v4650 = vld [vmem:[%s4 + $0x1e8] sm:$0xf]
      %v4651 = vld [vmem:[%s4 + $0x1ec] sm:$0xf]
      %v4652 = vld [vmem:[%s4 + $0x1f0] sm:$0xf]
      %v4653 = vld [vmem:[%s4 + $0x1f4] sm:$0xf]
      %v4654 = vld [vmem:[%s4 + $0x1f8] sm:$0xf]
      %v4655 = vld [vmem:[%s4 + $0x1fc] sm:$0xf]
      %v4656 = vld [vmem:[%s4 + $0x200] sm:$0xf]
      %v4657 = vld [vmem:[%s4 + $0x204] sm:$0xf]
      %v4658 = vld [vmem:[%s4 + $0x208] sm:$0xf]
      %v4659 = vld [vmem:[%s4 + $0x20c] sm:$0xf]
      %v4660 = vld [vmem:[%s4 + $0x210] sm:$0xf]
      %v4661 = vld [vmem:[%s4 + $0x214] sm:$0xf]
      %v4662 = vld [vmem:[%s4 + $0x218] sm:$0xf]
      %v4663 = vld [vmem:[%s4 + $0x21c] sm:$0xf]
      %v4664 = vld [vmem:[%s4 + $0x220] sm:$0xf]
      %v4665 = vld [vmem:[%s4 + $0x224] sm:$0xf]
      %v4666 = vld [vmem:[%s4 + $0x228] sm:$0xf]
      %v4667 = vld [vmem:[%s4 + $0x22c] sm:$0xf]
      %v4668 = vld [vmem:[%s4 + $0x230] sm:$0xf]
      %v4669 = vld [vmem:[%s4 + $0x234] sm:$0xf]
      %v4670 = vld [vmem:[%s4 + $0x238] sm:$0xf]
      %v4671 = vld [vmem:[%s4 + $0x23c] sm:$0xf]
      %v4816 = vunpack.c.l.b16 %v4528
      %v4817 = vunpack.c.l.b16 %v4529
      %v4818 = vunpack.c.l.b16 %v4530
      %v4819 = vunpack.c.l.b16 %v4531
      %v4820 = vunpack.c.l.b16 %v4532
      %v4821 = vunpack.c.l.b16 %v4533
      %v4822 = vunpack.c.l.b16 %v4534
      %v4823 = vunpack.c.l.b16 %v4535
      %v4824 = vunpack.c.l.b16 %v4536
      %v4825 = vunpack.c.l.b16 %v4537
      %v4826 = vunpack.c.l.b16 %v4538
      %v4827 = vunpack.c.l.b16 %v4539
      %v4828 = vunpack.c.l.b16 %v4540
      %v4829 = vunpack.c.l.b16 %v4541
      %v4830 = vunpack.c.l.b16 %v4542
      %v4831 = vunpack.c.l.b16 %v4543
      %v4832 = vunpack.c.l.b16 %v4544
      %v4833 = vunpack.c.l.b16 %v4545
      %v4834 = vunpack.c.l.b16 %v4546
      %v4835 = vunpack.c.l.b16 %v4547
      %v4836 = vunpack.c.l.b16 %v4548
      %v4837 = vunpack.c.l.b16 %v4549
      %v4838 = vunpack.c.l.b16 %v4550
      %v4839 = vunpack.c.l.b16 %v4551
      %v4840 = vunpack.c.l.b16 %v4552
      %v4841 = vunpack.c.l.b16 %v4553
      %v4842 = vunpack.c.l.b16 %v4554
      %v4843 = vunpack.c.l.b16 %v4555
      %v4844 = vunpack.c.l.b16 %v4556
      %v4845 = vunpack.c.l.b16 %v4557
      %v4846 = vunpack.c.l.b16 %v4558
      %v4847 = vunpack.c.l.b16 %v4559
      %v4848 = vunpack.c.l.b16 %v4560
      %v4849 = vunpack.c.l.b16 %v4561
      %v4850 = vunpack.c.l.b16 %v4562
      %v4851 = vunpack.c.l.b16 %v4563
      %v4852 = vunpack.c.l.b16 %v4564
      %v4853 = vunpack.c.l.b16 %v4565
      %v4854 = vunpack.c.l.b16 %v4566
      %v4855 = vunpack.c.l.b16 %v4567
      %v4856 = vunpack.c.l.b16 %v4568
      %v4857 = vunpack.c.l.b16 %v4569
      %v4858 = vunpack.c.l.b16 %v4570
      %v4859 = vunpack.c.l.b16 %v4571
      %v4860 = vunpack.c.l.b16 %v4572
      %v4861 = vunpack.c.l.b16 %v4573
      %v4862 = vunpack.c.l.b16 %v4574
      %v4863 = vunpack.c.l.b16 %v4575
      %v4864 = vunpack.c.l.b16 %v4576
      %v4865 = vunpack.c.l.b16 %v4577
      %v4866 = vunpack.c.l.b16 %v4578
      %v4867 = vunpack.c.l.b16 %v4579
      %v4868 = vunpack.c.l.b16 %v4580
      %v4869 = vunpack.c.l.b16 %v4581
      %v4870 = vunpack.c.l.b16 %v4582
      %v4871 = vunpack.c.l.b16 %v4583
      %v4872 = vunpack.c.l.b16 %v4584
      %v4873 = vunpack.c.l.b16 %v4585
      %v4874 = vunpack.c.l.b16 %v4586
      %v4875 = vunpack.c.l.b16 %v4587
      %v4876 = vunpack.c.l.b16 %v4588
      %v4877 = vunpack.c.l.b16 %v4589
      %v4878 = vunpack.c.l.b16 %v4590
      %v4879 = vunpack.c.l.b16 %v4591
      %v4880 = vunpack.c.l.b16 %v4592
      %v4881 = vunpack.c.l.b16 %v4593
      %v4882 = vunpack.c.l.b16 %v4594
      %v4883 = vunpack.c.l.b16 %v4595
      %v4884 = vunpack.c.l.b16 %v4596
      %v4885 = vunpack.c.l.b16 %v4597
      %v4886 = vunpack.c.l.b16 %v4598
      %v4887 = vunpack.c.l.b16 %v4599
      %v4888 = vunpack.c.l.b16 %v4600
      %v4889 = vunpack.c.l.b16 %v4601
      %v4890 = vunpack.c.l.b16 %v4602
      %v4891 = vunpack.c.l.b16 %v4603
      %v4892 = vunpack.c.l.b16 %v4604
      %v4893 = vunpack.c.l.b16 %v4605
      %v4894 = vunpack.c.l.b16 %v4606
      %v4895 = vunpack.c.l.b16 %v4607
      %v4896 = vunpack.c.l.b16 %v4608
      %v4897 = vunpack.c.l.b16 %v4609
      %v4898 = vunpack.c.l.b16 %v4610
      %v4899 = vunpack.c.l.b16 %v4611
      %v4900 = vunpack.c.l.b16 %v4612
      %v4901 = vunpack.c.l.b16 %v4613
      %v4902 = vunpack.c.l.b16 %v4614
      %v4903 = vunpack.c.l.b16 %v4615
      %v4904 = vunpack.c.l.b16 %v4616
      %v4905 = vunpack.c.l.b16 %v4617
      %v4906 = vunpack.c.l.b16 %v4618
      %v4907 = vunpack.c.l.b16 %v4619
      %v4908 = vunpack.c.l.b16 %v4620
      %v4909 = vunpack.c.l.b16 %v4621
      %v4910 = vunpack.c.l.b16 %v4622
      %v4911 = vunpack.c.l.b16 %v4623
      %v4912 = vunpack.c.l.b16 %v4624
      %v4913 = vunpack.c.l.b16 %v4625
      %v4914 = vunpack.c.l.b16 %v4626
      %v4915 = vunpack.c.l.b16 %v4627
      %v4916 = vunpack.c.l.b16 %v4628
      %v4917 = vunpack.c.l.b16 %v4629
      %v4918 = vunpack.c.l.b16 %v4630
      %v4919 = vunpack.c.l.b16 %v4631
      %v4920 = vunpack.c.l.b16 %v4632
      %v4921 = vunpack.c.l.b16 %v4633
      %v4922 = vunpack.c.l.b16 %v4634
      %v4923 = vunpack.c.l.b16 %v4635
      %v4924 = vunpack.c.l.b16 %v4636
      %v4925 = vunpack.c.l.b16 %v4637
      %v4926 = vunpack.c.l.b16 %v4638
      %v4927 = vunpack.c.l.b16 %v4639
      %v4928 = vunpack.c.l.b16 %v4640
      %v4929 = vunpack.c.l.b16 %v4641
      %v4930 = vunpack.c.l.b16 %v4642
      %v4931 = vunpack.c.l.b16 %v4643
      %v4932 = vunpack.c.l.b16 %v4644
      %v4933 = vunpack.c.l.b16 %v4645
      %v4934 = vunpack.c.l.b16 %v4646
      %v4935 = vunpack.c.l.b16 %v4647
      %v4936 = vunpack.c.l.b16 %v4648
      %v4937 = vunpack.c.l.b16 %v4649
      %v4938 = vunpack.c.l.b16 %v4650
      %v4939 = vunpack.c.l.b16 %v4651
      %v4940 = vunpack.c.l.b16 %v4652
      %v4941 = vunpack.c.l.b16 %v4653
      %v4942 = vunpack.c.l.b16 %v4654
      %v4943 = vunpack.c.l.b16 %v4655
      %v4944 = vunpack.c.l.b16 %v4656
      %v4945 = vunpack.c.l.b16 %v4657
      %v4946 = vunpack.c.l.b16 %v4658
      %v4947 = vunpack.c.l.b16 %v4659
      %v4948 = vunpack.c.l.b16 %v4660
      %v4949 = vunpack.c.l.b16 %v4661
      %v4950 = vunpack.c.l.b16 %v4662
      %v4951 = vunpack.c.l.b16 %v4663
      %v4952 = vunpack.c.l.b16 %v4664
      %v4953 = vunpack.c.l.b16 %v4665
      %v4954 = vunpack.c.l.b16 %v4666
      %v4955 = vunpack.c.l.b16 %v4667
      %v4956 = vunpack.c.l.b16 %v4668
      %v4957 = vunpack.c.l.b16 %v4669
      %v4958 = vunpack.c.l.b16 %v4670
      %v4959 = vunpack.c.l.b16 %v4671
      %v4960 = vpack.c.b16 %v4817, %v4816
      %v4961 = vpack.c.b16 %v4819, %v4818
      %v4962 = vpack.c.b16 %v4821, %v4820
      %v4963 = vpack.c.b16 %v4823, %v4822
      %v4964 = vpack.c.b16 %v4825, %v4824
      %v4965 = vpack.c.b16 %v4827, %v4826
      %v4966 = vpack.c.b16 %v4829, %v4828
      %v4967 = vpack.c.b16 %v4831, %v4830
      %v4968 = vpack.c.b16 %v4833, %v4832
      %v4969 = vpack.c.b16 %v4835, %v4834
      %v4970 = vpack.c.b16 %v4837, %v4836
      %v4971 = vpack.c.b16 %v4839, %v4838
      %v4972 = vpack.c.b16 %v4841, %v4840
      %v4973 = vpack.c.b16 %v4843, %v4842
      %v4974 = vpack.c.b16 %v4845, %v4844
      %v4975 = vpack.c.b16 %v4847, %v4846
      %v4976 = vpack.c.b16 %v4849, %v4848
      %v4977 = vpack.c.b16 %v4851, %v4850
      %v4978 = vpack.c.b16 %v4853, %v4852
      %v4979 = vpack.c.b16 %v4855, %v4854
      %v4980 = vpack.c.b16 %v4857, %v4856
      %v4981 = vpack.c.b16 %v4859, %v4858
      %v4982 = vpack.c.b16 %v4861, %v4860
      %v4983 = vpack.c.b16 %v4863, %v4862
      %v4984 = vpack.c.b16 %v4865, %v4864
      %v4985 = vpack.c.b16 %v4867, %v4866
      %v4986 = vpack.c.b16 %v4869, %v4868
      %v4987 = vpack.c.b16 %v4871, %v4870
      %v4988 = vpack.c.b16 %v4873, %v4872
      %v4989 = vpack.c.b16 %v4875, %v4874
      %v4990 = vpack.c.b16 %v4877, %v4876
      %v4991 = vpack.c.b16 %v4879, %v4878
      %v4992 = vpack.c.b16 %v4881, %v4880
      %v4993 = vpack.c.b16 %v4883, %v4882
      %v4994 = vpack.c.b16 %v4885, %v4884
      %v4995 = vpack.c.b16 %v4887, %v4886
      %v4996 = vpack.c.b16 %v4889, %v4888
      %v4997 = vpack.c.b16 %v4891, %v4890
      %v4998 = vpack.c.b16 %v4893, %v4892
      %v4999 = vpack.c.b16 %v4895, %v4894
      %v5000 = vpack.c.b16 %v4897, %v4896
      %v5001 = vpack.c.b16 %v4899, %v4898
      %v5002 = vpack.c.b16 %v4901, %v4900
      %v5003 = vpack.c.b16 %v4903, %v4902
      %v5004 = vpack.c.b16 %v4905, %v4904
      %v5005 = vpack.c.b16 %v4907, %v4906
      %v5006 = vpack.c.b16 %v4909, %v4908
      %v5007 = vpack.c.b16 %v4911, %v4910
      %v5008 = vpack.c.b16 %v4913, %v4912
      %v5009 = vpack.c.b16 %v4915, %v4914
      %v5010 = vpack.c.b16 %v4917, %v4916
      %v5011 = vpack.c.b16 %v4919, %v4918
      %v5012 = vpack.c.b16 %v4921, %v4920
      %v5013 = vpack.c.b16 %v4923, %v4922
      %v5014 = vpack.c.b16 %v4925, %v4924
      %v5015 = vpack.c.b16 %v4927, %v4926
      %v5016 = vpack.c.b16 %v4929, %v4928
      %v5017 = vpack.c.b16 %v4931, %v4930
      %v5018 = vpack.c.b16 %v4933, %v4932
      %v5019 = vpack.c.b16 %v4935, %v4934
      %v5020 = vpack.c.b16 %v4937, %v4936
      %v5021 = vpack.c.b16 %v4939, %v4938
      %v5022 = vpack.c.b16 %v4941, %v4940
      %v5023 = vpack.c.b16 %v4943, %v4942
      %v5024 = vpack.c.b16 %v4945, %v4944
      %v5025 = vpack.c.b16 %v4947, %v4946
      %v5026 = vpack.c.b16 %v4949, %v4948
      %v5027 = vpack.c.b16 %v4951, %v4950
      %v5028 = vpack.c.b16 %v4953, %v4952
      %v5029 = vpack.c.b16 %v4955, %v4954
      %v5030 = vpack.c.b16 %v4957, %v4956
      %v5031 = vpack.c.b16 %v4959, %v4958
      %5104 = vmatpush.bf16.msra.mxu0 %v4967
      %5105 = vmatpush.bf16.msra.mxu0 %v4966
      %5106 = vmatpush.bf16.msra.mxu0 %v4965
      %5107 = vmatpush.bf16.msra.mxu0 %v4964
      %5108 = vmatpush.bf16.msra.mxu0 %v4963
      %5109 = vmatpush.bf16.msra.mxu0 %v4962
      %5110 = vmatpush.bf16.msra.mxu0 %v4961
      %5111 = vmatpush.bf16.msra.mxu0 %v4960
      %5112 = vmatmul.bf16.gmra.mxu0 %v4384
      %v5113 = vpop.f32.mrf.mxu0
      %v5114 = vadd.f32 0.0, %v5113
      %v5115 = vpop.f32.mrf.mxu0
      %v5116 = vadd.f32 0.0, %v5115
      %5117 = vmatmul.bf16.gmra.mxu0 %v4393
      %v5118 = vpop.f32.mrf.mxu0
      %v5119 = vadd.f32 0.0, %v5118
      %v5120 = vpop.f32.mrf.mxu0
      %v5121 = vadd.f32 0.0, %v5120
      %5122 = vmatmul.bf16.gmra.mxu0 %v4402
      %v5123 = vpop.f32.mrf.mxu0
      %v5124 = vadd.f32 0.0, %v5123
      %v5125 = vpop.f32.mrf.mxu0
      %v5126 = vadd.f32 0.0, %v5125
      %5127 = vmatmul.bf16.gmra.mxu0 %v4411
      %v5128 = vpop.f32.mrf.mxu0
      %v5129 = vadd.f32 0.0, %v5128
      %v5130 = vpop.f32.mrf.mxu0
      %v5131 = vadd.f32 0.0, %v5130
      %5132 = vmatmul.bf16.gmra.mxu0 %v4420
      %v5133 = vpop.f32.mrf.mxu0
      %v5134 = vadd.f32 0.0, %v5133
      %v5135 = vpop.f32.mrf.mxu0
      %v5136 = vadd.f32 0.0, %v5135
      %5137 = vmatmul.bf16.gmra.mxu0 %v4429
      %v5138 = vpop.f32.mrf.mxu0
      %v5139 = vadd.f32 0.0, %v5138
      %v5140 = vpop.f32.mrf.mxu0
      %v5141 = vadd.f32 0.0, %v5140
      %5142 = vmatmul.bf16.gmra.mxu0 %v4438
      %v5143 = vpop.f32.mrf.mxu0
      %v5144 = vadd.f32 0.0, %v5143
      %v5145 = vpop.f32.mrf.mxu0
      %v5146 = vadd.f32 0.0, %v5145
      %5147 = vmatmul.bf16.gmra.mxu0 %v4447
      %v5148 = vpop.f32.mrf.mxu0
      %v5149 = vadd.f32 0.0, %v5148
      %v5150 = vpop.f32.mrf.mxu0
      %v5151 = vadd.f32 0.0, %v5150
      %5152 = vmatmul.bf16.gmra.mxu0 %v4456
      %v5153 = vpop.f32.mrf.mxu0
      %v5154 = vadd.f32 0.0, %v5153
      %v5155 = vpop.f32.mrf.mxu0
      %v5156 = vadd.f32 0.0, %v5155
      %5157 = vmatmul.bf16.gmra.mxu0 %v4465
      %v5158 = vpop.f32.mrf.mxu0
      %v5159 = vadd.f32 0.0, %v5158
      %v5160 = vpop.f32.mrf.mxu0
      %v5161 = vadd.f32 0.0, %v5160
      %5162 = vmatmul.bf16.gmra.mxu0 %v4474
      %v5163 = vpop.f32.mrf.mxu0
      %v5164 = vadd.f32 0.0, %v5163
      %v5165 = vpop.f32.mrf.mxu0
      %v5166 = vadd.f32 0.0, %v5165
      %5167 = vmatmul.bf16.gmra.mxu0 %v4483
      %v5168 = vpop.f32.mrf.mxu0
      %v5169 = vadd.f32 0.0, %v5168
      %v5170 = vpop.f32.mrf.mxu0
      %v5171 = vadd.f32 0.0, %v5170
      %5172 = vmatmul.bf16.gmra.mxu0 %v4492
      %v5173 = vpop.f32.mrf.mxu0
      %v5174 = vadd.f32 0.0, %v5173
      %v5175 = vpop.f32.mrf.mxu0
      %v5176 = vadd.f32 0.0, %v5175
      %5177 = vmatmul.bf16.gmra.mxu0 %v4501
      %v5178 = vpop.f32.mrf.mxu0
      %v5179 = vadd.f32 0.0, %v5178
      %v5180 = vpop.f32.mrf.mxu0
      %v5181 = vadd.f32 0.0, %v5180
      %5182 = vmatmul.bf16.gmra.mxu0 %v4510
      %v5183 = vpop.f32.mrf.mxu0
      %v5184 = vadd.f32 0.0, %v5183
      %v5185 = vpop.f32.mrf.mxu0
      %v5186 = vadd.f32 0.0, %v5185
      %5187 = vmatmul.bf16.gmra.mxu0 %v4519
      %v5188 = vpop.f32.mrf.mxu0
      %v5189 = vadd.f32 0.0, %v5188
      %v5190 = vpop.f32.mrf.mxu0
      %v5191 = vadd.f32 0.0, %v5190
      %5192 = vdwg.mxu0
      %5193 = vmatpush.bf16.msra.mxu0 %v4975
      %5194 = vmatpush.bf16.msra.mxu0 %v4974
      %5195 = vmatpush.bf16.msra.mxu0 %v4973
      %5196 = vmatpush.bf16.msra.mxu0 %v4972
      %5197 = vmatpush.bf16.msra.mxu0 %v4971
      %5198 = vmatpush.bf16.msra.mxu0 %v4970
      %5199 = vmatpush.bf16.msra.mxu0 %v4969
      %5200 = vmatpush.bf16.msra.mxu0 %v4968
      %5201 = vmatmul.bf16.gmra.mxu0 %v4385
      %v5202 = vpop.f32.mrf.mxu0
      %v5203 = vadd.f32 %v5114, %v5202
      %v5204 = vpop.f32.mrf.mxu0
      %v5205 = vadd.f32 %v5116, %v5204
      %5206 = vmatmul.bf16.gmra.mxu0 %v4394
      %v5207 = vpop.f32.mrf.mxu0
      %v5208 = vadd.f32 %v5119, %v5207
      %v5209 = vpop.f32.mrf.mxu0
      %v5210 = vadd.f32 %v5121, %v5209
      %5211 = vmatmul.bf16.gmra.mxu0 %v4403
      %v5212 = vpop.f32.mrf.mxu0
      %v5213 = vadd.f32 %v5124, %v5212
      %v5214 = vpop.f32.mrf.mxu0
      %v5215 = vadd.f32 %v5126, %v5214
      %5216 = vmatmul.bf16.gmra.mxu0 %v4412
      %v5217 = vpop.f32.mrf.mxu0
      %v5218 = vadd.f32 %v5129, %v5217
      %v5219 = vpop.f32.mrf.mxu0
      %v5220 = vadd.f32 %v5131, %v5219
      %5221 = vmatmul.bf16.gmra.mxu0 %v4421
      %v5222 = vpop.f32.mrf.mxu0
      %v5223 = vadd.f32 %v5134, %v5222
      %v5224 = vpop.f32.mrf.mxu0
      %v5225 = vadd.f32 %v5136, %v5224
      %5226 = vmatmul.bf16.gmra.mxu0 %v4430
      %v5227 = vpop.f32.mrf.mxu0
      %v5228 = vadd.f32 %v5139, %v5227
      %v5229 = vpop.f32.mrf.mxu0
      %v5230 = vadd.f32 %v5141, %v5229
      %5231 = vmatmul.bf16.gmra.mxu0 %v4439
      %v5232 = vpop.f32.mrf.mxu0
      %v5233 = vadd.f32 %v5144, %v5232
      %v5234 = vpop.f32.mrf.mxu0
      %v5235 = vadd.f32 %v5146, %v5234
      %5236 = vmatmul.bf16.gmra.mxu0 %v4448
      %v5237 = vpop.f32.mrf.mxu0
      %v5238 = vadd.f32 %v5149, %v5237
      %v5239 = vpop.f32.mrf.mxu0
      %v5240 = vadd.f32 %v5151, %v5239
      %5241 = vmatmul.bf16.gmra.mxu0 %v4457
      %v5242 = vpop.f32.mrf.mxu0
      %v5243 = vadd.f32 %v5154, %v5242
      %v5244 = vpop.f32.mrf.mxu0
      %v5245 = vadd.f32 %v5156, %v5244
      %5246 = vmatmul.bf16.gmra.mxu0 %v4466
      %v5247 = vpop.f32.mrf.mxu0
      %v5248 = vadd.f32 %v5159, %v5247
      %v5249 = vpop.f32.mrf.mxu0
      %v5250 = vadd.f32 %v5161, %v5249
      %5251 = vmatmul.bf16.gmra.mxu0 %v4475
      %v5252 = vpop.f32.mrf.mxu0
      %v5253 = vadd.f32 %v5164, %v5252
      %v5254 = vpop.f32.mrf.mxu0
      %v5255 = vadd.f32 %v5166, %v5254
      %5256 = vmatmul.bf16.gmra.mxu0 %v4484
      %v5257 = vpop.f32.mrf.mxu0
      %v5258 = vadd.f32 %v5169, %v5257
      %v5259 = vpop.f32.mrf.mxu0
      %v5260 = vadd.f32 %v5171, %v5259
      %5261 = vmatmul.bf16.gmra.mxu0 %v4493
      %v5262 = vpop.f32.mrf.mxu0
      %v5263 = vadd.f32 %v5174, %v5262
      %v5264 = vpop.f32.mrf.mxu0
      %v5265 = vadd.f32 %v5176, %v5264
      %5266 = vmatmul.bf16.gmra.mxu0 %v4502
      %v5267 = vpop.f32.mrf.mxu0
      %v5268 = vadd.f32 %v5179, %v5267
      %v5269 = vpop.f32.mrf.mxu0
      %v5270 = vadd.f32 %v5181, %v5269
      %5271 = vmatmul.bf16.gmra.mxu0 %v4511
      %v5272 = vpop.f32.mrf.mxu0
      %v5273 = vadd.f32 %v5184, %v5272
      %v5274 = vpop.f32.mrf.mxu0
      %v5275 = vadd.f32 %v5186, %v5274
      %5276 = vmatmul.bf16.gmra.mxu0 %v4520
      %v5277 = vpop.f32.mrf.mxu0
      %v5278 = vadd.f32 %v5189, %v5277
      %v5279 = vpop.f32.mrf.mxu0
      %v5280 = vadd.f32 %v5191, %v5279
      %5281 = vdwg.mxu0
      %5282 = vmatpush.bf16.msra.mxu0 %v4983
      %5283 = vmatpush.bf16.msra.mxu0 %v4982
      %5284 = vmatpush.bf16.msra.mxu0 %v4981
      %5285 = vmatpush.bf16.msra.mxu0 %v4980
      %5286 = vmatpush.bf16.msra.mxu0 %v4979
      %5287 = vmatpush.bf16.msra.mxu0 %v4978
      %5288 = vmatpush.bf16.msra.mxu0 %v4977
      %5289 = vmatpush.bf16.msra.mxu0 %v4976
      %5290 = vmatmul.bf16.gmra.mxu0 %v4386
      %v5291 = vpop.f32.mrf.mxu0
      %v5292 = vadd.f32 %v5203, %v5291
      %v5293 = vpop.f32.mrf.mxu0
      %v5294 = vadd.f32 %v5205, %v5293
      %5295 = vmatmul.bf16.gmra.mxu0 %v4395
      %v5296 = vpop.f32.mrf.mxu0
      %v5297 = vadd.f32 %v5208, %v5296
      %v5298 = vpop.f32.mrf.mxu0
      %v5299 = vadd.f32 %v5210, %v5298
      %5300 = vmatmul.bf16.gmra.mxu0 %v4404
      %v5301 = vpop.f32.mrf.mxu0
      %v5302 = vadd.f32 %v5213, %v5301
      %v5303 = vpop.f32.mrf.mxu0
      %v5304 = vadd.f32 %v5215, %v5303
      %5305 = vmatmul.bf16.gmra.mxu0 %v4413
      %v5306 = vpop.f32.mrf.mxu0
      %v5307 = vadd.f32 %v5218, %v5306
      %v5308 = vpop.f32.mrf.mxu0
      %v5309 = vadd.f32 %v5220, %v5308
      %5310 = vmatmul.bf16.gmra.mxu0 %v4422
      %v5311 = vpop.f32.mrf.mxu0
      %v5312 = vadd.f32 %v5223, %v5311
      %v5313 = vpop.f32.mrf.mxu0
      %v5314 = vadd.f32 %v5225, %v5313
      %5315 = vmatmul.bf16.gmra.mxu0 %v4431
      %v5316 = vpop.f32.mrf.mxu0
      %v5317 = vadd.f32 %v5228, %v5316
      %v5318 = vpop.f32.mrf.mxu0
      %v5319 = vadd.f32 %v5230, %v5318
      %5320 = vmatmul.bf16.gmra.mxu0 %v4440
      %v5321 = vpop.f32.mrf.mxu0
      %v5322 = vadd.f32 %v5233, %v5321
      %v5323 = vpop.f32.mrf.mxu0
      %v5324 = vadd.f32 %v5235, %v5323
      %5325 = vmatmul.bf16.gmra.mxu0 %v4449
      %v5326 = vpop.f32.mrf.mxu0
      %v5327 = vadd.f32 %v5238, %v5326
      %v5328 = vpop.f32.mrf.mxu0
      %v5329 = vadd.f32 %v5240, %v5328
      %5330 = vmatmul.bf16.gmra.mxu0 %v4458
      %v5331 = vpop.f32.mrf.mxu0
      %v5332 = vadd.f32 %v5243, %v5331
      %v5333 = vpop.f32.mrf.mxu0
      %v5334 = vadd.f32 %v5245, %v5333
      %5335 = vmatmul.bf16.gmra.mxu0 %v4467
      %v5336 = vpop.f32.mrf.mxu0
      %v5337 = vadd.f32 %v5248, %v5336
      %v5338 = vpop.f32.mrf.mxu0
      %v5339 = vadd.f32 %v5250, %v5338
      %5340 = vmatmul.bf16.gmra.mxu0 %v4476
      %v5341 = vpop.f32.mrf.mxu0
      %v5342 = vadd.f32 %v5253, %v5341
      %v5343 = vpop.f32.mrf.mxu0
      %v5344 = vadd.f32 %v5255, %v5343
      %5345 = vmatmul.bf16.gmra.mxu0 %v4485
      %v5346 = vpop.f32.mrf.mxu0
      %v5347 = vadd.f32 %v5258, %v5346
      %v5348 = vpop.f32.mrf.mxu0
      %v5349 = vadd.f32 %v5260, %v5348
      %5350 = vmatmul.bf16.gmra.mxu0 %v4494
      %v5351 = vpop.f32.mrf.mxu0
      %v5352 = vadd.f32 %v5263, %v5351
      %v5353 = vpop.f32.mrf.mxu0
      %v5354 = vadd.f32 %v5265, %v5353
      %5355 = vmatmul.bf16.gmra.mxu0 %v4503
      %v5356 = vpop.f32.mrf.mxu0
      %v5357 = vadd.f32 %v5268, %v5356
      %v5358 = vpop.f32.mrf.mxu0
      %v5359 = vadd.f32 %v5270, %v5358
      %5360 = vmatmul.bf16.gmra.mxu0 %v4512
      %v5361 = vpop.f32.mrf.mxu0
      %v5362 = vadd.f32 %v5273, %v5361
      %v5363 = vpop.f32.mrf.mxu0
      %v5364 = vadd.f32 %v5275, %v5363
      %5365 = vmatmul.bf16.gmra.mxu0 %v4521
      %v5366 = vpop.f32.mrf.mxu0
      %v5367 = vadd.f32 %v5278, %v5366
      %v5368 = vpop.f32.mrf.mxu0
      %v5369 = vadd.f32 %v5280, %v5368
      %5370 = vdwg.mxu0
      %5371 = vmatpush.bf16.msra.mxu0 %v4991
      %5372 = vmatpush.bf16.msra.mxu0 %v4990
      %5373 = vmatpush.bf16.msra.mxu0 %v4989
      %5374 = vmatpush.bf16.msra.mxu0 %v4988
      %5375 = vmatpush.bf16.msra.mxu0 %v4987
      %5376 = vmatpush.bf16.msra.mxu0 %v4986
      %5377 = vmatpush.bf16.msra.mxu0 %v4985
      %5378 = vmatpush.bf16.msra.mxu0 %v4984
      %5379 = vmatmul.bf16.gmra.mxu0 %v4387
      %v5380 = vpop.f32.mrf.mxu0
      %v5381 = vadd.f32 %v5292, %v5380
      %v5382 = vpop.f32.mrf.mxu0
      %v5383 = vadd.f32 %v5294, %v5382
      %5384 = vmatmul.bf16.gmra.mxu0 %v4396
      %v5385 = vpop.f32.mrf.mxu0
      %v5386 = vadd.f32 %v5297, %v5385
      %v5387 = vpop.f32.mrf.mxu0
      %v5388 = vadd.f32 %v5299, %v5387
      %5389 = vmatmul.bf16.gmra.mxu0 %v4405
      %v5390 = vpop.f32.mrf.mxu0
      %v5391 = vadd.f32 %v5302, %v5390
      %v5392 = vpop.f32.mrf.mxu0
      %v5393 = vadd.f32 %v5304, %v5392
      %5394 = vmatmul.bf16.gmra.mxu0 %v4414
      %v5395 = vpop.f32.mrf.mxu0
      %v5396 = vadd.f32 %v5307, %v5395
      %v5397 = vpop.f32.mrf.mxu0
      %v5398 = vadd.f32 %v5309, %v5397
      %5399 = vmatmul.bf16.gmra.mxu0 %v4423
      %v5400 = vpop.f32.mrf.mxu0
      %v5401 = vadd.f32 %v5312, %v5400
      %v5402 = vpop.f32.mrf.mxu0
      %v5403 = vadd.f32 %v5314, %v5402
      %5404 = vmatmul.bf16.gmra.mxu0 %v4432
      %v5405 = vpop.f32.mrf.mxu0
      %v5406 = vadd.f32 %v5317, %v5405
      %v5407 = vpop.f32.mrf.mxu0
      %v5408 = vadd.f32 %v5319, %v5407
      %5409 = vmatmul.bf16.gmra.mxu0 %v4441
      %v5410 = vpop.f32.mrf.mxu0
      %v5411 = vadd.f32 %v5322, %v5410
      %v5412 = vpop.f32.mrf.mxu0
      %v5413 = vadd.f32 %v5324, %v5412
      %5414 = vmatmul.bf16.gmra.mxu0 %v4450
      %v5415 = vpop.f32.mrf.mxu0
      %v5416 = vadd.f32 %v5327, %v5415
      %v5417 = vpop.f32.mrf.mxu0
      %v5418 = vadd.f32 %v5329, %v5417
      %5419 = vmatmul.bf16.gmra.mxu0 %v4459
      %v5420 = vpop.f32.mrf.mxu0
      %v5421 = vadd.f32 %v5332, %v5420
      %v5422 = vpop.f32.mrf.mxu0
      %v5423 = vadd.f32 %v5334, %v5422
      %5424 = vmatmul.bf16.gmra.mxu0 %v4468
      %v5425 = vpop.f32.mrf.mxu0
      %v5426 = vadd.f32 %v5337, %v5425
      %v5427 = vpop.f32.mrf.mxu0
      %v5428 = vadd.f32 %v5339, %v5427
      %5429 = vmatmul.bf16.gmra.mxu0 %v4477
      %v5430 = vpop.f32.mrf.mxu0
      %v5431 = vadd.f32 %v5342, %v5430
      %v5432 = vpop.f32.mrf.mxu0
      %v5433 = vadd.f32 %v5344, %v5432
      %5434 = vmatmul.bf16.gmra.mxu0 %v4486
      %v5435 = vpop.f32.mrf.mxu0
      %v5436 = vadd.f32 %v5347, %v5435
      %v5437 = vpop.f32.mrf.mxu0
      %v5438 = vadd.f32 %v5349, %v5437
      %5439 = vmatmul.bf16.gmra.mxu0 %v4495
      %v5440 = vpop.f32.mrf.mxu0
      %v5441 = vadd.f32 %v5352, %v5440
      %v5442 = vpop.f32.mrf.mxu0
      %v5443 = vadd.f32 %v5354, %v5442
      %5444 = vmatmul.bf16.gmra.mxu0 %v4504
      %v5445 = vpop.f32.mrf.mxu0
      %v5446 = vadd.f32 %v5357, %v5445
      %v5447 = vpop.f32.mrf.mxu0
      %v5448 = vadd.f32 %v5359, %v5447
      %5449 = vmatmul.bf16.gmra.mxu0 %v4513
      %v5450 = vpop.f32.mrf.mxu0
      %v5451 = vadd.f32 %v5362, %v5450
      %v5452 = vpop.f32.mrf.mxu0
      %v5453 = vadd.f32 %v5364, %v5452
      %5454 = vmatmul.bf16.gmra.mxu0 %v4522
      %v5455 = vpop.f32.mrf.mxu0
      %v5456 = vadd.f32 %v5367, %v5455
      %v5457 = vpop.f32.mrf.mxu0
      %v5458 = vadd.f32 %v5369, %v5457
      %5459 = vdwg.mxu0
      %5460 = vmatpush.bf16.msra.mxu0 %v4999
      %5461 = vmatpush.bf16.msra.mxu0 %v4998
      %5462 = vmatpush.bf16.msra.mxu0 %v4997
      %5463 = vmatpush.bf16.msra.mxu0 %v4996
      %5464 = vmatpush.bf16.msra.mxu0 %v4995
      %5465 = vmatpush.bf16.msra.mxu0 %v4994
      %5466 = vmatpush.bf16.msra.mxu0 %v4993
      %5467 = vmatpush.bf16.msra.mxu0 %v4992
      %5468 = vmatmul.bf16.gmra.mxu0 %v4388
      %v5469 = vpop.f32.mrf.mxu0
      %v5470 = vadd.f32 %v5381, %v5469
      %v5471 = vpop.f32.mrf.mxu0
      %v5472 = vadd.f32 %v5383, %v5471
      %5473 = vmatmul.bf16.gmra.mxu0 %v4397
      %v5474 = vpop.f32.mrf.mxu0
      %v5475 = vadd.f32 %v5386, %v5474
      %v5476 = vpop.f32.mrf.mxu0
      %v5477 = vadd.f32 %v5388, %v5476
      %5478 = vmatmul.bf16.gmra.mxu0 %v4406
      %v5479 = vpop.f32.mrf.mxu0
      %v5480 = vadd.f32 %v5391, %v5479
      %v5481 = vpop.f32.mrf.mxu0
      %v5482 = vadd.f32 %v5393, %v5481
      %5483 = vmatmul.bf16.gmra.mxu0 %v4415
      %v5484 = vpop.f32.mrf.mxu0
      %v5485 = vadd.f32 %v5396, %v5484
      %v5486 = vpop.f32.mrf.mxu0
      %v5487 = vadd.f32 %v5398, %v5486
      %5488 = vmatmul.bf16.gmra.mxu0 %v4424
      %v5489 = vpop.f32.mrf.mxu0
      %v5490 = vadd.f32 %v5401, %v5489
      %v5491 = vpop.f32.mrf.mxu0
      %v5492 = vadd.f32 %v5403, %v5491
      %5493 = vmatmul.bf16.gmra.mxu0 %v4433
      %v5494 = vpop.f32.mrf.mxu0
      %v5495 = vadd.f32 %v5406, %v5494
      %v5496 = vpop.f32.mrf.mxu0
      %v5497 = vadd.f32 %v5408, %v5496
      %5498 = vmatmul.bf16.gmra.mxu0 %v4442
      %v5499 = vpop.f32.mrf.mxu0
      %v5500 = vadd.f32 %v5411, %v5499
      %v5501 = vpop.f32.mrf.mxu0
      %v5502 = vadd.f32 %v5413, %v5501
      %5503 = vmatmul.bf16.gmra.mxu0 %v4451
      %v5504 = vpop.f32.mrf.mxu0
      %v5505 = vadd.f32 %v5416, %v5504
      %v5506 = vpop.f32.mrf.mxu0
      %v5507 = vadd.f32 %v5418, %v5506
      %5508 = vmatmul.bf16.gmra.mxu0 %v4460
      %v5509 = vpop.f32.mrf.mxu0
      %v5510 = vadd.f32 %v5421, %v5509
      %v5511 = vpop.f32.mrf.mxu0
      %v5512 = vadd.f32 %v5423, %v5511
      %5513 = vmatmul.bf16.gmra.mxu0 %v4469
      %v5514 = vpop.f32.mrf.mxu0
      %v5515 = vadd.f32 %v5426, %v5514
      %v5516 = vpop.f32.mrf.mxu0
      %v5517 = vadd.f32 %v5428, %v5516
      %5518 = vmatmul.bf16.gmra.mxu0 %v4478
      %v5519 = vpop.f32.mrf.mxu0
      %v5520 = vadd.f32 %v5431, %v5519
      %v5521 = vpop.f32.mrf.mxu0
      %v5522 = vadd.f32 %v5433, %v5521
      %5523 = vmatmul.bf16.gmra.mxu0 %v4487
      %v5524 = vpop.f32.mrf.mxu0
      %v5525 = vadd.f32 %v5436, %v5524
      %v5526 = vpop.f32.mrf.mxu0
      %v5527 = vadd.f32 %v5438, %v5526
      %5528 = vmatmul.bf16.gmra.mxu0 %v4496
      %v5529 = vpop.f32.mrf.mxu0
      %v5530 = vadd.f32 %v5441, %v5529
      %v5531 = vpop.f32.mrf.mxu0
      %v5532 = vadd.f32 %v5443, %v5531
      %5533 = vmatmul.bf16.gmra.mxu0 %v4505
      %v5534 = vpop.f32.mrf.mxu0
      %v5535 = vadd.f32 %v5446, %v5534
      %v5536 = vpop.f32.mrf.mxu0
      %v5537 = vadd.f32 %v5448, %v5536
      %5538 = vmatmul.bf16.gmra.mxu0 %v4514
      %v5539 = vpop.f32.mrf.mxu0
      %v5540 = vadd.f32 %v5451, %v5539
      %v5541 = vpop.f32.mrf.mxu0
      %v5542 = vadd.f32 %v5453, %v5541
      %5543 = vmatmul.bf16.gmra.mxu0 %v4523
      %v5544 = vpop.f32.mrf.mxu0
      %v5545 = vadd.f32 %v5456, %v5544
      %v5546 = vpop.f32.mrf.mxu0
      %v5547 = vadd.f32 %v5458, %v5546
      %5548 = vdwg.mxu0
      %5549 = vmatpush.bf16.msra.mxu0 %v5007
      %5550 = vmatpush.bf16.msra.mxu0 %v5006
      %5551 = vmatpush.bf16.msra.mxu0 %v5005
      %5552 = vmatpush.bf16.msra.mxu0 %v5004
      %5553 = vmatpush.bf16.msra.mxu0 %v5003
      %5554 = vmatpush.bf16.msra.mxu0 %v5002
      %5555 = vmatpush.bf16.msra.mxu0 %v5001
      %5556 = vmatpush.bf16.msra.mxu0 %v5000
      %5557 = vmatmul.bf16.gmra.mxu0 %v4389
      %v5558 = vpop.f32.mrf.mxu0
      %v5559 = vadd.f32 %v5470, %v5558
      %v5560 = vpop.f32.mrf.mxu0
      %v5561 = vadd.f32 %v5472, %v5560
      %5562 = vmatmul.bf16.gmra.mxu0 %v4398
      %v5563 = vpop.f32.mrf.mxu0
      %v5564 = vadd.f32 %v5475, %v5563
      %v5565 = vpop.f32.mrf.mxu0
      %v5566 = vadd.f32 %v5477, %v5565
      %5567 = vmatmul.bf16.gmra.mxu0 %v4407
      %v5568 = vpop.f32.mrf.mxu0
      %v5569 = vadd.f32 %v5480, %v5568
      %v5570 = vpop.f32.mrf.mxu0
      %v5571 = vadd.f32 %v5482, %v5570
      %5572 = vmatmul.bf16.gmra.mxu0 %v4416
      %v5573 = vpop.f32.mrf.mxu0
      %v5574 = vadd.f32 %v5485, %v5573
      %v5575 = vpop.f32.mrf.mxu0
      %v5576 = vadd.f32 %v5487, %v5575
      %5577 = vmatmul.bf16.gmra.mxu0 %v4425
      %v5578 = vpop.f32.mrf.mxu0
      %v5579 = vadd.f32 %v5490, %v5578
      %v5580 = vpop.f32.mrf.mxu0
      %v5581 = vadd.f32 %v5492, %v5580
      %5582 = vmatmul.bf16.gmra.mxu0 %v4434
      %v5583 = vpop.f32.mrf.mxu0
      %v5584 = vadd.f32 %v5495, %v5583
      %v5585 = vpop.f32.mrf.mxu0
      %v5586 = vadd.f32 %v5497, %v5585
      %5587 = vmatmul.bf16.gmra.mxu0 %v4443
      %v5588 = vpop.f32.mrf.mxu0
      %v5589 = vadd.f32 %v5500, %v5588
      %v5590 = vpop.f32.mrf.mxu0
      %v5591 = vadd.f32 %v5502, %v5590
      %5592 = vmatmul.bf16.gmra.mxu0 %v4452
      %v5593 = vpop.f32.mrf.mxu0
      %v5594 = vadd.f32 %v5505, %v5593
      %v5595 = vpop.f32.mrf.mxu0
      %v5596 = vadd.f32 %v5507, %v5595
      %5597 = vmatmul.bf16.gmra.mxu0 %v4461
      %v5598 = vpop.f32.mrf.mxu0
      %v5599 = vadd.f32 %v5510, %v5598
      %v5600 = vpop.f32.mrf.mxu0
      %v5601 = vadd.f32 %v5512, %v5600
      %5602 = vmatmul.bf16.gmra.mxu0 %v4470
      %v5603 = vpop.f32.mrf.mxu0
      %v5604 = vadd.f32 %v5515, %v5603
      %v5605 = vpop.f32.mrf.mxu0
      %v5606 = vadd.f32 %v5517, %v5605
      %5607 = vmatmul.bf16.gmra.mxu0 %v4479
      %v5608 = vpop.f32.mrf.mxu0
      %v5609 = vadd.f32 %v5520, %v5608
      %v5610 = vpop.f32.mrf.mxu0
      %v5611 = vadd.f32 %v5522, %v5610
      %5612 = vmatmul.bf16.gmra.mxu0 %v4488
      %v5613 = vpop.f32.mrf.mxu0
      %v5614 = vadd.f32 %v5525, %v5613
      %v5615 = vpop.f32.mrf.mxu0
      %v5616 = vadd.f32 %v5527, %v5615
      %5617 = vmatmul.bf16.gmra.mxu0 %v4497
      %v5618 = vpop.f32.mrf.mxu0
      %v5619 = vadd.f32 %v5530, %v5618
      %v5620 = vpop.f32.mrf.mxu0
      %v5621 = vadd.f32 %v5532, %v5620
      %5622 = vmatmul.bf16.gmra.mxu0 %v4506
      %v5623 = vpop.f32.mrf.mxu0
      %v5624 = vadd.f32 %v5535, %v5623
      %v5625 = vpop.f32.mrf.mxu0
      %v5626 = vadd.f32 %v5537, %v5625
      %5627 = vmatmul.bf16.gmra.mxu0 %v4515
      %v5628 = vpop.f32.mrf.mxu0
      %v5629 = vadd.f32 %v5540, %v5628
      %v5630 = vpop.f32.mrf.mxu0
      %v5631 = vadd.f32 %v5542, %v5630
      %5632 = vmatmul.bf16.gmra.mxu0 %v4524
      %v5633 = vpop.f32.mrf.mxu0
      %v5634 = vadd.f32 %v5545, %v5633
      %v5635 = vpop.f32.mrf.mxu0
      %v5636 = vadd.f32 %v5547, %v5635
      %5637 = vdwg.mxu0
      %5638 = vmatpush.bf16.msra.mxu0 %v5015
      %5639 = vmatpush.bf16.msra.mxu0 %v5014
      %5640 = vmatpush.bf16.msra.mxu0 %v5013
      %5641 = vmatpush.bf16.msra.mxu0 %v5012
      %5642 = vmatpush.bf16.msra.mxu0 %v5011
      %5643 = vmatpush.bf16.msra.mxu0 %v5010
      %5644 = vmatpush.bf16.msra.mxu0 %v5009
      %5645 = vmatpush.bf16.msra.mxu0 %v5008
      %5646 = vmatmul.bf16.gmra.mxu0 %v4390
      %v5647 = vpop.f32.mrf.mxu0
      %v5648 = vadd.f32 %v5559, %v5647
      %v5649 = vpop.f32.mrf.mxu0
      %v5650 = vadd.f32 %v5561, %v5649
      %5651 = vmatmul.bf16.gmra.mxu0 %v4399
      %v5652 = vpop.f32.mrf.mxu0
      %v5653 = vadd.f32 %v5564, %v5652
      %v5654 = vpop.f32.mrf.mxu0
      %v5655 = vadd.f32 %v5566, %v5654
      %5656 = vmatmul.bf16.gmra.mxu0 %v4408
      %v5657 = vpop.f32.mrf.mxu0
      %v5658 = vadd.f32 %v5569, %v5657
      %v5659 = vpop.f32.mrf.mxu0
      %v5660 = vadd.f32 %v5571, %v5659
      %5661 = vmatmul.bf16.gmra.mxu0 %v4417
      %v5662 = vpop.f32.mrf.mxu0
      %v5663 = vadd.f32 %v5574, %v5662
      %v5664 = vpop.f32.mrf.mxu0
      %v5665 = vadd.f32 %v5576, %v5664
      %5666 = vmatmul.bf16.gmra.mxu0 %v4426
      %v5667 = vpop.f32.mrf.mxu0
      %v5668 = vadd.f32 %v5579, %v5667
      %v5669 = vpop.f32.mrf.mxu0
      %v5670 = vadd.f32 %v5581, %v5669
      %5671 = vmatmul.bf16.gmra.mxu0 %v4435
      %v5672 = vpop.f32.mrf.mxu0
      %v5673 = vadd.f32 %v5584, %v5672
      %v5674 = vpop.f32.mrf.mxu0
      %v5675 = vadd.f32 %v5586, %v5674
      %5676 = vmatmul.bf16.gmra.mxu0 %v4444
      %v5677 = vpop.f32.mrf.mxu0
      %v5678 = vadd.f32 %v5589, %v5677
      %v5679 = vpop.f32.mrf.mxu0
      %v5680 = vadd.f32 %v5591, %v5679
      %5681 = vmatmul.bf16.gmra.mxu0 %v4453
      %v5682 = vpop.f32.mrf.mxu0
      %v5683 = vadd.f32 %v5594, %v5682
      %v5684 = vpop.f32.mrf.mxu0
      %v5685 = vadd.f32 %v5596, %v5684
      %5686 = vmatmul.bf16.gmra.mxu0 %v4462
      %v5687 = vpop.f32.mrf.mxu0
      %v5688 = vadd.f32 %v5599, %v5687
      %v5689 = vpop.f32.mrf.mxu0
      %v5690 = vadd.f32 %v5601, %v5689
      %5691 = vmatmul.bf16.gmra.mxu0 %v4471
      %v5692 = vpop.f32.mrf.mxu0
      %v5693 = vadd.f32 %v5604, %v5692
      %v5694 = vpop.f32.mrf.mxu0
      %v5695 = vadd.f32 %v5606, %v5694
      %5696 = vmatmul.bf16.gmra.mxu0 %v4480
      %v5697 = vpop.f32.mrf.mxu0
      %v5698 = vadd.f32 %v5609, %v5697
      %v5699 = vpop.f32.mrf.mxu0
      %v5700 = vadd.f32 %v5611, %v5699
      %5701 = vmatmul.bf16.gmra.mxu0 %v4489
      %v5702 = vpop.f32.mrf.mxu0
      %v5703 = vadd.f32 %v5614, %v5702
      %v5704 = vpop.f32.mrf.mxu0
      %v5705 = vadd.f32 %v5616, %v5704
      %5706 = vmatmul.bf16.gmra.mxu0 %v4498
      %v5707 = vpop.f32.mrf.mxu0
      %v5708 = vadd.f32 %v5619, %v5707
      %v5709 = vpop.f32.mrf.mxu0
      %v5710 = vadd.f32 %v5621, %v5709
      %5711 = vmatmul.bf16.gmra.mxu0 %v4507
      %v5712 = vpop.f32.mrf.mxu0
      %v5713 = vadd.f32 %v5624, %v5712
      %v5714 = vpop.f32.mrf.mxu0
      %v5715 = vadd.f32 %v5626, %v5714
      %5716 = vmatmul.bf16.gmra.mxu0 %v4516
      %v5717 = vpop.f32.mrf.mxu0
      %v5718 = vadd.f32 %v5629, %v5717
      %v5719 = vpop.f32.mrf.mxu0
      %v5720 = vadd.f32 %v5631, %v5719
      %5721 = vmatmul.bf16.gmra.mxu0 %v4525
      %v5722 = vpop.f32.mrf.mxu0
      %v5723 = vadd.f32 %v5634, %v5722
      %v5724 = vpop.f32.mrf.mxu0
      %v5725 = vadd.f32 %v5636, %v5724
      %5726 = vdwg.mxu0
      %5727 = vmatpush.bf16.msra.mxu0 %v5023
      %5728 = vmatpush.bf16.msra.mxu0 %v5022
      %5729 = vmatpush.bf16.msra.mxu0 %v5021
      %5730 = vmatpush.bf16.msra.mxu0 %v5020
      %5731 = vmatpush.bf16.msra.mxu0 %v5019
      %5732 = vmatpush.bf16.msra.mxu0 %v5018
      %5733 = vmatpush.bf16.msra.mxu0 %v5017
      %5734 = vmatpush.bf16.msra.mxu0 %v5016
      %5735 = vmatmul.bf16.gmra.mxu0 %v4391
      %v5736 = vpop.f32.mrf.mxu0
      %v5737 = vadd.f32 %v5648, %v5736
      %v5738 = vpop.f32.mrf.mxu0
      %v5739 = vadd.f32 %v5650, %v5738
      %5740 = vmatmul.bf16.gmra.mxu0 %v4400
      %v5741 = vpop.f32.mrf.mxu0
      %v5742 = vadd.f32 %v5653, %v5741
      %v5743 = vpop.f32.mrf.mxu0
      %v5744 = vadd.f32 %v5655, %v5743
      %5745 = vmatmul.bf16.gmra.mxu0 %v4409
      %v5746 = vpop.f32.mrf.mxu0
      %v5747 = vadd.f32 %v5658, %v5746
      %v5748 = vpop.f32.mrf.mxu0
      %v5749 = vadd.f32 %v5660, %v5748
      %5750 = vmatmul.bf16.gmra.mxu0 %v4418
      %v5751 = vpop.f32.mrf.mxu0
      %v5752 = vadd.f32 %v5663, %v5751
      %v5753 = vpop.f32.mrf.mxu0
      %v5754 = vadd.f32 %v5665, %v5753
      %5755 = vmatmul.bf16.gmra.mxu0 %v4427
      %v5756 = vpop.f32.mrf.mxu0
      %v5757 = vadd.f32 %v5668, %v5756
      %v5758 = vpop.f32.mrf.mxu0
      %v5759 = vadd.f32 %v5670, %v5758
      %5760 = vmatmul.bf16.gmra.mxu0 %v4436
      %v5761 = vpop.f32.mrf.mxu0
      %v5762 = vadd.f32 %v5673, %v5761
      %v5763 = vpop.f32.mrf.mxu0
      %v5764 = vadd.f32 %v5675, %v5763
      %5765 = vmatmul.bf16.gmra.mxu0 %v4445
      %v5766 = vpop.f32.mrf.mxu0
      %v5767 = vadd.f32 %v5678, %v5766
      %v5768 = vpop.f32.mrf.mxu0
      %v5769 = vadd.f32 %v5680, %v5768
      %5770 = vmatmul.bf16.gmra.mxu0 %v4454
      %v5771 = vpop.f32.mrf.mxu0
      %v5772 = vadd.f32 %v5683, %v5771
      %v5773 = vpop.f32.mrf.mxu0
      %v5774 = vadd.f32 %v5685, %v5773
      %5775 = vmatmul.bf16.gmra.mxu0 %v4463
      %v5776 = vpop.f32.mrf.mxu0
      %v5777 = vadd.f32 %v5688, %v5776
      %v5778 = vpop.f32.mrf.mxu0
      %v5779 = vadd.f32 %v5690, %v5778
      %5780 = vmatmul.bf16.gmra.mxu0 %v4472
      %v5781 = vpop.f32.mrf.mxu0
      %v5782 = vadd.f32 %v5693, %v5781
      %v5783 = vpop.f32.mrf.mxu0
      %v5784 = vadd.f32 %v5695, %v5783
      %5785 = vmatmul.bf16.gmra.mxu0 %v4481
      %v5786 = vpop.f32.mrf.mxu0
      %v5787 = vadd.f32 %v5698, %v5786
      %v5788 = vpop.f32.mrf.mxu0
      %v5789 = vadd.f32 %v5700, %v5788
      %5790 = vmatmul.bf16.gmra.mxu0 %v4490
      %v5791 = vpop.f32.mrf.mxu0
      %v5792 = vadd.f32 %v5703, %v5791
      %v5793 = vpop.f32.mrf.mxu0
      %v5794 = vadd.f32 %v5705, %v5793
      %5795 = vmatmul.bf16.gmra.mxu0 %v4499
      %v5796 = vpop.f32.mrf.mxu0
      %v5797 = vadd.f32 %v5708, %v5796
      %v5798 = vpop.f32.mrf.mxu0
      %v5799 = vadd.f32 %v5710, %v5798
      %5800 = vmatmul.bf16.gmra.mxu0 %v4508
      %v5801 = vpop.f32.mrf.mxu0
      %v5802 = vadd.f32 %v5713, %v5801
      %v5803 = vpop.f32.mrf.mxu0
      %v5804 = vadd.f32 %v5715, %v5803
      %5805 = vmatmul.bf16.gmra.mxu0 %v4517
      %v5806 = vpop.f32.mrf.mxu0
      %v5807 = vadd.f32 %v5718, %v5806
      %v5808 = vpop.f32.mrf.mxu0
      %v5809 = vadd.f32 %v5720, %v5808
      %5810 = vmatmul.bf16.gmra.mxu0 %v4526
      %v5811 = vpop.f32.mrf.mxu0
      %v5812 = vadd.f32 %v5723, %v5811
      %v5813 = vpop.f32.mrf.mxu0
      %v5814 = vadd.f32 %v5725, %v5813
      %5815 = vdwg.mxu0
      %5816 = vmatpush.bf16.msra.mxu0 %v5031
      %5817 = vmatpush.bf16.msra.mxu0 %v5030
      %5818 = vmatpush.bf16.msra.mxu0 %v5029
      %5819 = vmatpush.bf16.msra.mxu0 %v5028
      %5820 = vmatpush.bf16.msra.mxu0 %v5027
      %5821 = vmatpush.bf16.msra.mxu0 %v5026
      %5822 = vmatpush.bf16.msra.mxu0 %v5025
      %5823 = vmatpush.bf16.msra.mxu0 %v5024
      %5824 = vmatmul.bf16.gmra.mxu0 %v4392
      %v5825 = vpop.f32.mrf.mxu0
      %v5826 = vadd.f32 %v5737, %v5825
      %v5827 = vpop.f32.mrf.mxu0
      %v5828 = vadd.f32 %v5739, %v5827
      %5829 = vmatmul.bf16.gmra.mxu0 %v4401
      %v5830 = vpop.f32.mrf.mxu0
      %v5831 = vadd.f32 %v5742, %v5830
      %v5832 = vpop.f32.mrf.mxu0
      %v5833 = vadd.f32 %v5744, %v5832
      %5834 = vmatmul.bf16.gmra.mxu0 %v4410
      %v5835 = vpop.f32.mrf.mxu0
      %v5836 = vadd.f32 %v5747, %v5835
      %v5837 = vpop.f32.mrf.mxu0
      %v5838 = vadd.f32 %v5749, %v5837
      %5839 = vmatmul.bf16.gmra.mxu0 %v4419
      %v5840 = vpop.f32.mrf.mxu0
      %v5841 = vadd.f32 %v5752, %v5840
      %v5842 = vpop.f32.mrf.mxu0
      %v5843 = vadd.f32 %v5754, %v5842
      %5844 = vmatmul.bf16.gmra.mxu0 %v4428
      %v5845 = vpop.f32.mrf.mxu0
      %v5846 = vadd.f32 %v5757, %v5845
      %v5847 = vpop.f32.mrf.mxu0
      %v5848 = vadd.f32 %v5759, %v5847
      %5849 = vmatmul.bf16.gmra.mxu0 %v4437
      %v5850 = vpop.f32.mrf.mxu0
      %v5851 = vadd.f32 %v5762, %v5850
      %v5852 = vpop.f32.mrf.mxu0
      %v5853 = vadd.f32 %v5764, %v5852
      %5854 = vmatmul.bf16.gmra.mxu0 %v4446
      %v5855 = vpop.f32.mrf.mxu0
      %v5856 = vadd.f32 %v5767, %v5855
      %v5857 = vpop.f32.mrf.mxu0
      %v5858 = vadd.f32 %v5769, %v5857
      %5859 = vmatmul.bf16.gmra.mxu0 %v4455
      %v5860 = vpop.f32.mrf.mxu0
      %v5861 = vadd.f32 %v5772, %v5860
      %v5862 = vpop.f32.mrf.mxu0
      %v5863 = vadd.f32 %v5774, %v5862
      %5864 = vmatmul.bf16.gmra.mxu0 %v4464
      %v5865 = vpop.f32.mrf.mxu0
      %v5866 = vadd.f32 %v5777, %v5865
      %v5867 = vpop.f32.mrf.mxu0
      %v5868 = vadd.f32 %v5779, %v5867
      %5869 = vmatmul.bf16.gmra.mxu0 %v4473
      %v5870 = vpop.f32.mrf.mxu0
      %v5871 = vadd.f32 %v5782, %v5870
      %v5872 = vpop.f32.mrf.mxu0
      %v5873 = vadd.f32 %v5784, %v5872
      %5874 = vmatmul.bf16.gmra.mxu0 %v4482
      %v5875 = vpop.f32.mrf.mxu0
      %v5876 = vadd.f32 %v5787, %v5875
      %v5877 = vpop.f32.mrf.mxu0
      %v5878 = vadd.f32 %v5789, %v5877
      %5879 = vmatmul.bf16.gmra.mxu0 %v4491
      %v5880 = vpop.f32.mrf.mxu0
      %v5881 = vadd.f32 %v5792, %v5880
      %v5882 = vpop.f32.mrf.mxu0
      %v5883 = vadd.f32 %v5794, %v5882
      %5884 = vmatmul.bf16.gmra.mxu0 %v4500
      %v5885 = vpop.f32.mrf.mxu0
      %v5886 = vadd.f32 %v5797, %v5885
      %v5887 = vpop.f32.mrf.mxu0
      %v5888 = vadd.f32 %v5799, %v5887
      %5889 = vmatmul.bf16.gmra.mxu0 %v4509
      %v5890 = vpop.f32.mrf.mxu0
      %v5891 = vadd.f32 %v5802, %v5890
      %v5892 = vpop.f32.mrf.mxu0
      %v5893 = vadd.f32 %v5804, %v5892
      %5894 = vmatmul.bf16.gmra.mxu0 %v4518
      %v5895 = vpop.f32.mrf.mxu0
      %v5896 = vadd.f32 %v5807, %v5895
      %v5897 = vpop.f32.mrf.mxu0
      %v5898 = vadd.f32 %v5809, %v5897
      %5899 = vmatmul.bf16.gmra.mxu0 %v4527
      %v5900 = vpop.f32.mrf.mxu0
      %v5901 = vadd.f32 %v5812, %v5900
      %v5902 = vpop.f32.mrf.mxu0
      %v5903 = vadd.f32 %v5814, %v5902
      %5904 = vdwg.mxu0
      %v5905 = vld [vmem:[%s5] sm:$0x1]
      %v5907 = vperm.slane %v5905, 0
      %v5909 = vmul.f32 %v5826, %v5907
      %v5910 = vmul.f32 %v5828, %v5907
      %v5911 = vmul.f32 %v5831, %v5907
      %v5912 = vmul.f32 %v5833, %v5907
      %v5913 = vmul.f32 %v5836, %v5907
      %v5914 = vmul.f32 %v5838, %v5907
      %v5915 = vmul.f32 %v5841, %v5907
      %v5916 = vmul.f32 %v5843, %v5907
      %v5917 = vmul.f32 %v5846, %v5907
      %v5918 = vmul.f32 %v5848, %v5907
      %v5919 = vmul.f32 %v5851, %v5907
      %v5920 = vmul.f32 %v5853, %v5907
      %v5921 = vmul.f32 %v5856, %v5907
      %v5922 = vmul.f32 %v5858, %v5907
      %v5923 = vmul.f32 %v5861, %v5907
      %v5924 = vmul.f32 %v5863, %v5907
      %v5925 = vmul.f32 %v5866, %v5907
      %v5926 = vmul.f32 %v5868, %v5907
      %v5927 = vmul.f32 %v5871, %v5907
      %v5928 = vmul.f32 %v5873, %v5907
      %v5929 = vmul.f32 %v5876, %v5907
      %v5930 = vmul.f32 %v5878, %v5907
      %v5931 = vmul.f32 %v5881, %v5907
      %v5932 = vmul.f32 %v5883, %v5907
      %v5933 = vmul.f32 %v5886, %v5907
      %v5934 = vmul.f32 %v5888, %v5907
      %v5935 = vmul.f32 %v5891, %v5907
      %v5936 = vmul.f32 %v5893, %v5907
      %v5937 = vmul.f32 %v5896, %v5907
      %v5938 = vmul.f32 %v5898, %v5907
      %v5939 = vmul.f32 %v5901, %v5907
      %v5940 = vmul.f32 %v5903, %v5907
      %v5941 = vld [vmem:[%s6] sm:$0x1]
      %v5943 = vperm.slane %v5941, 0
      %v5945 = vadd.f32 %v5909, %v5943
      %v5946 = vadd.f32 %v5910, %v5943
      %v5947 = vadd.f32 %v5911, %v5943
      %v5948 = vadd.f32 %v5912, %v5943
      %v5949 = vadd.f32 %v5913, %v5943
      %v5950 = vadd.f32 %v5914, %v5943
      %v5951 = vadd.f32 %v5915, %v5943
      %v5952 = vadd.f32 %v5916, %v5943
      %v5953 = vadd.f32 %v5917, %v5943
      %v5954 = vadd.f32 %v5918, %v5943
      %v5955 = vadd.f32 %v5919, %v5943
      %v5956 = vadd.f32 %v5920, %v5943
      %v5957 = vadd.f32 %v5921, %v5943
      %v5958 = vadd.f32 %v5922, %v5943
      %v5959 = vadd.f32 %v5923, %v5943
      %v5960 = vadd.f32 %v5924, %v5943
      %v5961 = vadd.f32 %v5925, %v5943
      %v5962 = vadd.f32 %v5926, %v5943
      %v5963 = vadd.f32 %v5927, %v5943
      %v5964 = vadd.f32 %v5928, %v5943
      %v5965 = vadd.f32 %v5929, %v5943
      %v5966 = vadd.f32 %v5930, %v5943
      %v5967 = vadd.f32 %v5931, %v5943
      %v5968 = vadd.f32 %v5932, %v5943
      %v5969 = vadd.f32 %v5933, %v5943
      %v5970 = vadd.f32 %v5934, %v5943
      %v5971 = vadd.f32 %v5935, %v5943
      %v5972 = vadd.f32 %v5936, %v5943
      %v5973 = vadd.f32 %v5937, %v5943
      %v5974 = vadd.f32 %v5938, %v5943
      %v5975 = vadd.f32 %v5939, %v5943
      %v5976 = vadd.f32 %v5940, %v5943
      %v5977 = vmax.f32 %v5945, 0.0
      %v5978 = vmax.f32 %v5946, 0.0
      %v5979 = vmax.f32 %v5947, 0.0
      %v5980 = vmax.f32 %v5948, 0.0
      %v5981 = vmax.f32 %v5949, 0.0
      %v5982 = vmax.f32 %v5950, 0.0
      %v5983 = vmax.f32 %v5951, 0.0
      %v5984 = vmax.f32 %v5952, 0.0
      %v5985 = vmax.f32 %v5953, 0.0
      %v5986 = vmax.f32 %v5954, 0.0
      %v5987 = vmax.f32 %v5955, 0.0
      %v5988 = vmax.f32 %v5956, 0.0
      %v5989 = vmax.f32 %v5957, 0.0
      %v5990 = vmax.f32 %v5958, 0.0
      %v5991 = vmax.f32 %v5959, 0.0
      %v5992 = vmax.f32 %v5960, 0.0
      %v5993 = vmax.f32 %v5961, 0.0
      %v5994 = vmax.f32 %v5962, 0.0
      %v5995 = vmax.f32 %v5963, 0.0
      %v5996 = vmax.f32 %v5964, 0.0
      %v5997 = vmax.f32 %v5965, 0.0
      %v5998 = vmax.f32 %v5966, 0.0
      %v5999 = vmax.f32 %v5967, 0.0
      %v6000 = vmax.f32 %v5968, 0.0
      %v6001 = vmax.f32 %v5969, 0.0
      %v6002 = vmax.f32 %v5970, 0.0
      %v6003 = vmax.f32 %v5971, 0.0
      %v6004 = vmax.f32 %v5972, 0.0
      %v6005 = vmax.f32 %v5973, 0.0
      %v6006 = vmax.f32 %v5974, 0.0
      %v6007 = vmax.f32 %v5975, 0.0
      %v6008 = vmax.f32 %v5976, 0.0
      %6009 = vst.msk [vmem:[%s278] sm:$0xff] %vm353, %v5977
      %6010 = vst.msk [vmem:[%s278 + $0x8] sm:$0xff] %vm353, %v5978
      %6011 = vst.msk [vmem:[%s278 + $0x10] sm:$0xff] %vm353, %v5979
      %6012 = vst.msk [vmem:[%s278 + $0x18] sm:$0xff] %vm353, %v5980
      %6013 = vst.msk [vmem:[%s278 + $0x20] sm:$0xff] %vm353, %v5981
      %6014 = vst.msk [vmem:[%s278 + $0x28] sm:$0xff] %vm353, %v5982
      %6015 = vst.msk [vmem:[%s278 + $0x30] sm:$0xff] %vm353, %v5983
      %6016 = vst.msk [vmem:[%s278 + $0x38] sm:$0xff] %vm353, %v5984
      %6017 = vst.msk [vmem:[%s278 + $0x40] sm:$0xff] %vm353, %v5985
      %6018 = vst.msk [vmem:[%s278 + $0x48] sm:$0xff] %vm353, %v5986
      %6019 = vst.msk [vmem:[%s278 + $0x50] sm:$0xff] %vm353, %v5987
      %6020 = vst.msk [vmem:[%s278 + $0x58] sm:$0xff] %vm353, %v5988
      %6021 = vst.msk [vmem:[%s278 + $0x60] sm:$0xff] %vm353, %v5989
      %6022 = vst.msk [vmem:[%s278 + $0x68] sm:$0xff] %vm353, %v5990
      %6023 = vst.msk [vmem:[%s278 + $0x70] sm:$0xff] %vm353, %v5991
      %6024 = vst.msk [vmem:[%s278 + $0x78] sm:$0xff] %vm353, %v5992
      %6025 = vst.msk [vmem:[%s278 + $0x80] sm:$0xff] %vm353, %v5993
      %6026 = vst.msk [vmem:[%s278 + $0x88] sm:$0xff] %vm353, %v5994
      %6027 = vst.msk [vmem:[%s278 + $0x90] sm:$0xff] %vm353, %v5995
      %6028 = vst.msk [vmem:[%s278 + $0x98] sm:$0xff] %vm353, %v5996
      %6029 = vst.msk [vmem:[%s278 + $0xa0] sm:$0xff] %vm353, %v5997
      %6030 = vst.msk [vmem:[%s278 + $0xa8] sm:$0xff] %vm353, %v5998
      %6031 = vst.msk [vmem:[%s278 + $0xb0] sm:$0xff] %vm353, %v5999
      %6032 = vst.msk [vmem:[%s278 + $0xb8] sm:$0xff] %vm353, %v6000
      %6033 = vst.msk [vmem:[%s278 + $0xc0] sm:$0xff] %vm353, %v6001
      %6034 = vst.msk [vmem:[%s278 + $0xc8] sm:$0xff] %vm353, %v6002
      %6035 = vst.msk [vmem:[%s278 + $0xd0] sm:$0xff] %vm353, %v6003
      %6036 = vst.msk [vmem:[%s278 + $0xd8] sm:$0xff] %vm353, %v6004
      %6037 = vst.msk [vmem:[%s278 + $0xe0] sm:$0xff] %vm353, %v6005
      %6038 = vst.msk [vmem:[%s278 + $0xe8] sm:$0xff] %vm353, %v6006
      %6039 = vst.msk [vmem:[%s278 + $0xf0] sm:$0xff] %vm353, %v6007
      %6040 = vst.msk [vmem:[%s278 + $0xf8] sm:$0xff] %vm353, %v6008
      %p6041 = scmp.lt.s32.totalorder %s18, 1
      %s6042 = scalar_select %p6041, %s18, 1
      %s6043 = smul.addr %s6042, 32
      %s6044 = smul.addr %s6043, 8
      %s6045 = scalar_lea.vmem %s7, %s6044
      // Predicated region
      $region49: #{unet_encoder_forward.2} parent=47 // pred_check
        %p6046 = pneg %p188
      $region50: #{unet_encoder_forward.2} parent=47 // pred_check_branch
        %6048 = sbr.rel (%p6046) target = $region52
      $region51: #{unet_encoder_forward.2} parent=47 // pred_region
        _
      $region52: #{unet_encoder_forward.2} parent=47 // pred_fallthru
        _
    $region48: #{unet_encoder_forward.2} parent=5 // pred_fallthru
      _
    %p6049 = scmp.le.s32.totalorder 2, %s13
    // Predicated region
    $region53: #{unet_encoder_forward.2} parent=5 // pred_check
      %p6050 = pneg %p6049
    $region54: #{unet_encoder_forward.2} parent=5 // pred_check_branch
      %6052 = sbr.rel (%p6050) target = $region56
    $region55: #{unet_encoder_forward.2} parent=5 // pred_region
      %s6053 = ssub.s32 %s13, 2
      // Predicated region
      $region57: #{unet_encoder_forward.2} parent=55 // pred_check
        %p6054 = pneg %p194
      $region58: #{unet_encoder_forward.2} parent=55 // pred_check_branch
        %6056 = sbr.rel (%p6054) target = $region60
      $region59: #{unet_encoder_forward.2} parent=55 // pred_region
        %p6057 = scmp.lt.s32.totalorder %s19, 1
        %s6058 = scalar_select %p6057, %s19, 1
        %s6059 = smul.addr %s6058, 32
        %s6060 = smul.addr %s6059, 8
        %s6061 = scalar_lea.vmem %s7, %s6060
      $region60: #{unet_encoder_forward.2} parent=55 // pred_fallthru
        _
    $region56: #{unet_encoder_forward.2} parent=5 // pred_fallthru
      _
  $region6: #{unet_encoder_forward.2} parent=0 // loop_footer
    %s17 = sadd.s32 1, %s13
  $region7: #{unet_encoder_forward.2} parent=0 // loop_footer_branch
    %12 = sbr.rel target = $region3
  $region8: #{unet_encoder_forward.2} parent=0 // loop_exit
    _

</llo_original>
